<compile_context>
chip_gen: v7x
topology: tpu7x:2x2x1
jax: 0.10.0
libtpu: 0.0.40
codegen_flags: <defaults>
</compile_context>

<pallas_src>
import numpy as np
import jax
import jax.numpy as jnp
from jax.experimental import pallas as pl
from jax.experimental.pallas import tpu as pltpu


C1 = 8                 # conv_1 output channels (the `in_channels` given to Net_1)
C2 = 20                # conv_2 output channels (fixed by the module)
BT = 8                 # samples per grid step (batch block)
WS = 224               # wide per-sample grid: 14 rows x 16 cols (cols 14,15 of each row are pad)
NB = BT * WS           # columns per block = 1792 (multiple of 128)
LN_N = float(C1 * 14 * 14)


# ----------------------------- fused Pallas kernel -----------------------------

def _net1_kernel(x1_ref, w1_ref, b1_ref, g_ref, bt_ref, sln_ref, st_ref,
                 w2_ref, b2_ref, smat_ref, fcr_ref, bfc_ref, o_ref):
    # ---- conv_1 (5x5, stride 2, pad 2): ONE MXU dot over the K=36 im2col operand ----
    a1 = jnp.dot(w1_ref[...], x1_ref[...],
                 preferred_element_type=jnp.float32) + b1_ref[...]               # [C1, NB]

    # ---- LayerNorm([C1,14,14]) per sample + ReLU (folded scale/shift) ----
    # masked per-sample sums via tiny MXU dots against the 0/1 segment selector
    s1 = jnp.sum(jnp.dot(a1, sln_ref[...], preferred_element_type=jnp.float32),
                 axis=0, keepdims=True)                                           # [1, BT]
    s2 = jnp.sum(jnp.dot(a1 * a1, sln_ref[...], preferred_element_type=jnp.float32),
                 axis=0, keepdims=True)                                           # [1, BT]
    mean = s1 * (1.0 / LN_N)
    var = jnp.maximum(s2 * (1.0 / LN_N) - mean * mean, 0.0)
    inv = jax.lax.rsqrt(var + 1e-5)
    stats = jnp.concatenate([inv, mean * inv], axis=0)                            # [2, BT]
    cols = jnp.dot(stats, st_ref[...], preferred_element_type=jnp.float32)        # [2, NB]
    a1r = jnp.maximum((a1 * cols[0:1, :] - cols[1:2, :]) * g_ref[...] + bt_ref[...],
                      0.0)                                                        # [C1, NB]

    # ---- conv_2 (5x5, stride 1): im2col on K -> ONE bf16 dot [C2,200] x [200,NB] ----
    a1b = a1r.astype(jnp.bfloat16)
    a1p = jnp.concatenate([a1b, jnp.zeros((C1, 68), jnp.bfloat16)], axis=1)       # [C1, NB+68]
    p2 = jnp.concatenate(
        [a1p[:, kh * 16 + kw: kh * 16 + kw + NB] for kh in range(5) for kw in range(5)],
        axis=0)                                                                   # [25*C1, NB]
    a2 = jnp.maximum(jnp.dot(w2_ref[...], p2, preferred_element_type=jnp.float32)
                     + b2_ref[...], 0.0)                                          # [C2, NB]

    # ---- 2x2 MaxPool as two shift-max steps on the wide grid ----
    r1 = jnp.concatenate([a2[:, 1:], a2[:, :1]], axis=1)
    cmax = jnp.maximum(a2, r1)
    r16 = jnp.concatenate([cmax[:, 16:], cmax[:, :16]], axis=1)
    pooled = jnp.maximum(cmax, r16)                                               # [C2, NB]
    # pooled value for output (i,j) of sample b sits at column b*224 + 32*i + 2*j.

    # ---- fc_1: compact 25 valid pooled columns/sample (selection dot), one fc dot ----
    g2 = jnp.dot(pooled.astype(jnp.bfloat16), smat_ref[...],
                 preferred_element_type=jnp.float32)                              # [C2, 25*BT]
    gr = jnp.concatenate([g2[:, p * BT:(p + 1) * BT] for p in range(25)], axis=0) # [500, BT]
    logits_t = jnp.dot(fcr_ref[...], gr, preferred_element_type=jnp.float32)      # [10, BT]
    o_ref[0] = logits_t + bfc_ref[...]                                            # [10, BT]


# ----------------------------- wrapper -----------------------------

def _build_conv1_operand(x, Bp):
    """[B,1,28,28] -> stacked stride-2 im2col operand [36, Bp*224] (f32)."""
    B = x.shape[0]
    x = x.astype(jnp.float32)
    if B < Bp:
        x = jnp.pad(x, ((0, Bp - B), (0, 0), (0, 0), (0, 0)))
    xp = jnp.pad(x[:, 0], ((0, 0), (2, 2), (2, 2)))                   # [Bp, 32, 32]
    # ph[b, p, q, r, s] = xp[b, 2r+p, 2s+q]
    ph = xp.reshape(Bp, 16, 2, 16, 2).transpose(0, 2, 4, 1, 3)        # [Bp, 2, 2, 16, 16]
    rows = []
    for a in range(3):
        for c in range(3):
            blk = ph[:, :, :, a:a + 14, c:c + 14]                     # [Bp, 2, 2, 14, 14]
            blk = jnp.pad(blk, ((0, 0),) * 4 + ((0, 2),))             # pad width 14 -> 16
            rows.append(blk.reshape(Bp, 4, WS))
    x1 = jnp.concatenate(rows, axis=1)                                # [Bp, 36, 224]
    return x1.transpose(1, 0, 2).reshape(36, Bp * WS)


def net1_forward(x, prep):
    B = x.shape[0]
    Bp = ((B + BT - 1) // BT) * BT
    nblk = Bp // BT
    x1 = _build_conv1_operand(x, Bp)                                  # [36, Bp*224]

    flops_blk = (2 * C1 * 36 * NB + 4 * C1 * NB * BT + 4 * BT * NB
                 + 2 * C2 * (25 * C1) * NB + 2 * C2 * NB * (25 * BT)
                 + 2 * 10 * 500 * BT + 30 * C2 * NB)
    bytes_accessed = int(x1.size) * 4 + nblk * 10 * BT * 4 + sum(
        int(v.size) * v.dtype.itemsize for v in prep.values())

    out = pl.pallas_call(
        _net1_kernel,
        out_shape=jax.ShapeDtypeStruct((nblk, 10, BT), jnp.float32),
        grid_spec=pltpu.PrefetchScalarGridSpec(
            num_scalar_prefetch=0,
            grid=(nblk,),
            in_specs=[
                pl.BlockSpec((36, NB), lambda i: (0, i)),             # conv1 im2col operand
                pl.BlockSpec((C1, 36), lambda i: (0, 0)),             # conv1 weights (K-packed)
                pl.BlockSpec((C1, 1), lambda i: (0, 0)),              # conv1 bias
                pl.BlockSpec((C1, NB), lambda i: (0, 0)),             # LN gamma (wide, tiled)
                pl.BlockSpec((C1, NB), lambda i: (0, 0)),             # LN beta  (wide, tiled)
                pl.BlockSpec((NB, BT), lambda i: (0, 0)),             # LN masked segment selector
                pl.BlockSpec((BT, NB), lambda i: (0, 0)),             # LN broadcast-back selector
                pl.BlockSpec((C2, 25 * C1), lambda i: (0, 0)),        # conv2 weights, bf16
                pl.BlockSpec((C2, 1), lambda i: (0, 0)),              # conv2 bias
                pl.BlockSpec((NB, 25 * BT), lambda i: (0, 0)),        # pooled-column selector, bf16
                pl.BlockSpec((10, 25 * C2), lambda i: (0, 0)),        # fc weights (re-ordered)
                pl.BlockSpec((10, 1), lambda i: (0, 0)),              # fc bias
            ],
            out_specs=pl.BlockSpec((1, 10, BT), lambda i: (i, 0, 0)),
        ),
        compiler_params=pltpu.CompilerParams(dimension_semantics=("parallel",)),
        cost_estimate=pl.CostEstimate(flops=nblk * flops_blk, transcendentals=Bp,
                                      bytes_accessed=bytes_accessed),
    )(x1, prep["w1s"], prep["b1"], prep["g1t"], prep["bt1t"], prep["sln"], prep["st"],
      prep["w2s"], prep["b2"], prep["smat"], prep["fcr"], prep["bfc"])

    return out.transpose(0, 2, 1).reshape(Bp, 10)[:B]


# ----------------------------- parameters -----------------------------

def init_params(key, in_channels=C1):
    ks = jax.random.split(key, 8)
    p = {}
    p["conv1_w"] = 0.10 * jax.random.normal(ks[0], (in_channels, 1, 5, 5), jnp.float32)
    p["conv1_b"] = 0.10 * jax.random.normal(ks[1], (in_channels,), jnp.float32)
    p["conv2_w"] = 0.05 * jax.random.normal(ks[2], (C2, in_channels, 5, 5), jnp.float32)
    p["conv2_b"] = 0.10 * jax.random.normal(ks[3], (C2,), jnp.float32)
    p["ln1_g"] = 1.0 + 0.1 * jax.random.normal(ks[4], (in_channels, 14, 14), jnp.float32)
    p["ln1_b"] = 0.1 * jax.random.normal(ks[5], (in_channels, 14, 14), jnp.float32)
    p["fc_w"] = 0.05 * jax.random.normal(ks[6], (10, 500), jnp.float32)   # torch Linear: [out, in]
    p["fc_b"] = 0.10 * jax.random.normal(ks[7], (10,), jnp.float32)
    return p


def prepare_params(p):
    """One-time host-side repacking of PyTorch-layout params into kernel layouts."""
    # conv1: column j = (a*3+c)*4 + (ph*2+q) holds w1[:, 0, 2a+ph, 2c+q] (zero if kh/kw == 5)
    w1 = np.asarray(p["conv1_w"], np.float32)
    w1s = np.zeros((C1, 36), np.float32)
    for a in range(3):
        for c in range(3):
            for ph in range(2):
                for q in range(2):
                    kh, kw = 2 * a + ph, 2 * c + q
                    if kh < 5 and kw < 5:
                        w1s[:, (a * 3 + c) * 4 + ph * 2 + q] = w1[:, 0, kh, kw]

    def widen_tile(t):   # [C1,14,14] -> [C1,224] wide grid -> tiled BT times -> [C1, NB]
        tw = np.zeros((C1, 14, 16), np.float32)
        tw[:, :, :14] = np.asarray(t, np.float32)
        return np.tile(tw.reshape(C1, WS), (1, BT))

    # conv2: column k*C1 + ci with k = kh*5+kw (matches the in-kernel tap stacking order)
    w2 = np.asarray(p["conv2_w"], np.float32)
    w2s = w2.transpose(0, 2, 3, 1).reshape(C2, 25 * C1)

    # LN selectors: sln sums valid columns per sample; st broadcasts per-sample stats to columns
    sln = np.zeros((NB, BT), np.float32)
    st = np.zeros((BT, NB), np.float32)
    for b in range(BT):
        st[b, b * WS:(b + 1) * WS] = 1.0
        for w in range(WS):
            if (w % 16) < 14:
                sln[b * WS + w, b] = 1.0

    # pooled-column compaction selector: column p*BT + b picks (sample b, pooled pos p)
    smat = np.zeros((NB, 25 * BT), np.float32)
    for b in range(BT):
        for pp in range(25):
            i, j = pp // 5, pp % 5
            smat[b * WS + 32 * i + 2 * j, pp * BT + b] = 1.0

    # fc weights re-ordered to the compacted row order f' = p*C2 + c (torch order is c*25 + p)
    wfc = np.asarray(p["fc_w"], np.float32)
    fcr = np.zeros_like(wfc)
    for c in range(C2):
        for pp in range(25):
            fcr[:, pp * C2 + c] = wfc[:, c * 25 + pp]

    return {
        "w1s": jnp.asarray(w1s),
        "b1": jnp.asarray(np.asarray(p["conv1_b"], np.float32).reshape(C1, 1)),
        "g1t": jnp.asarray(widen_tile(p["ln1_g"])),
        "bt1t": jnp.asarray(widen_tile(p["ln1_b"])),
        "sln": jnp.asarray(sln),
        "st": jnp.asarray(st),
        "w2s": jnp.asarray(w2s, dtype=jnp.bfloat16),     # bf16 MXU inputs, f32 accumulate
        "b2": jnp.asarray(np.asarray(p["conv2_b"], np.float32).reshape(C2, 1)),
        "smat": jnp.asarray(smat, dtype=jnp.bfloat16),   # 0/1 selector, exact in bf16
        "fcr": jnp.asarray(fcr),
        "bfc": jnp.asarray(np.asarray(p["fc_b"], np.float32).reshape(10, 1)),
    }


if __name__ == "__main__":
    key = jax.random.PRNGKey(0)
    pkey, xkey = jax.random.split(key)
    params = init_params(pkey, in_channels=C1)
    prep = prepare_params(params)
    # MNIST-like input, NCHW (28x28 so LayerNorm([C1,14,14]) and fc(500) line up).
    # B=16 -> 2 grid steps of BT=8, so v7x megacore gets both TensorCores busy.
    x = jax.random.normal(xkey, (16, 1, 28, 28), jnp.float32)
    out = jax.jit(net1_forward)(x, prep)
    out = jax.block_until_ready(out)
    assert out.shape == (16, 10)
    assert bool(jnp.all(jnp.isfinite(out)))
    print("KERNEL_OK")
</pallas_src>

<mosaic_0001>
module attributes {stable_mosaic.version = 11 : i64} {
  func.func @_net1_kernel(%arg0: i32, %arg1: memref<36x1792xf32, #tpu.memory_space<vmem>>, %arg2: memref<8x36xf32, #tpu.memory_space<vmem>>, %arg3: memref<8x1xf32, #tpu.memory_space<vmem>>, %arg4: memref<8x1792xf32, #tpu.memory_space<vmem>>, %arg5: memref<8x1792xf32, #tpu.memory_space<vmem>>, %arg6: memref<1792x8xf32, #tpu.memory_space<vmem>>, %arg7: memref<8x1792xf32, #tpu.memory_space<vmem>>, %arg8: memref<20x200xbf16, #tpu.memory_space<vmem>>, %arg9: memref<20x1xf32, #tpu.memory_space<vmem>>, %arg10: memref<1792x200xbf16, #tpu.memory_space<vmem>>, %arg11: memref<10x500xf32, #tpu.memory_space<vmem>>, %arg12: memref<10x1xf32, #tpu.memory_space<vmem>>, %arg13: memref<1x10x8xf32, #tpu.memory_space<vmem>>) attributes {dimension_semantics = [#tpu.dimension_semantics<parallel>], iteration_bounds = array<i64: 2>, scalar_prefetch = 0 : i64, scratch_operands = 0 : i64, tpu.core_type = #tpu.core_type<tc>, window_params = [{transform_indices = @transform_0, window_bounds = array<i64: 36, 1792>}, {pipeline_mode = #tpu.pipeline_mode<synchronous>, transform_indices = @transform_1, window_bounds = array<i64: 8, 36>}, {pipeline_mode = #tpu.pipeline_mode<synchronous>, transform_indices = @transform_2, window_bounds = array<i64: 8, 1>}, {pipeline_mode = #tpu.pipeline_mode<synchronous>, transform_indices = @transform_3, window_bounds = array<i64: 8, 1792>}, {pipeline_mode = #tpu.pipeline_mode<synchronous>, transform_indices = @transform_4, window_bounds = array<i64: 8, 1792>}, {pipeline_mode = #tpu.pipeline_mode<synchronous>, transform_indices = @transform_5, window_bounds = array<i64: 1792, 8>}, {pipeline_mode = #tpu.pipeline_mode<synchronous>, transform_indices = @transform_6, window_bounds = array<i64: 8, 1792>}, {pipeline_mode = #tpu.pipeline_mode<synchronous>, transform_indices = @transform_7, window_bounds = array<i64: 20, 200>}, {pipeline_mode = #tpu.pipeline_mode<synchronous>, transform_indices = @transform_8, window_bounds = array<i64: 20, 1>}, {pipeline_mode = #tpu.pipeline_mode<synchronous>, transform_indices = @transform_9, window_bounds = array<i64: 1792, 200>}, {pipeline_mode = #tpu.pipeline_mode<synchronous>, transform_indices = @transform_10, window_bounds = array<i64: 10, 500>}, {pipeline_mode = #tpu.pipeline_mode<synchronous>, transform_indices = @transform_11, window_bounds = array<i64: 10, 1>}, {transform_indices = @transform_12, window_bounds = array<i64: 1, 10, 8>}]} {
    %c0 = arith.constant 0 : index
    %c0_0 = arith.constant 0 : index
    %0 = vector.load %arg2[%c0, %c0_0] : memref<8x36xf32, #tpu.memory_space<vmem>>, vector<8x36xf32>
    %c0_1 = arith.constant 0 : index
    %c0_2 = arith.constant 0 : index
    %1 = vector.load %arg1[%c0_1, %c0_2] : memref<36x1792xf32, #tpu.memory_space<vmem>>, vector<36x1792xf32>
    %cst = arith.constant dense<0.000000e+00> : vector<8x1792xf32>
    %2 = tpu.matmul %0, %1, %cst {dimension_numbers = #tpu.dot_dimension_numbers<[1], [0], [0], [1], [0, 0, 1, 1], [], []>} : vector<8x36xf32>, vector<36x1792xf32>, vector<8x1792xf32> -> vector<8x1792xf32>
    %c0_3 = arith.constant 0 : index
    %c0_4 = arith.constant 0 : index
    %3 = vector.load %arg3[%c0_3, %c0_4] : memref<8x1xf32, #tpu.memory_space<vmem>>, vector<8x1xf32>
    %4 = vector.broadcast %3 : vector<8x1xf32> to vector<8x1792xf32>
    %5 = arith.addf %2, %4 : vector<8x1792xf32>
    %c0_5 = arith.constant 0 : index
    %c0_6 = arith.constant 0 : index
    %6 = vector.load %arg6[%c0_5, %c0_6] : memref<1792x8xf32, #tpu.memory_space<vmem>>, vector<1792x8xf32>
    %cst_7 = arith.constant dense<0.000000e+00> : vector<8x8xf32>
    %7 = tpu.matmul %5, %6, %cst_7 {dimension_numbers = #tpu.dot_dimension_numbers<[1], [0], [0], [1], [0, 0, 1, 1], [], []>} : vector<8x1792xf32>, vector<1792x8xf32>, vector<8x8xf32> -> vector<8x8xf32>
    %cst_8 = arith.constant dense<0.000000e+00> : vector<8xf32>
    %8 = vector.multi_reduction <add>, %7, %cst_8 [0] : vector<8x8xf32> to vector<8xf32>
    %9 = vector.shape_cast %8 : vector<8xf32> to vector<1x8xf32>
    %10 = arith.mulf %5, %5 : vector<8x1792xf32>
    %c0_9 = arith.constant 0 : index
    %c0_10 = arith.constant 0 : index
    %11 = vector.load %arg6[%c0_9, %c0_10] : memref<1792x8xf32, #tpu.memory_space<vmem>>, vector<1792x8xf32>
    %cst_11 = arith.constant dense<0.000000e+00> : vector<8x8xf32>
    %12 = tpu.matmul %10, %11, %cst_11 {dimension_numbers = #tpu.dot_dimension_numbers<[1], [0], [0], [1], [0, 0, 1, 1], [], []>} : vector<8x1792xf32>, vector<1792x8xf32>, vector<8x8xf32> -> vector<8x8xf32>
    %cst_12 = arith.constant dense<0.000000e+00> : vector<8xf32>
    %13 = vector.multi_reduction <add>, %12, %cst_12 [0] : vector<8x8xf32> to vector<8xf32>
    %14 = vector.shape_cast %13 : vector<8xf32> to vector<1x8xf32>
    %cst_13 = arith.constant 6.37755089E-4 : f32
    %15 = vector.broadcast %cst_13 : f32 to vector<1x8xf32>
    %16 = arith.mulf %9, %15 : vector<1x8xf32>
    %cst_14 = arith.constant 6.37755089E-4 : f32
    %17 = vector.broadcast %cst_14 : f32 to vector<1x8xf32>
    %18 = arith.mulf %14, %17 : vector<1x8xf32>
    %19 = arith.mulf %16, %16 : vector<1x8xf32>
    %20 = arith.subf %18, %19 : vector<1x8xf32>
    %cst_15 = arith.constant 0.000000e+00 : f32
    %21 = vector.broadcast %cst_15 : f32 to vector<1x8xf32>
    %22 = arith.maximumf %20, %21 : vector<1x8xf32>
    %cst_16 = arith.constant 9.99999974E-6 : f32
    %23 = vector.broadcast %cst_16 : f32 to vector<1x8xf32>
    %24 = arith.addf %22, %23 : vector<1x8xf32>
    %25 = math.rsqrt %24 : vector<1x8xf32>
    %26 = arith.mulf %16, %25 : vector<1x8xf32>
    %27 = tpu.concatenate %25, %26 in 0 : vector<1x8xf32>, vector<1x8xf32> -> vector<2x8xf32>
    %c0_17 = arith.constant 0 : index
    %c0_18 = arith.constant 0 : index
    %28 = vector.load %arg7[%c0_17, %c0_18] : memref<8x1792xf32, #tpu.memory_space<vmem>>, vector<8x1792xf32>
    %cst_19 = arith.constant dense<0.000000e+00> : vector<2x1792xf32>
    %29 = tpu.matmul %27, %28, %cst_19 {dimension_numbers = #tpu.dot_dimension_numbers<[1], [0], [0], [1], [0, 0, 1, 1], [], []>} : vector<2x8xf32>, vector<8x1792xf32>, vector<2x1792xf32> -> vector<2x1792xf32>
    %30 = vector.extract_strided_slice %29 {offsets = [0, 0], sizes = [1, 1792], strides = [1, 1]} : vector<2x1792xf32> to vector<1x1792xf32>
    %31 = vector.broadcast %30 : vector<1x1792xf32> to vector<8x1792xf32>
    %32 = arith.mulf %5, %31 : vector<8x1792xf32>
    %33 = vector.extract_strided_slice %29 {offsets = [1, 0], sizes = [1, 1792], strides = [1, 1]} : vector<2x1792xf32> to vector<1x1792xf32>
    %34 = vector.broadcast %33 : vector<1x1792xf32> to vector<8x1792xf32>
    %35 = arith.subf %32, %34 : vector<8x1792xf32>
    %c0_20 = arith.constant 0 : index
    %c0_21 = arith.constant 0 : index
    %36 = vector.load %arg4[%c0_20, %c0_21] : memref<8x1792xf32, #tpu.memory_space<vmem>>, vector<8x1792xf32>
    %37 = arith.mulf %35, %36 : vector<8x1792xf32>
    %c0_22 = arith.constant 0 : index
    %c0_23 = arith.constant 0 : index
    %38 = vector.load %arg5[%c0_22, %c0_23] : memref<8x1792xf32, #tpu.memory_space<vmem>>, vector<8x1792xf32>
    %39 = arith.addf %37, %38 : vector<8x1792xf32>
    %cst_24 = arith.constant 0.000000e+00 : f32
    %40 = vector.broadcast %cst_24 : f32 to vector<8x1792xf32>
    %41 = arith.maximumf %39, %40 : vector<8x1792xf32>
    %42 = arith.truncf %41 : vector<8x1792xf32> to vector<8x1792xbf16>
    %cst_25 = arith.constant 0.000000e+00 : bf16
    %43 = vector.broadcast %cst_25 : bf16 to vector<8x68xbf16>
    %44 = tpu.concatenate %42, %43 in 1 : vector<8x1792xbf16>, vector<8x68xbf16> -> vector<8x1860xbf16>
    %45 = vector.extract_strided_slice %44 {offsets = [0, 0], sizes = [8, 1792], strides = [1, 1]} : vector<8x1860xbf16> to vector<8x1792xbf16>
    %46 = vector.extract_strided_slice %44 {offsets = [0, 1], sizes = [8, 1792], strides = [1, 1]} : vector<8x1860xbf16> to vector<8x1792xbf16>
    %47 = vector.extract_strided_slice %44 {offsets = [0, 2], sizes = [8, 1792], strides = [1, 1]} : vector<8x1860xbf16> to vector<8x1792xbf16>
    %48 = vector.extract_strided_slice %44 {offsets = [0, 3], sizes = [8, 1792], strides = [1, 1]} : vector<8x1860xbf16> to vector<8x1792xbf16>
    %49 = vector.extract_strided_slice %44 {offsets = [0, 4], sizes = [8, 1792], strides = [1, 1]} : vector<8x1860xbf16> to vector<8x1792xbf16>
    %50 = vector.extract_strided_slice %44 {offsets = [0, 16], sizes = [8, 1792], strides = [1, 1]} : vector<8x1860xbf16> to vector<8x1792xbf16>
    %51 = vector.extract_strided_slice %44 {offsets = [0, 17], sizes = [8, 1792], strides = [1, 1]} : vector<8x1860xbf16> to vector<8x1792xbf16>
    %52 = vector.extract_strided_slice %44 {offsets = [0, 18], sizes = [8, 1792], strides = [1, 1]} : vector<8x1860xbf16> to vector<8x1792xbf16>
    %53 = vector.extract_strided_slice %44 {offsets = [0, 19], sizes = [8, 1792], strides = [1, 1]} : vector<8x1860xbf16> to vector<8x1792xbf16>
    %54 = vector.extract_strided_slice %44 {offsets = [0, 20], sizes = [8, 1792], strides = [1, 1]} : vector<8x1860xbf16> to vector<8x1792xbf16>
    %55 = vector.extract_strided_slice %44 {offsets = [0, 32], sizes = [8, 1792], strides = [1, 1]} : vector<8x1860xbf16> to vector<8x1792xbf16>
    %56 = vector.extract_strided_slice %44 {offsets = [0, 33], sizes = [8, 1792], strides = [1, 1]} : vector<8x1860xbf16> to vector<8x1792xbf16>
    %57 = vector.extract_strided_slice %44 {offsets = [0, 34], sizes = [8, 1792], strides = [1, 1]} : vector<8x1860xbf16> to vector<8x1792xbf16>
    %58 = vector.extract_strided_slice %44 {offsets = [0, 35], sizes = [8, 1792], strides = [1, 1]} : vector<8x1860xbf16> to vector<8x1792xbf16>
    %59 = vector.extract_strided_slice %44 {offsets = [0, 36], sizes = [8, 1792], strides = [1, 1]} : vector<8x1860xbf16> to vector<8x1792xbf16>
    %60 = vector.extract_strided_slice %44 {offsets = [0, 48], sizes = [8, 1792], strides = [1, 1]} : vector<8x1860xbf16> to vector<8x1792xbf16>
    %61 = vector.extract_strided_slice %44 {offsets = [0, 49], sizes = [8, 1792], strides = [1, 1]} : vector<8x1860xbf16> to vector<8x1792xbf16>
    %62 = vector.extract_strided_slice %44 {offsets = [0, 50], sizes = [8, 1792], strides = [1, 1]} : vector<8x1860xbf16> to vector<8x1792xbf16>
    %63 = vector.extract_strided_slice %44 {offsets = [0, 51], sizes = [8, 1792], strides = [1, 1]} : vector<8x1860xbf16> to vector<8x1792xbf16>
    %64 = vector.extract_strided_slice %44 {offsets = [0, 52], sizes = [8, 1792], strides = [1, 1]} : vector<8x1860xbf16> to vector<8x1792xbf16>
    %65 = vector.extract_strided_slice %44 {offsets = [0, 64], sizes = [8, 1792], strides = [1, 1]} : vector<8x1860xbf16> to vector<8x1792xbf16>
    %66 = vector.extract_strided_slice %44 {offsets = [0, 65], sizes = [8, 1792], strides = [1, 1]} : vector<8x1860xbf16> to vector<8x1792xbf16>
    %67 = vector.extract_strided_slice %44 {offsets = [0, 66], sizes = [8, 1792], strides = [1, 1]} : vector<8x1860xbf16> to vector<8x1792xbf16>
    %68 = vector.extract_strided_slice %44 {offsets = [0, 67], sizes = [8, 1792], strides = [1, 1]} : vector<8x1860xbf16> to vector<8x1792xbf16>
    %69 = vector.extract_strided_slice %44 {offsets = [0, 68], sizes = [8, 1792], strides = [1, 1]} : vector<8x1860xbf16> to vector<8x1792xbf16>
    %70 = tpu.concatenate %45, %46, %47, %48, %49, %50, %51, %52, %53, %54, %55, %56, %57, %58, %59, %60 in 0 : vector<8x1792xbf16>, vector<8x1792xbf16>, vector<8x1792xbf16>, vector<8x1792xbf16>, vector<8x1792xbf16>, vector<8x1792xbf16>, vector<8x1792xbf16>, vector<8x1792xbf16>, vector<8x1792xbf16>, vector<8x1792xbf16>, vector<8x1792xbf16>, vector<8x1792xbf16>, vector<8x1792xbf16>, vector<8x1792xbf16>, vector<8x1792xbf16>, vector<8x1792xbf16> -> vector<128x1792xbf16>
    %71 = tpu.concatenate %61, %62, %63, %64, %65, %66, %67, %68, %69 in 0 : vector<8x1792xbf16>, vector<8x1792xbf16>, vector<8x1792xbf16>, vector<8x1792xbf16>, vector<8x1792xbf16>, vector<8x1792xbf16>, vector<8x1792xbf16>, vector<8x1792xbf16>, vector<8x1792xbf16> -> vector<72x1792xbf16>
    %72 = tpu.concatenate %70, %71 in 0 : vector<128x1792xbf16>, vector<72x1792xbf16> -> vector<200x1792xbf16>
    %c0_26 = arith.constant 0 : index
    %c0_27 = arith.constant 0 : index
    %73 = vector.load %arg8[%c0_26, %c0_27] : memref<20x200xbf16, #tpu.memory_space<vmem>>, vector<20x200xbf16>
    %cst_28 = arith.constant dense<0.000000e+00> : vector<20x1792xf32>
    %74 = tpu.matmul %73, %72, %cst_28 {dimension_numbers = #tpu.dot_dimension_numbers<[1], [0], [0], [1], [0, 0, 1, 1], [], []>} : vector<20x200xbf16>, vector<200x1792xbf16>, vector<20x1792xf32> -> vector<20x1792xf32>
    %c0_29 = arith.constant 0 : index
    %c0_30 = arith.constant 0 : index
    %75 = vector.load %arg9[%c0_29, %c0_30] : memref<20x1xf32, #tpu.memory_space<vmem>>, vector<20x1xf32>
    %76 = vector.broadcast %75 : vector<20x1xf32> to vector<20x1792xf32>
    %77 = arith.addf %74, %76 : vector<20x1792xf32>
    %cst_31 = arith.constant 0.000000e+00 : f32
    %78 = vector.broadcast %cst_31 : f32 to vector<20x1792xf32>
    %79 = arith.maximumf %77, %78 : vector<20x1792xf32>
    %80 = vector.extract_strided_slice %79 {offsets = [0, 1], sizes = [20, 1791], strides = [1, 1]} : vector<20x1792xf32> to vector<20x1791xf32>
    %81 = vector.extract_strided_slice %79 {offsets = [0, 0], sizes = [20, 1], strides = [1, 1]} : vector<20x1792xf32> to vector<20x1xf32>
    %82 = tpu.concatenate %80, %81 in 1 : vector<20x1791xf32>, vector<20x1xf32> -> vector<20x1792xf32>
    %83 = arith.maximumf %79, %82 : vector<20x1792xf32>
    %84 = vector.extract_strided_slice %83 {offsets = [0, 16], sizes = [20, 1776], strides = [1, 1]} : vector<20x1792xf32> to vector<20x1776xf32>
    %85 = vector.extract_strided_slice %83 {offsets = [0, 0], sizes = [20, 16], strides = [1, 1]} : vector<20x1792xf32> to vector<20x16xf32>
    %86 = tpu.concatenate %84, %85 in 1 : vector<20x1776xf32>, vector<20x16xf32> -> vector<20x1792xf32>
    %87 = arith.maximumf %83, %86 : vector<20x1792xf32>
    %88 = arith.truncf %87 : vector<20x1792xf32> to vector<20x1792xbf16>
    %c0_32 = arith.constant 0 : index
    %c0_33 = arith.constant 0 : index
    %89 = vector.load %arg10[%c0_32, %c0_33] : memref<1792x200xbf16, #tpu.memory_space<vmem>>, vector<1792x200xbf16>
    %cst_34 = arith.constant dense<0.000000e+00> : vector<20x200xf32>
    %90 = tpu.matmul %88, %89, %cst_34 {dimension_numbers = #tpu.dot_dimension_numbers<[1], [0], [0], [1], [0, 0, 1, 1], [], []>} : vector<20x1792xbf16>, vector<1792x200xbf16>, vector<20x200xf32> -> vector<20x200xf32>
    %91 = vector.extract_strided_slice %90 {offsets = [0, 0], sizes = [20, 8], strides = [1, 1]} : vector<20x200xf32> to vector<20x8xf32>
    %92 = vector.extract_strided_slice %90 {offsets = [0, 8], sizes = [20, 8], strides = [1, 1]} : vector<20x200xf32> to vector<20x8xf32>
    %93 = vector.extract_strided_slice %90 {offsets = [0, 16], sizes = [20, 8], strides = [1, 1]} : vector<20x200xf32> to vector<20x8xf32>
    %94 = vector.extract_strided_slice %90 {offsets = [0, 24], sizes = [20, 8], strides = [1, 1]} : vector<20x200xf32> to vector<20x8xf32>
    %95 = vector.extract_strided_slice %90 {offsets = [0, 32], sizes = [20, 8], strides = [1, 1]} : vector<20x200xf32> to vector<20x8xf32>
    %96 = vector.extract_strided_slice %90 {offsets = [0, 40], sizes = [20, 8], strides = [1, 1]} : vector<20x200xf32> to vector<20x8xf32>
    %97 = vector.extract_strided_slice %90 {offsets = [0, 48], sizes = [20, 8], strides = [1, 1]} : vector<20x200xf32> to vector<20x8xf32>
    %98 = vector.extract_strided_slice %90 {offsets = [0, 56], sizes = [20, 8], strides = [1, 1]} : vector<20x200xf32> to vector<20x8xf32>
    %99 = vector.extract_strided_slice %90 {offsets = [0, 64], sizes = [20, 8], strides = [1, 1]} : vector<20x200xf32> to vector<20x8xf32>
    %100 = vector.extract_strided_slice %90 {offsets = [0, 72], sizes = [20, 8], strides = [1, 1]} : vector<20x200xf32> to vector<20x8xf32>
    %101 = vector.extract_strided_slice %90 {offsets = [0, 80], sizes = [20, 8], strides = [1, 1]} : vector<20x200xf32> to vector<20x8xf32>
    %102 = vector.extract_strided_slice %90 {offsets = [0, 88], sizes = [20, 8], strides = [1, 1]} : vector<20x200xf32> to vector<20x8xf32>
    %103 = vector.extract_strided_slice %90 {offsets = [0, 96], sizes = [20, 8], strides = [1, 1]} : vector<20x200xf32> to vector<20x8xf32>
    %104 = vector.extract_strided_slice %90 {offsets = [0, 104], sizes = [20, 8], strides = [1, 1]} : vector<20x200xf32> to vector<20x8xf32>
    %105 = vector.extract_strided_slice %90 {offsets = [0, 112], sizes = [20, 8], strides = [1, 1]} : vector<20x200xf32> to vector<20x8xf32>
    %106 = vector.extract_strided_slice %90 {offsets = [0, 120], sizes = [20, 8], strides = [1, 1]} : vector<20x200xf32> to vector<20x8xf32>
    %107 = vector.extract_strided_slice %90 {offsets = [0, 128], sizes = [20, 8], strides = [1, 1]} : vector<20x200xf32> to vector<20x8xf32>
    %108 = vector.extract_strided_slice %90 {offsets = [0, 136], sizes = [20, 8], strides = [1, 1]} : vector<20x200xf32> to vector<20x8xf32>
    %109 = vector.extract_strided_slice %90 {offsets = [0, 144], sizes = [20, 8], strides = [1, 1]} : vector<20x200xf32> to vector<20x8xf32>
    %110 = vector.extract_strided_slice %90 {offsets = [0, 152], sizes = [20, 8], strides = [1, 1]} : vector<20x200xf32> to vector<20x8xf32>
    %111 = vector.extract_strided_slice %90 {offsets = [0, 160], sizes = [20, 8], strides = [1, 1]} : vector<20x200xf32> to vector<20x8xf32>
    %112 = vector.extract_strided_slice %90 {offsets = [0, 168], sizes = [20, 8], strides = [1, 1]} : vector<20x200xf32> to vector<20x8xf32>
    %113 = vector.extract_strided_slice %90 {offsets = [0, 176], sizes = [20, 8], strides = [1, 1]} : vector<20x200xf32> to vector<20x8xf32>
    %114 = vector.extract_strided_slice %90 {offsets = [0, 184], sizes = [20, 8], strides = [1, 1]} : vector<20x200xf32> to vector<20x8xf32>
    %115 = vector.extract_strided_slice %90 {offsets = [0, 192], sizes = [20, 8], strides = [1, 1]} : vector<20x200xf32> to vector<20x8xf32>
    %116 = tpu.concatenate %91, %92, %93, %94, %95, %96, %97, %98, %99, %100, %101, %102, %103, %104, %105, %106 in 0 : vector<20x8xf32>, vector<20x8xf32>, vector<20x8xf32>, vector<20x8xf32>, vector<20x8xf32>, vector<20x8xf32>, vector<20x8xf32>, vector<20x8xf32>, vector<20x8xf32>, vector<20x8xf32>, vector<20x8xf32>, vector<20x8xf32>, vector<20x8xf32>, vector<20x8xf32>, vector<20x8xf32>, vector<20x8xf32> -> vector<320x8xf32>
    %117 = tpu.concatenate %107, %108, %109, %110, %111, %112, %113, %114, %115 in 0 : vector<20x8xf32>, vector<20x8xf32>, vector<20x8xf32>, vector<20x8xf32>, vector<20x8xf32>, vector<20x8xf32>, vector<20x8xf32>, vector<20x8xf32>, vector<20x8xf32> -> vector<180x8xf32>
    %118 = tpu.concatenate %116, %117 in 0 : vector<320x8xf32>, vector<180x8xf32> -> vector<500x8xf32>
    %c0_35 = arith.constant 0 : index
    %c0_36 = arith.constant 0 : index
    %119 = vector.load %arg11[%c0_35, %c0_36] : memref<10x500xf32, #tpu.memory_space<vmem>>, vector<10x500xf32>
    %cst_37 = arith.constant dense<0.000000e+00> : vector<10x8xf32>
    %120 = tpu.matmul %119, %118, %cst_37 {dimension_numbers = #tpu.dot_dimension_numbers<[1], [0], [0], [1], [0, 0, 1, 1], [], []>} : vector<10x500xf32>, vector<500x8xf32>, vector<10x8xf32> -> vector<10x8xf32>
    %c0_38 = arith.constant 0 : index
    %c0_39 = arith.constant 0 : index
    %121 = vector.load %arg12[%c0_38, %c0_39] : memref<10x1xf32, #tpu.memory_space<vmem>>, vector<10x1xf32>
    %122 = vector.broadcast %121 : vector<10x1xf32> to vector<10x8xf32>
    %123 = arith.addf %120, %122 : vector<10x8xf32>
    %c0_40 = arith.constant 0 : index
    %c0_41 = arith.constant 0 : index
    %c0_42 = arith.constant 0 : index
    %124 = vector.load %arg13[%c0_40, %c0_41, %c0_42] : memref<1x10x8xf32, #tpu.memory_space<vmem>>, vector<1x10x8xf32>
    %125 = vector.shape_cast %124 : vector<1x10x8xf32> to vector<10x8xf32>
    %126 = vector.shape_cast %123 : vector<10x8xf32> to vector<1x10x8xf32>
    tpu.vector_store %arg13[%c0_40, %c0_41, %c0_42], %126 {strides = array<i32>} : memref<1x10x8xf32, #tpu.memory_space<vmem>>, vector<1x10x8xf32>,
    return
  }
  func.func @transform_0(%arg0: i32) -> (i32, i32) {
    %c0_i32 = arith.constant 0 : i32
    %c0_i32_0 = arith.constant 0 : i32
    return %c0_i32, %arg0 : i32, i32
  }
  func.func @transform_1(%arg0: i32) -> (i32, i32) {
    %c0_i32 = arith.constant 0 : i32
    %c0_i32_0 = arith.constant 0 : i32
    %c0_i32_1 = arith.constant 0 : i32
    return %c0_i32, %c0_i32_0 : i32, i32
  }
  func.func @transform_2(%arg0: i32) -> (i32, i32) {
    %c0_i32 = arith.constant 0 : i32
    %c0_i32_0 = arith.constant 0 : i32
    %c0_i32_1 = arith.constant 0 : i32
    return %c0_i32, %c0_i32_0 : i32, i32
  }
  func.func @transform_3(%arg0: i32) -> (i32, i32) {
    %c0_i32 = arith.constant 0 : i32
    %c0_i32_0 = arith.constant 0 : i32
    %c0_i32_1 = arith.constant 0 : i32
    return %c0_i32, %c0_i32_0 : i32, i32
  }
  func.func @transform_4(%arg0: i32) -> (i32, i32) {
    %c0_i32 = arith.constant 0 : i32
    %c0_i32_0 = arith.constant 0 : i32
    %c0_i32_1 = arith.constant 0 : i32
    return %c0_i32, %c0_i32_0 : i32, i32
  }
  func.func @transform_5(%arg0: i32) -> (i32, i32) {
    %c0_i32 = arith.constant 0 : i32
    %c0_i32_0 = arith.constant 0 : i32
    %c0_i32_1 = arith.constant 0 : i32
    return %c0_i32, %c0_i32_0 : i32, i32
  }
  func.func @transform_6(%arg0: i32) -> (i32, i32) {
    %c0_i32 = arith.constant 0 : i32
    %c0_i32_0 = arith.constant 0 : i32
    %c0_i32_1 = arith.constant 0 : i32
    return %c0_i32, %c0_i32_0 : i32, i32
  }
  func.func @transform_7(%arg0: i32) -> (i32, i32) {
    %c0_i32 = arith.constant 0 : i32
    %c0_i32_0 = arith.constant 0 : i32
    %c0_i32_1 = arith.constant 0 : i32
    return %c0_i32, %c0_i32_0 : i32, i32
  }
  func.func @transform_8(%arg0: i32) -> (i32, i32) {
    %c0_i32 = arith.constant 0 : i32
    %c0_i32_0 = arith.constant 0 : i32
    %c0_i32_1 = arith.constant 0 : i32
    return %c0_i32, %c0_i32_0 : i32, i32
  }
  func.func @transform_9(%arg0: i32) -> (i32, i32) {
    %c0_i32 = arith.constant 0 : i32
    %c0_i32_0 = arith.constant 0 : i32
    %c0_i32_1 = arith.constant 0 : i32
    return %c0_i32, %c0_i32_0 : i32, i32
  }
  func.func @transform_10(%arg0: i32) -> (i32, i32) {
    %c0_i32 = arith.constant 0 : i32
    %c0_i32_0 = arith.constant 0 : i32
    %c0_i32_1 = arith.constant 0 : i32
    return %c0_i32, %c0_i32_0 : i32, i32
  }
  func.func @transform_11(%arg0: i32) -> (i32, i32) {
    %c0_i32 = arith.constant 0 : i32
    %c0_i32_0 = arith.constant 0 : i32
    %c0_i32_1 = arith.constant 0 : i32
    return %c0_i32, %c0_i32_0 : i32, i32
  }
  func.func @transform_12(%arg0: i32) -> (i32, i32, i32) {
    %c0_i32 = arith.constant 0 : i32
    %c0_i32_0 = arith.constant 0 : i32
    %c0_i32_1 = arith.constant 0 : i32
    return %arg0, %c0_i32, %c0_i32_0 : i32, i32, i32
  }
}

</mosaic_0001>

<llo_original>
// kernel: net1_forward.1
$region0: #{net1_forward.1}
  #allocation0 [shape = 'u32[]', space=smem, size = 0x4, offset = 0x4, fixed_abs, tag = 'smem constant byte address 0x4 - core index']
  #allocation1 [shape = 'u32[144,128]{1,0:T(1,128)}', space=vmem, size = 0x12000, scoped, tag = 'internal scratch']
  %s0 = inlined_call_operand.vmem [shape: f32[36,3584], index: 0, kind: input, shape index: {}]
  %s1 = inlined_call_operand.vmem [shape: f32[8,36], index: 1, kind: input, shape index: {}]
  %s2 = inlined_call_operand.vmem [shape: f32[8,1], index: 2, kind: input, shape index: {}]
  %s3 = inlined_call_operand.vmem [shape: f32[8,1792], index: 3, kind: input, shape index: {}]
  %s4 = inlined_call_operand.vmem [shape: f32[8,1792], index: 4, kind: input, shape index: {}]
  %s5 = inlined_call_operand.vmem [shape: f32[1792,8], index: 5, kind: input, shape index: {}]
  %s6 = inlined_call_operand.vmem [shape: f32[8,1792], index: 6, kind: input, shape index: {}]
  %s7 = inlined_call_operand.vmem [shape: bf16[20,200], index: 7, kind: input, shape index: {}]
  %s8 = inlined_call_operand.vmem [shape: f32[20,1], index: 8, kind: input, shape index: {}]
  %s9 = inlined_call_operand.vmem [shape: bf16[1792,200], index: 9, kind: input, shape index: {}]
  %s10 = inlined_call_operand.vmem [shape: f32[10,500], index: 10, kind: input, shape index: {}]
  %s11 = inlined_call_operand.vmem [shape: f32[10,1], index: 11, kind: input, shape index: {}]
  %s12 = inlined_call_operand.vmem [shape: f32[2,10,8], index: 12, kind: output, shape index: {}]
  %s13 = sld [smem:[#allocation0]]
  $region104: #{net1_forward.1} parent=0
    _
  %s15 = ssub.s32 1, %s13
  %s16 = scalar_select 0, %s15, %s13
  $region1: #{net1_forward.1} parent=0
    #allocation2 [shape = 'u8[573440]{0}', space=vmem, size = 0x8c000, scoped, tag = 'input window, operand 0']
    loop: start=0, step=1, limit=4
    $region2: #{net1_forward.1} parent=1 // loop_pre_header
      _
    $region3: #{net1_forward.1} parent=1 // loop_header
      %s18 = sphi 0, %s22
      %p19 = scmp.ge.s32.totalorder %s18, 4
      %s28 = sphi 0, %s30
      %s31 = sphi 0, %s28
      %s32 = sphi 0, %s31
      %s48 = sphi 0, %s32
      %s52 = sphi 0, %s52
      %s54 = sphi 0, %s52
      %s55 = sphi 0, %s54
      %s69 = sphi 0, %s55
      %s73 = sphi 0, %s73
      %s75 = sphi 0, %s73
      %s76 = sphi 0, %s75
      %s90 = sphi 0, %s76
      %s94 = sphi 0, %s94
      %s96 = sphi 0, %s94
      %s97 = sphi 0, %s96
      %s111 = sphi 0, %s97
      %s115 = sphi 0, %s115
      %s117 = sphi 0, %s115
      %s118 = sphi 0, %s117
      %s132 = sphi 0, %s118
      %s136 = sphi 0, %s136
      %s138 = sphi 0, %s136
      %s139 = sphi 0, %s138
      %s153 = sphi 0, %s139
      %s157 = sphi 0, %s157
      %s159 = sphi 0, %s157
      %s160 = sphi 0, %s159
      %s174 = sphi 0, %s160
      %s178 = sphi 0, %s178
      %s180 = sphi 0, %s178
      %s181 = sphi 0, %s180
      %s195 = sphi 0, %s181
      %s199 = sphi 0, %s199
      %s201 = sphi 0, %s199
      %s202 = sphi 0, %s201
      %s216 = sphi 0, %s202
      %s220 = sphi 0, %s220
      %s222 = sphi 0, %s220
      %s223 = sphi 0, %s222
      %s237 = sphi 0, %s223
      %s241 = sphi 0, %s241
      %s243 = sphi 0, %s241
      %s244 = sphi 0, %s243
      %s258 = sphi 0, %s244
      %s262 = sphi 0, %s262
      %s264 = sphi 0, %s262
      %s265 = sphi 0, %s264
      %s279 = sphi 0, %s265
      %s285 = sphi 0, %s287
      %s288 = sphi 0, %s285
      %s289 = sphi 0, %s288
      %s305 = sphi 0, %s289
    $region4: #{net1_forward.1} parent=1 // loop_header_branch
      %21 = sbr.rel (%p19) target = $region8
    $region5: #{net1_forward.1} parent=1 // loop_body
      %s23 = ssub.s32 %s18, 1
      %s24 = ssub.s32 %s18, 2
      %s25 = sadd.s32 %s18, 1
      %s26 = ssub.s32 %s18, %s25
      %p27 = scmp.eq.s32.totalorder %s26, 0
      %s29 = sadd.s32 %s28, 1
      %s30 = scalar_select %p27, %s28, %s29
      %p33 = pneg %p27
      %p34 = scmp.eq.s32.totalorder %s18, 1
      %p35 = por %p33, %p34
      %p36 = scmp.ne.s32.totalorder %s28, %s31
      %p37 = scmp.eq.s32.totalorder %s18, 0
      %p38 = por %p36, %p37
      %p39 = scmp.ne.s32.totalorder %s28, %s31
      %p40 = scmp.eq.s32.totalorder %s23, 1
      %p41 = por %p39, %p40
      %p42 = scmp.ne.s32.totalorder %s31, %s32
      %p43 = scmp.eq.s32.totalorder %s23, 0
      %p44 = por %p42, %p43
      %p45 = scmp.ne.s32.totalorder %s31, %s32
      %p46 = scmp.eq.s32.totalorder %s24, 1
      %p47 = por %p45, %p46
      %p49 = scmp.ne.s32.totalorder %s32, %s48
      %p50 = scmp.eq.s32.totalorder %s24, 0
      %p51 = por %p49, %p50
      %s53 = sadd.s32 %s52, 1
      %p56 = scmp.eq.s32.totalorder %s18, 1
      %p57 = scmp.ne.s32.totalorder %s52, %s54
      %p58 = scmp.eq.s32.totalorder %s18, 0
      %p59 = por %p57, %p58
      %p60 = scmp.ne.s32.totalorder %s52, %s54
      %p61 = scmp.eq.s32.totalorder %s23, 1
      %p62 = por %p60, %p61
      %p63 = scmp.ne.s32.totalorder %s54, %s55
      %p64 = scmp.eq.s32.totalorder %s23, 0
      %p65 = por %p63, %p64
      %p66 = scmp.ne.s32.totalorder %s54, %s55
      %p67 = scmp.eq.s32.totalorder %s24, 1
      %p68 = por %p66, %p67
      %p70 = scmp.ne.s32.totalorder %s55, %s69
      %p71 = scmp.eq.s32.totalorder %s24, 0
      %p72 = por %p70, %p71
      %s74 = sadd.s32 %s73, 1
      %p77 = scmp.eq.s32.totalorder %s18, 1
      %p78 = scmp.ne.s32.totalorder %s73, %s75
      %p79 = scmp.eq.s32.totalorder %s18, 0
      %p80 = por %p78, %p79
      %p81 = scmp.ne.s32.totalorder %s73, %s75
      %p82 = scmp.eq.s32.totalorder %s23, 1
      %p83 = por %p81, %p82
      %p84 = scmp.ne.s32.totalorder %s75, %s76
      %p85 = scmp.eq.s32.totalorder %s23, 0
      %p86 = por %p84, %p85
      %p87 = scmp.ne.s32.totalorder %s75, %s76
      %p88 = scmp.eq.s32.totalorder %s24, 1
      %p89 = por %p87, %p88
      %p91 = scmp.ne.s32.totalorder %s76, %s90
      %p92 = scmp.eq.s32.totalorder %s24, 0
      %p93 = por %p91, %p92
      %s95 = sadd.s32 %s94, 1
      %p98 = scmp.eq.s32.totalorder %s18, 1
      %p99 = scmp.ne.s32.totalorder %s94, %s96
      %p100 = scmp.eq.s32.totalorder %s18, 0
      %p101 = por %p99, %p100
      %p102 = scmp.ne.s32.totalorder %s94, %s96
      %p103 = scmp.eq.s32.totalorder %s23, 1
      %p104 = por %p102, %p103
      %p105 = scmp.ne.s32.totalorder %s96, %s97
      %p106 = scmp.eq.s32.totalorder %s23, 0
      %p107 = por %p105, %p106
      %p108 = scmp.ne.s32.totalorder %s96, %s97
      %p109 = scmp.eq.s32.totalorder %s24, 1
      %p110 = por %p108, %p109
      %p112 = scmp.ne.s32.totalorder %s97, %s111
      %p113 = scmp.eq.s32.totalorder %s24, 0
      %p114 = por %p112, %p113
      %s116 = sadd.s32 %s115, 1
      %p119 = scmp.eq.s32.totalorder %s18, 1
      %p120 = scmp.ne.s32.totalorder %s115, %s117
      %p121 = scmp.eq.s32.totalorder %s18, 0
      %p122 = por %p120, %p121
      %p123 = scmp.ne.s32.totalorder %s115, %s117
      %p124 = scmp.eq.s32.totalorder %s23, 1
      %p125 = por %p123, %p124
      %p126 = scmp.ne.s32.totalorder %s117, %s118
      %p127 = scmp.eq.s32.totalorder %s23, 0
      %p128 = por %p126, %p127
      %p129 = scmp.ne.s32.totalorder %s117, %s118
      %p130 = scmp.eq.s32.totalorder %s24, 1
      %p131 = por %p129, %p130
      %p133 = scmp.ne.s32.totalorder %s118, %s132
      %p134 = scmp.eq.s32.totalorder %s24, 0
      %p135 = por %p133, %p134
      %s137 = sadd.s32 %s136, 1
      %p140 = scmp.eq.s32.totalorder %s18, 1
      %p141 = scmp.ne.s32.totalorder %s136, %s138
      %p142 = scmp.eq.s32.totalorder %s18, 0
      %p143 = por %p141, %p142
      %p144 = scmp.ne.s32.totalorder %s136, %s138
      %p145 = scmp.eq.s32.totalorder %s23, 1
      %p146 = por %p144, %p145
      %p147 = scmp.ne.s32.totalorder %s138, %s139
      %p148 = scmp.eq.s32.totalorder %s23, 0
      %p149 = por %p147, %p148
      %p150 = scmp.ne.s32.totalorder %s138, %s139
      %p151 = scmp.eq.s32.totalorder %s24, 1
      %p152 = por %p150, %p151
      %p154 = scmp.ne.s32.totalorder %s139, %s153
      %p155 = scmp.eq.s32.totalorder %s24, 0
      %p156 = por %p154, %p155
      %s158 = sadd.s32 %s157, 1
      %p161 = scmp.eq.s32.totalorder %s18, 1
      %p162 = scmp.ne.s32.totalorder %s157, %s159
      %p163 = scmp.eq.s32.totalorder %s18, 0
      %p164 = por %p162, %p163
      %p165 = scmp.ne.s32.totalorder %s157, %s159
      %p166 = scmp.eq.s32.totalorder %s23, 1
      %p167 = por %p165, %p166
      %p168 = scmp.ne.s32.totalorder %s159, %s160
      %p169 = scmp.eq.s32.totalorder %s23, 0
      %p170 = por %p168, %p169
      %p171 = scmp.ne.s32.totalorder %s159, %s160
      %p172 = scmp.eq.s32.totalorder %s24, 1
      %p173 = por %p171, %p172
      %p175 = scmp.ne.s32.totalorder %s160, %s174
      %p176 = scmp.eq.s32.totalorder %s24, 0
      %p177 = por %p175, %p176
      %s179 = sadd.s32 %s178, 1
      %p182 = scmp.eq.s32.totalorder %s18, 1
      %p183 = scmp.ne.s32.totalorder %s178, %s180
      %p184 = scmp.eq.s32.totalorder %s18, 0
      %p185 = por %p183, %p184
      %p186 = scmp.ne.s32.totalorder %s178, %s180
      %p187 = scmp.eq.s32.totalorder %s23, 1
      %p188 = por %p186, %p187
      %p189 = scmp.ne.s32.totalorder %s180, %s181
      %p190 = scmp.eq.s32.totalorder %s23, 0
      %p191 = por %p189, %p190
      %p192 = scmp.ne.s32.totalorder %s180, %s181
      %p193 = scmp.eq.s32.totalorder %s24, 1
      %p194 = por %p192, %p193
      %p196 = scmp.ne.s32.totalorder %s181, %s195
      %p197 = scmp.eq.s32.totalorder %s24, 0
      %p198 = por %p196, %p197
      %s200 = sadd.s32 %s199, 1
      %p203 = scmp.eq.s32.totalorder %s18, 1
      %p204 = scmp.ne.s32.totalorder %s199, %s201
      %p205 = scmp.eq.s32.totalorder %s18, 0
      %p206 = por %p204, %p205
      %p207 = scmp.ne.s32.totalorder %s199, %s201
      %p208 = scmp.eq.s32.totalorder %s23, 1
      %p209 = por %p207, %p208
      %p210 = scmp.ne.s32.totalorder %s201, %s202
      %p211 = scmp.eq.s32.totalorder %s23, 0
      %p212 = por %p210, %p211
      %p213 = scmp.ne.s32.totalorder %s201, %s202
      %p214 = scmp.eq.s32.totalorder %s24, 1
      %p215 = por %p213, %p214
      %p217 = scmp.ne.s32.totalorder %s202, %s216
      %p218 = scmp.eq.s32.totalorder %s24, 0
      %p219 = por %p217, %p218
      %s221 = sadd.s32 %s220, 1
      %p224 = scmp.eq.s32.totalorder %s18, 1
      %p225 = scmp.ne.s32.totalorder %s220, %s222
      %p226 = scmp.eq.s32.totalorder %s18, 0
      %p227 = por %p225, %p226
      %p228 = scmp.ne.s32.totalorder %s220, %s222
      %p229 = scmp.eq.s32.totalorder %s23, 1
      %p230 = por %p228, %p229
      %p231 = scmp.ne.s32.totalorder %s222, %s223
      %p232 = scmp.eq.s32.totalorder %s23, 0
      %p233 = por %p231, %p232
      %p234 = scmp.ne.s32.totalorder %s222, %s223
      %p235 = scmp.eq.s32.totalorder %s24, 1
      %p236 = por %p234, %p235
      %p238 = scmp.ne.s32.totalorder %s223, %s237
      %p239 = scmp.eq.s32.totalorder %s24, 0
      %p240 = por %p238, %p239
      %s242 = sadd.s32 %s241, 1
      %p245 = scmp.eq.s32.totalorder %s18, 1
      %p246 = scmp.ne.s32.totalorder %s241, %s243
      %p247 = scmp.eq.s32.totalorder %s18, 0
      %p248 = por %p246, %p247
      %p249 = scmp.ne.s32.totalorder %s241, %s243
      %p250 = scmp.eq.s32.totalorder %s23, 1
      %p251 = por %p249, %p250
      %p252 = scmp.ne.s32.totalorder %s243, %s244
      %p253 = scmp.eq.s32.totalorder %s23, 0
      %p254 = por %p252, %p253
      %p255 = scmp.ne.s32.totalorder %s243, %s244
      %p256 = scmp.eq.s32.totalorder %s24, 1
      %p257 = por %p255, %p256
      %p259 = scmp.ne.s32.totalorder %s244, %s258
      %p260 = scmp.eq.s32.totalorder %s24, 0
      %p261 = por %p259, %p260
      %s263 = sadd.s32 %s262, 1
      %p266 = scmp.eq.s32.totalorder %s18, 1
      %p267 = scmp.ne.s32.totalorder %s262, %s264
      %p268 = scmp.eq.s32.totalorder %s18, 0
      %p269 = por %p267, %p268
      %p270 = scmp.ne.s32.totalorder %s262, %s264
      %p271 = scmp.eq.s32.totalorder %s23, 1
      %p272 = por %p270, %p271
      %p273 = scmp.ne.s32.totalorder %s264, %s265
      %p274 = scmp.eq.s32.totalorder %s23, 0
      %p275 = por %p273, %p274
      %p276 = scmp.ne.s32.totalorder %s264, %s265
      %p277 = scmp.eq.s32.totalorder %s24, 1
      %p278 = por %p276, %p277
      %p280 = scmp.ne.s32.totalorder %s265, %s279
      %p281 = scmp.eq.s32.totalorder %s24, 0
      %p282 = por %p280, %p281
      %s283 = ssub.s32 %s18, %s25
      %p284 = scmp.eq.s32.totalorder %s283, 0
      %s286 = sadd.s32 %s285, 1
      %s287 = scalar_select %p284, %s285, %s286
      %p290 = pneg %p284
      %p291 = scmp.eq.s32.totalorder %s18, 1
      %p292 = por %p290, %p291
      %p293 = scmp.ne.s32.totalorder %s285, %s288
      %p294 = scmp.eq.s32.totalorder %s18, 0
      %p295 = por %p293, %p294
      %p296 = scmp.ne.s32.totalorder %s285, %s288
      %p297 = scmp.eq.s32.totalorder %s23, 1
      %p298 = por %p296, %p297
      %p299 = scmp.ne.s32.totalorder %s288, %s289
      %p300 = scmp.eq.s32.totalorder %s23, 0
      %p301 = por %p299, %p300
      %p302 = scmp.ne.s32.totalorder %s288, %s289
      %p303 = scmp.eq.s32.totalorder %s24, 1
      %p304 = por %p302, %p303
      %p306 = scmp.ne.s32.totalorder %s289, %s305
      %p307 = scmp.eq.s32.totalorder %s24, 0
      %p308 = por %p306, %p307
      %p309 = scmp.le.s32.totalorder 1, %s18
      %p310 = scmp.lt.s32.totalorder %s18, 3
      %p311 = pnand %p309, %p310
      %p312 = pneg %p311
      // Predicated region
      $region9: #{net1_forward.1} parent=5 // pred_check
        _
      $region10: #{net1_forward.1} parent=5 // pred_check_branch
        %314 = sbr.rel (%p311) target = $region12
      $region11: #{net1_forward.1} parent=5 // pred_region
        %s315 = ssub.s32 %s18, 1
        // Predicated region
        $region13: #{net1_forward.1} parent=11 // pred_check
          %p316 = pneg %p65
        $region14: #{net1_forward.1} parent=11 // pred_check_branch
          %318 = sbr.rel (%p316) target = $region16
        $region15: #{net1_forward.1} parent=11 // pred_region
          _
        $region16: #{net1_forward.1} parent=11 // pred_fallthru
          _
        // Predicated region
        $region17: #{net1_forward.1} parent=11 // pred_check
          %p319 = pneg %p86
        $region18: #{net1_forward.1} parent=11 // pred_check_branch
          %321 = sbr.rel (%p319) target = $region20
        $region19: #{net1_forward.1} parent=11 // pred_region
          _
        $region20: #{net1_forward.1} parent=11 // pred_fallthru
          _
        // Predicated region
        $region21: #{net1_forward.1} parent=11 // pred_check
          %p322 = pneg %p107
        $region22: #{net1_forward.1} parent=11 // pred_check_branch
          %324 = sbr.rel (%p322) target = $region24
        $region23: #{net1_forward.1} parent=11 // pred_region
          _
        $region24: #{net1_forward.1} parent=11 // pred_fallthru
          _
        // Predicated region
        $region25: #{net1_forward.1} parent=11 // pred_check
          %p325 = pneg %p128
        $region26: #{net1_forward.1} parent=11 // pred_check_branch
          %327 = sbr.rel (%p325) target = $region28
        $region27: #{net1_forward.1} parent=11 // pred_region
          _
        $region28: #{net1_forward.1} parent=11 // pred_fallthru
          _
        // Predicated region
        $region29: #{net1_forward.1} parent=11 // pred_check
          %p328 = pneg %p149
        $region30: #{net1_forward.1} parent=11 // pred_check_branch
          %330 = sbr.rel (%p328) target = $region32
        $region31: #{net1_forward.1} parent=11 // pred_region
          _
        $region32: #{net1_forward.1} parent=11 // pred_fallthru
          _
        // Predicated region
        $region33: #{net1_forward.1} parent=11 // pred_check
          %p331 = pneg %p170
        $region34: #{net1_forward.1} parent=11 // pred_check_branch
          %333 = sbr.rel (%p331) target = $region36
        $region35: #{net1_forward.1} parent=11 // pred_region
          _
        $region36: #{net1_forward.1} parent=11 // pred_fallthru
          _
        // Predicated region
        $region37: #{net1_forward.1} parent=11 // pred_check
          %p334 = pneg %p191
        $region38: #{net1_forward.1} parent=11 // pred_check_branch
          %336 = sbr.rel (%p334) target = $region40
        $region39: #{net1_forward.1} parent=11 // pred_region
          _
        $region40: #{net1_forward.1} parent=11 // pred_fallthru
          _
        // Predicated region
        $region41: #{net1_forward.1} parent=11 // pred_check
          %p337 = pneg %p212
        $region42: #{net1_forward.1} parent=11 // pred_check_branch
          %339 = sbr.rel (%p337) target = $region44
        $region43: #{net1_forward.1} parent=11 // pred_region
          _
        $region44: #{net1_forward.1} parent=11 // pred_fallthru
          _
        // Predicated region
        $region45: #{net1_forward.1} parent=11 // pred_check
          %p340 = pneg %p233
        $region46: #{net1_forward.1} parent=11 // pred_check_branch
          %342 = sbr.rel (%p340) target = $region48
        $region47: #{net1_forward.1} parent=11 // pred_region
          _
        $region48: #{net1_forward.1} parent=11 // pred_fallthru
          _
        // Predicated region
        $region49: #{net1_forward.1} parent=11 // pred_check
          %p343 = pneg %p254
        $region50: #{net1_forward.1} parent=11 // pred_check_branch
          %345 = sbr.rel (%p343) target = $region52
        $region51: #{net1_forward.1} parent=11 // pred_region
          _
        $region52: #{net1_forward.1} parent=11 // pred_fallthru
          _
        // Predicated region
        $region53: #{net1_forward.1} parent=11 // pred_check
          %p346 = pneg %p275
        $region54: #{net1_forward.1} parent=11 // pred_check_branch
          %348 = sbr.rel (%p346) target = $region56
        $region55: #{net1_forward.1} parent=11 // pred_region
          _
        $region56: #{net1_forward.1} parent=11 // pred_fallthru
          _
      $region12: #{net1_forward.1} parent=5 // pred_fallthru
        _
      %p349 = scmp.lt.s32.totalorder %s18, 2
      // Predicated region
      $region57: #{net1_forward.1} parent=5 // pred_check
        %p350 = pneg %p349
      $region58: #{net1_forward.1} parent=5 // pred_check_branch
        %352 = sbr.rel (%p350) target = $region60
      $region59: #{net1_forward.1} parent=5 // pred_region
        // Predicated region
        $region61: #{net1_forward.1} parent=59 // pred_check
          %p353 = pneg %p38
        $region62: #{net1_forward.1} parent=59 // pred_check_branch
          %355 = sbr.rel (%p353) target = $region64
        $region63: #{net1_forward.1} parent=59 // pred_region
          %s356 = sand.u32 %s28, 1
          %s357 = sand.u32 %s28, 1
          %s358 = smul.addr %s357, 560
          %s359 = scalar_lea.vmem [#allocation2], %s358
          %s360 = smul.u32 14, %s18
          %s361 = smul.addr %s360, 8
          %s362 = scalar_lea.vmem %s0, %s361
          // Predicated region
          $region65: #{net1_forward.1} parent=63 // pred_check
            _
          $region66: #{net1_forward.1} parent=63 // pred_check_branch
            %364 = sbr.rel (0) target = $region68
          $region67: #{net1_forward.1} parent=63 // pred_region
            // Predicated region
            $region69: #{net1_forward.1} parent=67 // pred_check
              _
            $region70: #{net1_forward.1} parent=67 // pred_check_branch
              %366 = sbr.rel (0) target = $region72
            $region71: #{net1_forward.1} parent=67 // pred_region
              loop: start=0, step=1, limit=1
              $region73: #{net1_forward.1} parent=71 // loop_pre_header
                _
              $region74: #{net1_forward.1} parent=71 // loop_header
                %s368 = sphi 0, %s372
                %p369 = scmp.ge.s32.totalorder %s368, 1
                %s373 = sphi %s362, %s362
                %s374 = sphi %s359, %s359
              $region75: #{net1_forward.1} parent=71 // loop_header_branch
                %371 = sbr.rel (%p369) target = $region79
              $region76: #{net1_forward.1} parent=71 // loop_body
                %v375 = vld [vmem:[%s373] sm:$0xff]
                %376 = vst [vmem:[%s374] sm:$0xff] %v375
                %v377 = vld [vmem:[%s373 + $0x8] sm:$0xff]
                %378 = vst [vmem:[%s374 + $0x8] sm:$0xff] %v377
                %v379 = vld [vmem:[%s373 + $0x10] sm:$0xff]
                %380 = vst [vmem:[%s374 + $0x10] sm:$0xff] %v379
                %v381 = vld [vmem:[%s373 + $0x18] sm:$0xff]
                %382 = vst [vmem:[%s374 + $0x18] sm:$0xff] %v381
                %v383 = vld [vmem:[%s373 + $0x20] sm:$0xff]
                %384 = vst [vmem:[%s374 + $0x20] sm:$0xff] %v383
                %v385 = vld [vmem:[%s373 + $0x28] sm:$0xff]
                %386 = vst [vmem:[%s374 + $0x28] sm:$0xff] %v385
                %v387 = vld [vmem:[%s373 + $0x30] sm:$0xff]
                %388 = vst [vmem:[%s374 + $0x30] sm:$0xff] %v387
                %v389 = vld [vmem:[%s373 + $0x38] sm:$0xff]
                %390 = vst [vmem:[%s374 + $0x38] sm:$0xff] %v389
                %v391 = vld [vmem:[%s373 + $0x40] sm:$0xff]
                %392 = vst [vmem:[%s374 + $0x40] sm:$0xff] %v391
                %v393 = vld [vmem:[%s373 + $0x48] sm:$0xff]
                %394 = vst [vmem:[%s374 + $0x48] sm:$0xff] %v393
                %v395 = vld [vmem:[%s373 + $0x50] sm:$0xff]
                %396 = vst [vmem:[%s374 + $0x50] sm:$0xff] %v395
                %v397 = vld [vmem:[%s373 + $0x58] sm:$0xff]
                %398 = vst [vmem:[%s374 + $0x58] sm:$0xff] %v397
                %v399 = vld [vmem:[%s373 + $0x60] sm:$0xff]
                %400 = vst [vmem:[%s374 + $0x60] sm:$0xff] %v399
                %v401 = vld [vmem:[%s373 + $0x68] sm:$0xff]
                %402 = vst [vmem:[%s374 + $0x68] sm:$0xff] %v401
                %v403 = vld [vmem:[%s373 + $0xe0] sm:$0xff]
                %404 = vst [vmem:[%s374 + $0x70] sm:$0xff] %v403
                %v405 = vld [vmem:[%s373 + $0xe8] sm:$0xff]
                %406 = vst [vmem:[%s374 + $0x78] sm:$0xff] %v405
                %v407 = vld [vmem:[%s373 + $0xf0] sm:$0xff]
                %408 = vst [vmem:[%s374 + $0x80] sm:$0xff] %v407
                %v409 = vld [vmem:[%s373 + $0xf8] sm:$0xff]
                %410 = vst [vmem:[%s374 + $0x88] sm:$0xff] %v409
                %v411 = vld [vmem:[%s373 + $0x100] sm:$0xff]
                %412 = vst [vmem:[%s374 + $0x90] sm:$0xff] %v411
                %v413 = vld [vmem:[%s373 + $0x108] sm:$0xff]
                %414 = vst [vmem:[%s374 + $0x98] sm:$0xff] %v413
                %v415 = vld [vmem:[%s373 + $0x110] sm:$0xff]
                %416 = vst [vmem:[%s374 + $0xa0] sm:$0xff] %v415
                %v417 = vld [vmem:[%s373 + $0x118] sm:$0xff]
                %418 = vst [vmem:[%s374 + $0xa8] sm:$0xff] %v417
                %v419 = vld [vmem:[%s373 + $0x120] sm:$0xff]
                %420 = vst [vmem:[%s374 + $0xb0] sm:$0xff] %v419
                %v421 = vld [vmem:[%s373 + $0x128] sm:$0xff]
                %422 = vst [vmem:[%s374 + $0xb8] sm:$0xff] %v421
                %v423 = vld [vmem:[%s373 + $0x130] sm:$0xff]
                %424 = vst [vmem:[%s374 + $0xc0] sm:$0xff] %v423
                %v425 = vld [vmem:[%s373 + $0x138] sm:$0xff]
                %426 = vst [vmem:[%s374 + $0xc8] sm:$0xff] %v425
                %v427 = vld [vmem:[%s373 + $0x140] sm:$0xff]
                %428 = vst [vmem:[%s374 + $0xd0] sm:$0xff] %v427
                %v429 = vld [vmem:[%s373 + $0x148] sm:$0xff]
                %430 = vst [vmem:[%s374 + $0xd8] sm:$0xff] %v429
                %v431 = vld [vmem:[%s373 + $0x1c0] sm:$0xff]
                %432 = vst [vmem:[%s374 + $0xe0] sm:$0xff] %v431
                %v433 = vld [vmem:[%s373 + $0x1c8] sm:$0xff]
                %434 = vst [vmem:[%s374 + $0xe8] sm:$0xff] %v433
                %v435 = vld [vmem:[%s373 + $0x1d0] sm:$0xff]
                %436 = vst [vmem:[%s374 + $0xf0] sm:$0xff] %v435
                %v437 = vld [vmem:[%s373 + $0x1d8] sm:$0xff]
                %438 = vst [vmem:[%s374 + $0xf8] sm:$0xff] %v437
                %v439 = vld [vmem:[%s373 + $0x1e0] sm:$0xff]
                %440 = vst [vmem:[%s374 + $0x100] sm:$0xff] %v439
                %v441 = vld [vmem:[%s373 + $0x1e8] sm:$0xff]
                %442 = vst [vmem:[%s374 + $0x108] sm:$0xff] %v441
                %v443 = vld [vmem:[%s373 + $0x1f0] sm:$0xff]
                %444 = vst [vmem:[%s374 + $0x110] sm:$0xff] %v443
                %v445 = vld [vmem:[%s373 + $0x1f8] sm:$0xff]
                %446 = vst [vmem:[%s374 + $0x118] sm:$0xff] %v445
                %v447 = vld [vmem:[%s373 + $0x200] sm:$0xff]
                %448 = vst [vmem:[%s374 + $0x120] sm:$0xff] %v447
                %v449 = vld [vmem:[%s373 + $0x208] sm:$0xff]
                %450 = vst [vmem:[%s374 + $0x128] sm:$0xff] %v449
                %v451 = vld [vmem:[%s373 + $0x210] sm:$0xff]
                %452 = vst [vmem:[%s374 + $0x130] sm:$0xff] %v451
                %v453 = vld [vmem:[%s373 + $0x218] sm:$0xff]
                %454 = vst [vmem:[%s374 + $0x138] sm:$0xff] %v453
                %v455 = vld [vmem:[%s373 + $0x220] sm:$0xff]
                %456 = vst [vmem:[%s374 + $0x140] sm:$0xff] %v455
                %v457 = vld [vmem:[%s373 + $0x228] sm:$0xff]
                %458 = vst [vmem:[%s374 + $0x148] sm:$0xff] %v457
                %v459 = vld [vmem:[%s373 + $0x2a0] sm:$0xff]
                %460 = vst [vmem:[%s374 + $0x150] sm:$0xff] %v459
                %v461 = vld [vmem:[%s373 + $0x2a8] sm:$0xff]
                %462 = vst [vmem:[%s374 + $0x158] sm:$0xff] %v461
                %v463 = vld [vmem:[%s373 + $0x2b0] sm:$0xff]
                %464 = vst [vmem:[%s374 + $0x160] sm:$0xff] %v463
                %v465 = vld [vmem:[%s373 + $0x2b8] sm:$0xff]
                %466 = vst [vmem:[%s374 + $0x168] sm:$0xff] %v465
                %v467 = vld [vmem:[%s373 + $0x2c0] sm:$0xff]
                %468 = vst [vmem:[%s374 + $0x170] sm:$0xff] %v467
                %v469 = vld [vmem:[%s373 + $0x2c8] sm:$0xff]
                %470 = vst [vmem:[%s374 + $0x178] sm:$0xff] %v469
                %v471 = vld [vmem:[%s373 + $0x2d0] sm:$0xff]
                %472 = vst [vmem:[%s374 + $0x180] sm:$0xff] %v471
                %v473 = vld [vmem:[%s373 + $0x2d8] sm:$0xff]
                %474 = vst [vmem:[%s374 + $0x188] sm:$0xff] %v473
                %v475 = vld [vmem:[%s373 + $0x2e0] sm:$0xff]
                %476 = vst [vmem:[%s374 + $0x190] sm:$0xff] %v475
                %v477 = vld [vmem:[%s373 + $0x2e8] sm:$0xff]
                %478 = vst [vmem:[%s374 + $0x198] sm:$0xff] %v477
                %v479 = vld [vmem:[%s373 + $0x2f0] sm:$0xff]
                %480 = vst [vmem:[%s374 + $0x1a0] sm:$0xff] %v479
                %v481 = vld [vmem:[%s373 + $0x2f8] sm:$0xff]
                %482 = vst [vmem:[%s374 + $0x1a8] sm:$0xff] %v481
                %v483 = vld [vmem:[%s373 + $0x300] sm:$0xff]
                %484 = vst [vmem:[%s374 + $0x1b0] sm:$0xff] %v483
                %v485 = vld [vmem:[%s373 + $0x308] sm:$0xff]
                %486 = vst [vmem:[%s374 + $0x1b8] sm:$0xff] %v485
                %v487 = vld [vmem:[%s373 + $0x380] sm:$0xff]
                %488 = vst [vmem:[%s374 + $0x1c0] sm:$0xff] %v487
                %v489 = vld [vmem:[%s373 + $0x388] sm:$0xff]
                %490 = vst [vmem:[%s374 + $0x1c8] sm:$0xff] %v489
                %v491 = vld [vmem:[%s373 + $0x390] sm:$0xff]
                %492 = vst [vmem:[%s374 + $0x1d0] sm:$0xff] %v491
                %v493 = vld [vmem:[%s373 + $0x398] sm:$0xff]
                %494 = vst [vmem:[%s374 + $0x1d8] sm:$0xff] %v493
                %v495 = vld [vmem:[%s373 + $0x3a0] sm:$0xff]
                %496 = vst [vmem:[%s374 + $0x1e0] sm:$0xff] %v495
                %v497 = vld [vmem:[%s373 + $0x3a8] sm:$0xff]
                %498 = vst [vmem:[%s374 + $0x1e8] sm:$0xff] %v497
                %v499 = vld [vmem:[%s373 + $0x3b0] sm:$0xff]
                %500 = vst [vmem:[%s374 + $0x1f0] sm:$0xff] %v499
                %v501 = vld [vmem:[%s373 + $0x3b8] sm:$0xff]
                %502 = vst [vmem:[%s374 + $0x1f8] sm:$0xff] %v501
                %v503 = vld [vmem:[%s373 + $0x3c0] sm:$0xff]
                %504 = vst [vmem:[%s374 + $0x200] sm:$0xff] %v503
                %v505 = vld [vmem:[%s373 + $0x3c8] sm:$0xff]
                %506 = vst [vmem:[%s374 + $0x208] sm:$0xff] %v505
                %v507 = vld [vmem:[%s373 + $0x3d0] sm:$0xff]
                %508 = vst [vmem:[%s374 + $0x210] sm:$0xff] %v507
                %v509 = vld [vmem:[%s373 + $0x3d8] sm:$0xff]
                %510 = vst [vmem:[%s374 + $0x218] sm:$0xff] %v509
                %v511 = vld [vmem:[%s373 + $0x3e0] sm:$0xff]
                %512 = vst [vmem:[%s374 + $0x220] sm:$0xff] %v511
                %v513 = vld [vmem:[%s373 + $0x3e8] sm:$0xff]
                %514 = vst [vmem:[%s374 + $0x228] sm:$0xff] %v513
              $region77: #{net1_forward.1} parent=71 // loop_footer
                %s372 = sadd.s32 1, %s368
              $region78: #{net1_forward.1} parent=71 // loop_footer_branch
                %367 = sbr.rel target = $region74
              $region79: #{net1_forward.1} parent=71 // loop_exit
                _
            $region72: #{net1_forward.1} parent=67 // pred_fallthru
              _
            // Predicated region
            $region80: #{net1_forward.1} parent=67 // pred_check
              _
            $region81: #{net1_forward.1} parent=67 // pred_check_branch
              %516 = sbr.rel target = $region83
            $region82: #{net1_forward.1} parent=67 // pred_region
              _
            $region83: #{net1_forward.1} parent=67 // pred_fallthru
              _
          $region68: #{net1_forward.1} parent=63 // pred_fallthru
            _
          %517 = vnop
        $region64: #{net1_forward.1} parent=59 // pred_fallthru
          _
      $region60: #{net1_forward.1} parent=5 // pred_fallthru
        _
      %p518 = scmp.le.s32.totalorder 1, %s18
      %p519 = scmp.lt.s32.totalorder %s18, 3
      %p520 = pnand %p518, %p519
      %p521 = pneg %p520
      // Predicated region
      $region84: #{net1_forward.1} parent=5 // pred_check
        _
      $region85: #{net1_forward.1} parent=5 // pred_check_branch
        %523 = sbr.rel (%p520) target = $region87
      $region86: #{net1_forward.1} parent=5 // pred_region
        %s524 = ssub.s32 %s18, 1
        %s525 = sand.u32 %s31, 1
        %s526 = sand.u32 %s31, 1
        %s527 = smul.addr %s526, 560
        %s528 = scalar_lea.vmem [#allocation2], %s527
        // Predicated region
        $region88: #{net1_forward.1} parent=86 // pred_check
          %p529 = pneg %p44
        $region89: #{net1_forward.1} parent=86 // pred_check_branch
          %531 = sbr.rel (%p529) target = $region91
        $region90: #{net1_forward.1} parent=86 // pred_region
          _
        $region91: #{net1_forward.1} parent=86 // pred_fallthru
          _
        %s532 = sand.u32 %s31, 1
        %s533 = sand.u32 %s31, 1
        %s534 = smul.addr %s533, 560
        %s535 = scalar_lea.vmem [#allocation2], %s534
        %p536 = pneg %p44
        %p537 = pneg %p41
        %p538 = pneg %p65
        %p539 = pneg %p62
        %p540 = pneg %p86
        %p541 = pneg %p83
        %p542 = pneg %p107
        %p543 = pneg %p104
        %p544 = pneg %p128
        %p545 = pneg %p125
        %p546 = pneg %p149
        %p547 = pneg %p146
        %p548 = pneg %p170
        %p549 = pneg %p167
        %p550 = pneg %p191
        %p551 = pneg %p188
        %p552 = pneg %p212
        %p553 = pneg %p209
        %p554 = pneg %p233
        %p555 = pneg %p230
        %p556 = pneg %p254
        %p557 = pneg %p251
        %p558 = pneg %p275
        %p559 = pneg %p272
        %p560 = pneg %p301
        %p561 = pneg %p298
        %p562 = scmp.lt.s32.totalorder %s23, 1
        %s563 = scalar_select %p562, %s23, 1
        %s564 = smul.addr %s563, 2
        %s565 = smul.addr %s564, 8
        %s566 = scalar_lea.vmem %s12, %s565
        %s567 = smul.u32 14, %s23
        %p568 = scmp.lt.s32.totalorder %s23, 1
        %s569 = scalar_select %p568, %s23, 1
        %s570 = smul.addr %s569, 2
        %s571 = smul.addr %s570, 8
        %s572 = scalar_lea.vmem %s12, %s571
        %v574 = vld [vmem:[%s1] sm:$0xff]
        %v575 = vld [vmem:[%s528] sm:$0xff]
        %v576 = vld [vmem:[%s528 + $0x8] sm:$0xff]
        %v577 = vld [vmem:[%s528 + $0x10] sm:$0xff]
        %v578 = vld [vmem:[%s528 + $0x18] sm:$0xff]
        %v579 = vld [vmem:[%s528 + $0x20] sm:$0xff]
        %v580 = vld [vmem:[%s528 + $0x28] sm:$0xff]
        %v581 = vld [vmem:[%s528 + $0x30] sm:$0xff]
        %v582 = vld [vmem:[%s528 + $0x38] sm:$0xff]
        %v583 = vld [vmem:[%s528 + $0x40] sm:$0xff]
        %v584 = vld [vmem:[%s528 + $0x48] sm:$0xff]
        %v585 = vld [vmem:[%s528 + $0x50] sm:$0xff]
        %v586 = vld [vmem:[%s528 + $0x58] sm:$0xff]
        %v587 = vld [vmem:[%s528 + $0x60] sm:$0xff]
        %v588 = vld [vmem:[%s528 + $0x68] sm:$0xff]
        %v589 = vld [vmem:[%s528 + $0x70] sm:$0xff]
        %v590 = vld [vmem:[%s528 + $0x78] sm:$0xff]
        %v591 = vld [vmem:[%s528 + $0x80] sm:$0xff]
        %v592 = vld [vmem:[%s528 + $0x88] sm:$0xff]
        %v593 = vld [vmem:[%s528 + $0x90] sm:$0xff]
        %v594 = vld [vmem:[%s528 + $0x98] sm:$0xff]
        %v595 = vld [vmem:[%s528 + $0xa0] sm:$0xff]
        %v596 = vld [vmem:[%s528 + $0xa8] sm:$0xff]
        %v597 = vld [vmem:[%s528 + $0xb0] sm:$0xff]
        %v598 = vld [vmem:[%s528 + $0xb8] sm:$0xff]
        %v599 = vld [vmem:[%s528 + $0xc0] sm:$0xff]
        %v600 = vld [vmem:[%s528 + $0xc8] sm:$0xff]
        %v601 = vld [vmem:[%s528 + $0xd0] sm:$0xff]
        %v602 = vld [vmem:[%s528 + $0xd8] sm:$0xff]
        %v603 = vld [vmem:[%s528 + $0xe0] sm:$0xff]
        %v604 = vld [vmem:[%s528 + $0xe8] sm:$0xff]
        %v605 = vld [vmem:[%s528 + $0xf0] sm:$0xff]
        %v606 = vld [vmem:[%s528 + $0xf8] sm:$0xff]
        %v607 = vld [vmem:[%s528 + $0x100] sm:$0xff]
        %v608 = vld [vmem:[%s528 + $0x108] sm:$0xff]
        %v609 = vld [vmem:[%s528 + $0x110] sm:$0xff]
        %v610 = vld [vmem:[%s528 + $0x118] sm:$0xff]
        %v611 = vld [vmem:[%s528 + $0x120] sm:$0xff]
        %v612 = vld [vmem:[%s528 + $0x128] sm:$0xff]
        %v613 = vld [vmem:[%s528 + $0x130] sm:$0xff]
        %v614 = vld [vmem:[%s528 + $0x138] sm:$0xff]
        %v615 = vld [vmem:[%s528 + $0x140] sm:$0xff]
        %v616 = vld [vmem:[%s528 + $0x148] sm:$0xff]
        %v617 = vld [vmem:[%s528 + $0x150] sm:$0xff]
        %v618 = vld [vmem:[%s528 + $0x158] sm:$0xff]
        %v619 = vld [vmem:[%s528 + $0x160] sm:$0xff]
        %v620 = vld [vmem:[%s528 + $0x168] sm:$0xff]
        %v621 = vld [vmem:[%s528 + $0x170] sm:$0xff]
        %v622 = vld [vmem:[%s528 + $0x178] sm:$0xff]
        %v623 = vld [vmem:[%s528 + $0x180] sm:$0xff]
        %v624 = vld [vmem:[%s528 + $0x188] sm:$0xff]
        %v625 = vld [vmem:[%s528 + $0x190] sm:$0xff]
        %v626 = vld [vmem:[%s528 + $0x198] sm:$0xff]
        %v627 = vld [vmem:[%s528 + $0x1a0] sm:$0xff]
        %v628 = vld [vmem:[%s528 + $0x1a8] sm:$0xff]
        %v629 = vld [vmem:[%s528 + $0x1b0] sm:$0xff]
        %v630 = vld [vmem:[%s528 + $0x1b8] sm:$0xff]
        %v631 = vld [vmem:[%s528 + $0x1c0] sm:$0xf]
        %v632 = vld [vmem:[%s528 + $0x1c8] sm:$0xf]
        %v633 = vld [vmem:[%s528 + $0x1d0] sm:$0xf]
        %v634 = vld [vmem:[%s528 + $0x1d8] sm:$0xf]
        %v635 = vld [vmem:[%s528 + $0x1e0] sm:$0xf]
        %v636 = vld [vmem:[%s528 + $0x1e8] sm:$0xf]
        %v637 = vld [vmem:[%s528 + $0x1f0] sm:$0xf]
        %v638 = vld [vmem:[%s528 + $0x1f8] sm:$0xf]
        %v639 = vld [vmem:[%s528 + $0x200] sm:$0xf]
        %v640 = vld [vmem:[%s528 + $0x208] sm:$0xf]
        %v641 = vld [vmem:[%s528 + $0x210] sm:$0xf]
        %v642 = vld [vmem:[%s528 + $0x218] sm:$0xf]
        %v643 = vld [vmem:[%s528 + $0x220] sm:$0xf]
        %v644 = vld [vmem:[%s528 + $0x228] sm:$0xf]
        %v645 = vld [vmem:[%s2] sm:$0xff]
        %647 = vset.pattern.permute.xlu0 0
        %648 = vperm.xlu0 %647, %v645
        %v649 = vpop.permute.xlu0 %648
        %vm651 = vcmask 293888
        %v653 = vsel %vm651, %v574, 0
        %vm655 = vcmask 1043456
        %v657 = vsel %vm655, %v631, 0
        %v660 = vsel %vm655, %v632, 0
        %v663 = vsel %vm655, %v633, 0
        %v666 = vsel %vm655, %v634, 0
        %v669 = vsel %vm655, %v635, 0
        %v672 = vsel %vm655, %v636, 0
        %v675 = vsel %vm655, %v637, 0
        %v678 = vsel %vm655, %v638, 0
        %v681 = vsel %vm655, %v639, 0
        %v684 = vsel %vm655, %v640, 0
        %v687 = vsel %vm655, %v641, 0
        %v690 = vsel %vm655, %v642, 0
        %v693 = vsel %vm655, %v643, 0
        %v696 = vsel %vm655, %v644, 0
        %698 = vmatprep.subr.mxu0 %v576
        %699 = vmatpush1.msra.mxu0 %v575
        %700 = vmatprep.subr.mxu0 %v590
        %701 = vmatpush1.msra.mxu0 %v589
        %702 = vmatprep.subr.mxu0 %v604
        %703 = vmatpush1.msra.mxu0 %v603
        %704 = vmatprep.subr.mxu0 %v618
        %705 = vmatpush1.msra.mxu0 %v617
        %706 = vmatprep.subr.mxu0 %v660
        %707 = vmatpush1.msra.mxu0 %v657
        %708 = vmatprep.subr.mxu0 0.0
        %709 = vmatpush1.msra.mxu0 0.0
        %710 = vmatprep.subr.mxu0 0.0
        %711 = vmatpush1.msra.mxu0 0.0
        %712 = vmatprep.subr.mxu0 0.0
        %713 = vmatpush1.msra.mxu0 0.0
        %714 = vmatprep.subr.mxu0 0.0
        %715 = vmatpush1.msra.mxu0 0.0
        %716 = vmatprep.subr.mxu0 0.0
        %717 = vmatpush1.msra.mxu0 0.0
        %718 = vmatprep.subr.mxu0 0.0
        %719 = vmatpush1.msra.mxu0 0.0
        %720 = vmatprep.subr.mxu0 0.0
        %721 = vmatpush1.msra.mxu0 0.0
        %722 = vmatprep.subr.mxu0 0.0
        %723 = vmatpush1.msra.mxu0 0.0
        %724 = vmatprep.subr.mxu0 0.0
        %725 = vmatpush1.msra.mxu0 0.0
        %726 = vmatprep.subr.mxu0 0.0
        %727 = vmatpush1.msra.mxu0 0.0
        %728 = vmatprep.subr.mxu0 0.0
        %729 = vmatpush1.msra.mxu0 0.0
        %730 = vmatprep.subr.mxu0 0.0
        %731 = vmatpush1.msra.mxu0 0.0
        %732 = vmatprep.subr.mxu0 0.0
        %733 = vmatpush1.msra.mxu0 0.0
        %734 = vmatprep.subr.mxu0 0.0
        %735 = vmatpush1.msra.mxu0 0.0
        %736 = vmatprep.subr.mxu0 0.0
        %737 = vmatpush1.msra.mxu0 0.0
        %738 = vmatprep.subr.mxu0 0.0
        %739 = vmatpush1.msra.mxu0 0.0
        %740 = vmatprep.subr.mxu0 0.0
        %741 = vmatpush1.msra.mxu0 0.0
        %742 = vmatprep.subr.mxu0 0.0
        %743 = vmatpush1.msra.mxu0 0.0
        %744 = vmatprep.subr.mxu0 0.0
        %745 = vmatpush1.msra.mxu0 0.0
        %746 = vmatprep.subr.mxu0 0.0
        %747 = vmatpush1.msra.mxu0 0.0
        %748 = vmatprep.subr.mxu0 0.0
        %749 = vmatpush1.msra.mxu0 0.0
        %750 = vmatprep.subr.mxu0 0.0
        %751 = vmatpush1.msra.mxu0 0.0
        %752 = vmatprep.subr.mxu0 0.0
        %753 = vmatpush1.msra.mxu0 0.0
        %754 = vmatprep.subr.mxu0 0.0
        %755 = vmatpush1.msra.mxu0 0.0
        %756 = vmatprep.subr.mxu0 0.0
        %757 = vmatpush1.msra.mxu0 0.0
        %758 = vmatprep.subr.mxu0 0.0
        %759 = vmatpush1.msra.mxu0 0.0
        %760 = vmatprep.subr.mxu0 0.0
        %761 = vmatpush1.msra.mxu0 0.0
        %762 = vmatprep.mubr.f32.mxu0 0.0
        %763 = vmatmul.mubr.f32.gmra.mrb[0].mxu0 %v653
        %v764 = vpop.f32.mrb[0].mxu0
        %v765 = vadd.f32 %v649, %v764
        %v766 = vpop.f32.mrb[0].mxu0
        %v767 = vadd.f32 %v649, %v766
        %768 = vdwg.mxu0
        %769 = vmatprep.subr.mxu0 %v578
        %770 = vmatpush1.msra.mxu0 %v577
        %771 = vmatprep.subr.mxu0 %v592
        %772 = vmatpush1.msra.mxu0 %v591
        %773 = vmatprep.subr.mxu0 %v606
        %774 = vmatpush1.msra.mxu0 %v605
        %775 = vmatprep.subr.mxu0 %v620
        %776 = vmatpush1.msra.mxu0 %v619
        %777 = vmatprep.subr.mxu0 %v666
        %778 = vmatpush1.msra.mxu0 %v663
        %779 = vmatprep.subr.mxu0 0.0
        %780 = vmatpush1.msra.mxu0 0.0
        %781 = vmatprep.subr.mxu0 0.0
        %782 = vmatpush1.msra.mxu0 0.0
        %783 = vmatprep.subr.mxu0 0.0
        %784 = vmatpush1.msra.mxu0 0.0
        %785 = vmatprep.subr.mxu0 0.0
        %786 = vmatpush1.msra.mxu0 0.0
        %787 = vmatprep.subr.mxu0 0.0
        %788 = vmatpush1.msra.mxu0 0.0
        %789 = vmatprep.subr.mxu0 0.0
        %790 = vmatpush1.msra.mxu0 0.0
        %791 = vmatprep.subr.mxu0 0.0
        %792 = vmatpush1.msra.mxu0 0.0
        %793 = vmatprep.subr.mxu0 0.0
        %794 = vmatpush1.msra.mxu0 0.0
        %795 = vmatprep.subr.mxu0 0.0
        %796 = vmatpush1.msra.mxu0 0.0
        %797 = vmatprep.subr.mxu0 0.0
        %798 = vmatpush1.msra.mxu0 0.0
        %799 = vmatprep.subr.mxu0 0.0
        %800 = vmatpush1.msra.mxu0 0.0
        %801 = vmatprep.subr.mxu0 0.0
        %802 = vmatpush1.msra.mxu0 0.0
        %803 = vmatprep.subr.mxu0 0.0
        %804 = vmatpush1.msra.mxu0 0.0
        %805 = vmatprep.subr.mxu0 0.0
        %806 = vmatpush1.msra.mxu0 0.0
        %807 = vmatprep.subr.mxu0 0.0
        %808 = vmatpush1.msra.mxu0 0.0
        %809 = vmatprep.subr.mxu0 0.0
        %810 = vmatpush1.msra.mxu0 0.0
        %811 = vmatprep.subr.mxu0 0.0
        %812 = vmatpush1.msra.mxu0 0.0
        %813 = vmatprep.subr.mxu0 0.0
        %814 = vmatpush1.msra.mxu0 0.0
        %815 = vmatprep.subr.mxu0 0.0
        %816 = vmatpush1.msra.mxu0 0.0
        %817 = vmatprep.subr.mxu0 0.0
        %818 = vmatpush1.msra.mxu0 0.0
        %819 = vmatprep.subr.mxu0 0.0
        %820 = vmatpush1.msra.mxu0 0.0
        %821 = vmatprep.subr.mxu0 0.0
        %822 = vmatpush1.msra.mxu0 0.0
        %823 = vmatprep.subr.mxu0 0.0
        %824 = vmatpush1.msra.mxu0 0.0
        %825 = vmatprep.subr.mxu0 0.0
        %826 = vmatpush1.msra.mxu0 0.0
        %827 = vmatprep.subr.mxu0 0.0
        %828 = vmatpush1.msra.mxu0 0.0
        %829 = vmatprep.subr.mxu0 0.0
        %830 = vmatpush1.msra.mxu0 0.0
        %831 = vmatprep.subr.mxu0 0.0
        %832 = vmatpush1.msra.mxu0 0.0
        %833 = vmatprep.mubr.f32.mxu0 0.0
        %834 = vmatmul.mubr.f32.gmra.mrb[0].mxu0 %v653
        %v835 = vpop.f32.mrb[0].mxu0
        %v836 = vadd.f32 %v649, %v835
        %v837 = vpop.f32.mrb[0].mxu0
        %v838 = vadd.f32 %v649, %v837
        %839 = vdwg.mxu0
        %840 = vmatprep.subr.mxu0 %v580
        %841 = vmatpush1.msra.mxu0 %v579
        %842 = vmatprep.subr.mxu0 %v594
        %843 = vmatpush1.msra.mxu0 %v593
        %844 = vmatprep.subr.mxu0 %v608
        %845 = vmatpush1.msra.mxu0 %v607
        %846 = vmatprep.subr.mxu0 %v622
        %847 = vmatpush1.msra.mxu0 %v621
        %848 = vmatprep.subr.mxu0 %v672
        %849 = vmatpush1.msra.mxu0 %v669
        %850 = vmatprep.subr.mxu0 0.0
        %851 = vmatpush1.msra.mxu0 0.0
        %852 = vmatprep.subr.mxu0 0.0
        %853 = vmatpush1.msra.mxu0 0.0
        %854 = vmatprep.subr.mxu0 0.0
        %855 = vmatpush1.msra.mxu0 0.0
        %856 = vmatprep.subr.mxu0 0.0
        %857 = vmatpush1.msra.mxu0 0.0
        %858 = vmatprep.subr.mxu0 0.0
        %859 = vmatpush1.msra.mxu0 0.0
        %860 = vmatprep.subr.mxu0 0.0
        %861 = vmatpush1.msra.mxu0 0.0
        %862 = vmatprep.subr.mxu0 0.0
        %863 = vmatpush1.msra.mxu0 0.0
        %864 = vmatprep.subr.mxu0 0.0
        %865 = vmatpush1.msra.mxu0 0.0
        %866 = vmatprep.subr.mxu0 0.0
        %867 = vmatpush1.msra.mxu0 0.0
        %868 = vmatprep.subr.mxu0 0.0
        %869 = vmatpush1.msra.mxu0 0.0
        %870 = vmatprep.subr.mxu0 0.0
        %871 = vmatpush1.msra.mxu0 0.0
        %872 = vmatprep.subr.mxu0 0.0
        %873 = vmatpush1.msra.mxu0 0.0
        %874 = vmatprep.subr.mxu0 0.0
        %875 = vmatpush1.msra.mxu0 0.0
        %876 = vmatprep.subr.mxu0 0.0
        %877 = vmatpush1.msra.mxu0 0.0
        %878 = vmatprep.subr.mxu0 0.0
        %879 = vmatpush1.msra.mxu0 0.0
        %880 = vmatprep.subr.mxu0 0.0
        %881 = vmatpush1.msra.mxu0 0.0
        %882 = vmatprep.subr.mxu0 0.0
        %883 = vmatpush1.msra.mxu0 0.0
        %884 = vmatprep.subr.mxu0 0.0
        %885 = vmatpush1.msra.mxu0 0.0
        %886 = vmatprep.subr.mxu0 0.0
        %887 = vmatpush1.msra.mxu0 0.0
        %888 = vmatprep.subr.mxu0 0.0
        %889 = vmatpush1.msra.mxu0 0.0
        %890 = vmatprep.subr.mxu0 0.0
        %891 = vmatpush1.msra.mxu0 0.0
        %892 = vmatprep.subr.mxu0 0.0
        %893 = vmatpush1.msra.mxu0 0.0
        %894 = vmatprep.subr.mxu0 0.0
        %895 = vmatpush1.msra.mxu0 0.0
        %896 = vmatprep.subr.mxu0 0.0
        %897 = vmatpush1.msra.mxu0 0.0
        %898 = vmatprep.subr.mxu0 0.0
        %899 = vmatpush1.msra.mxu0 0.0
        %900 = vmatprep.subr.mxu0 0.0
        %901 = vmatpush1.msra.mxu0 0.0
        %902 = vmatprep.subr.mxu0 0.0
        %903 = vmatpush1.msra.mxu0 0.0
        %904 = vmatprep.mubr.f32.mxu0 0.0
        %905 = vmatmul.mubr.f32.gmra.mrb[0].mxu0 %v653
        %v906 = vpop.f32.mrb[0].mxu0
        %v907 = vadd.f32 %v649, %v906
        %v908 = vpop.f32.mrb[0].mxu0
        %v909 = vadd.f32 %v649, %v908
        %910 = vdwg.mxu0
        %911 = vmatprep.subr.mxu0 %v582
        %912 = vmatpush1.msra.mxu0 %v581
        %913 = vmatprep.subr.mxu0 %v596
        %914 = vmatpush1.msra.mxu0 %v595
        %915 = vmatprep.subr.mxu0 %v610
        %916 = vmatpush1.msra.mxu0 %v609
        %917 = vmatprep.subr.mxu0 %v624
        %918 = vmatpush1.msra.mxu0 %v623
        %919 = vmatprep.subr.mxu0 %v678
        %920 = vmatpush1.msra.mxu0 %v675
        %921 = vmatprep.subr.mxu0 0.0
        %922 = vmatpush1.msra.mxu0 0.0
        %923 = vmatprep.subr.mxu0 0.0
        %924 = vmatpush1.msra.mxu0 0.0
        %925 = vmatprep.subr.mxu0 0.0
        %926 = vmatpush1.msra.mxu0 0.0
        %927 = vmatprep.subr.mxu0 0.0
        %928 = vmatpush1.msra.mxu0 0.0
        %929 = vmatprep.subr.mxu0 0.0
        %930 = vmatpush1.msra.mxu0 0.0
        %931 = vmatprep.subr.mxu0 0.0
        %932 = vmatpush1.msra.mxu0 0.0
        %933 = vmatprep.subr.mxu0 0.0
        %934 = vmatpush1.msra.mxu0 0.0
        %935 = vmatprep.subr.mxu0 0.0
        %936 = vmatpush1.msra.mxu0 0.0
        %937 = vmatprep.subr.mxu0 0.0
        %938 = vmatpush1.msra.mxu0 0.0
        %939 = vmatprep.subr.mxu0 0.0
        %940 = vmatpush1.msra.mxu0 0.0
        %941 = vmatprep.subr.mxu0 0.0
        %942 = vmatpush1.msra.mxu0 0.0
        %943 = vmatprep.subr.mxu0 0.0
        %944 = vmatpush1.msra.mxu0 0.0
        %945 = vmatprep.subr.mxu0 0.0
        %946 = vmatpush1.msra.mxu0 0.0
        %947 = vmatprep.subr.mxu0 0.0
        %948 = vmatpush1.msra.mxu0 0.0
        %949 = vmatprep.subr.mxu0 0.0
        %950 = vmatpush1.msra.mxu0 0.0
        %951 = vmatprep.subr.mxu0 0.0
        %952 = vmatpush1.msra.mxu0 0.0
        %953 = vmatprep.subr.mxu0 0.0
        %954 = vmatpush1.msra.mxu0 0.0
        %955 = vmatprep.subr.mxu0 0.0
        %956 = vmatpush1.msra.mxu0 0.0
        %957 = vmatprep.subr.mxu0 0.0
        %958 = vmatpush1.msra.mxu0 0.0
        %959 = vmatprep.subr.mxu0 0.0
        %960 = vmatpush1.msra.mxu0 0.0
        %961 = vmatprep.subr.mxu0 0.0
        %962 = vmatpush1.msra.mxu0 0.0
        %963 = vmatprep.subr.mxu0 0.0
        %964 = vmatpush1.msra.mxu0 0.0
        %965 = vmatprep.subr.mxu0 0.0
        %966 = vmatpush1.msra.mxu0 0.0
        %967 = vmatprep.subr.mxu0 0.0
        %968 = vmatpush1.msra.mxu0 0.0
        %969 = vmatprep.subr.mxu0 0.0
        %970 = vmatpush1.msra.mxu0 0.0
        %971 = vmatprep.subr.mxu0 0.0
        %972 = vmatpush1.msra.mxu0 0.0
        %973 = vmatprep.subr.mxu0 0.0
        %974 = vmatpush1.msra.mxu0 0.0
        %975 = vmatprep.mubr.f32.mxu0 0.0
        %976 = vmatmul.mubr.f32.gmra.mrb[0].mxu0 %v653
        %v977 = vpop.f32.mrb[0].mxu0
        %v978 = vadd.f32 %v649, %v977
        %v979 = vpop.f32.mrb[0].mxu0
        %v980 = vadd.f32 %v649, %v979
        %981 = vdwg.mxu0
        %982 = vmatprep.subr.mxu0 %v584
        %983 = vmatpush1.msra.mxu0 %v583
        %984 = vmatprep.subr.mxu0 %v598
        %985 = vmatpush1.msra.mxu0 %v597
        %986 = vmatprep.subr.mxu0 %v612
        %987 = vmatpush1.msra.mxu0 %v611
        %988 = vmatprep.subr.mxu0 %v626
        %989 = vmatpush1.msra.mxu0 %v625
        %990 = vmatprep.subr.mxu0 %v684
        %991 = vmatpush1.msra.mxu0 %v681
        %992 = vmatprep.subr.mxu0 0.0
        %993 = vmatpush1.msra.mxu0 0.0
        %994 = vmatprep.subr.mxu0 0.0
        %995 = vmatpush1.msra.mxu0 0.0
        %996 = vmatprep.subr.mxu0 0.0
        %997 = vmatpush1.msra.mxu0 0.0
        %998 = vmatprep.subr.mxu0 0.0
        %999 = vmatpush1.msra.mxu0 0.0
        %1000 = vmatprep.subr.mxu0 0.0
        %1001 = vmatpush1.msra.mxu0 0.0
        %1002 = vmatprep.subr.mxu0 0.0
        %1003 = vmatpush1.msra.mxu0 0.0
        %1004 = vmatprep.subr.mxu0 0.0
        %1005 = vmatpush1.msra.mxu0 0.0
        %1006 = vmatprep.subr.mxu0 0.0
        %1007 = vmatpush1.msra.mxu0 0.0
        %1008 = vmatprep.subr.mxu0 0.0
        %1009 = vmatpush1.msra.mxu0 0.0
        %1010 = vmatprep.subr.mxu0 0.0
        %1011 = vmatpush1.msra.mxu0 0.0
        %1012 = vmatprep.subr.mxu0 0.0
        %1013 = vmatpush1.msra.mxu0 0.0
        %1014 = vmatprep.subr.mxu0 0.0
        %1015 = vmatpush1.msra.mxu0 0.0
        %1016 = vmatprep.subr.mxu0 0.0
        %1017 = vmatpush1.msra.mxu0 0.0
        %1018 = vmatprep.subr.mxu0 0.0
        %1019 = vmatpush1.msra.mxu0 0.0
        %1020 = vmatprep.subr.mxu0 0.0
        %1021 = vmatpush1.msra.mxu0 0.0
        %1022 = vmatprep.subr.mxu0 0.0
        %1023 = vmatpush1.msra.mxu0 0.0
        %1024 = vmatprep.subr.mxu0 0.0
        %1025 = vmatpush1.msra.mxu0 0.0
        %1026 = vmatprep.subr.mxu0 0.0
        %1027 = vmatpush1.msra.mxu0 0.0
        %1028 = vmatprep.subr.mxu0 0.0
        %1029 = vmatpush1.msra.mxu0 0.0
        %1030 = vmatprep.subr.mxu0 0.0
        %1031 = vmatpush1.msra.mxu0 0.0
        %1032 = vmatprep.subr.mxu0 0.0
        %1033 = vmatpush1.msra.mxu0 0.0
        %1034 = vmatprep.subr.mxu0 0.0
        %1035 = vmatpush1.msra.mxu0 0.0
        %1036 = vmatprep.subr.mxu0 0.0
        %1037 = vmatpush1.msra.mxu0 0.0
        %1038 = vmatprep.subr.mxu0 0.0
        %1039 = vmatpush1.msra.mxu0 0.0
        %1040 = vmatprep.subr.mxu0 0.0
        %1041 = vmatpush1.msra.mxu0 0.0
        %1042 = vmatprep.subr.mxu0 0.0
        %1043 = vmatpush1.msra.mxu0 0.0
        %1044 = vmatprep.subr.mxu0 0.0
        %1045 = vmatpush1.msra.mxu0 0.0
        %1046 = vmatprep.mubr.f32.mxu0 0.0
        %1047 = vmatmul.mubr.f32.gmra.mrb[0].mxu0 %v653
        %v1048 = vpop.f32.mrb[0].mxu0
        %v1049 = vadd.f32 %v649, %v1048
        %v1050 = vpop.f32.mrb[0].mxu0
        %v1051 = vadd.f32 %v649, %v1050
        %1052 = vdwg.mxu0
        %1053 = vmatprep.subr.mxu0 %v586
        %1054 = vmatpush1.msra.mxu0 %v585
        %1055 = vmatprep.subr.mxu0 %v600
        %1056 = vmatpush1.msra.mxu0 %v599
        %1057 = vmatprep.subr.mxu0 %v614
        %1058 = vmatpush1.msra.mxu0 %v613
        %1059 = vmatprep.subr.mxu0 %v628
        %1060 = vmatpush1.msra.mxu0 %v627
        %1061 = vmatprep.subr.mxu0 %v690
        %1062 = vmatpush1.msra.mxu0 %v687
        %1063 = vmatprep.subr.mxu0 0.0
        %1064 = vmatpush1.msra.mxu0 0.0
        %1065 = vmatprep.subr.mxu0 0.0
        %1066 = vmatpush1.msra.mxu0 0.0
        %1067 = vmatprep.subr.mxu0 0.0
        %1068 = vmatpush1.msra.mxu0 0.0
        %1069 = vmatprep.subr.mxu0 0.0
        %1070 = vmatpush1.msra.mxu0 0.0
        %1071 = vmatprep.subr.mxu0 0.0
        %1072 = vmatpush1.msra.mxu0 0.0
        %1073 = vmatprep.subr.mxu0 0.0
        %1074 = vmatpush1.msra.mxu0 0.0
        %1075 = vmatprep.subr.mxu0 0.0
        %1076 = vmatpush1.msra.mxu0 0.0
        %1077 = vmatprep.subr.mxu0 0.0
        %1078 = vmatpush1.msra.mxu0 0.0
        %1079 = vmatprep.subr.mxu0 0.0
        %1080 = vmatpush1.msra.mxu0 0.0
        %1081 = vmatprep.subr.mxu0 0.0
        %1082 = vmatpush1.msra.mxu0 0.0
        %1083 = vmatprep.subr.mxu0 0.0
        %1084 = vmatpush1.msra.mxu0 0.0
        %1085 = vmatprep.subr.mxu0 0.0
        %1086 = vmatpush1.msra.mxu0 0.0
        %1087 = vmatprep.subr.mxu0 0.0
        %1088 = vmatpush1.msra.mxu0 0.0
        %1089 = vmatprep.subr.mxu0 0.0
        %1090 = vmatpush1.msra.mxu0 0.0
        %1091 = vmatprep.subr.mxu0 0.0
        %1092 = vmatpush1.msra.mxu0 0.0
        %1093 = vmatprep.subr.mxu0 0.0
        %1094 = vmatpush1.msra.mxu0 0.0
        %1095 = vmatprep.subr.mxu0 0.0
        %1096 = vmatpush1.msra.mxu0 0.0
        %1097 = vmatprep.subr.mxu0 0.0
        %1098 = vmatpush1.msra.mxu0 0.0
        %1099 = vmatprep.subr.mxu0 0.0
        %1100 = vmatpush1.msra.mxu0 0.0
        %1101 = vmatprep.subr.mxu0 0.0
        %1102 = vmatpush1.msra.mxu0 0.0
        %1103 = vmatprep.subr.mxu0 0.0
        %1104 = vmatpush1.msra.mxu0 0.0
        %1105 = vmatprep.subr.mxu0 0.0
        %1106 = vmatpush1.msra.mxu0 0.0
        %1107 = vmatprep.subr.mxu0 0.0
        %1108 = vmatpush1.msra.mxu0 0.0
        %1109 = vmatprep.subr.mxu0 0.0
        %1110 = vmatpush1.msra.mxu0 0.0
        %1111 = vmatprep.subr.mxu0 0.0
        %1112 = vmatpush1.msra.mxu0 0.0
        %1113 = vmatprep.subr.mxu0 0.0
        %1114 = vmatpush1.msra.mxu0 0.0
        %1115 = vmatprep.subr.mxu0 0.0
        %1116 = vmatpush1.msra.mxu0 0.0
        %1117 = vmatprep.mubr.f32.mxu0 0.0
        %1118 = vmatmul.mubr.f32.gmra.mrb[0].mxu0 %v653
        %v1119 = vpop.f32.mrb[0].mxu0
        %v1120 = vadd.f32 %v649, %v1119
        %v1121 = vpop.f32.mrb[0].mxu0
        %v1122 = vadd.f32 %v649, %v1121
        %1123 = vdwg.mxu0
        %1124 = vmatprep.subr.mxu0 %v588
        %1125 = vmatpush1.msra.mxu0 %v587
        %1126 = vmatprep.subr.mxu0 %v602
        %1127 = vmatpush1.msra.mxu0 %v601
        %1128 = vmatprep.subr.mxu0 %v616
        %1129 = vmatpush1.msra.mxu0 %v615
        %1130 = vmatprep.subr.mxu0 %v630
        %1131 = vmatpush1.msra.mxu0 %v629
        %1132 = vmatprep.subr.mxu0 %v696
        %1133 = vmatpush1.msra.mxu0 %v693
        %1134 = vmatprep.subr.mxu0 0.0
        %1135 = vmatpush1.msra.mxu0 0.0
        %1136 = vmatprep.subr.mxu0 0.0
        %1137 = vmatpush1.msra.mxu0 0.0
        %1138 = vmatprep.subr.mxu0 0.0
        %1139 = vmatpush1.msra.mxu0 0.0
        %1140 = vmatprep.subr.mxu0 0.0
        %1141 = vmatpush1.msra.mxu0 0.0
        %1142 = vmatprep.subr.mxu0 0.0
        %1143 = vmatpush1.msra.mxu0 0.0
        %1144 = vmatprep.subr.mxu0 0.0
        %1145 = vmatpush1.msra.mxu0 0.0
        %1146 = vmatprep.subr.mxu0 0.0
        %1147 = vmatpush1.msra.mxu0 0.0
        %1148 = vmatprep.subr.mxu0 0.0
        %1149 = vmatpush1.msra.mxu0 0.0
        %1150 = vmatprep.subr.mxu0 0.0
        %1151 = vmatpush1.msra.mxu0 0.0
        %1152 = vmatprep.subr.mxu0 0.0
        %1153 = vmatpush1.msra.mxu0 0.0
        %1154 = vmatprep.subr.mxu0 0.0
        %1155 = vmatpush1.msra.mxu0 0.0
        %1156 = vmatprep.subr.mxu0 0.0
        %1157 = vmatpush1.msra.mxu0 0.0
        %1158 = vmatprep.subr.mxu0 0.0
        %1159 = vmatpush1.msra.mxu0 0.0
        %1160 = vmatprep.subr.mxu0 0.0
        %1161 = vmatpush1.msra.mxu0 0.0
        %1162 = vmatprep.subr.mxu0 0.0
        %1163 = vmatpush1.msra.mxu0 0.0
        %1164 = vmatprep.subr.mxu0 0.0
        %1165 = vmatpush1.msra.mxu0 0.0
        %1166 = vmatprep.subr.mxu0 0.0
        %1167 = vmatpush1.msra.mxu0 0.0
        %1168 = vmatprep.subr.mxu0 0.0
        %1169 = vmatpush1.msra.mxu0 0.0
        %1170 = vmatprep.subr.mxu0 0.0
        %1171 = vmatpush1.msra.mxu0 0.0
        %1172 = vmatprep.subr.mxu0 0.0
        %1173 = vmatpush1.msra.mxu0 0.0
        %1174 = vmatprep.subr.mxu0 0.0
        %1175 = vmatpush1.msra.mxu0 0.0
        %1176 = vmatprep.subr.mxu0 0.0
        %1177 = vmatpush1.msra.mxu0 0.0
        %1178 = vmatprep.subr.mxu0 0.0
        %1179 = vmatpush1.msra.mxu0 0.0
        %1180 = vmatprep.subr.mxu0 0.0
        %1181 = vmatpush1.msra.mxu0 0.0
        %1182 = vmatprep.subr.mxu0 0.0
        %1183 = vmatpush1.msra.mxu0 0.0
        %1184 = vmatprep.subr.mxu0 0.0
        %1185 = vmatpush1.msra.mxu0 0.0
        %1186 = vmatprep.subr.mxu0 0.0
        %1187 = vmatpush1.msra.mxu0 0.0
        %1188 = vmatprep.mubr.f32.mxu0 0.0
        %1189 = vmatmul.mubr.f32.gmra.mrb[0].mxu0 %v653
        %v1190 = vpop.f32.mrb[0].mxu0
        %v1191 = vadd.f32 %v649, %v1190
        %v1192 = vpop.f32.mrb[0].mxu0
        %v1193 = vadd.f32 %v649, %v1192
        %1194 = vdwg.mxu0
        %v1195 = vld [vmem:[%s5] sm:$0xff]
        %v1196 = vld [vmem:[%s5 + $0x8] sm:$0xff]
        %v1197 = vld [vmem:[%s5 + $0x10] sm:$0xff]
        %v1198 = vld [vmem:[%s5 + $0x18] sm:$0xff]
        %v1199 = vld [vmem:[%s5 + $0x20] sm:$0xff]
        %v1200 = vld [vmem:[%s5 + $0x28] sm:$0xff]
        %v1201 = vld [vmem:[%s5 + $0x30] sm:$0xff]
        %v1202 = vld [vmem:[%s5 + $0x38] sm:$0xff]
        %v1203 = vld [vmem:[%s5 + $0x40] sm:$0xff]
        %v1204 = vld [vmem:[%s5 + $0x48] sm:$0xff]
        %v1205 = vld [vmem:[%s5 + $0x50] sm:$0xff]
        %v1206 = vld [vmem:[%s5 + $0x58] sm:$0xff]
        %v1207 = vld [vmem:[%s5 + $0x60] sm:$0xff]
        %v1208 = vld [vmem:[%s5 + $0x68] sm:$0xff]
        %v1209 = vld [vmem:[%s5 + $0x70] sm:$0xff]
        %v1210 = vld [vmem:[%s5 + $0x78] sm:$0xff]
        %v1211 = vld [vmem:[%s5 + $0x80] sm:$0xff]
        %v1212 = vld [vmem:[%s5 + $0x88] sm:$0xff]
        %v1213 = vld [vmem:[%s5 + $0x90] sm:$0xff]
        %v1214 = vld [vmem:[%s5 + $0x98] sm:$0xff]
        %v1215 = vld [vmem:[%s5 + $0xa0] sm:$0xff]
        %v1216 = vld [vmem:[%s5 + $0xa8] sm:$0xff]
        %v1217 = vld [vmem:[%s5 + $0xb0] sm:$0xff]
        %v1218 = vld [vmem:[%s5 + $0xb8] sm:$0xff]
        %v1219 = vld [vmem:[%s5 + $0xc0] sm:$0xff]
        %v1220 = vld [vmem:[%s5 + $0xc8] sm:$0xff]
        %v1221 = vld [vmem:[%s5 + $0xd0] sm:$0xff]
        %v1222 = vld [vmem:[%s5 + $0xd8] sm:$0xff]
        %v1223 = vld [vmem:[%s5 + $0xe0] sm:$0xff]
        %v1224 = vld [vmem:[%s5 + $0xe8] sm:$0xff]
        %v1225 = vld [vmem:[%s5 + $0xf0] sm:$0xff]
        %v1226 = vld [vmem:[%s5 + $0xf8] sm:$0xff]
        %v1227 = vld [vmem:[%s5 + $0x100] sm:$0xff]
        %v1228 = vld [vmem:[%s5 + $0x108] sm:$0xff]
        %v1229 = vld [vmem:[%s5 + $0x110] sm:$0xff]
        %v1230 = vld [vmem:[%s5 + $0x118] sm:$0xff]
        %v1231 = vld [vmem:[%s5 + $0x120] sm:$0xff]
        %v1232 = vld [vmem:[%s5 + $0x128] sm:$0xff]
        %v1233 = vld [vmem:[%s5 + $0x130] sm:$0xff]
        %v1234 = vld [vmem:[%s5 + $0x138] sm:$0xff]
        %v1235 = vld [vmem:[%s5 + $0x140] sm:$0xff]
        %v1236 = vld [vmem:[%s5 + $0x148] sm:$0xff]
        %v1237 = vld [vmem:[%s5 + $0x150] sm:$0xff]
        %v1238 = vld [vmem:[%s5 + $0x158] sm:$0xff]
        %v1239 = vld [vmem:[%s5 + $0x160] sm:$0xff]
        %v1240 = vld [vmem:[%s5 + $0x168] sm:$0xff]
        %v1241 = vld [vmem:[%s5 + $0x170] sm:$0xff]
        %v1242 = vld [vmem:[%s5 + $0x178] sm:$0xff]
        %v1243 = vld [vmem:[%s5 + $0x180] sm:$0xff]
        %v1244 = vld [vmem:[%s5 + $0x188] sm:$0xff]
        %v1245 = vld [vmem:[%s5 + $0x190] sm:$0xff]
        %v1246 = vld [vmem:[%s5 + $0x198] sm:$0xff]
        %v1247 = vld [vmem:[%s5 + $0x1a0] sm:$0xff]
        %v1248 = vld [vmem:[%s5 + $0x1a8] sm:$0xff]
        %v1249 = vld [vmem:[%s5 + $0x1b0] sm:$0xff]
        %v1250 = vld [vmem:[%s5 + $0x1b8] sm:$0xff]
        %v1251 = vld [vmem:[%s5 + $0x1c0] sm:$0xff]
        %v1252 = vld [vmem:[%s5 + $0x1c8] sm:$0xff]
        %v1253 = vld [vmem:[%s5 + $0x1d0] sm:$0xff]
        %v1254 = vld [vmem:[%s5 + $0x1d8] sm:$0xff]
        %v1255 = vld [vmem:[%s5 + $0x1e0] sm:$0xff]
        %v1256 = vld [vmem:[%s5 + $0x1e8] sm:$0xff]
        %v1257 = vld [vmem:[%s5 + $0x1f0] sm:$0xff]
        %v1258 = vld [vmem:[%s5 + $0x1f8] sm:$0xff]
        %v1259 = vld [vmem:[%s5 + $0x200] sm:$0xff]
        %v1260 = vld [vmem:[%s5 + $0x208] sm:$0xff]
        %v1261 = vld [vmem:[%s5 + $0x210] sm:$0xff]
        %v1262 = vld [vmem:[%s5 + $0x218] sm:$0xff]
        %v1263 = vld [vmem:[%s5 + $0x220] sm:$0xff]
        %v1264 = vld [vmem:[%s5 + $0x228] sm:$0xff]
        %v1265 = vld [vmem:[%s5 + $0x230] sm:$0xff]
        %v1266 = vld [vmem:[%s5 + $0x238] sm:$0xff]
        %v1267 = vld [vmem:[%s5 + $0x240] sm:$0xff]
        %v1268 = vld [vmem:[%s5 + $0x248] sm:$0xff]
        %v1269 = vld [vmem:[%s5 + $0x250] sm:$0xff]
        %v1270 = vld [vmem:[%s5 + $0x258] sm:$0xff]
        %v1271 = vld [vmem:[%s5 + $0x260] sm:$0xff]
        %v1272 = vld [vmem:[%s5 + $0x268] sm:$0xff]
        %v1273 = vld [vmem:[%s5 + $0x270] sm:$0xff]
        %v1274 = vld [vmem:[%s5 + $0x278] sm:$0xff]
        %v1275 = vld [vmem:[%s5 + $0x280] sm:$0xff]
        %v1276 = vld [vmem:[%s5 + $0x288] sm:$0xff]
        %v1277 = vld [vmem:[%s5 + $0x290] sm:$0xff]
        %v1278 = vld [vmem:[%s5 + $0x298] sm:$0xff]
        %v1279 = vld [vmem:[%s5 + $0x2a0] sm:$0xff]
        %v1280 = vld [vmem:[%s5 + $0x2a8] sm:$0xff]
        %v1281 = vld [vmem:[%s5 + $0x2b0] sm:$0xff]
        %v1282 = vld [vmem:[%s5 + $0x2b8] sm:$0xff]
        %v1283 = vld [vmem:[%s5 + $0x2c0] sm:$0xff]
        %v1284 = vld [vmem:[%s5 + $0x2c8] sm:$0xff]
        %v1285 = vld [vmem:[%s5 + $0x2d0] sm:$0xff]
        %v1286 = vld [vmem:[%s5 + $0x2d8] sm:$0xff]
        %v1287 = vld [vmem:[%s5 + $0x2e0] sm:$0xff]
        %v1288 = vld [vmem:[%s5 + $0x2e8] sm:$0xff]
        %v1289 = vld [vmem:[%s5 + $0x2f0] sm:$0xff]
        %v1290 = vld [vmem:[%s5 + $0x2f8] sm:$0xff]
        %v1291 = vld [vmem:[%s5 + $0x300] sm:$0xff]
        %v1292 = vld [vmem:[%s5 + $0x308] sm:$0xff]
        %v1293 = vld [vmem:[%s5 + $0x310] sm:$0xff]
        %v1294 = vld [vmem:[%s5 + $0x318] sm:$0xff]
        %v1295 = vld [vmem:[%s5 + $0x320] sm:$0xff]
        %v1296 = vld [vmem:[%s5 + $0x328] sm:$0xff]
        %v1297 = vld [vmem:[%s5 + $0x330] sm:$0xff]
        %v1298 = vld [vmem:[%s5 + $0x338] sm:$0xff]
        %v1299 = vld [vmem:[%s5 + $0x340] sm:$0xff]
        %v1300 = vld [vmem:[%s5 + $0x348] sm:$0xff]
        %v1301 = vld [vmem:[%s5 + $0x350] sm:$0xff]
        %v1302 = vld [vmem:[%s5 + $0x358] sm:$0xff]
        %v1303 = vld [vmem:[%s5 + $0x360] sm:$0xff]
        %v1304 = vld [vmem:[%s5 + $0x368] sm:$0xff]
        %v1305 = vld [vmem:[%s5 + $0x370] sm:$0xff]
        %v1306 = vld [vmem:[%s5 + $0x378] sm:$0xff]
        %v1307 = vld [vmem:[%s5 + $0x380] sm:$0xff]
        %v1308 = vld [vmem:[%s5 + $0x388] sm:$0xff]
        %v1309 = vld [vmem:[%s5 + $0x390] sm:$0xff]
        %v1310 = vld [vmem:[%s5 + $0x398] sm:$0xff]
        %v1311 = vld [vmem:[%s5 + $0x3a0] sm:$0xff]
        %v1312 = vld [vmem:[%s5 + $0x3a8] sm:$0xff]
        %v1313 = vld [vmem:[%s5 + $0x3b0] sm:$0xff]
        %v1314 = vld [vmem:[%s5 + $0x3b8] sm:$0xff]
        %v1315 = vld [vmem:[%s5 + $0x3c0] sm:$0xff]
        %v1316 = vld [vmem:[%s5 + $0x3c8] sm:$0xff]
        %v1317 = vld [vmem:[%s5 + $0x3d0] sm:$0xff]
        %v1318 = vld [vmem:[%s5 + $0x3d8] sm:$0xff]
        %v1319 = vld [vmem:[%s5 + $0x3e0] sm:$0xff]
        %v1320 = vld [vmem:[%s5 + $0x3e8] sm:$0xff]
        %v1321 = vld [vmem:[%s5 + $0x3f0] sm:$0xff]
        %v1322 = vld [vmem:[%s5 + $0x3f8] sm:$0xff]
        %v1323 = vld [vmem:[%s5 + $0x400] sm:$0xff]
        %v1324 = vld [vmem:[%s5 + $0x408] sm:$0xff]
        %v1325 = vld [vmem:[%s5 + $0x410] sm:$0xff]
        %v1326 = vld [vmem:[%s5 + $0x418] sm:$0xff]
        %v1327 = vld [vmem:[%s5 + $0x420] sm:$0xff]
        %v1328 = vld [vmem:[%s5 + $0x428] sm:$0xff]
        %v1329 = vld [vmem:[%s5 + $0x430] sm:$0xff]
        %v1330 = vld [vmem:[%s5 + $0x438] sm:$0xff]
        %v1331 = vld [vmem:[%s5 + $0x440] sm:$0xff]
        %v1332 = vld [vmem:[%s5 + $0x448] sm:$0xff]
        %v1333 = vld [vmem:[%s5 + $0x450] sm:$0xff]
        %v1334 = vld [vmem:[%s5 + $0x458] sm:$0xff]
        %v1335 = vld [vmem:[%s5 + $0x460] sm:$0xff]
        %v1336 = vld [vmem:[%s5 + $0x468] sm:$0xff]
        %v1337 = vld [vmem:[%s5 + $0x470] sm:$0xff]
        %v1338 = vld [vmem:[%s5 + $0x478] sm:$0xff]
        %v1339 = vld [vmem:[%s5 + $0x480] sm:$0xff]
        %v1340 = vld [vmem:[%s5 + $0x488] sm:$0xff]
        %v1341 = vld [vmem:[%s5 + $0x490] sm:$0xff]
        %v1342 = vld [vmem:[%s5 + $0x498] sm:$0xff]
        %v1343 = vld [vmem:[%s5 + $0x4a0] sm:$0xff]
        %v1344 = vld [vmem:[%s5 + $0x4a8] sm:$0xff]
        %v1345 = vld [vmem:[%s5 + $0x4b0] sm:$0xff]
        %v1346 = vld [vmem:[%s5 + $0x4b8] sm:$0xff]
        %v1347 = vld [vmem:[%s5 + $0x4c0] sm:$0xff]
        %v1348 = vld [vmem:[%s5 + $0x4c8] sm:$0xff]
        %v1349 = vld [vmem:[%s5 + $0x4d0] sm:$0xff]
        %v1350 = vld [vmem:[%s5 + $0x4d8] sm:$0xff]
        %v1351 = vld [vmem:[%s5 + $0x4e0] sm:$0xff]
        %v1352 = vld [vmem:[%s5 + $0x4e8] sm:$0xff]
        %v1353 = vld [vmem:[%s5 + $0x4f0] sm:$0xff]
        %v1354 = vld [vmem:[%s5 + $0x4f8] sm:$0xff]
        %v1355 = vld [vmem:[%s5 + $0x500] sm:$0xff]
        %v1356 = vld [vmem:[%s5 + $0x508] sm:$0xff]
        %v1357 = vld [vmem:[%s5 + $0x510] sm:$0xff]
        %v1358 = vld [vmem:[%s5 + $0x518] sm:$0xff]
        %v1359 = vld [vmem:[%s5 + $0x520] sm:$0xff]
        %v1360 = vld [vmem:[%s5 + $0x528] sm:$0xff]
        %v1361 = vld [vmem:[%s5 + $0x530] sm:$0xff]
        %v1362 = vld [vmem:[%s5 + $0x538] sm:$0xff]
        %v1363 = vld [vmem:[%s5 + $0x540] sm:$0xff]
        %v1364 = vld [vmem:[%s5 + $0x548] sm:$0xff]
        %v1365 = vld [vmem:[%s5 + $0x550] sm:$0xff]
        %v1366 = vld [vmem:[%s5 + $0x558] sm:$0xff]
        %v1367 = vld [vmem:[%s5 + $0x560] sm:$0xff]
        %v1368 = vld [vmem:[%s5 + $0x568] sm:$0xff]
        %v1369 = vld [vmem:[%s5 + $0x570] sm:$0xff]
        %v1370 = vld [vmem:[%s5 + $0x578] sm:$0xff]
        %v1371 = vld [vmem:[%s5 + $0x580] sm:$0xff]
        %v1372 = vld [vmem:[%s5 + $0x588] sm:$0xff]
        %v1373 = vld [vmem:[%s5 + $0x590] sm:$0xff]
        %v1374 = vld [vmem:[%s5 + $0x598] sm:$0xff]
        %v1375 = vld [vmem:[%s5 + $0x5a0] sm:$0xff]
        %v1376 = vld [vmem:[%s5 + $0x5a8] sm:$0xff]
        %v1377 = vld [vmem:[%s5 + $0x5b0] sm:$0xff]
        %v1378 = vld [vmem:[%s5 + $0x5b8] sm:$0xff]
        %v1379 = vld [vmem:[%s5 + $0x5c0] sm:$0xff]
        %v1380 = vld [vmem:[%s5 + $0x5c8] sm:$0xff]
        %v1381 = vld [vmem:[%s5 + $0x5d0] sm:$0xff]
        %v1382 = vld [vmem:[%s5 + $0x5d8] sm:$0xff]
        %v1383 = vld [vmem:[%s5 + $0x5e0] sm:$0xff]
        %v1384 = vld [vmem:[%s5 + $0x5e8] sm:$0xff]
        %v1385 = vld [vmem:[%s5 + $0x5f0] sm:$0xff]
        %v1386 = vld [vmem:[%s5 + $0x5f8] sm:$0xff]
        %v1387 = vld [vmem:[%s5 + $0x600] sm:$0xff]
        %v1388 = vld [vmem:[%s5 + $0x608] sm:$0xff]
        %v1389 = vld [vmem:[%s5 + $0x610] sm:$0xff]
        %v1390 = vld [vmem:[%s5 + $0x618] sm:$0xff]
        %v1391 = vld [vmem:[%s5 + $0x620] sm:$0xff]
        %v1392 = vld [vmem:[%s5 + $0x628] sm:$0xff]
        %v1393 = vld [vmem:[%s5 + $0x630] sm:$0xff]
        %v1394 = vld [vmem:[%s5 + $0x638] sm:$0xff]
        %v1395 = vld [vmem:[%s5 + $0x640] sm:$0xff]
        %v1396 = vld [vmem:[%s5 + $0x648] sm:$0xff]
        %v1397 = vld [vmem:[%s5 + $0x650] sm:$0xff]
        %v1398 = vld [vmem:[%s5 + $0x658] sm:$0xff]
        %v1399 = vld [vmem:[%s5 + $0x660] sm:$0xff]
        %v1400 = vld [vmem:[%s5 + $0x668] sm:$0xff]
        %v1401 = vld [vmem:[%s5 + $0x670] sm:$0xff]
        %v1402 = vld [vmem:[%s5 + $0x678] sm:$0xff]
        %v1403 = vld [vmem:[%s5 + $0x680] sm:$0xff]
        %v1404 = vld [vmem:[%s5 + $0x688] sm:$0xff]
        %v1405 = vld [vmem:[%s5 + $0x690] sm:$0xff]
        %v1406 = vld [vmem:[%s5 + $0x698] sm:$0xff]
        %v1407 = vld [vmem:[%s5 + $0x6a0] sm:$0xff]
        %v1408 = vld [vmem:[%s5 + $0x6a8] sm:$0xff]
        %v1409 = vld [vmem:[%s5 + $0x6b0] sm:$0xff]
        %v1410 = vld [vmem:[%s5 + $0x6b8] sm:$0xff]
        %v1411 = vld [vmem:[%s5 + $0x6c0] sm:$0xff]
        %v1412 = vld [vmem:[%s5 + $0x6c8] sm:$0xff]
        %v1413 = vld [vmem:[%s5 + $0x6d0] sm:$0xff]
        %v1414 = vld [vmem:[%s5 + $0x6d8] sm:$0xff]
        %v1415 = vld [vmem:[%s5 + $0x6e0] sm:$0xff]
        %v1416 = vld [vmem:[%s5 + $0x6e8] sm:$0xff]
        %v1417 = vld [vmem:[%s5 + $0x6f0] sm:$0xff]
        %v1418 = vld [vmem:[%s5 + $0x6f8] sm:$0xff]
        %1419 = vmatprep.subr.mxu0 0.0
        %1420 = vmatpush1.msra.mxu0 %v1195
        %1421 = vmatprep.subr.mxu0 0.0
        %1422 = vmatpush1.msra.mxu0 %v1196
        %1423 = vmatprep.subr.mxu0 0.0
        %1424 = vmatpush1.msra.mxu0 %v1197
        %1425 = vmatprep.subr.mxu0 0.0
        %1426 = vmatpush1.msra.mxu0 %v1198
        %1427 = vmatprep.subr.mxu0 0.0
        %1428 = vmatpush1.msra.mxu0 %v1199
        %1429 = vmatprep.subr.mxu0 0.0
        %1430 = vmatpush1.msra.mxu0 %v1200
        %1431 = vmatprep.subr.mxu0 0.0
        %1432 = vmatpush1.msra.mxu0 %v1201
        %1433 = vmatprep.subr.mxu0 0.0
        %1434 = vmatpush1.msra.mxu0 %v1202
        %1435 = vmatprep.subr.mxu0 0.0
        %1436 = vmatpush1.msra.mxu0 %v1203
        %1437 = vmatprep.subr.mxu0 0.0
        %1438 = vmatpush1.msra.mxu0 %v1204
        %1439 = vmatprep.subr.mxu0 0.0
        %1440 = vmatpush1.msra.mxu0 %v1205
        %1441 = vmatprep.subr.mxu0 0.0
        %1442 = vmatpush1.msra.mxu0 %v1206
        %1443 = vmatprep.subr.mxu0 0.0
        %1444 = vmatpush1.msra.mxu0 %v1207
        %1445 = vmatprep.subr.mxu0 0.0
        %1446 = vmatpush1.msra.mxu0 %v1208
        %1447 = vmatprep.subr.mxu0 0.0
        %1448 = vmatpush1.msra.mxu0 %v1209
        %1449 = vmatprep.subr.mxu0 0.0
        %1450 = vmatpush1.msra.mxu0 %v1210
        %1451 = vmatprep.subr.mxu0 0.0
        %1452 = vmatpush1.msra.mxu0 %v1211
        %1453 = vmatprep.subr.mxu0 0.0
        %1454 = vmatpush1.msra.mxu0 %v1212
        %1455 = vmatprep.subr.mxu0 0.0
        %1456 = vmatpush1.msra.mxu0 %v1213
        %1457 = vmatprep.subr.mxu0 0.0
        %1458 = vmatpush1.msra.mxu0 %v1214
        %1459 = vmatprep.subr.mxu0 0.0
        %1460 = vmatpush1.msra.mxu0 %v1215
        %1461 = vmatprep.subr.mxu0 0.0
        %1462 = vmatpush1.msra.mxu0 %v1216
        %1463 = vmatprep.subr.mxu0 0.0
        %1464 = vmatpush1.msra.mxu0 %v1217
        %1465 = vmatprep.subr.mxu0 0.0
        %1466 = vmatpush1.msra.mxu0 %v1218
        %1467 = vmatprep.subr.mxu0 0.0
        %1468 = vmatpush1.msra.mxu0 %v1219
        %1469 = vmatprep.subr.mxu0 0.0
        %1470 = vmatpush1.msra.mxu0 %v1220
        %1471 = vmatprep.subr.mxu0 0.0
        %1472 = vmatpush1.msra.mxu0 %v1221
        %1473 = vmatprep.subr.mxu0 0.0
        %1474 = vmatpush1.msra.mxu0 %v1222
        %1475 = vmatprep.subr.mxu0 0.0
        %1476 = vmatpush1.msra.mxu0 %v1223
        %1477 = vmatprep.subr.mxu0 0.0
        %1478 = vmatpush1.msra.mxu0 %v1224
        %1479 = vmatprep.subr.mxu0 0.0
        %1480 = vmatpush1.msra.mxu0 %v1225
        %1481 = vmatprep.subr.mxu0 0.0
        %1482 = vmatpush1.msra.mxu0 %v1226
        %1483 = vmatprep.mubr.f32.mxu0 %v767
        %1484 = vmatmul.mubr.f32.gmra.mrb[0].mxu0 %v765
        %v1485 = vpop.f32.mrb[0].mxu0
        %v1486 = vadd.f32 0.0, %v1485
        %v1487 = vpop.f32.mrb[0].mxu0
        %1488 = vdwg.mxu0
        %1489 = vmatprep.subr.mxu0 0.0
        %1490 = vmatpush1.msra.mxu0 %v1227
        %1491 = vmatprep.subr.mxu0 0.0
        %1492 = vmatpush1.msra.mxu0 %v1228
        %1493 = vmatprep.subr.mxu0 0.0
        %1494 = vmatpush1.msra.mxu0 %v1229
        %1495 = vmatprep.subr.mxu0 0.0
        %1496 = vmatpush1.msra.mxu0 %v1230
        %1497 = vmatprep.subr.mxu0 0.0
        %1498 = vmatpush1.msra.mxu0 %v1231
        %1499 = vmatprep.subr.mxu0 0.0
        %1500 = vmatpush1.msra.mxu0 %v1232
        %1501 = vmatprep.subr.mxu0 0.0
        %1502 = vmatpush1.msra.mxu0 %v1233
        %1503 = vmatprep.subr.mxu0 0.0
        %1504 = vmatpush1.msra.mxu0 %v1234
        %1505 = vmatprep.subr.mxu0 0.0
        %1506 = vmatpush1.msra.mxu0 %v1235
        %1507 = vmatprep.subr.mxu0 0.0
        %1508 = vmatpush1.msra.mxu0 %v1236
        %1509 = vmatprep.subr.mxu0 0.0
        %1510 = vmatpush1.msra.mxu0 %v1237
        %1511 = vmatprep.subr.mxu0 0.0
        %1512 = vmatpush1.msra.mxu0 %v1238
        %1513 = vmatprep.subr.mxu0 0.0
        %1514 = vmatpush1.msra.mxu0 %v1239
        %1515 = vmatprep.subr.mxu0 0.0
        %1516 = vmatpush1.msra.mxu0 %v1240
        %1517 = vmatprep.subr.mxu0 0.0
        %1518 = vmatpush1.msra.mxu0 %v1241
        %1519 = vmatprep.subr.mxu0 0.0
        %1520 = vmatpush1.msra.mxu0 %v1242
        %1521 = vmatprep.subr.mxu0 0.0
        %1522 = vmatpush1.msra.mxu0 %v1243
        %1523 = vmatprep.subr.mxu0 0.0
        %1524 = vmatpush1.msra.mxu0 %v1244
        %1525 = vmatprep.subr.mxu0 0.0
        %1526 = vmatpush1.msra.mxu0 %v1245
        %1527 = vmatprep.subr.mxu0 0.0
        %1528 = vmatpush1.msra.mxu0 %v1246
        %1529 = vmatprep.subr.mxu0 0.0
        %1530 = vmatpush1.msra.mxu0 %v1247
        %1531 = vmatprep.subr.mxu0 0.0
        %1532 = vmatpush1.msra.mxu0 %v1248
        %1533 = vmatprep.subr.mxu0 0.0
        %1534 = vmatpush1.msra.mxu0 %v1249
        %1535 = vmatprep.subr.mxu0 0.0
        %1536 = vmatpush1.msra.mxu0 %v1250
        %1537 = vmatprep.subr.mxu0 0.0
        %1538 = vmatpush1.msra.mxu0 %v1251
        %1539 = vmatprep.subr.mxu0 0.0
        %1540 = vmatpush1.msra.mxu0 %v1252
        %1541 = vmatprep.subr.mxu0 0.0
        %1542 = vmatpush1.msra.mxu0 %v1253
        %1543 = vmatprep.subr.mxu0 0.0
        %1544 = vmatpush1.msra.mxu0 %v1254
        %1545 = vmatprep.subr.mxu0 0.0
        %1546 = vmatpush1.msra.mxu0 %v1255
        %1547 = vmatprep.subr.mxu0 0.0
        %1548 = vmatpush1.msra.mxu0 %v1256
        %1549 = vmatprep.subr.mxu0 0.0
        %1550 = vmatpush1.msra.mxu0 %v1257
        %1551 = vmatprep.subr.mxu0 0.0
        %1552 = vmatpush1.msra.mxu0 %v1258
        %1553 = vmatprep.mubr.f32.mxu0 %v838
        %1554 = vmatmul.mubr.f32.gmra.mrb[0].mxu0 %v836
        %v1555 = vpop.f32.mrb[0].mxu0
        %v1556 = vadd.f32 %v1486, %v1555
        %v1557 = vpop.f32.mrb[0].mxu0
        %1558 = vdwg.mxu0
        %1559 = vmatprep.subr.mxu0 0.0
        %1560 = vmatpush1.msra.mxu0 %v1259
        %1561 = vmatprep.subr.mxu0 0.0
        %1562 = vmatpush1.msra.mxu0 %v1260
        %1563 = vmatprep.subr.mxu0 0.0
        %1564 = vmatpush1.msra.mxu0 %v1261
        %1565 = vmatprep.subr.mxu0 0.0
        %1566 = vmatpush1.msra.mxu0 %v1262
        %1567 = vmatprep.subr.mxu0 0.0
        %1568 = vmatpush1.msra.mxu0 %v1263
        %1569 = vmatprep.subr.mxu0 0.0
        %1570 = vmatpush1.msra.mxu0 %v1264
        %1571 = vmatprep.subr.mxu0 0.0
        %1572 = vmatpush1.msra.mxu0 %v1265
        %1573 = vmatprep.subr.mxu0 0.0
        %1574 = vmatpush1.msra.mxu0 %v1266
        %1575 = vmatprep.subr.mxu0 0.0
        %1576 = vmatpush1.msra.mxu0 %v1267
        %1577 = vmatprep.subr.mxu0 0.0
        %1578 = vmatpush1.msra.mxu0 %v1268
        %1579 = vmatprep.subr.mxu0 0.0
        %1580 = vmatpush1.msra.mxu0 %v1269
        %1581 = vmatprep.subr.mxu0 0.0
        %1582 = vmatpush1.msra.mxu0 %v1270
        %1583 = vmatprep.subr.mxu0 0.0
        %1584 = vmatpush1.msra.mxu0 %v1271
        %1585 = vmatprep.subr.mxu0 0.0
        %1586 = vmatpush1.msra.mxu0 %v1272
        %1587 = vmatprep.subr.mxu0 0.0
        %1588 = vmatpush1.msra.mxu0 %v1273
        %1589 = vmatprep.subr.mxu0 0.0
        %1590 = vmatpush1.msra.mxu0 %v1274
        %1591 = vmatprep.subr.mxu0 0.0
        %1592 = vmatpush1.msra.mxu0 %v1275
        %1593 = vmatprep.subr.mxu0 0.0
        %1594 = vmatpush1.msra.mxu0 %v1276
        %1595 = vmatprep.subr.mxu0 0.0
        %1596 = vmatpush1.msra.mxu0 %v1277
        %1597 = vmatprep.subr.mxu0 0.0
        %1598 = vmatpush1.msra.mxu0 %v1278
        %1599 = vmatprep.subr.mxu0 0.0
        %1600 = vmatpush1.msra.mxu0 %v1279
        %1601 = vmatprep.subr.mxu0 0.0
        %1602 = vmatpush1.msra.mxu0 %v1280
        %1603 = vmatprep.subr.mxu0 0.0
        %1604 = vmatpush1.msra.mxu0 %v1281
        %1605 = vmatprep.subr.mxu0 0.0
        %1606 = vmatpush1.msra.mxu0 %v1282
        %1607 = vmatprep.subr.mxu0 0.0
        %1608 = vmatpush1.msra.mxu0 %v1283
        %1609 = vmatprep.subr.mxu0 0.0
        %1610 = vmatpush1.msra.mxu0 %v1284
        %1611 = vmatprep.subr.mxu0 0.0
        %1612 = vmatpush1.msra.mxu0 %v1285
        %1613 = vmatprep.subr.mxu0 0.0
        %1614 = vmatpush1.msra.mxu0 %v1286
        %1615 = vmatprep.subr.mxu0 0.0
        %1616 = vmatpush1.msra.mxu0 %v1287
        %1617 = vmatprep.subr.mxu0 0.0
        %1618 = vmatpush1.msra.mxu0 %v1288
        %1619 = vmatprep.subr.mxu0 0.0
        %1620 = vmatpush1.msra.mxu0 %v1289
        %1621 = vmatprep.subr.mxu0 0.0
        %1622 = vmatpush1.msra.mxu0 %v1290
        %1623 = vmatprep.mubr.f32.mxu0 %v909
        %1624 = vmatmul.mubr.f32.gmra.mrb[0].mxu0 %v907
        %v1625 = vpop.f32.mrb[0].mxu0
        %v1626 = vadd.f32 %v1556, %v1625
        %v1627 = vpop.f32.mrb[0].mxu0
        %1628 = vdwg.mxu0
        %1629 = vmatprep.subr.mxu0 0.0
        %1630 = vmatpush1.msra.mxu0 %v1291
        %1631 = vmatprep.subr.mxu0 0.0
        %1632 = vmatpush1.msra.mxu0 %v1292
        %1633 = vmatprep.subr.mxu0 0.0
        %1634 = vmatpush1.msra.mxu0 %v1293
        %1635 = vmatprep.subr.mxu0 0.0
        %1636 = vmatpush1.msra.mxu0 %v1294
        %1637 = vmatprep.subr.mxu0 0.0
        %1638 = vmatpush1.msra.mxu0 %v1295
        %1639 = vmatprep.subr.mxu0 0.0
        %1640 = vmatpush1.msra.mxu0 %v1296
        %1641 = vmatprep.subr.mxu0 0.0
        %1642 = vmatpush1.msra.mxu0 %v1297
        %1643 = vmatprep.subr.mxu0 0.0
        %1644 = vmatpush1.msra.mxu0 %v1298
        %1645 = vmatprep.subr.mxu0 0.0
        %1646 = vmatpush1.msra.mxu0 %v1299
        %1647 = vmatprep.subr.mxu0 0.0
        %1648 = vmatpush1.msra.mxu0 %v1300
        %1649 = vmatprep.subr.mxu0 0.0
        %1650 = vmatpush1.msra.mxu0 %v1301
        %1651 = vmatprep.subr.mxu0 0.0
        %1652 = vmatpush1.msra.mxu0 %v1302
        %1653 = vmatprep.subr.mxu0 0.0
        %1654 = vmatpush1.msra.mxu0 %v1303
        %1655 = vmatprep.subr.mxu0 0.0
        %1656 = vmatpush1.msra.mxu0 %v1304
        %1657 = vmatprep.subr.mxu0 0.0
        %1658 = vmatpush1.msra.mxu0 %v1305
        %1659 = vmatprep.subr.mxu0 0.0
        %1660 = vmatpush1.msra.mxu0 %v1306
        %1661 = vmatprep.subr.mxu0 0.0
        %1662 = vmatpush1.msra.mxu0 %v1307
        %1663 = vmatprep.subr.mxu0 0.0
        %1664 = vmatpush1.msra.mxu0 %v1308
        %1665 = vmatprep.subr.mxu0 0.0
        %1666 = vmatpush1.msra.mxu0 %v1309
        %1667 = vmatprep.subr.mxu0 0.0
        %1668 = vmatpush1.msra.mxu0 %v1310
        %1669 = vmatprep.subr.mxu0 0.0
        %1670 = vmatpush1.msra.mxu0 %v1311
        %1671 = vmatprep.subr.mxu0 0.0
        %1672 = vmatpush1.msra.mxu0 %v1312
        %1673 = vmatprep.subr.mxu0 0.0
        %1674 = vmatpush1.msra.mxu0 %v1313
        %1675 = vmatprep.subr.mxu0 0.0
        %1676 = vmatpush1.msra.mxu0 %v1314
        %1677 = vmatprep.subr.mxu0 0.0
        %1678 = vmatpush1.msra.mxu0 %v1315
        %1679 = vmatprep.subr.mxu0 0.0
        %1680 = vmatpush1.msra.mxu0 %v1316
        %1681 = vmatprep.subr.mxu0 0.0
        %1682 = vmatpush1.msra.mxu0 %v1317
        %1683 = vmatprep.subr.mxu0 0.0
        %1684 = vmatpush1.msra.mxu0 %v1318
        %1685 = vmatprep.subr.mxu0 0.0
        %1686 = vmatpush1.msra.mxu0 %v1319
        %1687 = vmatprep.subr.mxu0 0.0
        %1688 = vmatpush1.msra.mxu0 %v1320
        %1689 = vmatprep.subr.mxu0 0.0
        %1690 = vmatpush1.msra.mxu0 %v1321
        %1691 = vmatprep.subr.mxu0 0.0
        %1692 = vmatpush1.msra.mxu0 %v1322
        %1693 = vmatprep.mubr.f32.mxu0 %v980
        %1694 = vmatmul.mubr.f32.gmra.mrb[0].mxu0 %v978
        %v1695 = vpop.f32.mrb[0].mxu0
        %v1696 = vadd.f32 %v1626, %v1695
        %v1697 = vpop.f32.mrb[0].mxu0
        %1698 = vdwg.mxu0
        %1699 = vmatprep.subr.mxu0 0.0
        %1700 = vmatpush1.msra.mxu0 %v1323
        %1701 = vmatprep.subr.mxu0 0.0
        %1702 = vmatpush1.msra.mxu0 %v1324
        %1703 = vmatprep.subr.mxu0 0.0
        %1704 = vmatpush1.msra.mxu0 %v1325
        %1705 = vmatprep.subr.mxu0 0.0
        %1706 = vmatpush1.msra.mxu0 %v1326
        %1707 = vmatprep.subr.mxu0 0.0
        %1708 = vmatpush1.msra.mxu0 %v1327
        %1709 = vmatprep.subr.mxu0 0.0
        %1710 = vmatpush1.msra.mxu0 %v1328
        %1711 = vmatprep.subr.mxu0 0.0
        %1712 = vmatpush1.msra.mxu0 %v1329
        %1713 = vmatprep.subr.mxu0 0.0
        %1714 = vmatpush1.msra.mxu0 %v1330
        %1715 = vmatprep.subr.mxu0 0.0
        %1716 = vmatpush1.msra.mxu0 %v1331
        %1717 = vmatprep.subr.mxu0 0.0
        %1718 = vmatpush1.msra.mxu0 %v1332
        %1719 = vmatprep.subr.mxu0 0.0
        %1720 = vmatpush1.msra.mxu0 %v1333
        %1721 = vmatprep.subr.mxu0 0.0
        %1722 = vmatpush1.msra.mxu0 %v1334
        %1723 = vmatprep.subr.mxu0 0.0
        %1724 = vmatpush1.msra.mxu0 %v1335
        %1725 = vmatprep.subr.mxu0 0.0
        %1726 = vmatpush1.msra.mxu0 %v1336
        %1727 = vmatprep.subr.mxu0 0.0
        %1728 = vmatpush1.msra.mxu0 %v1337
        %1729 = vmatprep.subr.mxu0 0.0
        %1730 = vmatpush1.msra.mxu0 %v1338
        %1731 = vmatprep.subr.mxu0 0.0
        %1732 = vmatpush1.msra.mxu0 %v1339
        %1733 = vmatprep.subr.mxu0 0.0
        %1734 = vmatpush1.msra.mxu0 %v1340
        %1735 = vmatprep.subr.mxu0 0.0
        %1736 = vmatpush1.msra.mxu0 %v1341
        %1737 = vmatprep.subr.mxu0 0.0
        %1738 = vmatpush1.msra.mxu0 %v1342
        %1739 = vmatprep.subr.mxu0 0.0
        %1740 = vmatpush1.msra.mxu0 %v1343
        %1741 = vmatprep.subr.mxu0 0.0
        %1742 = vmatpush1.msra.mxu0 %v1344
        %1743 = vmatprep.subr.mxu0 0.0
        %1744 = vmatpush1.msra.mxu0 %v1345
        %1745 = vmatprep.subr.mxu0 0.0
        %1746 = vmatpush1.msra.mxu0 %v1346
        %1747 = vmatprep.subr.mxu0 0.0
        %1748 = vmatpush1.msra.mxu0 %v1347
        %1749 = vmatprep.subr.mxu0 0.0
        %1750 = vmatpush1.msra.mxu0 %v1348
        %1751 = vmatprep.subr.mxu0 0.0
        %1752 = vmatpush1.msra.mxu0 %v1349
        %1753 = vmatprep.subr.mxu0 0.0
        %1754 = vmatpush1.msra.mxu0 %v1350
        %1755 = vmatprep.subr.mxu0 0.0
        %1756 = vmatpush1.msra.mxu0 %v1351
        %1757 = vmatprep.subr.mxu0 0.0
        %1758 = vmatpush1.msra.mxu0 %v1352
        %1759 = vmatprep.subr.mxu0 0.0
        %1760 = vmatpush1.msra.mxu0 %v1353
        %1761 = vmatprep.subr.mxu0 0.0
        %1762 = vmatpush1.msra.mxu0 %v1354
        %1763 = vmatprep.mubr.f32.mxu0 %v1051
        %1764 = vmatmul.mubr.f32.gmra.mrb[0].mxu0 %v1049
        %v1765 = vpop.f32.mrb[0].mxu0
        %v1766 = vadd.f32 %v1696, %v1765
        %v1767 = vpop.f32.mrb[0].mxu0
        %1768 = vdwg.mxu0
        %1769 = vmatprep.subr.mxu0 0.0
        %1770 = vmatpush1.msra.mxu0 %v1355
        %1771 = vmatprep.subr.mxu0 0.0
        %1772 = vmatpush1.msra.mxu0 %v1356
        %1773 = vmatprep.subr.mxu0 0.0
        %1774 = vmatpush1.msra.mxu0 %v1357
        %1775 = vmatprep.subr.mxu0 0.0
        %1776 = vmatpush1.msra.mxu0 %v1358
        %1777 = vmatprep.subr.mxu0 0.0
        %1778 = vmatpush1.msra.mxu0 %v1359
        %1779 = vmatprep.subr.mxu0 0.0
        %1780 = vmatpush1.msra.mxu0 %v1360
        %1781 = vmatprep.subr.mxu0 0.0
        %1782 = vmatpush1.msra.mxu0 %v1361
        %1783 = vmatprep.subr.mxu0 0.0
        %1784 = vmatpush1.msra.mxu0 %v1362
        %1785 = vmatprep.subr.mxu0 0.0
        %1786 = vmatpush1.msra.mxu0 %v1363
        %1787 = vmatprep.subr.mxu0 0.0
        %1788 = vmatpush1.msra.mxu0 %v1364
        %1789 = vmatprep.subr.mxu0 0.0
        %1790 = vmatpush1.msra.mxu0 %v1365
        %1791 = vmatprep.subr.mxu0 0.0
        %1792 = vmatpush1.msra.mxu0 %v1366
        %1793 = vmatprep.subr.mxu0 0.0
        %1794 = vmatpush1.msra.mxu0 %v1367
        %1795 = vmatprep.subr.mxu0 0.0
        %1796 = vmatpush1.msra.mxu0 %v1368
        %1797 = vmatprep.subr.mxu0 0.0
        %1798 = vmatpush1.msra.mxu0 %v1369
        %1799 = vmatprep.subr.mxu0 0.0
        %1800 = vmatpush1.msra.mxu0 %v1370
        %1801 = vmatprep.subr.mxu0 0.0
        %1802 = vmatpush1.msra.mxu0 %v1371
        %1803 = vmatprep.subr.mxu0 0.0
        %1804 = vmatpush1.msra.mxu0 %v1372
        %1805 = vmatprep.subr.mxu0 0.0
        %1806 = vmatpush1.msra.mxu0 %v1373
        %1807 = vmatprep.subr.mxu0 0.0
        %1808 = vmatpush1.msra.mxu0 %v1374
        %1809 = vmatprep.subr.mxu0 0.0
        %1810 = vmatpush1.msra.mxu0 %v1375
        %1811 = vmatprep.subr.mxu0 0.0
        %1812 = vmatpush1.msra.mxu0 %v1376
        %1813 = vmatprep.subr.mxu0 0.0
        %1814 = vmatpush1.msra.mxu0 %v1377
        %1815 = vmatprep.subr.mxu0 0.0
        %1816 = vmatpush1.msra.mxu0 %v1378
        %1817 = vmatprep.subr.mxu0 0.0
        %1818 = vmatpush1.msra.mxu0 %v1379
        %1819 = vmatprep.subr.mxu0 0.0
        %1820 = vmatpush1.msra.mxu0 %v1380
        %1821 = vmatprep.subr.mxu0 0.0
        %1822 = vmatpush1.msra.mxu0 %v1381
        %1823 = vmatprep.subr.mxu0 0.0
        %1824 = vmatpush1.msra.mxu0 %v1382
        %1825 = vmatprep.subr.mxu0 0.0
        %1826 = vmatpush1.msra.mxu0 %v1383
        %1827 = vmatprep.subr.mxu0 0.0
        %1828 = vmatpush1.msra.mxu0 %v1384
        %1829 = vmatprep.subr.mxu0 0.0
        %1830 = vmatpush1.msra.mxu0 %v1385
        %1831 = vmatprep.subr.mxu0 0.0
        %1832 = vmatpush1.msra.mxu0 %v1386
        %1833 = vmatprep.mubr.f32.mxu0 %v1122
        %1834 = vmatmul.mubr.f32.gmra.mrb[0].mxu0 %v1120
        %v1835 = vpop.f32.mrb[0].mxu0
        %v1836 = vadd.f32 %v1766, %v1835
        %v1837 = vpop.f32.mrb[0].mxu0
        %1838 = vdwg.mxu0
        %1839 = vmatprep.subr.mxu0 0.0
        %1840 = vmatpush1.msra.mxu0 %v1387
        %1841 = vmatprep.subr.mxu0 0.0
        %1842 = vmatpush1.msra.mxu0 %v1388
        %1843 = vmatprep.subr.mxu0 0.0
        %1844 = vmatpush1.msra.mxu0 %v1389
        %1845 = vmatprep.subr.mxu0 0.0
        %1846 = vmatpush1.msra.mxu0 %v1390
        %1847 = vmatprep.subr.mxu0 0.0
        %1848 = vmatpush1.msra.mxu0 %v1391
        %1849 = vmatprep.subr.mxu0 0.0
        %1850 = vmatpush1.msra.mxu0 %v1392
        %1851 = vmatprep.subr.mxu0 0.0
        %1852 = vmatpush1.msra.mxu0 %v1393
        %1853 = vmatprep.subr.mxu0 0.0
        %1854 = vmatpush1.msra.mxu0 %v1394
        %1855 = vmatprep.subr.mxu0 0.0
        %1856 = vmatpush1.msra.mxu0 %v1395
        %1857 = vmatprep.subr.mxu0 0.0
        %1858 = vmatpush1.msra.mxu0 %v1396
        %1859 = vmatprep.subr.mxu0 0.0
        %1860 = vmatpush1.msra.mxu0 %v1397
        %1861 = vmatprep.subr.mxu0 0.0
        %1862 = vmatpush1.msra.mxu0 %v1398
        %1863 = vmatprep.subr.mxu0 0.0
        %1864 = vmatpush1.msra.mxu0 %v1399
        %1865 = vmatprep.subr.mxu0 0.0
        %1866 = vmatpush1.msra.mxu0 %v1400
        %1867 = vmatprep.subr.mxu0 0.0
        %1868 = vmatpush1.msra.mxu0 %v1401
        %1869 = vmatprep.subr.mxu0 0.0
        %1870 = vmatpush1.msra.mxu0 %v1402
        %1871 = vmatprep.subr.mxu0 0.0
        %1872 = vmatpush1.msra.mxu0 %v1403
        %1873 = vmatprep.subr.mxu0 0.0
        %1874 = vmatpush1.msra.mxu0 %v1404
        %1875 = vmatprep.subr.mxu0 0.0
        %1876 = vmatpush1.msra.mxu0 %v1405
        %1877 = vmatprep.subr.mxu0 0.0
        %1878 = vmatpush1.msra.mxu0 %v1406
        %1879 = vmatprep.subr.mxu0 0.0
        %1880 = vmatpush1.msra.mxu0 %v1407
        %1881 = vmatprep.subr.mxu0 0.0
        %1882 = vmatpush1.msra.mxu0 %v1408
        %1883 = vmatprep.subr.mxu0 0.0
        %1884 = vmatpush1.msra.mxu0 %v1409
        %1885 = vmatprep.subr.mxu0 0.0
        %1886 = vmatpush1.msra.mxu0 %v1410
        %1887 = vmatprep.subr.mxu0 0.0
        %1888 = vmatpush1.msra.mxu0 %v1411
        %1889 = vmatprep.subr.mxu0 0.0
        %1890 = vmatpush1.msra.mxu0 %v1412
        %1891 = vmatprep.subr.mxu0 0.0
        %1892 = vmatpush1.msra.mxu0 %v1413
        %1893 = vmatprep.subr.mxu0 0.0
        %1894 = vmatpush1.msra.mxu0 %v1414
        %1895 = vmatprep.subr.mxu0 0.0
        %1896 = vmatpush1.msra.mxu0 %v1415
        %1897 = vmatprep.subr.mxu0 0.0
        %1898 = vmatpush1.msra.mxu0 %v1416
        %1899 = vmatprep.subr.mxu0 0.0
        %1900 = vmatpush1.msra.mxu0 %v1417
        %1901 = vmatprep.subr.mxu0 0.0
        %1902 = vmatpush1.msra.mxu0 %v1418
        %1903 = vmatprep.mubr.f32.mxu0 %v1193
        %1904 = vmatmul.mubr.f32.gmra.mrb[0].mxu0 %v1191
        %v1905 = vpop.f32.mrb[0].mxu0
        %v1906 = vadd.f32 %v1836, %v1905
        %v1907 = vpop.f32.mrb[0].mxu0
        %1908 = vdwg.mxu0
        %vm1909 = vcmask 64512
        %v1910 = vsel %vm1909, %v1906, 0.0
        %v1911 = vrot.slane %v1910, 4
        %v1912 = vadd.f32 %v1910, %v1911
        %v1913 = vrot.slane %v1912, 2
        %v1914 = vadd.f32 %v1912, %v1913
        %v1915 = vrot.slane %v1914, 1
        %v1916 = vadd.f32 %v1914, %v1915
        %v1917 = vmul.f32 %v765, %v765
        %v1918 = vmul.f32 %v767, %v767
        %v1919 = vmul.f32 %v836, %v836
        %v1920 = vmul.f32 %v838, %v838
        %v1921 = vmul.f32 %v907, %v907
        %v1922 = vmul.f32 %v909, %v909
        %v1923 = vmul.f32 %v978, %v978
        %v1924 = vmul.f32 %v980, %v980
        %v1925 = vmul.f32 %v1049, %v1049
        %v1926 = vmul.f32 %v1051, %v1051
        %v1927 = vmul.f32 %v1120, %v1120
        %v1928 = vmul.f32 %v1122, %v1122
        %v1929 = vmul.f32 %v1191, %v1191
        %v1930 = vmul.f32 %v1193, %v1193
        %1931 = vmatprep.subr.mxu0 0.0
        %1932 = vmatpush1.msra.mxu0 %v1195
        %1933 = vmatprep.subr.mxu0 0.0
        %1934 = vmatpush1.msra.mxu0 %v1196
        %1935 = vmatprep.subr.mxu0 0.0
        %1936 = vmatpush1.msra.mxu0 %v1197
        %1937 = vmatprep.subr.mxu0 0.0
        %1938 = vmatpush1.msra.mxu0 %v1198
        %1939 = vmatprep.subr.mxu0 0.0
        %1940 = vmatpush1.msra.mxu0 %v1199
        %1941 = vmatprep.subr.mxu0 0.0
        %1942 = vmatpush1.msra.mxu0 %v1200
        %1943 = vmatprep.subr.mxu0 0.0
        %1944 = vmatpush1.msra.mxu0 %v1201
        %1945 = vmatprep.subr.mxu0 0.0
        %1946 = vmatpush1.msra.mxu0 %v1202
        %1947 = vmatprep.subr.mxu0 0.0
        %1948 = vmatpush1.msra.mxu0 %v1203
        %1949 = vmatprep.subr.mxu0 0.0
        %1950 = vmatpush1.msra.mxu0 %v1204
        %1951 = vmatprep.subr.mxu0 0.0
        %1952 = vmatpush1.msra.mxu0 %v1205
        %1953 = vmatprep.subr.mxu0 0.0
        %1954 = vmatpush1.msra.mxu0 %v1206
        %1955 = vmatprep.subr.mxu0 0.0
        %1956 = vmatpush1.msra.mxu0 %v1207
        %1957 = vmatprep.subr.mxu0 0.0
        %1958 = vmatpush1.msra.mxu0 %v1208
        %1959 = vmatprep.subr.mxu0 0.0
        %1960 = vmatpush1.msra.mxu0 %v1209
        %1961 = vmatprep.subr.mxu0 0.0
        %1962 = vmatpush1.msra.mxu0 %v1210
        %1963 = vmatprep.subr.mxu0 0.0
        %1964 = vmatpush1.msra.mxu0 %v1211
        %1965 = vmatprep.subr.mxu0 0.0
        %1966 = vmatpush1.msra.mxu0 %v1212
        %1967 = vmatprep.subr.mxu0 0.0
        %1968 = vmatpush1.msra.mxu0 %v1213
        %1969 = vmatprep.subr.mxu0 0.0
        %1970 = vmatpush1.msra.mxu0 %v1214
        %1971 = vmatprep.subr.mxu0 0.0
        %1972 = vmatpush1.msra.mxu0 %v1215
        %1973 = vmatprep.subr.mxu0 0.0
        %1974 = vmatpush1.msra.mxu0 %v1216
        %1975 = vmatprep.subr.mxu0 0.0
        %1976 = vmatpush1.msra.mxu0 %v1217
        %1977 = vmatprep.subr.mxu0 0.0
        %1978 = vmatpush1.msra.mxu0 %v1218
        %1979 = vmatprep.subr.mxu0 0.0
        %1980 = vmatpush1.msra.mxu0 %v1219
        %1981 = vmatprep.subr.mxu0 0.0
        %1982 = vmatpush1.msra.mxu0 %v1220
        %1983 = vmatprep.subr.mxu0 0.0
        %1984 = vmatpush1.msra.mxu0 %v1221
        %1985 = vmatprep.subr.mxu0 0.0
        %1986 = vmatpush1.msra.mxu0 %v1222
        %1987 = vmatprep.subr.mxu0 0.0
        %1988 = vmatpush1.msra.mxu0 %v1223
        %1989 = vmatprep.subr.mxu0 0.0
        %1990 = vmatpush1.msra.mxu0 %v1224
        %1991 = vmatprep.subr.mxu0 0.0
        %1992 = vmatpush1.msra.mxu0 %v1225
        %1993 = vmatprep.subr.mxu0 0.0
        %1994 = vmatpush1.msra.mxu0 %v1226
        %1995 = vmatprep.mubr.f32.mxu0 %v1918
        %1996 = vmatmul.mubr.f32.gmra.mrb[0].mxu0 %v1917
        %v1997 = vpop.f32.mrb[0].mxu0
        %v1998 = vadd.f32 0.0, %v1997
        %v1999 = vpop.f32.mrb[0].mxu0
        %2000 = vdwg.mxu0
        %2001 = vmatprep.subr.mxu0 0.0
        %2002 = vmatpush1.msra.mxu0 %v1227
        %2003 = vmatprep.subr.mxu0 0.0
        %2004 = vmatpush1.msra.mxu0 %v1228
        %2005 = vmatprep.subr.mxu0 0.0
        %2006 = vmatpush1.msra.mxu0 %v1229
        %2007 = vmatprep.subr.mxu0 0.0
        %2008 = vmatpush1.msra.mxu0 %v1230
        %2009 = vmatprep.subr.mxu0 0.0
        %2010 = vmatpush1.msra.mxu0 %v1231
        %2011 = vmatprep.subr.mxu0 0.0
        %2012 = vmatpush1.msra.mxu0 %v1232
        %2013 = vmatprep.subr.mxu0 0.0
        %2014 = vmatpush1.msra.mxu0 %v1233
        %2015 = vmatprep.subr.mxu0 0.0
        %2016 = vmatpush1.msra.mxu0 %v1234
        %2017 = vmatprep.subr.mxu0 0.0
        %2018 = vmatpush1.msra.mxu0 %v1235
        %2019 = vmatprep.subr.mxu0 0.0
        %2020 = vmatpush1.msra.mxu0 %v1236
        %2021 = vmatprep.subr.mxu0 0.0
        %2022 = vmatpush1.msra.mxu0 %v1237
        %2023 = vmatprep.subr.mxu0 0.0
        %2024 = vmatpush1.msra.mxu0 %v1238
        %2025 = vmatprep.subr.mxu0 0.0
        %2026 = vmatpush1.msra.mxu0 %v1239
        %2027 = vmatprep.subr.mxu0 0.0
        %2028 = vmatpush1.msra.mxu0 %v1240
        %2029 = vmatprep.subr.mxu0 0.0
        %2030 = vmatpush1.msra.mxu0 %v1241
        %2031 = vmatprep.subr.mxu0 0.0
        %2032 = vmatpush1.msra.mxu0 %v1242
        %2033 = vmatprep.subr.mxu0 0.0
        %2034 = vmatpush1.msra.mxu0 %v1243
        %2035 = vmatprep.subr.mxu0 0.0
        %2036 = vmatpush1.msra.mxu0 %v1244
        %2037 = vmatprep.subr.mxu0 0.0
        %2038 = vmatpush1.msra.mxu0 %v1245
        %2039 = vmatprep.subr.mxu0 0.0
        %2040 = vmatpush1.msra.mxu0 %v1246
        %2041 = vmatprep.subr.mxu0 0.0
        %2042 = vmatpush1.msra.mxu0 %v1247
        %2043 = vmatprep.subr.mxu0 0.0
        %2044 = vmatpush1.msra.mxu0 %v1248
        %2045 = vmatprep.subr.mxu0 0.0
        %2046 = vmatpush1.msra.mxu0 %v1249
        %2047 = vmatprep.subr.mxu0 0.0
        %2048 = vmatpush1.msra.mxu0 %v1250
        %2049 = vmatprep.subr.mxu0 0.0
        %2050 = vmatpush1.msra.mxu0 %v1251
        %2051 = vmatprep.subr.mxu0 0.0
        %2052 = vmatpush1.msra.mxu0 %v1252
        %2053 = vmatprep.subr.mxu0 0.0
        %2054 = vmatpush1.msra.mxu0 %v1253
        %2055 = vmatprep.subr.mxu0 0.0
        %2056 = vmatpush1.msra.mxu0 %v1254
        %2057 = vmatprep.subr.mxu0 0.0
        %2058 = vmatpush1.msra.mxu0 %v1255
        %2059 = vmatprep.subr.mxu0 0.0
        %2060 = vmatpush1.msra.mxu0 %v1256
        %2061 = vmatprep.subr.mxu0 0.0
        %2062 = vmatpush1.msra.mxu0 %v1257
        %2063 = vmatprep.subr.mxu0 0.0
        %2064 = vmatpush1.msra.mxu0 %v1258
        %2065 = vmatprep.mubr.f32.mxu0 %v1920
        %2066 = vmatmul.mubr.f32.gmra.mrb[0].mxu0 %v1919
        %v2067 = vpop.f32.mrb[0].mxu0
        %v2068 = vadd.f32 %v1998, %v2067
        %v2069 = vpop.f32.mrb[0].mxu0
        %2070 = vdwg.mxu0
        %2071 = vmatprep.subr.mxu0 0.0
        %2072 = vmatpush1.msra.mxu0 %v1259
        %2073 = vmatprep.subr.mxu0 0.0
        %2074 = vmatpush1.msra.mxu0 %v1260
        %2075 = vmatprep.subr.mxu0 0.0
        %2076 = vmatpush1.msra.mxu0 %v1261
        %2077 = vmatprep.subr.mxu0 0.0
        %2078 = vmatpush1.msra.mxu0 %v1262
        %2079 = vmatprep.subr.mxu0 0.0
        %2080 = vmatpush1.msra.mxu0 %v1263
        %2081 = vmatprep.subr.mxu0 0.0
        %2082 = vmatpush1.msra.mxu0 %v1264
        %2083 = vmatprep.subr.mxu0 0.0
        %2084 = vmatpush1.msra.mxu0 %v1265
        %2085 = vmatprep.subr.mxu0 0.0
        %2086 = vmatpush1.msra.mxu0 %v1266
        %2087 = vmatprep.subr.mxu0 0.0
        %2088 = vmatpush1.msra.mxu0 %v1267
        %2089 = vmatprep.subr.mxu0 0.0
        %2090 = vmatpush1.msra.mxu0 %v1268
        %2091 = vmatprep.subr.mxu0 0.0
        %2092 = vmatpush1.msra.mxu0 %v1269
        %2093 = vmatprep.subr.mxu0 0.0
        %2094 = vmatpush1.msra.mxu0 %v1270
        %2095 = vmatprep.subr.mxu0 0.0
        %2096 = vmatpush1.msra.mxu0 %v1271
        %2097 = vmatprep.subr.mxu0 0.0
        %2098 = vmatpush1.msra.mxu0 %v1272
        %2099 = vmatprep.subr.mxu0 0.0
        %2100 = vmatpush1.msra.mxu0 %v1273
        %2101 = vmatprep.subr.mxu0 0.0
        %2102 = vmatpush1.msra.mxu0 %v1274
        %2103 = vmatprep.subr.mxu0 0.0
        %2104 = vmatpush1.msra.mxu0 %v1275
        %2105 = vmatprep.subr.mxu0 0.0
        %2106 = vmatpush1.msra.mxu0 %v1276
        %2107 = vmatprep.subr.mxu0 0.0
        %2108 = vmatpush1.msra.mxu0 %v1277
        %2109 = vmatprep.subr.mxu0 0.0
        %2110 = vmatpush1.msra.mxu0 %v1278
        %2111 = vmatprep.subr.mxu0 0.0
        %2112 = vmatpush1.msra.mxu0 %v1279
        %2113 = vmatprep.subr.mxu0 0.0
        %2114 = vmatpush1.msra.mxu0 %v1280
        %2115 = vmatprep.subr.mxu0 0.0
        %2116 = vmatpush1.msra.mxu0 %v1281
        %2117 = vmatprep.subr.mxu0 0.0
        %2118 = vmatpush1.msra.mxu0 %v1282
        %2119 = vmatprep.subr.mxu0 0.0
        %2120 = vmatpush1.msra.mxu0 %v1283
        %2121 = vmatprep.subr.mxu0 0.0
        %2122 = vmatpush1.msra.mxu0 %v1284
        %2123 = vmatprep.subr.mxu0 0.0
        %2124 = vmatpush1.msra.mxu0 %v1285
        %2125 = vmatprep.subr.mxu0 0.0
        %2126 = vmatpush1.msra.mxu0 %v1286
        %2127 = vmatprep.subr.mxu0 0.0
        %2128 = vmatpush1.msra.mxu0 %v1287
        %2129 = vmatprep.subr.mxu0 0.0
        %2130 = vmatpush1.msra.mxu0 %v1288
        %2131 = vmatprep.subr.mxu0 0.0
        %2132 = vmatpush1.msra.mxu0 %v1289
        %2133 = vmatprep.subr.mxu0 0.0
        %2134 = vmatpush1.msra.mxu0 %v1290
        %2135 = vmatprep.mubr.f32.mxu0 %v1922
        %2136 = vmatmul.mubr.f32.gmra.mrb[0].mxu0 %v1921
        %v2137 = vpop.f32.mrb[0].mxu0
        %v2138 = vadd.f32 %v2068, %v2137
        %v2139 = vpop.f32.mrb[0].mxu0
        %2140 = vdwg.mxu0
        %2141 = vmatprep.subr.mxu0 0.0
        %2142 = vmatpush1.msra.mxu0 %v1291
        %2143 = vmatprep.subr.mxu0 0.0
        %2144 = vmatpush1.msra.mxu0 %v1292
        %2145 = vmatprep.subr.mxu0 0.0
        %2146 = vmatpush1.msra.mxu0 %v1293
        %2147 = vmatprep.subr.mxu0 0.0
        %2148 = vmatpush1.msra.mxu0 %v1294
        %2149 = vmatprep.subr.mxu0 0.0
        %2150 = vmatpush1.msra.mxu0 %v1295
        %2151 = vmatprep.subr.mxu0 0.0
        %2152 = vmatpush1.msra.mxu0 %v1296
        %2153 = vmatprep.subr.mxu0 0.0
        %2154 = vmatpush1.msra.mxu0 %v1297
        %2155 = vmatprep.subr.mxu0 0.0
        %2156 = vmatpush1.msra.mxu0 %v1298
        %2157 = vmatprep.subr.mxu0 0.0
        %2158 = vmatpush1.msra.mxu0 %v1299
        %2159 = vmatprep.subr.mxu0 0.0
        %2160 = vmatpush1.msra.mxu0 %v1300
        %2161 = vmatprep.subr.mxu0 0.0
        %2162 = vmatpush1.msra.mxu0 %v1301
        %2163 = vmatprep.subr.mxu0 0.0
        %2164 = vmatpush1.msra.mxu0 %v1302
        %2165 = vmatprep.subr.mxu0 0.0
        %2166 = vmatpush1.msra.mxu0 %v1303
        %2167 = vmatprep.subr.mxu0 0.0
        %2168 = vmatpush1.msra.mxu0 %v1304
        %2169 = vmatprep.subr.mxu0 0.0
        %2170 = vmatpush1.msra.mxu0 %v1305
        %2171 = vmatprep.subr.mxu0 0.0
        %2172 = vmatpush1.msra.mxu0 %v1306
        %2173 = vmatprep.subr.mxu0 0.0
        %2174 = vmatpush1.msra.mxu0 %v1307
        %2175 = vmatprep.subr.mxu0 0.0
        %2176 = vmatpush1.msra.mxu0 %v1308
        %2177 = vmatprep.subr.mxu0 0.0
        %2178 = vmatpush1.msra.mxu0 %v1309
        %2179 = vmatprep.subr.mxu0 0.0
        %2180 = vmatpush1.msra.mxu0 %v1310
        %2181 = vmatprep.subr.mxu0 0.0
        %2182 = vmatpush1.msra.mxu0 %v1311
        %2183 = vmatprep.subr.mxu0 0.0
        %2184 = vmatpush1.msra.mxu0 %v1312
        %2185 = vmatprep.subr.mxu0 0.0
        %2186 = vmatpush1.msra.mxu0 %v1313
        %2187 = vmatprep.subr.mxu0 0.0
        %2188 = vmatpush1.msra.mxu0 %v1314
        %2189 = vmatprep.subr.mxu0 0.0
        %2190 = vmatpush1.msra.mxu0 %v1315
        %2191 = vmatprep.subr.mxu0 0.0
        %2192 = vmatpush1.msra.mxu0 %v1316
        %2193 = vmatprep.subr.mxu0 0.0
        %2194 = vmatpush1.msra.mxu0 %v1317
        %2195 = vmatprep.subr.mxu0 0.0
        %2196 = vmatpush1.msra.mxu0 %v1318
        %2197 = vmatprep.subr.mxu0 0.0
        %2198 = vmatpush1.msra.mxu0 %v1319
        %2199 = vmatprep.subr.mxu0 0.0
        %2200 = vmatpush1.msra.mxu0 %v1320
        %2201 = vmatprep.subr.mxu0 0.0
        %2202 = vmatpush1.msra.mxu0 %v1321
        %2203 = vmatprep.subr.mxu0 0.0
        %2204 = vmatpush1.msra.mxu0 %v1322
        %2205 = vmatprep.mubr.f32.mxu0 %v1924
        %2206 = vmatmul.mubr.f32.gmra.mrb[0].mxu0 %v1923
        %v2207 = vpop.f32.mrb[0].mxu0
        %v2208 = vadd.f32 %v2138, %v2207
        %v2209 = vpop.f32.mrb[0].mxu0
        %2210 = vdwg.mxu0
        %2211 = vmatprep.subr.mxu0 0.0
        %2212 = vmatpush1.msra.mxu0 %v1323
        %2213 = vmatprep.subr.mxu0 0.0
        %2214 = vmatpush1.msra.mxu0 %v1324
        %2215 = vmatprep.subr.mxu0 0.0
        %2216 = vmatpush1.msra.mxu0 %v1325
        %2217 = vmatprep.subr.mxu0 0.0
        %2218 = vmatpush1.msra.mxu0 %v1326
        %2219 = vmatprep.subr.mxu0 0.0
        %2220 = vmatpush1.msra.mxu0 %v1327
        %2221 = vmatprep.subr.mxu0 0.0
        %2222 = vmatpush1.msra.mxu0 %v1328
        %2223 = vmatprep.subr.mxu0 0.0
        %2224 = vmatpush1.msra.mxu0 %v1329
        %2225 = vmatprep.subr.mxu0 0.0
        %2226 = vmatpush1.msra.mxu0 %v1330
        %2227 = vmatprep.subr.mxu0 0.0
        %2228 = vmatpush1.msra.mxu0 %v1331
        %2229 = vmatprep.subr.mxu0 0.0
        %2230 = vmatpush1.msra.mxu0 %v1332
        %2231 = vmatprep.subr.mxu0 0.0
        %2232 = vmatpush1.msra.mxu0 %v1333
        %2233 = vmatprep.subr.mxu0 0.0
        %2234 = vmatpush1.msra.mxu0 %v1334
        %2235 = vmatprep.subr.mxu0 0.0
        %2236 = vmatpush1.msra.mxu0 %v1335
        %2237 = vmatprep.subr.mxu0 0.0
        %2238 = vmatpush1.msra.mxu0 %v1336
        %2239 = vmatprep.subr.mxu0 0.0
        %2240 = vmatpush1.msra.mxu0 %v1337
        %2241 = vmatprep.subr.mxu0 0.0
        %2242 = vmatpush1.msra.mxu0 %v1338
        %2243 = vmatprep.subr.mxu0 0.0
        %2244 = vmatpush1.msra.mxu0 %v1339
        %2245 = vmatprep.subr.mxu0 0.0
        %2246 = vmatpush1.msra.mxu0 %v1340
        %2247 = vmatprep.subr.mxu0 0.0
        %2248 = vmatpush1.msra.mxu0 %v1341
        %2249 = vmatprep.subr.mxu0 0.0
        %2250 = vmatpush1.msra.mxu0 %v1342
        %2251 = vmatprep.subr.mxu0 0.0
        %2252 = vmatpush1.msra.mxu0 %v1343
        %2253 = vmatprep.subr.mxu0 0.0
        %2254 = vmatpush1.msra.mxu0 %v1344
        %2255 = vmatprep.subr.mxu0 0.0
        %2256 = vmatpush1.msra.mxu0 %v1345
        %2257 = vmatprep.subr.mxu0 0.0
        %2258 = vmatpush1.msra.mxu0 %v1346
        %2259 = vmatprep.subr.mxu0 0.0
        %2260 = vmatpush1.msra.mxu0 %v1347
        %2261 = vmatprep.subr.mxu0 0.0
        %2262 = vmatpush1.msra.mxu0 %v1348
        %2263 = vmatprep.subr.mxu0 0.0
        %2264 = vmatpush1.msra.mxu0 %v1349
        %2265 = vmatprep.subr.mxu0 0.0
        %2266 = vmatpush1.msra.mxu0 %v1350
        %2267 = vmatprep.subr.mxu0 0.0
        %2268 = vmatpush1.msra.mxu0 %v1351
        %2269 = vmatprep.subr.mxu0 0.0
        %2270 = vmatpush1.msra.mxu0 %v1352
        %2271 = vmatprep.subr.mxu0 0.0
        %2272 = vmatpush1.msra.mxu0 %v1353
        %2273 = vmatprep.subr.mxu0 0.0
        %2274 = vmatpush1.msra.mxu0 %v1354
        %2275 = vmatprep.mubr.f32.mxu0 %v1926
        %2276 = vmatmul.mubr.f32.gmra.mrb[0].mxu0 %v1925
        %v2277 = vpop.f32.mrb[0].mxu0
        %v2278 = vadd.f32 %v2208, %v2277
        %v2279 = vpop.f32.mrb[0].mxu0
        %2280 = vdwg.mxu0
        %2281 = vmatprep.subr.mxu0 0.0
        %2282 = vmatpush1.msra.mxu0 %v1355
        %2283 = vmatprep.subr.mxu0 0.0
        %2284 = vmatpush1.msra.mxu0 %v1356
        %2285 = vmatprep.subr.mxu0 0.0
        %2286 = vmatpush1.msra.mxu0 %v1357
        %2287 = vmatprep.subr.mxu0 0.0
        %2288 = vmatpush1.msra.mxu0 %v1358
        %2289 = vmatprep.subr.mxu0 0.0
        %2290 = vmatpush1.msra.mxu0 %v1359
        %2291 = vmatprep.subr.mxu0 0.0
        %2292 = vmatpush1.msra.mxu0 %v1360
        %2293 = vmatprep.subr.mxu0 0.0
        %2294 = vmatpush1.msra.mxu0 %v1361
        %2295 = vmatprep.subr.mxu0 0.0
        %2296 = vmatpush1.msra.mxu0 %v1362
        %2297 = vmatprep.subr.mxu0 0.0
        %2298 = vmatpush1.msra.mxu0 %v1363
        %2299 = vmatprep.subr.mxu0 0.0
        %2300 = vmatpush1.msra.mxu0 %v1364
        %2301 = vmatprep.subr.mxu0 0.0
        %2302 = vmatpush1.msra.mxu0 %v1365
        %2303 = vmatprep.subr.mxu0 0.0
        %2304 = vmatpush1.msra.mxu0 %v1366
        %2305 = vmatprep.subr.mxu0 0.0
        %2306 = vmatpush1.msra.mxu0 %v1367
        %2307 = vmatprep.subr.mxu0 0.0
        %2308 = vmatpush1.msra.mxu0 %v1368
        %2309 = vmatprep.subr.mxu0 0.0
        %2310 = vmatpush1.msra.mxu0 %v1369
        %2311 = vmatprep.subr.mxu0 0.0
        %2312 = vmatpush1.msra.mxu0 %v1370
        %2313 = vmatprep.subr.mxu0 0.0
        %2314 = vmatpush1.msra.mxu0 %v1371
        %2315 = vmatprep.subr.mxu0 0.0
        %2316 = vmatpush1.msra.mxu0 %v1372
        %2317 = vmatprep.subr.mxu0 0.0
        %2318 = vmatpush1.msra.mxu0 %v1373
        %2319 = vmatprep.subr.mxu0 0.0
        %2320 = vmatpush1.msra.mxu0 %v1374
        %2321 = vmatprep.subr.mxu0 0.0
        %2322 = vmatpush1.msra.mxu0 %v1375
        %2323 = vmatprep.subr.mxu0 0.0
        %2324 = vmatpush1.msra.mxu0 %v1376
        %2325 = vmatprep.subr.mxu0 0.0
        %2326 = vmatpush1.msra.mxu0 %v1377
        %2327 = vmatprep.subr.mxu0 0.0
        %2328 = vmatpush1.msra.mxu0 %v1378
        %2329 = vmatprep.subr.mxu0 0.0
        %2330 = vmatpush1.msra.mxu0 %v1379
        %2331 = vmatprep.subr.mxu0 0.0
        %2332 = vmatpush1.msra.mxu0 %v1380
        %2333 = vmatprep.subr.mxu0 0.0
        %2334 = vmatpush1.msra.mxu0 %v1381
        %2335 = vmatprep.subr.mxu0 0.0
        %2336 = vmatpush1.msra.mxu0 %v1382
        %2337 = vmatprep.subr.mxu0 0.0
        %2338 = vmatpush1.msra.mxu0 %v1383
        %2339 = vmatprep.subr.mxu0 0.0
        %2340 = vmatpush1.msra.mxu0 %v1384
        %2341 = vmatprep.subr.mxu0 0.0
        %2342 = vmatpush1.msra.mxu0 %v1385
        %2343 = vmatprep.subr.mxu0 0.0
        %2344 = vmatpush1.msra.mxu0 %v1386
        %2345 = vmatprep.mubr.f32.mxu0 %v1928
        %2346 = vmatmul.mubr.f32.gmra.mrb[0].mxu0 %v1927
        %v2347 = vpop.f32.mrb[0].mxu0
        %v2348 = vadd.f32 %v2278, %v2347
        %v2349 = vpop.f32.mrb[0].mxu0
        %2350 = vdwg.mxu0
        %2351 = vmatprep.subr.mxu0 0.0
        %2352 = vmatpush1.msra.mxu0 %v1387
        %2353 = vmatprep.subr.mxu0 0.0
        %2354 = vmatpush1.msra.mxu0 %v1388
        %2355 = vmatprep.subr.mxu0 0.0
        %2356 = vmatpush1.msra.mxu0 %v1389
        %2357 = vmatprep.subr.mxu0 0.0
        %2358 = vmatpush1.msra.mxu0 %v1390
        %2359 = vmatprep.subr.mxu0 0.0
        %2360 = vmatpush1.msra.mxu0 %v1391
        %2361 = vmatprep.subr.mxu0 0.0
        %2362 = vmatpush1.msra.mxu0 %v1392
        %2363 = vmatprep.subr.mxu0 0.0
        %2364 = vmatpush1.msra.mxu0 %v1393
        %2365 = vmatprep.subr.mxu0 0.0
        %2366 = vmatpush1.msra.mxu0 %v1394
        %2367 = vmatprep.subr.mxu0 0.0
        %2368 = vmatpush1.msra.mxu0 %v1395
        %2369 = vmatprep.subr.mxu0 0.0
        %2370 = vmatpush1.msra.mxu0 %v1396
        %2371 = vmatprep.subr.mxu0 0.0
        %2372 = vmatpush1.msra.mxu0 %v1397
        %2373 = vmatprep.subr.mxu0 0.0
        %2374 = vmatpush1.msra.mxu0 %v1398
        %2375 = vmatprep.subr.mxu0 0.0
        %2376 = vmatpush1.msra.mxu0 %v1399
        %2377 = vmatprep.subr.mxu0 0.0
        %2378 = vmatpush1.msra.mxu0 %v1400
        %2379 = vmatprep.subr.mxu0 0.0
        %2380 = vmatpush1.msra.mxu0 %v1401
        %2381 = vmatprep.subr.mxu0 0.0
        %2382 = vmatpush1.msra.mxu0 %v1402
        %2383 = vmatprep.subr.mxu0 0.0
        %2384 = vmatpush1.msra.mxu0 %v1403
        %2385 = vmatprep.subr.mxu0 0.0
        %2386 = vmatpush1.msra.mxu0 %v1404
        %2387 = vmatprep.subr.mxu0 0.0
        %2388 = vmatpush1.msra.mxu0 %v1405
        %2389 = vmatprep.subr.mxu0 0.0
        %2390 = vmatpush1.msra.mxu0 %v1406
        %2391 = vmatprep.subr.mxu0 0.0
        %2392 = vmatpush1.msra.mxu0 %v1407
        %2393 = vmatprep.subr.mxu0 0.0
        %2394 = vmatpush1.msra.mxu0 %v1408
        %2395 = vmatprep.subr.mxu0 0.0
        %2396 = vmatpush1.msra.mxu0 %v1409
        %2397 = vmatprep.subr.mxu0 0.0
        %2398 = vmatpush1.msra.mxu0 %v1410
        %2399 = vmatprep.subr.mxu0 0.0
        %2400 = vmatpush1.msra.mxu0 %v1411
        %2401 = vmatprep.subr.mxu0 0.0
        %2402 = vmatpush1.msra.mxu0 %v1412
        %2403 = vmatprep.subr.mxu0 0.0
        %2404 = vmatpush1.msra.mxu0 %v1413
        %2405 = vmatprep.subr.mxu0 0.0
        %2406 = vmatpush1.msra.mxu0 %v1414
        %2407 = vmatprep.subr.mxu0 0.0
        %2408 = vmatpush1.msra.mxu0 %v1415
        %2409 = vmatprep.subr.mxu0 0.0
        %2410 = vmatpush1.msra.mxu0 %v1416
        %2411 = vmatprep.subr.mxu0 0.0
        %2412 = vmatpush1.msra.mxu0 %v1417
        %2413 = vmatprep.subr.mxu0 0.0
        %2414 = vmatpush1.msra.mxu0 %v1418
        %2415 = vmatprep.mubr.f32.mxu0 %v1930
        %2416 = vmatmul.mubr.f32.gmra.mrb[0].mxu0 %v1929
        %v2417 = vpop.f32.mrb[0].mxu0
        %v2418 = vadd.f32 %v2348, %v2417
        %v2419 = vpop.f32.mrb[0].mxu0
        %2420 = vdwg.mxu0
        %v2421 = vsel %vm1909, %v2418, 0.0
        %v2422 = vrot.slane %v2421, 4
        %v2423 = vadd.f32 %v2421, %v2422
        %v2424 = vrot.slane %v2423, 2
        %v2425 = vadd.f32 %v2423, %v2424
        %v2426 = vrot.slane %v2425, 1
        %v2427 = vadd.f32 %v2425, %v2426
        %v2428 = vmul.f32 %v1916, 0.0006377551
        %v2429 = vmul.f32 %v2427, 0.0006377551
        %v2430 = vmul.f32 %v2428, %v2428
        %v2431 = vsub.f32 %v2429, %v2430
        %v2432 = vmax.f32 %v2431, 0.0
        %v2433 = vadd.f32 %v2432, 1e-05
        %v2434 = vrsqrt.pop %v2433
        %v2435 = vmul.f32 %v2428, %v2434
        %vm2436 = vcmask 1040384
        %v2437 = vsel %vm2436, %v2434, %v2435
        %v2438 = vld [vmem:[%s6] sm:$0xff]
        %v2439 = vld [vmem:[%s6 + $0x8] sm:$0xff]
        %v2440 = vld [vmem:[%s6 + $0x10] sm:$0xff]
        %v2441 = vld [vmem:[%s6 + $0x18] sm:$0xff]
        %v2442 = vld [vmem:[%s6 + $0x20] sm:$0xff]
        %v2443 = vld [vmem:[%s6 + $0x28] sm:$0xff]
        %v2444 = vld [vmem:[%s6 + $0x30] sm:$0xff]
        %v2445 = vld [vmem:[%s6 + $0x38] sm:$0xff]
        %v2446 = vld [vmem:[%s6 + $0x40] sm:$0xff]
        %v2447 = vld [vmem:[%s6 + $0x48] sm:$0xff]
        %v2448 = vld [vmem:[%s6 + $0x50] sm:$0xff]
        %v2449 = vld [vmem:[%s6 + $0x58] sm:$0xff]
        %v2450 = vld [vmem:[%s6 + $0x60] sm:$0xff]
        %v2451 = vld [vmem:[%s6 + $0x68] sm:$0xff]
        %v2453 = vsel %vm1909, %v2437, 0
        %2455 = vmatprep.subr.mxu0 %v2439
        %2456 = vmatpush1.msra.mxu0 %v2438
        %2457 = vmatprep.subr.mxu0 0.0
        %2458 = vmatpush1.msra.mxu0 0.0
        %2459 = vmatprep.subr.mxu0 0.0
        %2460 = vmatpush1.msra.mxu0 0.0
        %2461 = vmatprep.subr.mxu0 0.0
        %2462 = vmatpush1.msra.mxu0 0.0
        %2463 = vmatprep.subr.mxu0 0.0
        %2464 = vmatpush1.msra.mxu0 0.0
        %2465 = vmatprep.subr.mxu0 0.0
        %2466 = vmatpush1.msra.mxu0 0.0
        %2467 = vmatprep.subr.mxu0 0.0
        %2468 = vmatpush1.msra.mxu0 0.0
        %2469 = vmatprep.subr.mxu0 0.0
        %2470 = vmatpush1.msra.mxu0 0.0
        %2471 = vmatprep.subr.mxu0 0.0
        %2472 = vmatpush1.msra.mxu0 0.0
        %2473 = vmatprep.subr.mxu0 0.0
        %2474 = vmatpush1.msra.mxu0 0.0
        %2475 = vmatprep.subr.mxu0 0.0
        %2476 = vmatpush1.msra.mxu0 0.0
        %2477 = vmatprep.subr.mxu0 0.0
        %2478 = vmatpush1.msra.mxu0 0.0
        %2479 = vmatprep.subr.mxu0 0.0
        %2480 = vmatpush1.msra.mxu0 0.0
        %2481 = vmatprep.subr.mxu0 0.0
        %2482 = vmatpush1.msra.mxu0 0.0
        %2483 = vmatprep.subr.mxu0 0.0
        %2484 = vmatpush1.msra.mxu0 0.0
        %2485 = vmatprep.subr.mxu0 0.0
        %2486 = vmatpush1.msra.mxu0 0.0
        %2487 = vmatprep.subr.mxu0 0.0
        %2488 = vmatpush1.msra.mxu0 0.0
        %2489 = vmatprep.subr.mxu0 0.0
        %2490 = vmatpush1.msra.mxu0 0.0
        %2491 = vmatprep.subr.mxu0 0.0
        %2492 = vmatpush1.msra.mxu0 0.0
        %2493 = vmatprep.subr.mxu0 0.0
        %2494 = vmatpush1.msra.mxu0 0.0
        %2495 = vmatprep.subr.mxu0 0.0
        %2496 = vmatpush1.msra.mxu0 0.0
        %2497 = vmatprep.subr.mxu0 0.0
        %2498 = vmatpush1.msra.mxu0 0.0
        %2499 = vmatprep.subr.mxu0 0.0
        %2500 = vmatpush1.msra.mxu0 0.0
        %2501 = vmatprep.subr.mxu0 0.0
        %2502 = vmatpush1.msra.mxu0 0.0
        %2503 = vmatprep.subr.mxu0 0.0
        %2504 = vmatpush1.msra.mxu0 0.0
        %2505 = vmatprep.subr.mxu0 0.0
        %2506 = vmatpush1.msra.mxu0 0.0
        %2507 = vmatprep.subr.mxu0 0.0
        %2508 = vmatpush1.msra.mxu0 0.0
        %2509 = vmatprep.subr.mxu0 0.0
        %2510 = vmatpush1.msra.mxu0 0.0
        %2511 = vmatprep.subr.mxu0 0.0
        %2512 = vmatpush1.msra.mxu0 0.0
        %2513 = vmatprep.subr.mxu0 0.0
        %2514 = vmatpush1.msra.mxu0 0.0
        %2515 = vmatprep.subr.mxu0 0.0
        %2516 = vmatpush1.msra.mxu0 0.0
        %2517 = vmatprep.subr.mxu0 0.0
        %2518 = vmatpush1.msra.mxu0 0.0
        %2519 = vmatprep.mubr.f32.mxu0 0.0
        %2520 = vmatmul.mubr.f32.gmra.mrb[0].mxu0 %v2453
        %v2521 = vpop.f32.mrb[0].mxu0
        %v2522 = vadd.f32 0.0, %v2521
        %v2523 = vpop.f32.mrb[0].mxu0
        %v2524 = vadd.f32 0.0, %v2523
        %2525 = vdwg.mxu0
        %2526 = vmatprep.subr.mxu0 %v2441
        %2527 = vmatpush1.msra.mxu0 %v2440
        %2528 = vmatprep.subr.mxu0 0.0
        %2529 = vmatpush1.msra.mxu0 0.0
        %2530 = vmatprep.subr.mxu0 0.0
        %2531 = vmatpush1.msra.mxu0 0.0
        %2532 = vmatprep.subr.mxu0 0.0
        %2533 = vmatpush1.msra.mxu0 0.0
        %2534 = vmatprep.subr.mxu0 0.0
        %2535 = vmatpush1.msra.mxu0 0.0
        %2536 = vmatprep.subr.mxu0 0.0
        %2537 = vmatpush1.msra.mxu0 0.0
        %2538 = vmatprep.subr.mxu0 0.0
        %2539 = vmatpush1.msra.mxu0 0.0
        %2540 = vmatprep.subr.mxu0 0.0
        %2541 = vmatpush1.msra.mxu0 0.0
        %2542 = vmatprep.subr.mxu0 0.0
        %2543 = vmatpush1.msra.mxu0 0.0
        %2544 = vmatprep.subr.mxu0 0.0
        %2545 = vmatpush1.msra.mxu0 0.0
        %2546 = vmatprep.subr.mxu0 0.0
        %2547 = vmatpush1.msra.mxu0 0.0
        %2548 = vmatprep.subr.mxu0 0.0
        %2549 = vmatpush1.msra.mxu0 0.0
        %2550 = vmatprep.subr.mxu0 0.0
        %2551 = vmatpush1.msra.mxu0 0.0
        %2552 = vmatprep.subr.mxu0 0.0
        %2553 = vmatpush1.msra.mxu0 0.0
        %2554 = vmatprep.subr.mxu0 0.0
        %2555 = vmatpush1.msra.mxu0 0.0
        %2556 = vmatprep.subr.mxu0 0.0
        %2557 = vmatpush1.msra.mxu0 0.0
        %2558 = vmatprep.subr.mxu0 0.0
        %2559 = vmatpush1.msra.mxu0 0.0
        %2560 = vmatprep.subr.mxu0 0.0
        %2561 = vmatpush1.msra.mxu0 0.0
        %2562 = vmatprep.subr.mxu0 0.0
        %2563 = vmatpush1.msra.mxu0 0.0
        %2564 = vmatprep.subr.mxu0 0.0
        %2565 = vmatpush1.msra.mxu0 0.0
        %2566 = vmatprep.subr.mxu0 0.0
        %2567 = vmatpush1.msra.mxu0 0.0
        %2568 = vmatprep.subr.mxu0 0.0
        %2569 = vmatpush1.msra.mxu0 0.0
        %2570 = vmatprep.subr.mxu0 0.0
        %2571 = vmatpush1.msra.mxu0 0.0
        %2572 = vmatprep.subr.mxu0 0.0
        %2573 = vmatpush1.msra.mxu0 0.0
        %2574 = vmatprep.subr.mxu0 0.0
        %2575 = vmatpush1.msra.mxu0 0.0
        %2576 = vmatprep.subr.mxu0 0.0
        %2577 = vmatpush1.msra.mxu0 0.0
        %2578 = vmatprep.subr.mxu0 0.0
        %2579 = vmatpush1.msra.mxu0 0.0
        %2580 = vmatprep.subr.mxu0 0.0
        %2581 = vmatpush1.msra.mxu0 0.0
        %2582 = vmatprep.subr.mxu0 0.0
        %2583 = vmatpush1.msra.mxu0 0.0
        %2584 = vmatprep.subr.mxu0 0.0
        %2585 = vmatpush1.msra.mxu0 0.0
        %2586 = vmatprep.subr.mxu0 0.0
        %2587 = vmatpush1.msra.mxu0 0.0
        %2588 = vmatprep.subr.mxu0 0.0
        %2589 = vmatpush1.msra.mxu0 0.0
        %2590 = vmatprep.mubr.f32.mxu0 0.0
        %2591 = vmatmul.mubr.f32.gmra.mrb[0].mxu0 %v2453
        %v2592 = vpop.f32.mrb[0].mxu0
        %v2593 = vadd.f32 0.0, %v2592
        %v2594 = vpop.f32.mrb[0].mxu0
        %v2595 = vadd.f32 0.0, %v2594
        %2596 = vdwg.mxu0
        %2597 = vmatprep.subr.mxu0 %v2443
        %2598 = vmatpush1.msra.mxu0 %v2442
        %2599 = vmatprep.subr.mxu0 0.0
        %2600 = vmatpush1.msra.mxu0 0.0
        %2601 = vmatprep.subr.mxu0 0.0
        %2602 = vmatpush1.msra.mxu0 0.0
        %2603 = vmatprep.subr.mxu0 0.0
        %2604 = vmatpush1.msra.mxu0 0.0
        %2605 = vmatprep.subr.mxu0 0.0
        %2606 = vmatpush1.msra.mxu0 0.0
        %2607 = vmatprep.subr.mxu0 0.0
        %2608 = vmatpush1.msra.mxu0 0.0
        %2609 = vmatprep.subr.mxu0 0.0
        %2610 = vmatpush1.msra.mxu0 0.0
        %2611 = vmatprep.subr.mxu0 0.0
        %2612 = vmatpush1.msra.mxu0 0.0
        %2613 = vmatprep.subr.mxu0 0.0
        %2614 = vmatpush1.msra.mxu0 0.0
        %2615 = vmatprep.subr.mxu0 0.0
        %2616 = vmatpush1.msra.mxu0 0.0
        %2617 = vmatprep.subr.mxu0 0.0
        %2618 = vmatpush1.msra.mxu0 0.0
        %2619 = vmatprep.subr.mxu0 0.0
        %2620 = vmatpush1.msra.mxu0 0.0
        %2621 = vmatprep.subr.mxu0 0.0
        %2622 = vmatpush1.msra.mxu0 0.0
        %2623 = vmatprep.subr.mxu0 0.0
        %2624 = vmatpush1.msra.mxu0 0.0
        %2625 = vmatprep.subr.mxu0 0.0
        %2626 = vmatpush1.msra.mxu0 0.0
        %2627 = vmatprep.subr.mxu0 0.0
        %2628 = vmatpush1.msra.mxu0 0.0
        %2629 = vmatprep.subr.mxu0 0.0
        %2630 = vmatpush1.msra.mxu0 0.0
        %2631 = vmatprep.subr.mxu0 0.0
        %2632 = vmatpush1.msra.mxu0 0.0
        %2633 = vmatprep.subr.mxu0 0.0
        %2634 = vmatpush1.msra.mxu0 0.0
        %2635 = vmatprep.subr.mxu0 0.0
        %2636 = vmatpush1.msra.mxu0 0.0
        %2637 = vmatprep.subr.mxu0 0.0
        %2638 = vmatpush1.msra.mxu0 0.0
        %2639 = vmatprep.subr.mxu0 0.0
        %2640 = vmatpush1.msra.mxu0 0.0
        %2641 = vmatprep.subr.mxu0 0.0
        %2642 = vmatpush1.msra.mxu0 0.0
        %2643 = vmatprep.subr.mxu0 0.0
        %2644 = vmatpush1.msra.mxu0 0.0
        %2645 = vmatprep.subr.mxu0 0.0
        %2646 = vmatpush1.msra.mxu0 0.0
        %2647 = vmatprep.subr.mxu0 0.0
        %2648 = vmatpush1.msra.mxu0 0.0
        %2649 = vmatprep.subr.mxu0 0.0
        %2650 = vmatpush1.msra.mxu0 0.0
        %2651 = vmatprep.subr.mxu0 0.0
        %2652 = vmatpush1.msra.mxu0 0.0
        %2653 = vmatprep.subr.mxu0 0.0
        %2654 = vmatpush1.msra.mxu0 0.0
        %2655 = vmatprep.subr.mxu0 0.0
        %2656 = vmatpush1.msra.mxu0 0.0
        %2657 = vmatprep.subr.mxu0 0.0
        %2658 = vmatpush1.msra.mxu0 0.0
        %2659 = vmatprep.subr.mxu0 0.0
        %2660 = vmatpush1.msra.mxu0 0.0
        %2661 = vmatprep.mubr.f32.mxu0 0.0
        %2662 = vmatmul.mubr.f32.gmra.mrb[0].mxu0 %v2453
        %v2663 = vpop.f32.mrb[0].mxu0
        %v2664 = vadd.f32 0.0, %v2663
        %v2665 = vpop.f32.mrb[0].mxu0
        %v2666 = vadd.f32 0.0, %v2665
        %2667 = vdwg.mxu0
        %2668 = vmatprep.subr.mxu0 %v2445
        %2669 = vmatpush1.msra.mxu0 %v2444
        %2670 = vmatprep.subr.mxu0 0.0
        %2671 = vmatpush1.msra.mxu0 0.0
        %2672 = vmatprep.subr.mxu0 0.0
        %2673 = vmatpush1.msra.mxu0 0.0
        %2674 = vmatprep.subr.mxu0 0.0
        %2675 = vmatpush1.msra.mxu0 0.0
        %2676 = vmatprep.subr.mxu0 0.0
        %2677 = vmatpush1.msra.mxu0 0.0
        %2678 = vmatprep.subr.mxu0 0.0
        %2679 = vmatpush1.msra.mxu0 0.0
        %2680 = vmatprep.subr.mxu0 0.0
        %2681 = vmatpush1.msra.mxu0 0.0
        %2682 = vmatprep.subr.mxu0 0.0
        %2683 = vmatpush1.msra.mxu0 0.0
        %2684 = vmatprep.subr.mxu0 0.0
        %2685 = vmatpush1.msra.mxu0 0.0
        %2686 = vmatprep.subr.mxu0 0.0
        %2687 = vmatpush1.msra.mxu0 0.0
        %2688 = vmatprep.subr.mxu0 0.0
        %2689 = vmatpush1.msra.mxu0 0.0
        %2690 = vmatprep.subr.mxu0 0.0
        %2691 = vmatpush1.msra.mxu0 0.0
        %2692 = vmatprep.subr.mxu0 0.0
        %2693 = vmatpush1.msra.mxu0 0.0
        %2694 = vmatprep.subr.mxu0 0.0
        %2695 = vmatpush1.msra.mxu0 0.0
        %2696 = vmatprep.subr.mxu0 0.0
        %2697 = vmatpush1.msra.mxu0 0.0
        %2698 = vmatprep.subr.mxu0 0.0
        %2699 = vmatpush1.msra.mxu0 0.0
        %2700 = vmatprep.subr.mxu0 0.0
        %2701 = vmatpush1.msra.mxu0 0.0
        %2702 = vmatprep.subr.mxu0 0.0
        %2703 = vmatpush1.msra.mxu0 0.0
        %2704 = vmatprep.subr.mxu0 0.0
        %2705 = vmatpush1.msra.mxu0 0.0
        %2706 = vmatprep.subr.mxu0 0.0
        %2707 = vmatpush1.msra.mxu0 0.0
        %2708 = vmatprep.subr.mxu0 0.0
        %2709 = vmatpush1.msra.mxu0 0.0
        %2710 = vmatprep.subr.mxu0 0.0
        %2711 = vmatpush1.msra.mxu0 0.0
        %2712 = vmatprep.subr.mxu0 0.0
        %2713 = vmatpush1.msra.mxu0 0.0
        %2714 = vmatprep.subr.mxu0 0.0
        %2715 = vmatpush1.msra.mxu0 0.0
        %2716 = vmatprep.subr.mxu0 0.0
        %2717 = vmatpush1.msra.mxu0 0.0
        %2718 = vmatprep.subr.mxu0 0.0
        %2719 = vmatpush1.msra.mxu0 0.0
        %2720 = vmatprep.subr.mxu0 0.0
        %2721 = vmatpush1.msra.mxu0 0.0
        %2722 = vmatprep.subr.mxu0 0.0
        %2723 = vmatpush1.msra.mxu0 0.0
        %2724 = vmatprep.subr.mxu0 0.0
        %2725 = vmatpush1.msra.mxu0 0.0
        %2726 = vmatprep.subr.mxu0 0.0
        %2727 = vmatpush1.msra.mxu0 0.0
        %2728 = vmatprep.subr.mxu0 0.0
        %2729 = vmatpush1.msra.mxu0 0.0
        %2730 = vmatprep.subr.mxu0 0.0
        %2731 = vmatpush1.msra.mxu0 0.0
        %2732 = vmatprep.mubr.f32.mxu0 0.0
        %2733 = vmatmul.mubr.f32.gmra.mrb[0].mxu0 %v2453
        %v2734 = vpop.f32.mrb[0].mxu0
        %v2735 = vadd.f32 0.0, %v2734
        %v2736 = vpop.f32.mrb[0].mxu0
        %v2737 = vadd.f32 0.0, %v2736
        %2738 = vdwg.mxu0
        %2739 = vmatprep.subr.mxu0 %v2447
        %2740 = vmatpush1.msra.mxu0 %v2446
        %2741 = vmatprep.subr.mxu0 0.0
        %2742 = vmatpush1.msra.mxu0 0.0
        %2743 = vmatprep.subr.mxu0 0.0
        %2744 = vmatpush1.msra.mxu0 0.0
        %2745 = vmatprep.subr.mxu0 0.0
        %2746 = vmatpush1.msra.mxu0 0.0
        %2747 = vmatprep.subr.mxu0 0.0
        %2748 = vmatpush1.msra.mxu0 0.0
        %2749 = vmatprep.subr.mxu0 0.0
        %2750 = vmatpush1.msra.mxu0 0.0
        %2751 = vmatprep.subr.mxu0 0.0
        %2752 = vmatpush1.msra.mxu0 0.0
        %2753 = vmatprep.subr.mxu0 0.0
        %2754 = vmatpush1.msra.mxu0 0.0
        %2755 = vmatprep.subr.mxu0 0.0
        %2756 = vmatpush1.msra.mxu0 0.0
        %2757 = vmatprep.subr.mxu0 0.0
        %2758 = vmatpush1.msra.mxu0 0.0
        %2759 = vmatprep.subr.mxu0 0.0
        %2760 = vmatpush1.msra.mxu0 0.0
        %2761 = vmatprep.subr.mxu0 0.0
        %2762 = vmatpush1.msra.mxu0 0.0
        %2763 = vmatprep.subr.mxu0 0.0
        %2764 = vmatpush1.msra.mxu0 0.0
        %2765 = vmatprep.subr.mxu0 0.0
        %2766 = vmatpush1.msra.mxu0 0.0
        %2767 = vmatprep.subr.mxu0 0.0
        %2768 = vmatpush1.msra.mxu0 0.0
        %2769 = vmatprep.subr.mxu0 0.0
        %2770 = vmatpush1.msra.mxu0 0.0
        %2771 = vmatprep.subr.mxu0 0.0
        %2772 = vmatpush1.msra.mxu0 0.0
        %2773 = vmatprep.subr.mxu0 0.0
        %2774 = vmatpush1.msra.mxu0 0.0
        %2775 = vmatprep.subr.mxu0 0.0
        %2776 = vmatpush1.msra.mxu0 0.0
        %2777 = vmatprep.subr.mxu0 0.0
        %2778 = vmatpush1.msra.mxu0 0.0
        %2779 = vmatprep.subr.mxu0 0.0
        %2780 = vmatpush1.msra.mxu0 0.0
        %2781 = vmatprep.subr.mxu0 0.0
        %2782 = vmatpush1.msra.mxu0 0.0
        %2783 = vmatprep.subr.mxu0 0.0
        %2784 = vmatpush1.msra.mxu0 0.0
        %2785 = vmatprep.subr.mxu0 0.0
        %2786 = vmatpush1.msra.mxu0 0.0
        %2787 = vmatprep.subr.mxu0 0.0
        %2788 = vmatpush1.msra.mxu0 0.0
        %2789 = vmatprep.subr.mxu0 0.0
        %2790 = vmatpush1.msra.mxu0 0.0
        %2791 = vmatprep.subr.mxu0 0.0
        %2792 = vmatpush1.msra.mxu0 0.0
        %2793 = vmatprep.subr.mxu0 0.0
        %2794 = vmatpush1.msra.mxu0 0.0
        %2795 = vmatprep.subr.mxu0 0.0
        %2796 = vmatpush1.msra.mxu0 0.0
        %2797 = vmatprep.subr.mxu0 0.0
        %2798 = vmatpush1.msra.mxu0 0.0
        %2799 = vmatprep.subr.mxu0 0.0
        %2800 = vmatpush1.msra.mxu0 0.0
        %2801 = vmatprep.subr.mxu0 0.0
        %2802 = vmatpush1.msra.mxu0 0.0
        %2803 = vmatprep.mubr.f32.mxu0 0.0
        %2804 = vmatmul.mubr.f32.gmra.mrb[0].mxu0 %v2453
        %v2805 = vpop.f32.mrb[0].mxu0
        %v2806 = vadd.f32 0.0, %v2805
        %v2807 = vpop.f32.mrb[0].mxu0
        %v2808 = vadd.f32 0.0, %v2807
        %2809 = vdwg.mxu0
        %2810 = vmatprep.subr.mxu0 %v2449
        %2811 = vmatpush1.msra.mxu0 %v2448
        %2812 = vmatprep.subr.mxu0 0.0
        %2813 = vmatpush1.msra.mxu0 0.0
        %2814 = vmatprep.subr.mxu0 0.0
        %2815 = vmatpush1.msra.mxu0 0.0
        %2816 = vmatprep.subr.mxu0 0.0
        %2817 = vmatpush1.msra.mxu0 0.0
        %2818 = vmatprep.subr.mxu0 0.0
        %2819 = vmatpush1.msra.mxu0 0.0
        %2820 = vmatprep.subr.mxu0 0.0
        %2821 = vmatpush1.msra.mxu0 0.0
        %2822 = vmatprep.subr.mxu0 0.0
        %2823 = vmatpush1.msra.mxu0 0.0
        %2824 = vmatprep.subr.mxu0 0.0
        %2825 = vmatpush1.msra.mxu0 0.0
        %2826 = vmatprep.subr.mxu0 0.0
        %2827 = vmatpush1.msra.mxu0 0.0
        %2828 = vmatprep.subr.mxu0 0.0
        %2829 = vmatpush1.msra.mxu0 0.0
        %2830 = vmatprep.subr.mxu0 0.0
        %2831 = vmatpush1.msra.mxu0 0.0
        %2832 = vmatprep.subr.mxu0 0.0
        %2833 = vmatpush1.msra.mxu0 0.0
        %2834 = vmatprep.subr.mxu0 0.0
        %2835 = vmatpush1.msra.mxu0 0.0
        %2836 = vmatprep.subr.mxu0 0.0
        %2837 = vmatpush1.msra.mxu0 0.0
        %2838 = vmatprep.subr.mxu0 0.0
        %2839 = vmatpush1.msra.mxu0 0.0
        %2840 = vmatprep.subr.mxu0 0.0
        %2841 = vmatpush1.msra.mxu0 0.0
        %2842 = vmatprep.subr.mxu0 0.0
        %2843 = vmatpush1.msra.mxu0 0.0
        %2844 = vmatprep.subr.mxu0 0.0
        %2845 = vmatpush1.msra.mxu0 0.0
        %2846 = vmatprep.subr.mxu0 0.0
        %2847 = vmatpush1.msra.mxu0 0.0
        %2848 = vmatprep.subr.mxu0 0.0
        %2849 = vmatpush1.msra.mxu0 0.0
        %2850 = vmatprep.subr.mxu0 0.0
        %2851 = vmatpush1.msra.mxu0 0.0
        %2852 = vmatprep.subr.mxu0 0.0
        %2853 = vmatpush1.msra.mxu0 0.0
        %2854 = vmatprep.subr.mxu0 0.0
        %2855 = vmatpush1.msra.mxu0 0.0
        %2856 = vmatprep.subr.mxu0 0.0
        %2857 = vmatpush1.msra.mxu0 0.0
        %2858 = vmatprep.subr.mxu0 0.0
        %2859 = vmatpush1.msra.mxu0 0.0
        %2860 = vmatprep.subr.mxu0 0.0
        %2861 = vmatpush1.msra.mxu0 0.0
        %2862 = vmatprep.subr.mxu0 0.0
        %2863 = vmatpush1.msra.mxu0 0.0
        %2864 = vmatprep.subr.mxu0 0.0
        %2865 = vmatpush1.msra.mxu0 0.0
        %2866 = vmatprep.subr.mxu0 0.0
        %2867 = vmatpush1.msra.mxu0 0.0
        %2868 = vmatprep.subr.mxu0 0.0
        %2869 = vmatpush1.msra.mxu0 0.0
        %2870 = vmatprep.subr.mxu0 0.0
        %2871 = vmatpush1.msra.mxu0 0.0
        %2872 = vmatprep.subr.mxu0 0.0
        %2873 = vmatpush1.msra.mxu0 0.0
        %2874 = vmatprep.mubr.f32.mxu0 0.0
        %2875 = vmatmul.mubr.f32.gmra.mrb[0].mxu0 %v2453
        %v2876 = vpop.f32.mrb[0].mxu0
        %v2877 = vadd.f32 0.0, %v2876
        %v2878 = vpop.f32.mrb[0].mxu0
        %v2879 = vadd.f32 0.0, %v2878
        %2880 = vdwg.mxu0
        %2881 = vmatprep.subr.mxu0 %v2451
        %2882 = vmatpush1.msra.mxu0 %v2450
        %2883 = vmatprep.subr.mxu0 0.0
        %2884 = vmatpush1.msra.mxu0 0.0
        %2885 = vmatprep.subr.mxu0 0.0
        %2886 = vmatpush1.msra.mxu0 0.0
        %2887 = vmatprep.subr.mxu0 0.0
        %2888 = vmatpush1.msra.mxu0 0.0
        %2889 = vmatprep.subr.mxu0 0.0
        %2890 = vmatpush1.msra.mxu0 0.0
        %2891 = vmatprep.subr.mxu0 0.0
        %2892 = vmatpush1.msra.mxu0 0.0
        %2893 = vmatprep.subr.mxu0 0.0
        %2894 = vmatpush1.msra.mxu0 0.0
        %2895 = vmatprep.subr.mxu0 0.0
        %2896 = vmatpush1.msra.mxu0 0.0
        %2897 = vmatprep.subr.mxu0 0.0
        %2898 = vmatpush1.msra.mxu0 0.0
        %2899 = vmatprep.subr.mxu0 0.0
        %2900 = vmatpush1.msra.mxu0 0.0
        %2901 = vmatprep.subr.mxu0 0.0
        %2902 = vmatpush1.msra.mxu0 0.0
        %2903 = vmatprep.subr.mxu0 0.0
        %2904 = vmatpush1.msra.mxu0 0.0
        %2905 = vmatprep.subr.mxu0 0.0
        %2906 = vmatpush1.msra.mxu0 0.0
        %2907 = vmatprep.subr.mxu0 0.0
        %2908 = vmatpush1.msra.mxu0 0.0
        %2909 = vmatprep.subr.mxu0 0.0
        %2910 = vmatpush1.msra.mxu0 0.0
        %2911 = vmatprep.subr.mxu0 0.0
        %2912 = vmatpush1.msra.mxu0 0.0
        %2913 = vmatprep.subr.mxu0 0.0
        %2914 = vmatpush1.msra.mxu0 0.0
        %2915 = vmatprep.subr.mxu0 0.0
        %2916 = vmatpush1.msra.mxu0 0.0
        %2917 = vmatprep.subr.mxu0 0.0
        %2918 = vmatpush1.msra.mxu0 0.0
        %2919 = vmatprep.subr.mxu0 0.0
        %2920 = vmatpush1.msra.mxu0 0.0
        %2921 = vmatprep.subr.mxu0 0.0
        %2922 = vmatpush1.msra.mxu0 0.0
        %2923 = vmatprep.subr.mxu0 0.0
        %2924 = vmatpush1.msra.mxu0 0.0
        %2925 = vmatprep.subr.mxu0 0.0
        %2926 = vmatpush1.msra.mxu0 0.0
        %2927 = vmatprep.subr.mxu0 0.0
        %2928 = vmatpush1.msra.mxu0 0.0
        %2929 = vmatprep.subr.mxu0 0.0
        %2930 = vmatpush1.msra.mxu0 0.0
        %2931 = vmatprep.subr.mxu0 0.0
        %2932 = vmatpush1.msra.mxu0 0.0
        %2933 = vmatprep.subr.mxu0 0.0
        %2934 = vmatpush1.msra.mxu0 0.0
        %2935 = vmatprep.subr.mxu0 0.0
        %2936 = vmatpush1.msra.mxu0 0.0
        %2937 = vmatprep.subr.mxu0 0.0
        %2938 = vmatpush1.msra.mxu0 0.0
        %2939 = vmatprep.subr.mxu0 0.0
        %2940 = vmatpush1.msra.mxu0 0.0
        %2941 = vmatprep.subr.mxu0 0.0
        %2942 = vmatpush1.msra.mxu0 0.0
        %2943 = vmatprep.subr.mxu0 0.0
        %2944 = vmatpush1.msra.mxu0 0.0
        %2945 = vmatprep.mubr.f32.mxu0 0.0
        %2946 = vmatmul.mubr.f32.gmra.mrb[0].mxu0 %v2453
        %v2947 = vpop.f32.mrb[0].mxu0
        %v2948 = vadd.f32 0.0, %v2947
        %v2949 = vpop.f32.mrb[0].mxu0
        %v2950 = vadd.f32 0.0, %v2949
        %2951 = vdwg.mxu0
        %v2952 = vlaneseq
        %v2953 = vshrl.u32 %v2952, 7
        %v2954 = vsub.s32 0, %v2953
        %v2955 = vrot.slane %v2522, %v2954
        %v2956 = vlaneseq
        %v2957 = vshrl.u32 %v2956, 7
        %v2958 = vsub.s32 0, %v2957
        %v2959 = vrot.slane %v2524, %v2958
        %v2960 = vlaneseq
        %v2961 = vshrl.u32 %v2960, 7
        %v2962 = vsub.s32 0, %v2961
        %v2963 = vrot.slane %v2593, %v2962
        %v2964 = vlaneseq
        %v2965 = vshrl.u32 %v2964, 7
        %v2966 = vsub.s32 0, %v2965
        %v2967 = vrot.slane %v2595, %v2966
        %v2968 = vlaneseq
        %v2969 = vshrl.u32 %v2968, 7
        %v2970 = vsub.s32 0, %v2969
        %v2971 = vrot.slane %v2664, %v2970
        %v2972 = vlaneseq
        %v2973 = vshrl.u32 %v2972, 7
        %v2974 = vsub.s32 0, %v2973
        %v2975 = vrot.slane %v2666, %v2974
        %v2976 = vlaneseq
        %v2977 = vshrl.u32 %v2976, 7
        %v2978 = vsub.s32 0, %v2977
        %v2979 = vrot.slane %v2735, %v2978
        %v2980 = vlaneseq
        %v2981 = vshrl.u32 %v2980, 7
        %v2982 = vsub.s32 0, %v2981
        %v2983 = vrot.slane %v2737, %v2982
        %v2984 = vlaneseq
        %v2985 = vshrl.u32 %v2984, 7
        %v2986 = vsub.s32 0, %v2985
        %v2987 = vrot.slane %v2806, %v2986
        %v2988 = vlaneseq
        %v2989 = vshrl.u32 %v2988, 7
        %v2990 = vsub.s32 0, %v2989
        %v2991 = vrot.slane %v2808, %v2990
        %v2992 = vlaneseq
        %v2993 = vshrl.u32 %v2992, 7
        %v2994 = vsub.s32 0, %v2993
        %v2995 = vrot.slane %v2877, %v2994
        %v2996 = vlaneseq
        %v2997 = vshrl.u32 %v2996, 7
        %v2998 = vsub.s32 0, %v2997
        %v2999 = vrot.slane %v2879, %v2998
        %v3000 = vlaneseq
        %v3001 = vshrl.u32 %v3000, 7
        %v3002 = vsub.s32 0, %v3001
        %v3003 = vrot.slane %v2948, %v3002
        %v3004 = vlaneseq
        %v3005 = vshrl.u32 %v3004, 7
        %v3006 = vsub.s32 0, %v3005
        %v3007 = vrot.slane %v2950, %v3006
        %v3008 = vmul.f32 %v765, %v2955
        %v3009 = vmul.f32 %v767, %v2959
        %v3010 = vmul.f32 %v836, %v2963
        %v3011 = vmul.f32 %v838, %v2967
        %v3012 = vmul.f32 %v907, %v2971
        %v3013 = vmul.f32 %v909, %v2975
        %v3014 = vmul.f32 %v978, %v2979
        %v3015 = vmul.f32 %v980, %v2983
        %v3016 = vmul.f32 %v1049, %v2987
        %v3017 = vmul.f32 %v1051, %v2991
        %v3018 = vmul.f32 %v1120, %v2995
        %v3019 = vmul.f32 %v1122, %v2999
        %v3020 = vmul.f32 %v1191, %v3003
        %v3021 = vmul.f32 %v1193, %v3007
        %v3022 = vlaneseq
        %v3023 = vshrl.u32 %v3022, 7
        %v3024 = vsub.s32 1, %v3023
        %v3025 = vrot.slane %v2522, %v3024
        %v3026 = vlaneseq
        %v3027 = vshrl.u32 %v3026, 7
        %v3028 = vsub.s32 1, %v3027
        %v3029 = vrot.slane %v2524, %v3028
        %v3030 = vlaneseq
        %v3031 = vshrl.u32 %v3030, 7
        %v3032 = vsub.s32 1, %v3031
        %v3033 = vrot.slane %v2593, %v3032
        %v3034 = vlaneseq
        %v3035 = vshrl.u32 %v3034, 7
        %v3036 = vsub.s32 1, %v3035
        %v3037 = vrot.slane %v2595, %v3036
        %v3038 = vlaneseq
        %v3039 = vshrl.u32 %v3038, 7
        %v3040 = vsub.s32 1, %v3039
        %v3041 = vrot.slane %v2664, %v3040
        %v3042 = vlaneseq
        %v3043 = vshrl.u32 %v3042, 7
        %v3044 = vsub.s32 1, %v3043
        %v3045 = vrot.slane %v2666, %v3044
        %v3046 = vlaneseq
        %v3047 = vshrl.u32 %v3046, 7
        %v3048 = vsub.s32 1, %v3047
        %v3049 = vrot.slane %v2735, %v3048
        %v3050 = vlaneseq
        %v3051 = vshrl.u32 %v3050, 7
        %v3052 = vsub.s32 1, %v3051
        %v3053 = vrot.slane %v2737, %v3052
        %v3054 = vlaneseq
        %v3055 = vshrl.u32 %v3054, 7
        %v3056 = vsub.s32 1, %v3055
        %v3057 = vrot.slane %v2806, %v3056
        %v3058 = vlaneseq
        %v3059 = vshrl.u32 %v3058, 7
        %v3060 = vsub.s32 1, %v3059
        %v3061 = vrot.slane %v2808, %v3060
        %v3062 = vlaneseq
        %v3063 = vshrl.u32 %v3062, 7
        %v3064 = vsub.s32 1, %v3063
        %v3065 = vrot.slane %v2877, %v3064
        %v3066 = vlaneseq
        %v3067 = vshrl.u32 %v3066, 7
        %v3068 = vsub.s32 1, %v3067
        %v3069 = vrot.slane %v2879, %v3068
        %v3070 = vlaneseq
        %v3071 = vshrl.u32 %v3070, 7
        %v3072 = vsub.s32 1, %v3071
        %v3073 = vrot.slane %v2948, %v3072
        %v3074 = vlaneseq
        %v3075 = vshrl.u32 %v3074, 7
        %v3076 = vsub.s32 1, %v3075
        %v3077 = vrot.slane %v2950, %v3076
        %v3078 = vsub.f32 %v3008, %v3025
        %v3079 = vsub.f32 %v3009, %v3029
        %v3080 = vsub.f32 %v3010, %v3033
        %v3081 = vsub.f32 %v3011, %v3037
        %v3082 = vsub.f32 %v3012, %v3041
        %v3083 = vsub.f32 %v3013, %v3045
        %v3084 = vsub.f32 %v3014, %v3049
        %v3085 = vsub.f32 %v3015, %v3053
        %v3086 = vsub.f32 %v3016, %v3057
        %v3087 = vsub.f32 %v3017, %v3061
        %v3088 = vsub.f32 %v3018, %v3065
        %v3089 = vsub.f32 %v3019, %v3069
        %v3090 = vsub.f32 %v3020, %v3073
        %v3091 = vsub.f32 %v3021, %v3077
        %v3092 = vld [vmem:[%s3] sm:$0xff]
        %v3093 = vld [vmem:[%s3 + $0x8] sm:$0xff]
        %v3094 = vld [vmem:[%s3 + $0x10] sm:$0xff]
        %v3095 = vld [vmem:[%s3 + $0x18] sm:$0xff]
        %v3096 = vld [vmem:[%s3 + $0x20] sm:$0xff]
        %v3097 = vld [vmem:[%s3 + $0x28] sm:$0xff]
        %v3098 = vld [vmem:[%s3 + $0x30] sm:$0xff]
        %v3099 = vld [vmem:[%s3 + $0x38] sm:$0xff]
        %v3100 = vld [vmem:[%s3 + $0x40] sm:$0xff]
        %v3101 = vld [vmem:[%s3 + $0x48] sm:$0xff]
        %v3102 = vld [vmem:[%s3 + $0x50] sm:$0xff]
        %v3103 = vld [vmem:[%s3 + $0x58] sm:$0xff]
        %v3104 = vld [vmem:[%s3 + $0x60] sm:$0xff]
        %v3105 = vld [vmem:[%s3 + $0x68] sm:$0xff]
        %v3106 = vmul.f32 %v3078, %v3092
        %v3107 = vmul.f32 %v3079, %v3093
        %v3108 = vmul.f32 %v3080, %v3094
        %v3109 = vmul.f32 %v3081, %v3095
        %v3110 = vmul.f32 %v3082, %v3096
        %v3111 = vmul.f32 %v3083, %v3097
        %v3112 = vmul.f32 %v3084, %v3098
        %v3113 = vmul.f32 %v3085, %v3099
        %v3114 = vmul.f32 %v3086, %v3100
        %v3115 = vmul.f32 %v3087, %v3101
        %v3116 = vmul.f32 %v3088, %v3102
        %v3117 = vmul.f32 %v3089, %v3103
        %v3118 = vmul.f32 %v3090, %v3104
        %v3119 = vmul.f32 %v3091, %v3105
        %v3120 = vld [vmem:[%s4] sm:$0xff]
        %v3121 = vld [vmem:[%s4 + $0x8] sm:$0xff]
        %v3122 = vld [vmem:[%s4 + $0x10] sm:$0xff]
        %v3123 = vld [vmem:[%s4 + $0x18] sm:$0xff]
        %v3124 = vld [vmem:[%s4 + $0x20] sm:$0xff]
        %v3125 = vld [vmem:[%s4 + $0x28] sm:$0xff]
        %v3126 = vld [vmem:[%s4 + $0x30] sm:$0xff]
        %v3127 = vld [vmem:[%s4 + $0x38] sm:$0xff]
        %v3128 = vld [vmem:[%s4 + $0x40] sm:$0xff]
        %v3129 = vld [vmem:[%s4 + $0x48] sm:$0xff]
        %v3130 = vld [vmem:[%s4 + $0x50] sm:$0xff]
        %v3131 = vld [vmem:[%s4 + $0x58] sm:$0xff]
        %v3132 = vld [vmem:[%s4 + $0x60] sm:$0xff]
        %v3133 = vld [vmem:[%s4 + $0x68] sm:$0xff]
        %v3134 = vadd.f32 %v3106, %v3120
        %v3135 = vadd.f32 %v3107, %v3121
        %v3136 = vadd.f32 %v3108, %v3122
        %v3137 = vadd.f32 %v3109, %v3123
        %v3138 = vadd.f32 %v3110, %v3124
        %v3139 = vadd.f32 %v3111, %v3125
        %v3140 = vadd.f32 %v3112, %v3126
        %v3141 = vadd.f32 %v3113, %v3127
        %v3142 = vadd.f32 %v3114, %v3128
        %v3143 = vadd.f32 %v3115, %v3129
        %v3144 = vadd.f32 %v3116, %v3130
        %v3145 = vadd.f32 %v3117, %v3131
        %v3146 = vadd.f32 %v3118, %v3132
        %v3147 = vadd.f32 %v3119, %v3133
        %v3148 = vmax.f32 %v3134, 0.0
        %v3149 = vmax.f32 %v3135, 0.0
        %v3150 = vmax.f32 %v3136, 0.0
        %v3151 = vmax.f32 %v3137, 0.0
        %v3152 = vmax.f32 %v3138, 0.0
        %v3153 = vmax.f32 %v3139, 0.0
        %v3154 = vmax.f32 %v3140, 0.0
        %v3155 = vmax.f32 %v3141, 0.0
        %v3156 = vmax.f32 %v3142, 0.0
        %v3157 = vmax.f32 %v3143, 0.0
        %v3158 = vmax.f32 %v3144, 0.0
        %v3159 = vmax.f32 %v3145, 0.0
        %v3160 = vmax.f32 %v3146, 0.0
        %v3161 = vmax.f32 %v3147, 0.0
        %v3162 = vpack.c.bf16 %v3148, %v3148
        %v3163 = vpack.c.bf16 %v3149, %v3149
        %v3164 = vpack.c.bf16 %v3150, %v3150
        %v3165 = vpack.c.bf16 %v3151, %v3151
        %v3166 = vpack.c.bf16 %v3152, %v3152
        %v3167 = vpack.c.bf16 %v3153, %v3153
        %v3168 = vpack.c.bf16 %v3154, %v3154
        %v3169 = vpack.c.bf16 %v3155, %v3155
        %v3170 = vpack.c.bf16 %v3156, %v3156
        %v3171 = vpack.c.bf16 %v3157, %v3157
        %v3172 = vpack.c.bf16 %v3158, %v3158
        %v3173 = vpack.c.bf16 %v3159, %v3159
        %v3174 = vpack.c.bf16 %v3160, %v3160
        %v3175 = vpack.c.bf16 %v3161, %v3161
        %v3191 = vrot.slane %v3162, 4
        %v3192 = vrot.slane %v3163, 4
        %v3193 = vrot.slane %v3164, 4
        %v3194 = vrot.slane %v3165, 4
        %v3195 = vrot.slane %v3166, 4
        %v3196 = vrot.slane %v3167, 4
        %v3197 = vrot.slane %v3168, 4
        %v3198 = vrot.slane %v3169, 4
        %v3199 = vrot.slane %v3170, 4
        %v3200 = vrot.slane %v3171, 4
        %v3201 = vrot.slane %v3172, 4
        %v3202 = vrot.slane %v3173, 4
        %v3203 = vrot.slane %v3174, 4
        %v3204 = vrot.slane %v3175, 4
        %v3205 = vrot.slane 0, 4
        %3206 = vrot.lane.b32.xlu0 %v3191, 127
        %v3207 = vpop.permute.xlu0 %3206
        %3208 = vrot.lane.b32.xlu0 %v3192, 127
        %v3209 = vpop.permute.xlu0 %3208
        %3210 = vrot.lane.b32.xlu0 %v3193, 127
        %v3211 = vpop.permute.xlu0 %3210
        %3212 = vrot.lane.b32.xlu0 %v3194, 127
        %v3213 = vpop.permute.xlu0 %3212
        %3214 = vrot.lane.b32.xlu0 %v3195, 127
        %v3215 = vpop.permute.xlu0 %3214
        %3216 = vrot.lane.b32.xlu0 %v3196, 127
        %v3217 = vpop.permute.xlu0 %3216
        %3218 = vrot.lane.b32.xlu0 %v3197, 127
        %v3219 = vpop.permute.xlu0 %3218
        %3220 = vrot.lane.b32.xlu0 %v3198, 127
        %v3221 = vpop.permute.xlu0 %3220
        %3222 = vrot.lane.b32.xlu0 %v3199, 127
        %v3223 = vpop.permute.xlu0 %3222
        %3224 = vrot.lane.b32.xlu0 %v3200, 127
        %v3225 = vpop.permute.xlu0 %3224
        %3226 = vrot.lane.b32.xlu0 %v3201, 127
        %v3227 = vpop.permute.xlu0 %3226
        %3228 = vrot.lane.b32.xlu0 %v3202, 127
        %v3229 = vpop.permute.xlu0 %3228
        %3230 = vrot.lane.b32.xlu0 %v3203, 127
        %v3231 = vpop.permute.xlu0 %3230
        %3232 = vrot.lane.b32.xlu0 %v3204, 127
        %v3233 = vpop.permute.xlu0 %3232
        %3234 = vrot.lane.b32.xlu0 %v3205, 127
        %v3235 = vpop.permute.xlu0 %3234
        %vm3236 = vcmask 1039360
        %v3237 = vsel %vm3236, %v3207, %v3209
        %v3238 = vsel %vm3236, %v3209, %v3211
        %v3239 = vsel %vm3236, %v3211, %v3213
        %v3240 = vsel %vm3236, %v3213, %v3215
        %v3241 = vsel %vm3236, %v3215, %v3217
        %v3242 = vsel %vm3236, %v3217, %v3219
        %v3243 = vsel %vm3236, %v3219, %v3221
        %v3244 = vsel %vm3236, %v3221, %v3223
        %v3245 = vsel %vm3236, %v3223, %v3225
        %v3246 = vsel %vm3236, %v3225, %v3227
        %v3247 = vsel %vm3236, %v3227, %v3229
        %v3248 = vsel %vm3236, %v3229, %v3231
        %v3249 = vsel %vm3236, %v3231, %v3233
        %v3250 = vsel %vm3236, %v3233, %v3235
        %3251 = vrot.lane.b32.xlu0 %v3162, 126
        %v3252 = vpop.permute.xlu0 %3251
        %3253 = vrot.lane.b32.xlu0 %v3163, 126
        %v3254 = vpop.permute.xlu0 %3253
        %3255 = vrot.lane.b32.xlu0 %v3164, 126
        %v3256 = vpop.permute.xlu0 %3255
        %3257 = vrot.lane.b32.xlu0 %v3165, 126
        %v3258 = vpop.permute.xlu0 %3257
        %3259 = vrot.lane.b32.xlu0 %v3166, 126
        %v3260 = vpop.permute.xlu0 %3259
        %3261 = vrot.lane.b32.xlu0 %v3167, 126
        %v3262 = vpop.permute.xlu0 %3261
        %3263 = vrot.lane.b32.xlu0 %v3168, 126
        %v3264 = vpop.permute.xlu0 %3263
        %3265 = vrot.lane.b32.xlu0 %v3169, 126
        %v3266 = vpop.permute.xlu0 %3265
        %3267 = vrot.lane.b32.xlu0 %v3170, 126
        %v3268 = vpop.permute.xlu0 %3267
        %3269 = vrot.lane.b32.xlu0 %v3171, 126
        %v3270 = vpop.permute.xlu0 %3269
        %3271 = vrot.lane.b32.xlu0 %v3172, 126
        %v3272 = vpop.permute.xlu0 %3271
        %3273 = vrot.lane.b32.xlu0 %v3173, 126
        %v3274 = vpop.permute.xlu0 %3273
        %3275 = vrot.lane.b32.xlu0 %v3174, 126
        %v3276 = vpop.permute.xlu0 %3275
        %3277 = vrot.lane.b32.xlu0 %v3175, 126
        %v3278 = vpop.permute.xlu0 %3277
        %3279 = vrot.lane.b32.xlu0 0, 126
        %v3280 = vpop.permute.xlu0 %3279
        %vm3281 = vcmask 1031168
        %v3282 = vsel %vm3281, %v3252, %v3254
        %v3283 = vsel %vm3281, %v3254, %v3256
        %v3284 = vsel %vm3281, %v3256, %v3258
        %v3285 = vsel %vm3281, %v3258, %v3260
        %v3286 = vsel %vm3281, %v3260, %v3262
        %v3287 = vsel %vm3281, %v3262, %v3264
        %v3288 = vsel %vm3281, %v3264, %v3266
        %v3289 = vsel %vm3281, %v3266, %v3268
        %v3290 = vsel %vm3281, %v3268, %v3270
        %v3291 = vsel %vm3281, %v3270, %v3272
        %v3292 = vsel %vm3281, %v3272, %v3274
        %v3293 = vsel %vm3281, %v3274, %v3276
        %v3294 = vsel %vm3281, %v3276, %v3278
        %v3295 = vsel %vm3281, %v3278, %v3280
        %3296 = vrot.lane.b32.xlu0 %v3191, 125
        %v3297 = vpop.permute.xlu0 %3296
        %3298 = vrot.lane.b32.xlu0 %v3192, 125
        %v3299 = vpop.permute.xlu0 %3298
        %3300 = vrot.lane.b32.xlu0 %v3193, 125
        %v3301 = vpop.permute.xlu0 %3300
        %3302 = vrot.lane.b32.xlu0 %v3194, 125
        %v3303 = vpop.permute.xlu0 %3302
        %3304 = vrot.lane.b32.xlu0 %v3195, 125
        %v3305 = vpop.permute.xlu0 %3304
        %3306 = vrot.lane.b32.xlu0 %v3196, 125
        %v3307 = vpop.permute.xlu0 %3306
        %3308 = vrot.lane.b32.xlu0 %v3197, 125
        %v3309 = vpop.permute.xlu0 %3308
        %3310 = vrot.lane.b32.xlu0 %v3198, 125
        %v3311 = vpop.permute.xlu0 %3310
        %3312 = vrot.lane.b32.xlu0 %v3199, 125
        %v3313 = vpop.permute.xlu0 %3312
        %3314 = vrot.lane.b32.xlu0 %v3200, 125
        %v3315 = vpop.permute.xlu0 %3314
        %3316 = vrot.lane.b32.xlu0 %v3201, 125
        %v3317 = vpop.permute.xlu0 %3316
        %3318 = vrot.lane.b32.xlu0 %v3202, 125
        %v3319 = vpop.permute.xlu0 %3318
        %3320 = vrot.lane.b32.xlu0 %v3203, 125
        %v3321 = vpop.permute.xlu0 %3320
        %3322 = vrot.lane.b32.xlu0 %v3204, 125
        %v3323 = vpop.permute.xlu0 %3322
        %3324 = vrot.lane.b32.xlu0 %v3205, 125
        %v3325 = vpop.permute.xlu0 %3324
        %vm3326 = vcmask 1022976
        %v3327 = vsel %vm3326, %v3297, %v3299
        %v3328 = vsel %vm3326, %v3299, %v3301
        %v3329 = vsel %vm3326, %v3301, %v3303
        %v3330 = vsel %vm3326, %v3303, %v3305
        %v3331 = vsel %vm3326, %v3305, %v3307
        %v3332 = vsel %vm3326, %v3307, %v3309
        %v3333 = vsel %vm3326, %v3309, %v3311
        %v3334 = vsel %vm3326, %v3311, %v3313
        %v3335 = vsel %vm3326, %v3313, %v3315
        %v3336 = vsel %vm3326, %v3315, %v3317
        %v3337 = vsel %vm3326, %v3317, %v3319
        %v3338 = vsel %vm3326, %v3319, %v3321
        %v3339 = vsel %vm3326, %v3321, %v3323
        %v3340 = vsel %vm3326, %v3323, %v3325
        %3341 = vrot.lane.b32.xlu0 %v3162, 124
        %v3342 = vpop.permute.xlu0 %3341
        %3343 = vrot.lane.b32.xlu0 %v3163, 124
        %v3344 = vpop.permute.xlu0 %3343
        %3345 = vrot.lane.b32.xlu0 %v3164, 124
        %v3346 = vpop.permute.xlu0 %3345
        %3347 = vrot.lane.b32.xlu0 %v3165, 124
        %v3348 = vpop.permute.xlu0 %3347
        %3349 = vrot.lane.b32.xlu0 %v3166, 124
        %v3350 = vpop.permute.xlu0 %3349
        %3351 = vrot.lane.b32.xlu0 %v3167, 124
        %v3352 = vpop.permute.xlu0 %3351
        %3353 = vrot.lane.b32.xlu0 %v3168, 124
        %v3354 = vpop.permute.xlu0 %3353
        %3355 = vrot.lane.b32.xlu0 %v3169, 124
        %v3356 = vpop.permute.xlu0 %3355
        %3357 = vrot.lane.b32.xlu0 %v3170, 124
        %v3358 = vpop.permute.xlu0 %3357
        %3359 = vrot.lane.b32.xlu0 %v3171, 124
        %v3360 = vpop.permute.xlu0 %3359
        %3361 = vrot.lane.b32.xlu0 %v3172, 124
        %v3362 = vpop.permute.xlu0 %3361
        %3363 = vrot.lane.b32.xlu0 %v3173, 124
        %v3364 = vpop.permute.xlu0 %3363
        %3365 = vrot.lane.b32.xlu0 %v3174, 124
        %v3366 = vpop.permute.xlu0 %3365
        %3367 = vrot.lane.b32.xlu0 %v3175, 124
        %v3368 = vpop.permute.xlu0 %3367
        %3369 = vrot.lane.b32.xlu0 0, 124
        %v3370 = vpop.permute.xlu0 %3369
        %vm3371 = vcmask 1014784
        %v3372 = vsel %vm3371, %v3342, %v3344
        %v3373 = vsel %vm3371, %v3344, %v3346
        %v3374 = vsel %vm3371, %v3346, %v3348
        %v3375 = vsel %vm3371, %v3348, %v3350
        %v3376 = vsel %vm3371, %v3350, %v3352
        %v3377 = vsel %vm3371, %v3352, %v3354
        %v3378 = vsel %vm3371, %v3354, %v3356
        %v3379 = vsel %vm3371, %v3356, %v3358
        %v3380 = vsel %vm3371, %v3358, %v3360
        %v3381 = vsel %vm3371, %v3360, %v3362
        %v3382 = vsel %vm3371, %v3362, %v3364
        %v3383 = vsel %vm3371, %v3364, %v3366
        %v3384 = vsel %vm3371, %v3366, %v3368
        %v3385 = vsel %vm3371, %v3368, %v3370
        %3386 = vrot.lane.b32.xlu0 %v3191, 112
        %v3387 = vpop.permute.xlu0 %3386
        %3388 = vrot.lane.b32.xlu0 %v3192, 112
        %v3389 = vpop.permute.xlu0 %3388
        %3390 = vrot.lane.b32.xlu0 %v3193, 112
        %v3391 = vpop.permute.xlu0 %3390
        %3392 = vrot.lane.b32.xlu0 %v3194, 112
        %v3393 = vpop.permute.xlu0 %3392
        %3394 = vrot.lane.b32.xlu0 %v3195, 112
        %v3395 = vpop.permute.xlu0 %3394
        %3396 = vrot.lane.b32.xlu0 %v3196, 112
        %v3397 = vpop.permute.xlu0 %3396
        %3398 = vrot.lane.b32.xlu0 %v3197, 112
        %v3399 = vpop.permute.xlu0 %3398
        %3400 = vrot.lane.b32.xlu0 %v3198, 112
        %v3401 = vpop.permute.xlu0 %3400
        %3402 = vrot.lane.b32.xlu0 %v3199, 112
        %v3403 = vpop.permute.xlu0 %3402
        %3404 = vrot.lane.b32.xlu0 %v3200, 112
        %v3405 = vpop.permute.xlu0 %3404
        %3406 = vrot.lane.b32.xlu0 %v3201, 112
        %v3407 = vpop.permute.xlu0 %3406
        %3408 = vrot.lane.b32.xlu0 %v3202, 112
        %v3409 = vpop.permute.xlu0 %3408
        %3410 = vrot.lane.b32.xlu0 %v3203, 112
        %v3411 = vpop.permute.xlu0 %3410
        %3412 = vrot.lane.b32.xlu0 %v3204, 112
        %v3413 = vpop.permute.xlu0 %3412
        %3414 = vrot.lane.b32.xlu0 %v3205, 112
        %v3415 = vpop.permute.xlu0 %3414
        %vm3416 = vcmask 916480
        %v3417 = vsel %vm3416, %v3387, %v3389
        %v3418 = vsel %vm3416, %v3389, %v3391
        %v3419 = vsel %vm3416, %v3391, %v3393
        %v3420 = vsel %vm3416, %v3393, %v3395
        %v3421 = vsel %vm3416, %v3395, %v3397
        %v3422 = vsel %vm3416, %v3397, %v3399
        %v3423 = vsel %vm3416, %v3399, %v3401
        %v3424 = vsel %vm3416, %v3401, %v3403
        %v3425 = vsel %vm3416, %v3403, %v3405
        %v3426 = vsel %vm3416, %v3405, %v3407
        %v3427 = vsel %vm3416, %v3407, %v3409
        %v3428 = vsel %vm3416, %v3409, %v3411
        %v3429 = vsel %vm3416, %v3411, %v3413
        %v3430 = vsel %vm3416, %v3413, %v3415
        %3431 = vrot.lane.b32.xlu0 %v3162, 111
        %v3432 = vpop.permute.xlu0 %3431
        %3433 = vrot.lane.b32.xlu0 %v3163, 111
        %v3434 = vpop.permute.xlu0 %3433
        %3435 = vrot.lane.b32.xlu0 %v3164, 111
        %v3436 = vpop.permute.xlu0 %3435
        %3437 = vrot.lane.b32.xlu0 %v3165, 111
        %v3438 = vpop.permute.xlu0 %3437
        %3439 = vrot.lane.b32.xlu0 %v3166, 111
        %v3440 = vpop.permute.xlu0 %3439
        %3441 = vrot.lane.b32.xlu0 %v3167, 111
        %v3442 = vpop.permute.xlu0 %3441
        %3443 = vrot.lane.b32.xlu0 %v3168, 111
        %v3444 = vpop.permute.xlu0 %3443
        %3445 = vrot.lane.b32.xlu0 %v3169, 111
        %v3446 = vpop.permute.xlu0 %3445
        %3447 = vrot.lane.b32.xlu0 %v3170, 111
        %v3448 = vpop.permute.xlu0 %3447
        %3449 = vrot.lane.b32.xlu0 %v3171, 111
        %v3450 = vpop.permute.xlu0 %3449
        %3451 = vrot.lane.b32.xlu0 %v3172, 111
        %v3452 = vpop.permute.xlu0 %3451
        %3453 = vrot.lane.b32.xlu0 %v3173, 111
        %v3454 = vpop.permute.xlu0 %3453
        %3455 = vrot.lane.b32.xlu0 %v3174, 111
        %v3456 = vpop.permute.xlu0 %3455
        %3457 = vrot.lane.b32.xlu0 %v3175, 111
        %v3458 = vpop.permute.xlu0 %3457
        %3459 = vrot.lane.b32.xlu0 0, 111
        %v3460 = vpop.permute.xlu0 %3459
        %vm3461 = vcmask 908288
        %v3462 = vsel %vm3461, %v3432, %v3434
        %v3463 = vsel %vm3461, %v3434, %v3436
        %v3464 = vsel %vm3461, %v3436, %v3438
        %v3465 = vsel %vm3461, %v3438, %v3440
        %v3466 = vsel %vm3461, %v3440, %v3442
        %v3467 = vsel %vm3461, %v3442, %v3444
        %v3468 = vsel %vm3461, %v3444, %v3446
        %v3469 = vsel %vm3461, %v3446, %v3448
        %v3470 = vsel %vm3461, %v3448, %v3450
        %v3471 = vsel %vm3461, %v3450, %v3452
        %v3472 = vsel %vm3461, %v3452, %v3454
        %v3473 = vsel %vm3461, %v3454, %v3456
        %v3474 = vsel %vm3461, %v3456, %v3458
        %v3475 = vsel %vm3461, %v3458, %v3460
        %3476 = vrot.lane.b32.xlu0 %v3191, 110
        %v3477 = vpop.permute.xlu0 %3476
        %3478 = vrot.lane.b32.xlu0 %v3192, 110
        %v3479 = vpop.permute.xlu0 %3478
        %3480 = vrot.lane.b32.xlu0 %v3193, 110
        %v3481 = vpop.permute.xlu0 %3480
        %3482 = vrot.lane.b32.xlu0 %v3194, 110
        %v3483 = vpop.permute.xlu0 %3482
        %3484 = vrot.lane.b32.xlu0 %v3195, 110
        %v3485 = vpop.permute.xlu0 %3484
        %3486 = vrot.lane.b32.xlu0 %v3196, 110
        %v3487 = vpop.permute.xlu0 %3486
        %3488 = vrot.lane.b32.xlu0 %v3197, 110
        %v3489 = vpop.permute.xlu0 %3488
        %3490 = vrot.lane.b32.xlu0 %v3198, 110
        %v3491 = vpop.permute.xlu0 %3490
        %3492 = vrot.lane.b32.xlu0 %v3199, 110
        %v3493 = vpop.permute.xlu0 %3492
        %3494 = vrot.lane.b32.xlu0 %v3200, 110
        %v3495 = vpop.permute.xlu0 %3494
        %3496 = vrot.lane.b32.xlu0 %v3201, 110
        %v3497 = vpop.permute.xlu0 %3496
        %3498 = vrot.lane.b32.xlu0 %v3202, 110
        %v3499 = vpop.permute.xlu0 %3498
        %3500 = vrot.lane.b32.xlu0 %v3203, 110
        %v3501 = vpop.permute.xlu0 %3500
        %3502 = vrot.lane.b32.xlu0 %v3204, 110
        %v3503 = vpop.permute.xlu0 %3502
        %3504 = vrot.lane.b32.xlu0 %v3205, 110
        %v3505 = vpop.permute.xlu0 %3504
        %vm3506 = vcmask 900096
        %v3507 = vsel %vm3506, %v3477, %v3479
        %v3508 = vsel %vm3506, %v3479, %v3481
        %v3509 = vsel %vm3506, %v3481, %v3483
        %v3510 = vsel %vm3506, %v3483, %v3485
        %v3511 = vsel %vm3506, %v3485, %v3487
        %v3512 = vsel %vm3506, %v3487, %v3489
        %v3513 = vsel %vm3506, %v3489, %v3491
        %v3514 = vsel %vm3506, %v3491, %v3493
        %v3515 = vsel %vm3506, %v3493, %v3495
        %v3516 = vsel %vm3506, %v3495, %v3497
        %v3517 = vsel %vm3506, %v3497, %v3499
        %v3518 = vsel %vm3506, %v3499, %v3501
        %v3519 = vsel %vm3506, %v3501, %v3503
        %v3520 = vsel %vm3506, %v3503, %v3505
        %3521 = vrot.lane.b32.xlu0 %v3162, 109
        %v3522 = vpop.permute.xlu0 %3521
        %3523 = vrot.lane.b32.xlu0 %v3163, 109
        %v3524 = vpop.permute.xlu0 %3523
        %3525 = vrot.lane.b32.xlu0 %v3164, 109
        %v3526 = vpop.permute.xlu0 %3525
        %3527 = vrot.lane.b32.xlu0 %v3165, 109
        %v3528 = vpop.permute.xlu0 %3527
        %3529 = vrot.lane.b32.xlu0 %v3166, 109
        %v3530 = vpop.permute.xlu0 %3529
        %3531 = vrot.lane.b32.xlu0 %v3167, 109
        %v3532 = vpop.permute.xlu0 %3531
        %3533 = vrot.lane.b32.xlu0 %v3168, 109
        %v3534 = vpop.permute.xlu0 %3533
        %3535 = vrot.lane.b32.xlu0 %v3169, 109
        %v3536 = vpop.permute.xlu0 %3535
        %3537 = vrot.lane.b32.xlu0 %v3170, 109
        %v3538 = vpop.permute.xlu0 %3537
        %3539 = vrot.lane.b32.xlu0 %v3171, 109
        %v3540 = vpop.permute.xlu0 %3539
        %3541 = vrot.lane.b32.xlu0 %v3172, 109
        %v3542 = vpop.permute.xlu0 %3541
        %3543 = vrot.lane.b32.xlu0 %v3173, 109
        %v3544 = vpop.permute.xlu0 %3543
        %3545 = vrot.lane.b32.xlu0 %v3174, 109
        %v3546 = vpop.permute.xlu0 %3545
        %3547 = vrot.lane.b32.xlu0 %v3175, 109
        %v3548 = vpop.permute.xlu0 %3547
        %3549 = vrot.lane.b32.xlu0 0, 109
        %v3550 = vpop.permute.xlu0 %3549
        %vm3551 = vcmask 891904
        %v3552 = vsel %vm3551, %v3522, %v3524
        %v3553 = vsel %vm3551, %v3524, %v3526
        %v3554 = vsel %vm3551, %v3526, %v3528
        %v3555 = vsel %vm3551, %v3528, %v3530
        %v3556 = vsel %vm3551, %v3530, %v3532
        %v3557 = vsel %vm3551, %v3532, %v3534
        %v3558 = vsel %vm3551, %v3534, %v3536
        %v3559 = vsel %vm3551, %v3536, %v3538
        %v3560 = vsel %vm3551, %v3538, %v3540
        %v3561 = vsel %vm3551, %v3540, %v3542
        %v3562 = vsel %vm3551, %v3542, %v3544
        %v3563 = vsel %vm3551, %v3544, %v3546
        %v3564 = vsel %vm3551, %v3546, %v3548
        %v3565 = vsel %vm3551, %v3548, %v3550
        %3566 = vrot.lane.b32.xlu0 %v3191, 108
        %v3567 = vpop.permute.xlu0 %3566
        %3568 = vrot.lane.b32.xlu0 %v3192, 108
        %v3569 = vpop.permute.xlu0 %3568
        %3570 = vrot.lane.b32.xlu0 %v3193, 108
        %v3571 = vpop.permute.xlu0 %3570
        %3572 = vrot.lane.b32.xlu0 %v3194, 108
        %v3573 = vpop.permute.xlu0 %3572
        %3574 = vrot.lane.b32.xlu0 %v3195, 108
        %v3575 = vpop.permute.xlu0 %3574
        %3576 = vrot.lane.b32.xlu0 %v3196, 108
        %v3577 = vpop.permute.xlu0 %3576
        %3578 = vrot.lane.b32.xlu0 %v3197, 108
        %v3579 = vpop.permute.xlu0 %3578
        %3580 = vrot.lane.b32.xlu0 %v3198, 108
        %v3581 = vpop.permute.xlu0 %3580
        %3582 = vrot.lane.b32.xlu0 %v3199, 108
        %v3583 = vpop.permute.xlu0 %3582
        %3584 = vrot.lane.b32.xlu0 %v3200, 108
        %v3585 = vpop.permute.xlu0 %3584
        %3586 = vrot.lane.b32.xlu0 %v3201, 108
        %v3587 = vpop.permute.xlu0 %3586
        %3588 = vrot.lane.b32.xlu0 %v3202, 108
        %v3589 = vpop.permute.xlu0 %3588
        %3590 = vrot.lane.b32.xlu0 %v3203, 108
        %v3591 = vpop.permute.xlu0 %3590
        %3592 = vrot.lane.b32.xlu0 %v3204, 108
        %v3593 = vpop.permute.xlu0 %3592
        %3594 = vrot.lane.b32.xlu0 %v3205, 108
        %v3595 = vpop.permute.xlu0 %3594
        %vm3596 = vcmask 883712
        %v3597 = vsel %vm3596, %v3567, %v3569
        %v3598 = vsel %vm3596, %v3569, %v3571
        %v3599 = vsel %vm3596, %v3571, %v3573
        %v3600 = vsel %vm3596, %v3573, %v3575
        %v3601 = vsel %vm3596, %v3575, %v3577
        %v3602 = vsel %vm3596, %v3577, %v3579
        %v3603 = vsel %vm3596, %v3579, %v3581
        %v3604 = vsel %vm3596, %v3581, %v3583
        %v3605 = vsel %vm3596, %v3583, %v3585
        %v3606 = vsel %vm3596, %v3585, %v3587
        %v3607 = vsel %vm3596, %v3587, %v3589
        %v3608 = vsel %vm3596, %v3589, %v3591
        %v3609 = vsel %vm3596, %v3591, %v3593
        %v3610 = vsel %vm3596, %v3593, %v3595
        %3611 = vrot.lane.b32.xlu0 %v3162, 96
        %v3612 = vpop.permute.xlu0 %3611
        %3613 = vrot.lane.b32.xlu0 %v3163, 96
        %v3614 = vpop.permute.xlu0 %3613
        %3615 = vrot.lane.b32.xlu0 %v3164, 96
        %v3616 = vpop.permute.xlu0 %3615
        %3617 = vrot.lane.b32.xlu0 %v3165, 96
        %v3618 = vpop.permute.xlu0 %3617
        %3619 = vrot.lane.b32.xlu0 %v3166, 96
        %v3620 = vpop.permute.xlu0 %3619
        %3621 = vrot.lane.b32.xlu0 %v3167, 96
        %v3622 = vpop.permute.xlu0 %3621
        %3623 = vrot.lane.b32.xlu0 %v3168, 96
        %v3624 = vpop.permute.xlu0 %3623
        %3625 = vrot.lane.b32.xlu0 %v3169, 96
        %v3626 = vpop.permute.xlu0 %3625
        %3627 = vrot.lane.b32.xlu0 %v3170, 96
        %v3628 = vpop.permute.xlu0 %3627
        %3629 = vrot.lane.b32.xlu0 %v3171, 96
        %v3630 = vpop.permute.xlu0 %3629
        %3631 = vrot.lane.b32.xlu0 %v3172, 96
        %v3632 = vpop.permute.xlu0 %3631
        %3633 = vrot.lane.b32.xlu0 %v3173, 96
        %v3634 = vpop.permute.xlu0 %3633
        %3635 = vrot.lane.b32.xlu0 %v3174, 96
        %v3636 = vpop.permute.xlu0 %3635
        %3637 = vrot.lane.b32.xlu0 %v3175, 96
        %v3638 = vpop.permute.xlu0 %3637
        %3639 = vrot.lane.b32.xlu0 0, 96
        %v3640 = vpop.permute.xlu0 %3639
        %vm3641 = vcmask 785408
        %v3642 = vsel %vm3641, %v3612, %v3614
        %v3643 = vsel %vm3641, %v3614, %v3616
        %v3644 = vsel %vm3641, %v3616, %v3618
        %v3645 = vsel %vm3641, %v3618, %v3620
        %v3646 = vsel %vm3641, %v3620, %v3622
        %v3647 = vsel %vm3641, %v3622, %v3624
        %v3648 = vsel %vm3641, %v3624, %v3626
        %v3649 = vsel %vm3641, %v3626, %v3628
        %v3650 = vsel %vm3641, %v3628, %v3630
        %v3651 = vsel %vm3641, %v3630, %v3632
        %v3652 = vsel %vm3641, %v3632, %v3634
        %v3653 = vsel %vm3641, %v3634, %v3636
        %v3654 = vsel %vm3641, %v3636, %v3638
        %v3655 = vsel %vm3641, %v3638, %v3640
        %3656 = vrot.lane.b32.xlu0 %v3191, 95
        %v3657 = vpop.permute.xlu0 %3656
        %3658 = vrot.lane.b32.xlu0 %v3192, 95
        %v3659 = vpop.permute.xlu0 %3658
        %3660 = vrot.lane.b32.xlu0 %v3193, 95
        %v3661 = vpop.permute.xlu0 %3660
        %3662 = vrot.lane.b32.xlu0 %v3194, 95
        %v3663 = vpop.permute.xlu0 %3662
        %3664 = vrot.lane.b32.xlu0 %v3195, 95
        %v3665 = vpop.permute.xlu0 %3664
        %3666 = vrot.lane.b32.xlu0 %v3196, 95
        %v3667 = vpop.permute.xlu0 %3666
        %3668 = vrot.lane.b32.xlu0 %v3197, 95
        %v3669 = vpop.permute.xlu0 %3668
        %3670 = vrot.lane.b32.xlu0 %v3198, 95
        %v3671 = vpop.permute.xlu0 %3670
        %3672 = vrot.lane.b32.xlu0 %v3199, 95
        %v3673 = vpop.permute.xlu0 %3672
        %3674 = vrot.lane.b32.xlu0 %v3200, 95
        %v3675 = vpop.permute.xlu0 %3674
        %3676 = vrot.lane.b32.xlu0 %v3201, 95
        %v3677 = vpop.permute.xlu0 %3676
        %3678 = vrot.lane.b32.xlu0 %v3202, 95
        %v3679 = vpop.permute.xlu0 %3678
        %3680 = vrot.lane.b32.xlu0 %v3203, 95
        %v3681 = vpop.permute.xlu0 %3680
        %3682 = vrot.lane.b32.xlu0 %v3204, 95
        %v3683 = vpop.permute.xlu0 %3682
        %3684 = vrot.lane.b32.xlu0 %v3205, 95
        %v3685 = vpop.permute.xlu0 %3684
        %vm3686 = vcmask 777216
        %v3687 = vsel %vm3686, %v3657, %v3659
        %v3688 = vsel %vm3686, %v3659, %v3661
        %v3689 = vsel %vm3686, %v3661, %v3663
        %v3690 = vsel %vm3686, %v3663, %v3665
        %v3691 = vsel %vm3686, %v3665, %v3667
        %v3692 = vsel %vm3686, %v3667, %v3669
        %v3693 = vsel %vm3686, %v3669, %v3671
        %v3694 = vsel %vm3686, %v3671, %v3673
        %v3695 = vsel %vm3686, %v3673, %v3675
        %v3696 = vsel %vm3686, %v3675, %v3677
        %v3697 = vsel %vm3686, %v3677, %v3679
        %v3698 = vsel %vm3686, %v3679, %v3681
        %v3699 = vsel %vm3686, %v3681, %v3683
        %v3700 = vsel %vm3686, %v3683, %v3685
        %3701 = vrot.lane.b32.xlu0 %v3162, 94
        %v3702 = vpop.permute.xlu0 %3701
        %3703 = vrot.lane.b32.xlu0 %v3163, 94
        %v3704 = vpop.permute.xlu0 %3703
        %3705 = vrot.lane.b32.xlu0 %v3164, 94
        %v3706 = vpop.permute.xlu0 %3705
        %3707 = vrot.lane.b32.xlu0 %v3165, 94
        %v3708 = vpop.permute.xlu0 %3707
        %3709 = vrot.lane.b32.xlu0 %v3166, 94
        %v3710 = vpop.permute.xlu0 %3709
        %3711 = vrot.lane.b32.xlu0 %v3167, 94
        %v3712 = vpop.permute.xlu0 %3711
        %3713 = vrot.lane.b32.xlu0 %v3168, 94
        %v3714 = vpop.permute.xlu0 %3713
        %3715 = vrot.lane.b32.xlu0 %v3169, 94
        %v3716 = vpop.permute.xlu0 %3715
        %3717 = vrot.lane.b32.xlu0 %v3170, 94
        %v3718 = vpop.permute.xlu0 %3717
        %3719 = vrot.lane.b32.xlu0 %v3171, 94
        %v3720 = vpop.permute.xlu0 %3719
        %3721 = vrot.lane.b32.xlu0 %v3172, 94
        %v3722 = vpop.permute.xlu0 %3721
        %3723 = vrot.lane.b32.xlu0 %v3173, 94
        %v3724 = vpop.permute.xlu0 %3723
        %3725 = vrot.lane.b32.xlu0 %v3174, 94
        %v3726 = vpop.permute.xlu0 %3725
        %3727 = vrot.lane.b32.xlu0 %v3175, 94
        %v3728 = vpop.permute.xlu0 %3727
        %3729 = vrot.lane.b32.xlu0 0, 94
        %v3730 = vpop.permute.xlu0 %3729
        %vm3731 = vcmask 769024
        %v3732 = vsel %vm3731, %v3702, %v3704
        %v3733 = vsel %vm3731, %v3704, %v3706
        %v3734 = vsel %vm3731, %v3706, %v3708
        %v3735 = vsel %vm3731, %v3708, %v3710
        %v3736 = vsel %vm3731, %v3710, %v3712
        %v3737 = vsel %vm3731, %v3712, %v3714
        %v3738 = vsel %vm3731, %v3714, %v3716
        %v3739 = vsel %vm3731, %v3716, %v3718
        %v3740 = vsel %vm3731, %v3718, %v3720
        %v3741 = vsel %vm3731, %v3720, %v3722
        %v3742 = vsel %vm3731, %v3722, %v3724
        %v3743 = vsel %vm3731, %v3724, %v3726
        %v3744 = vsel %vm3731, %v3726, %v3728
        %v3745 = vsel %vm3731, %v3728, %v3730
        %3746 = vrot.lane.b32.xlu0 %v3191, 93
        %v3747 = vpop.permute.xlu0 %3746
        %3748 = vrot.lane.b32.xlu0 %v3192, 93
        %v3749 = vpop.permute.xlu0 %3748
        %3750 = vrot.lane.b32.xlu0 %v3193, 93
        %v3751 = vpop.permute.xlu0 %3750
        %3752 = vrot.lane.b32.xlu0 %v3194, 93
        %v3753 = vpop.permute.xlu0 %3752
        %3754 = vrot.lane.b32.xlu0 %v3195, 93
        %v3755 = vpop.permute.xlu0 %3754
        %3756 = vrot.lane.b32.xlu0 %v3196, 93
        %v3757 = vpop.permute.xlu0 %3756
        %3758 = vrot.lane.b32.xlu0 %v3197, 93
        %v3759 = vpop.permute.xlu0 %3758
        %3760 = vrot.lane.b32.xlu0 %v3198, 93
        %v3761 = vpop.permute.xlu0 %3760
        %3762 = vrot.lane.b32.xlu0 %v3199, 93
        %v3763 = vpop.permute.xlu0 %3762
        %3764 = vrot.lane.b32.xlu0 %v3200, 93
        %v3765 = vpop.permute.xlu0 %3764
        %3766 = vrot.lane.b32.xlu0 %v3201, 93
        %v3767 = vpop.permute.xlu0 %3766
        %3768 = vrot.lane.b32.xlu0 %v3202, 93
        %v3769 = vpop.permute.xlu0 %3768
        %3770 = vrot.lane.b32.xlu0 %v3203, 93
        %v3771 = vpop.permute.xlu0 %3770
        %3772 = vrot.lane.b32.xlu0 %v3204, 93
        %v3773 = vpop.permute.xlu0 %3772
        %3774 = vrot.lane.b32.xlu0 %v3205, 93
        %v3775 = vpop.permute.xlu0 %3774
        %vm3776 = vcmask 760832
        %v3777 = vsel %vm3776, %v3747, %v3749
        %v3778 = vsel %vm3776, %v3749, %v3751
        %v3779 = vsel %vm3776, %v3751, %v3753
        %v3780 = vsel %vm3776, %v3753, %v3755
        %v3781 = vsel %vm3776, %v3755, %v3757
        %v3782 = vsel %vm3776, %v3757, %v3759
        %v3783 = vsel %vm3776, %v3759, %v3761
        %v3784 = vsel %vm3776, %v3761, %v3763
        %v3785 = vsel %vm3776, %v3763, %v3765
        %v3786 = vsel %vm3776, %v3765, %v3767
        %v3787 = vsel %vm3776, %v3767, %v3769
        %v3788 = vsel %vm3776, %v3769, %v3771
        %v3789 = vsel %vm3776, %v3771, %v3773
        %v3790 = vsel %vm3776, %v3773, %v3775
        %3791 = vrot.lane.b32.xlu0 %v3162, 92
        %v3792 = vpop.permute.xlu0 %3791
        %3793 = vrot.lane.b32.xlu0 %v3163, 92
        %v3794 = vpop.permute.xlu0 %3793
        %3795 = vrot.lane.b32.xlu0 %v3164, 92
        %v3796 = vpop.permute.xlu0 %3795
        %3797 = vrot.lane.b32.xlu0 %v3165, 92
        %v3798 = vpop.permute.xlu0 %3797
        %3799 = vrot.lane.b32.xlu0 %v3166, 92
        %v3800 = vpop.permute.xlu0 %3799
        %3801 = vrot.lane.b32.xlu0 %v3167, 92
        %v3802 = vpop.permute.xlu0 %3801
        %3803 = vrot.lane.b32.xlu0 %v3168, 92
        %v3804 = vpop.permute.xlu0 %3803
        %3805 = vrot.lane.b32.xlu0 %v3169, 92
        %v3806 = vpop.permute.xlu0 %3805
        %3807 = vrot.lane.b32.xlu0 %v3170, 92
        %v3808 = vpop.permute.xlu0 %3807
        %3809 = vrot.lane.b32.xlu0 %v3171, 92
        %v3810 = vpop.permute.xlu0 %3809
        %3811 = vrot.lane.b32.xlu0 %v3172, 92
        %v3812 = vpop.permute.xlu0 %3811
        %3813 = vrot.lane.b32.xlu0 %v3173, 92
        %v3814 = vpop.permute.xlu0 %3813
        %3815 = vrot.lane.b32.xlu0 %v3174, 92
        %v3816 = vpop.permute.xlu0 %3815
        %3817 = vrot.lane.b32.xlu0 %v3175, 92
        %v3818 = vpop.permute.xlu0 %3817
        %3819 = vrot.lane.b32.xlu0 0, 92
        %v3820 = vpop.permute.xlu0 %3819
        %vm3821 = vcmask 752640
        %v3822 = vsel %vm3821, %v3792, %v3794
        %v3823 = vsel %vm3821, %v3794, %v3796
        %v3824 = vsel %vm3821, %v3796, %v3798
        %v3825 = vsel %vm3821, %v3798, %v3800
        %v3826 = vsel %vm3821, %v3800, %v3802
        %v3827 = vsel %vm3821, %v3802, %v3804
        %v3828 = vsel %vm3821, %v3804, %v3806
        %v3829 = vsel %vm3821, %v3806, %v3808
        %v3830 = vsel %vm3821, %v3808, %v3810
        %v3831 = vsel %vm3821, %v3810, %v3812
        %v3832 = vsel %vm3821, %v3812, %v3814
        %v3833 = vsel %vm3821, %v3814, %v3816
        %v3834 = vsel %vm3821, %v3816, %v3818
        %v3835 = vsel %vm3821, %v3818, %v3820
        %3836 = vrot.lane.b32.xlu0 %v3191, 80
        %v3837 = vpop.permute.xlu0 %3836
        %3838 = vrot.lane.b32.xlu0 %v3192, 80
        %v3839 = vpop.permute.xlu0 %3838
        %3840 = vrot.lane.b32.xlu0 %v3193, 80
        %v3841 = vpop.permute.xlu0 %3840
        %3842 = vrot.lane.b32.xlu0 %v3194, 80
        %v3843 = vpop.permute.xlu0 %3842
        %3844 = vrot.lane.b32.xlu0 %v3195, 80
        %v3845 = vpop.permute.xlu0 %3844
        %3846 = vrot.lane.b32.xlu0 %v3196, 80
        %v3847 = vpop.permute.xlu0 %3846
        %3848 = vrot.lane.b32.xlu0 %v3197, 80
        %v3849 = vpop.permute.xlu0 %3848
        %3850 = vrot.lane.b32.xlu0 %v3198, 80
        %v3851 = vpop.permute.xlu0 %3850
        %3852 = vrot.lane.b32.xlu0 %v3199, 80
        %v3853 = vpop.permute.xlu0 %3852
        %3854 = vrot.lane.b32.xlu0 %v3200, 80
        %v3855 = vpop.permute.xlu0 %3854
        %3856 = vrot.lane.b32.xlu0 %v3201, 80
        %v3857 = vpop.permute.xlu0 %3856
        %3858 = vrot.lane.b32.xlu0 %v3202, 80
        %v3859 = vpop.permute.xlu0 %3858
        %3860 = vrot.lane.b32.xlu0 %v3203, 80
        %v3861 = vpop.permute.xlu0 %3860
        %3862 = vrot.lane.b32.xlu0 %v3204, 80
        %v3863 = vpop.permute.xlu0 %3862
        %3864 = vrot.lane.b32.xlu0 %v3205, 80
        %v3865 = vpop.permute.xlu0 %3864
        %vm3866 = vcmask 654336
        %v3867 = vsel %vm3866, %v3837, %v3839
        %v3868 = vsel %vm3866, %v3839, %v3841
        %v3869 = vsel %vm3866, %v3841, %v3843
        %v3870 = vsel %vm3866, %v3843, %v3845
        %v3871 = vsel %vm3866, %v3845, %v3847
        %v3872 = vsel %vm3866, %v3847, %v3849
        %v3873 = vsel %vm3866, %v3849, %v3851
        %v3874 = vsel %vm3866, %v3851, %v3853
        %v3875 = vsel %vm3866, %v3853, %v3855
        %v3876 = vsel %vm3866, %v3855, %v3857
        %v3877 = vsel %vm3866, %v3857, %v3859
        %v3878 = vsel %vm3866, %v3859, %v3861
        %v3879 = vsel %vm3866, %v3861, %v3863
        %v3880 = vsel %vm3866, %v3863, %v3865
        %v3883 = vsel %vm655, %v3162, %v3237
        %v3887 = vsel %vm655, %v3163, %v3238
        %v3891 = vsel %vm655, %v3164, %v3239
        %v3895 = vsel %vm655, %v3165, %v3240
        %v3899 = vsel %vm655, %v3166, %v3241
        %v3903 = vsel %vm655, %v3167, %v3242
        %v3907 = vsel %vm655, %v3168, %v3243
        %v3911 = vsel %vm655, %v3169, %v3244
        %v3915 = vsel %vm655, %v3170, %v3245
        %v3919 = vsel %vm655, %v3171, %v3246
        %v3923 = vsel %vm655, %v3172, %v3247
        %v3927 = vsel %vm655, %v3173, %v3248
        %v3931 = vsel %vm655, %v3174, %v3249
        %v3935 = vsel %vm655, %v3175, %v3250
        %v3939 = vsel %vm655, %v3282, %v3327
        %v3943 = vsel %vm655, %v3283, %v3328
        %v3947 = vsel %vm655, %v3284, %v3329
        %v3951 = vsel %vm655, %v3285, %v3330
        %v3955 = vsel %vm655, %v3286, %v3331
        %v3959 = vsel %vm655, %v3287, %v3332
        %v3963 = vsel %vm655, %v3288, %v3333
        %v3967 = vsel %vm655, %v3289, %v3334
        %v3971 = vsel %vm655, %v3290, %v3335
        %v3975 = vsel %vm655, %v3291, %v3336
        %v3979 = vsel %vm655, %v3292, %v3337
        %v3983 = vsel %vm655, %v3293, %v3338
        %v3987 = vsel %vm655, %v3294, %v3339
        %v3991 = vsel %vm655, %v3295, %v3340
        %v3995 = vsel %vm655, %v3372, %v3417
        %v3999 = vsel %vm655, %v3373, %v3418
        %v4003 = vsel %vm655, %v3374, %v3419
        %v4007 = vsel %vm655, %v3375, %v3420
        %v4011 = vsel %vm655, %v3376, %v3421
        %v4015 = vsel %vm655, %v3377, %v3422
        %v4019 = vsel %vm655, %v3378, %v3423
        %v4023 = vsel %vm655, %v3379, %v3424
        %v4027 = vsel %vm655, %v3380, %v3425
        %v4031 = vsel %vm655, %v3381, %v3426
        %v4035 = vsel %vm655, %v3382, %v3427
        %v4039 = vsel %vm655, %v3383, %v3428
        %v4043 = vsel %vm655, %v3384, %v3429
        %v4047 = vsel %vm655, %v3385, %v3430
        %v4051 = vsel %vm655, %v3462, %v3507
        %v4055 = vsel %vm655, %v3463, %v3508
        %v4059 = vsel %vm655, %v3464, %v3509
        %v4063 = vsel %vm655, %v3465, %v3510
        %v4067 = vsel %vm655, %v3466, %v3511
        %v4071 = vsel %vm655, %v3467, %v3512
        %v4075 = vsel %vm655, %v3468, %v3513
        %v4079 = vsel %vm655, %v3469, %v3514
        %v4083 = vsel %vm655, %v3470, %v3515
        %v4087 = vsel %vm655, %v3471, %v3516
        %v4091 = vsel %vm655, %v3472, %v3517
        %v4095 = vsel %vm655, %v3473, %v3518
        %v4099 = vsel %vm655, %v3474, %v3519
        %v4103 = vsel %vm655, %v3475, %v3520
        %v4107 = vsel %vm655, %v3552, %v3597
        %v4111 = vsel %vm655, %v3553, %v3598
        %v4115 = vsel %vm655, %v3554, %v3599
        %v4119 = vsel %vm655, %v3555, %v3600
        %v4123 = vsel %vm655, %v3556, %v3601
        %v4127 = vsel %vm655, %v3557, %v3602
        %v4131 = vsel %vm655, %v3558, %v3603
        %v4135 = vsel %vm655, %v3559, %v3604
        %v4139 = vsel %vm655, %v3560, %v3605
        %v4143 = vsel %vm655, %v3561, %v3606
        %v4147 = vsel %vm655, %v3562, %v3607
        %v4151 = vsel %vm655, %v3563, %v3608
        %v4155 = vsel %vm655, %v3564, %v3609
        %v4159 = vsel %vm655, %v3565, %v3610
        %v4163 = vsel %vm655, %v3642, %v3687
        %v4167 = vsel %vm655, %v3643, %v3688
        %v4171 = vsel %vm655, %v3644, %v3689
        %v4175 = vsel %vm655, %v3645, %v3690
        %v4179 = vsel %vm655, %v3646, %v3691
        %v4183 = vsel %vm655, %v3647, %v3692
        %v4187 = vsel %vm655, %v3648, %v3693
        %v4191 = vsel %vm655, %v3649, %v3694
        %v4195 = vsel %vm655, %v3650, %v3695
        %v4199 = vsel %vm655, %v3651, %v3696
        %v4203 = vsel %vm655, %v3652, %v3697
        %v4207 = vsel %vm655, %v3653, %v3698
        %v4211 = vsel %vm655, %v3654, %v3699
        %v4215 = vsel %vm655, %v3655, %v3700
        %v4219 = vsel %vm655, %v3732, %v3777
        %v4223 = vsel %vm655, %v3733, %v3778
        %v4227 = vsel %vm655, %v3734, %v3779
        %v4231 = vsel %vm655, %v3735, %v3780
        %v4235 = vsel %vm655, %v3736, %v3781
        %v4239 = vsel %vm655, %v3737, %v3782
        %v4243 = vsel %vm655, %v3738, %v3783
        %v4247 = vsel %vm655, %v3739, %v3784
        %v4251 = vsel %vm655, %v3740, %v3785
        %v4255 = vsel %vm655, %v3741, %v3786
        %v4259 = vsel %vm655, %v3742, %v3787
        %v4263 = vsel %vm655, %v3743, %v3788
        %v4267 = vsel %vm655, %v3744, %v3789
        %v4271 = vsel %vm655, %v3745, %v3790
        %v4275 = vsel %vm655, %v3822, %v3867
        %v4279 = vsel %vm655, %v3823, %v3868
        %v4283 = vsel %vm655, %v3824, %v3869
        %v4287 = vsel %vm655, %v3825, %v3870
        %v4291 = vsel %vm655, %v3826, %v3871
        %v4295 = vsel %vm655, %v3827, %v3872
        %v4299 = vsel %vm655, %v3828, %v3873
        %v4303 = vsel %vm655, %v3829, %v3874
        %v4307 = vsel %vm655, %v3830, %v3875
        %v4311 = vsel %vm655, %v3831, %v3876
        %v4315 = vsel %vm655, %v3832, %v3877
        %v4319 = vsel %vm655, %v3833, %v3878
        %v4323 = vsel %vm655, %v3834, %v3879
        %v4327 = vsel %vm655, %v3835, %v3880
        %4329 = vrot.lane.b32.xlu0 %v3162, 113
        %v4330 = vpop.permute.xlu0 %4329
        %4331 = vrot.lane.b32.xlu0 %v3163, 113
        %v4332 = vpop.permute.xlu0 %4331
        %4333 = vrot.lane.b32.xlu0 %v3164, 113
        %v4334 = vpop.permute.xlu0 %4333
        %4335 = vrot.lane.b32.xlu0 %v3165, 113
        %v4336 = vpop.permute.xlu0 %4335
        %4337 = vrot.lane.b32.xlu0 %v3166, 113
        %v4338 = vpop.permute.xlu0 %4337
        %4339 = vrot.lane.b32.xlu0 %v3167, 113
        %v4340 = vpop.permute.xlu0 %4339
        %4341 = vrot.lane.b32.xlu0 %v3168, 113
        %v4342 = vpop.permute.xlu0 %4341
        %4343 = vrot.lane.b32.xlu0 %v3169, 113
        %v4344 = vpop.permute.xlu0 %4343
        %4345 = vrot.lane.b32.xlu0 %v3170, 113
        %v4346 = vpop.permute.xlu0 %4345
        %4347 = vrot.lane.b32.xlu0 %v3171, 113
        %v4348 = vpop.permute.xlu0 %4347
        %4349 = vrot.lane.b32.xlu0 %v3172, 113
        %v4350 = vpop.permute.xlu0 %4349
        %4351 = vrot.lane.b32.xlu0 %v3173, 113
        %v4352 = vpop.permute.xlu0 %4351
        %4353 = vrot.lane.b32.xlu0 %v3174, 113
        %v4354 = vpop.permute.xlu0 %4353
        %4355 = vrot.lane.b32.xlu0 %v3175, 113
        %v4356 = vpop.permute.xlu0 %4355
        %4357 = vrot.lane.b32.xlu0 0, 113
        %v4358 = vpop.permute.xlu0 %4357
        %vm4359 = vcmask 924672
        %v4360 = vsel %vm4359, %v4330, %v4332
        %v4361 = vsel %vm4359, %v4332, %v4334
        %v4362 = vsel %vm4359, %v4334, %v4336
        %v4363 = vsel %vm4359, %v4336, %v4338
        %v4364 = vsel %vm4359, %v4338, %v4340
        %v4365 = vsel %vm4359, %v4340, %v4342
        %v4366 = vsel %vm4359, %v4342, %v4344
        %v4367 = vsel %vm4359, %v4344, %v4346
        %v4368 = vsel %vm4359, %v4346, %v4348
        %v4369 = vsel %vm4359, %v4348, %v4350
        %v4370 = vsel %vm4359, %v4350, %v4352
        %v4371 = vsel %vm4359, %v4352, %v4354
        %v4372 = vsel %vm4359, %v4354, %v4356
        %v4373 = vsel %vm4359, %v4356, %v4358
        %v4376 = vsel %vm655, 0, %v3235
        %v4379 = vsel %vm655, %v3280, %v3325
        %v4381 = vsel %vm655, %v4360, %v3417
        %v4383 = vsel %vm655, %v4361, %v3418
        %v4385 = vsel %vm655, %v4362, %v3419
        %v4387 = vsel %vm655, %v4363, %v3420
        %v4389 = vsel %vm655, %v4364, %v3421
        %v4391 = vsel %vm655, %v4365, %v3422
        %v4393 = vsel %vm655, %v4366, %v3423
        %v4395 = vsel %vm655, %v4367, %v3424
        %v4397 = vsel %vm655, %v4368, %v3425
        %v4399 = vsel %vm655, %v4369, %v3426
        %v4401 = vsel %vm655, %v4370, %v3427
        %v4403 = vsel %vm655, %v4371, %v3428
        %v4405 = vsel %vm655, %v4372, %v3429
        %v4407 = vsel %vm655, %v4373, %v3430
        %v4410 = vsel %vm655, %v4358, %v3415
        %v4413 = vsel %vm655, %v3460, %v3505
        %4474 = vrot.lane.b32.xlu0 %v3883, 79
        %v4475 = vpop.permute.xlu0 %4474
        %4476 = vrot.lane.b32.xlu0 %v3887, 79
        %v4477 = vpop.permute.xlu0 %4476
        %4478 = vrot.lane.b32.xlu0 %v3891, 79
        %v4479 = vpop.permute.xlu0 %4478
        %4480 = vrot.lane.b32.xlu0 %v3895, 79
        %v4481 = vpop.permute.xlu0 %4480
        %4482 = vrot.lane.b32.xlu0 %v3899, 79
        %v4483 = vpop.permute.xlu0 %4482
        %4484 = vrot.lane.b32.xlu0 %v3903, 79
        %v4485 = vpop.permute.xlu0 %4484
        %4486 = vrot.lane.b32.xlu0 %v3907, 79
        %v4487 = vpop.permute.xlu0 %4486
        %4488 = vrot.lane.b32.xlu0 %v3911, 79
        %v4489 = vpop.permute.xlu0 %4488
        %4490 = vrot.lane.b32.xlu0 %v3915, 79
        %v4491 = vpop.permute.xlu0 %4490
        %4492 = vrot.lane.b32.xlu0 %v3919, 79
        %v4493 = vpop.permute.xlu0 %4492
        %4494 = vrot.lane.b32.xlu0 %v3923, 79
        %v4495 = vpop.permute.xlu0 %4494
        %4496 = vrot.lane.b32.xlu0 %v3927, 79
        %v4497 = vpop.permute.xlu0 %4496
        %4498 = vrot.lane.b32.xlu0 %v3931, 79
        %v4499 = vpop.permute.xlu0 %4498
        %4500 = vrot.lane.b32.xlu0 %v3935, 79
        %v4501 = vpop.permute.xlu0 %4500
        %4502 = vrot.lane.b32.xlu0 %v4376, 79
        %v4503 = vpop.permute.xlu0 %4502
        %4504 = vrot.lane.b32.xlu0 %v3939, 79
        %v4505 = vpop.permute.xlu0 %4504
        %4506 = vrot.lane.b32.xlu0 %v3943, 79
        %v4507 = vpop.permute.xlu0 %4506
        %4508 = vrot.lane.b32.xlu0 %v3947, 79
        %v4509 = vpop.permute.xlu0 %4508
        %4510 = vrot.lane.b32.xlu0 %v3951, 79
        %v4511 = vpop.permute.xlu0 %4510
        %4512 = vrot.lane.b32.xlu0 %v3955, 79
        %v4513 = vpop.permute.xlu0 %4512
        %4514 = vrot.lane.b32.xlu0 %v3959, 79
        %v4515 = vpop.permute.xlu0 %4514
        %4516 = vrot.lane.b32.xlu0 %v3963, 79
        %v4517 = vpop.permute.xlu0 %4516
        %4518 = vrot.lane.b32.xlu0 %v3967, 79
        %v4519 = vpop.permute.xlu0 %4518
        %4520 = vrot.lane.b32.xlu0 %v3971, 79
        %v4521 = vpop.permute.xlu0 %4520
        %4522 = vrot.lane.b32.xlu0 %v3975, 79
        %v4523 = vpop.permute.xlu0 %4522
        %4524 = vrot.lane.b32.xlu0 %v3979, 79
        %v4525 = vpop.permute.xlu0 %4524
        %4526 = vrot.lane.b32.xlu0 %v3983, 79
        %v4527 = vpop.permute.xlu0 %4526
        %4528 = vrot.lane.b32.xlu0 %v3987, 79
        %v4529 = vpop.permute.xlu0 %4528
        %4530 = vrot.lane.b32.xlu0 %v3991, 79
        %v4531 = vpop.permute.xlu0 %4530
        %4532 = vrot.lane.b32.xlu0 %v4379, 79
        %v4533 = vpop.permute.xlu0 %4532
        %4534 = vrot.lane.b32.xlu0 %v4381, 79
        %v4535 = vpop.permute.xlu0 %4534
        %4536 = vrot.lane.b32.xlu0 %v4383, 79
        %v4537 = vpop.permute.xlu0 %4536
        %4538 = vrot.lane.b32.xlu0 %v4385, 79
        %v4539 = vpop.permute.xlu0 %4538
        %4540 = vrot.lane.b32.xlu0 %v4387, 79
        %v4541 = vpop.permute.xlu0 %4540
        %4542 = vrot.lane.b32.xlu0 %v4389, 79
        %v4543 = vpop.permute.xlu0 %4542
        %4544 = vrot.lane.b32.xlu0 %v4391, 79
        %v4545 = vpop.permute.xlu0 %4544
        %4546 = vrot.lane.b32.xlu0 %v4393, 79
        %v4547 = vpop.permute.xlu0 %4546
        %4548 = vrot.lane.b32.xlu0 %v4395, 79
        %v4549 = vpop.permute.xlu0 %4548
        %4550 = vrot.lane.b32.xlu0 %v4397, 79
        %v4551 = vpop.permute.xlu0 %4550
        %4552 = vrot.lane.b32.xlu0 %v4399, 79
        %v4553 = vpop.permute.xlu0 %4552
        %4554 = vrot.lane.b32.xlu0 %v4401, 79
        %v4555 = vpop.permute.xlu0 %4554
        %4556 = vrot.lane.b32.xlu0 %v4403, 79
        %v4557 = vpop.permute.xlu0 %4556
        %4558 = vrot.lane.b32.xlu0 %v4405, 79
        %v4559 = vpop.permute.xlu0 %4558
        %4560 = vrot.lane.b32.xlu0 %v4407, 79
        %v4561 = vpop.permute.xlu0 %4560
        %4562 = vrot.lane.b32.xlu0 %v4410, 79
        %v4563 = vpop.permute.xlu0 %4562
        %4564 = vrot.lane.b32.xlu0 %v4051, 79
        %v4565 = vpop.permute.xlu0 %4564
        %4566 = vrot.lane.b32.xlu0 %v4055, 79
        %v4567 = vpop.permute.xlu0 %4566
        %4568 = vrot.lane.b32.xlu0 %v4059, 79
        %v4569 = vpop.permute.xlu0 %4568
        %4570 = vrot.lane.b32.xlu0 %v4063, 79
        %v4571 = vpop.permute.xlu0 %4570
        %4572 = vrot.lane.b32.xlu0 %v4067, 79
        %v4573 = vpop.permute.xlu0 %4572
        %4574 = vrot.lane.b32.xlu0 %v4071, 79
        %v4575 = vpop.permute.xlu0 %4574
        %4576 = vrot.lane.b32.xlu0 %v4075, 79
        %v4577 = vpop.permute.xlu0 %4576
        %4578 = vrot.lane.b32.xlu0 %v4079, 79
        %v4579 = vpop.permute.xlu0 %4578
        %4580 = vrot.lane.b32.xlu0 %v4083, 79
        %v4581 = vpop.permute.xlu0 %4580
        %4582 = vrot.lane.b32.xlu0 %v4087, 79
        %v4583 = vpop.permute.xlu0 %4582
        %4584 = vrot.lane.b32.xlu0 %v4091, 79
        %v4585 = vpop.permute.xlu0 %4584
        %4586 = vrot.lane.b32.xlu0 %v4095, 79
        %v4587 = vpop.permute.xlu0 %4586
        %4588 = vrot.lane.b32.xlu0 %v4099, 79
        %v4589 = vpop.permute.xlu0 %4588
        %4590 = vrot.lane.b32.xlu0 %v4103, 79
        %v4591 = vpop.permute.xlu0 %4590
        %4592 = vrot.lane.b32.xlu0 %v4413, 79
        %v4593 = vpop.permute.xlu0 %4592
        %4594 = vrot.lane.b32.xlu0 %v3552, 79
        %v4595 = vpop.permute.xlu0 %4594
        %4596 = vrot.lane.b32.xlu0 %v3553, 79
        %v4597 = vpop.permute.xlu0 %4596
        %4598 = vrot.lane.b32.xlu0 %v3554, 79
        %v4599 = vpop.permute.xlu0 %4598
        %4600 = vrot.lane.b32.xlu0 %v3555, 79
        %v4601 = vpop.permute.xlu0 %4600
        %4602 = vrot.lane.b32.xlu0 %v3556, 79
        %v4603 = vpop.permute.xlu0 %4602
        %4604 = vrot.lane.b32.xlu0 %v3557, 79
        %v4605 = vpop.permute.xlu0 %4604
        %4606 = vrot.lane.b32.xlu0 %v3558, 79
        %v4607 = vpop.permute.xlu0 %4606
        %4608 = vrot.lane.b32.xlu0 %v3559, 79
        %v4609 = vpop.permute.xlu0 %4608
        %4610 = vrot.lane.b32.xlu0 %v3560, 79
        %v4611 = vpop.permute.xlu0 %4610
        %4612 = vrot.lane.b32.xlu0 %v3561, 79
        %v4613 = vpop.permute.xlu0 %4612
        %4614 = vrot.lane.b32.xlu0 %v3562, 79
        %v4615 = vpop.permute.xlu0 %4614
        %4616 = vrot.lane.b32.xlu0 %v3563, 79
        %v4617 = vpop.permute.xlu0 %4616
        %4618 = vrot.lane.b32.xlu0 %v3564, 79
        %v4619 = vpop.permute.xlu0 %4618
        %4620 = vrot.lane.b32.xlu0 %v3565, 79
        %v4621 = vpop.permute.xlu0 %4620
        %4622 = vrot.lane.b32.xlu0 %v3550, 79
        %v4623 = vpop.permute.xlu0 %4622
        %vm4624 = vcmask 646144
        %v4625 = vsel %vm4624, %v4475, %v4477
        %v4626 = vsel %vm4624, %v4477, %v4479
        %v4627 = vsel %vm4624, %v4479, %v4481
        %v4628 = vsel %vm4624, %v4481, %v4483
        %v4629 = vsel %vm4624, %v4483, %v4485
        %v4630 = vsel %vm4624, %v4485, %v4487
        %v4631 = vsel %vm4624, %v4487, %v4489
        %v4632 = vsel %vm4624, %v4489, %v4491
        %v4633 = vsel %vm4624, %v4491, %v4493
        %v4634 = vsel %vm4624, %v4493, %v4495
        %v4635 = vsel %vm4624, %v4495, %v4497
        %v4636 = vsel %vm4624, %v4497, %v4499
        %v4637 = vsel %vm4624, %v4499, %v4501
        %v4638 = vsel %vm4624, %v4501, %v4503
        %v4639 = vsel %vm4624, %v4505, %v4507
        %v4640 = vsel %vm4624, %v4507, %v4509
        %v4641 = vsel %vm4624, %v4509, %v4511
        %v4642 = vsel %vm4624, %v4511, %v4513
        %v4643 = vsel %vm4624, %v4513, %v4515
        %v4644 = vsel %vm4624, %v4515, %v4517
        %v4645 = vsel %vm4624, %v4517, %v4519
        %v4646 = vsel %vm4624, %v4519, %v4521
        %v4647 = vsel %vm4624, %v4521, %v4523
        %v4648 = vsel %vm4624, %v4523, %v4525
        %v4649 = vsel %vm4624, %v4525, %v4527
        %v4650 = vsel %vm4624, %v4527, %v4529
        %v4651 = vsel %vm4624, %v4529, %v4531
        %v4652 = vsel %vm4624, %v4531, %v4533
        %v4653 = vsel %vm4624, %v4535, %v4537
        %v4654 = vsel %vm4624, %v4537, %v4539
        %v4655 = vsel %vm4624, %v4539, %v4541
        %v4656 = vsel %vm4624, %v4541, %v4543
        %v4657 = vsel %vm4624, %v4543, %v4545
        %v4658 = vsel %vm4624, %v4545, %v4547
        %v4659 = vsel %vm4624, %v4547, %v4549
        %v4660 = vsel %vm4624, %v4549, %v4551
        %v4661 = vsel %vm4624, %v4551, %v4553
        %v4662 = vsel %vm4624, %v4553, %v4555
        %v4663 = vsel %vm4624, %v4555, %v4557
        %v4664 = vsel %vm4624, %v4557, %v4559
        %v4665 = vsel %vm4624, %v4559, %v4561
        %v4666 = vsel %vm4624, %v4561, %v4563
        %v4667 = vsel %vm4624, %v4565, %v4567
        %v4668 = vsel %vm4624, %v4567, %v4569
        %v4669 = vsel %vm4624, %v4569, %v4571
        %v4670 = vsel %vm4624, %v4571, %v4573
        %v4671 = vsel %vm4624, %v4573, %v4575
        %v4672 = vsel %vm4624, %v4575, %v4577
        %v4673 = vsel %vm4624, %v4577, %v4579
        %v4674 = vsel %vm4624, %v4579, %v4581
        %v4675 = vsel %vm4624, %v4581, %v4583
        %v4676 = vsel %vm4624, %v4583, %v4585
        %v4677 = vsel %vm4624, %v4585, %v4587
        %v4678 = vsel %vm4624, %v4587, %v4589
        %v4679 = vsel %vm4624, %v4589, %v4591
        %v4680 = vsel %vm4624, %v4591, %v4593
        %v4681 = vsel %vm4624, %v4595, %v4597
        %v4682 = vsel %vm4624, %v4597, %v4599
        %v4683 = vsel %vm4624, %v4599, %v4601
        %v4684 = vsel %vm4624, %v4601, %v4603
        %v4685 = vsel %vm4624, %v4603, %v4605
        %v4686 = vsel %vm4624, %v4605, %v4607
        %v4687 = vsel %vm4624, %v4607, %v4609
        %v4688 = vsel %vm4624, %v4609, %v4611
        %v4689 = vsel %vm4624, %v4611, %v4613
        %v4690 = vsel %vm4624, %v4613, %v4615
        %v4691 = vsel %vm4624, %v4615, %v4617
        %v4692 = vsel %vm4624, %v4617, %v4619
        %v4693 = vsel %vm4624, %v4619, %v4621
        %v4694 = vsel %vm4624, %v4621, %v4623
        %v4751 = vld [vmem:[%s7] sm:$0xff]
        %v4752 = vld [vmem:[%s7 + $0x8] sm:$0xff]
        %v4753 = vld [vmem:[%s7 + $0x10] sm:$0x33]
        %v4754 = vld [vmem:[%s8] sm:$0xff]
        %v4755 = vld [vmem:[%s8 + $0x8] sm:$0xff]
        %v4756 = vld [vmem:[%s8 + $0x10] sm:$0xf]
        %4758 = vset.pattern.permute.xlu0 0
        %4759 = vperm.xlu0 %4758, %v4754
        %v4760 = vpop.permute.xlu0 %4759
        %4763 = vset.pattern.permute.xlu0 0
        %4764 = vperm.xlu0 %4763, %v4755
        %v4765 = vpop.permute.xlu0 %4764
        %4768 = vset.pattern.permute.xlu0 0
        %4769 = vperm.xlu0 %4768, %v4756
        %v4770 = vpop.permute.xlu0 %4769
        %v4775 = vunpack.c.l.b16 %v4751
        %v4776 = vunpack.c.h.b16 %v4751
        %v4777 = vunpack.c.l.b16 %v4752
        %v4778 = vunpack.c.h.b16 %v4752
        %v4779 = vunpack.c.l.b16 %v4753
        %v4780 = vunpack.c.h.b16 %v4753
        %v4781 = vpack.c.b16 %v4777, %v4775
        %v4782 = vpack.c.b16 %v4778, %v4776
        %v4783 = vpack.c.b16 %v4779, %v4779
        %v4784 = vpack.c.b16 %v4780, %v4780
        %vm4787 = vcmask 588800
        %v4789 = vsel %vm4787, %v4782, 0
        %v4792 = vsel %vm4787, %v4784, 0
        %v4795 = vsel %vm655, %v4681, 0
        %v4798 = vsel %vm655, %v4682, 0
        %v4801 = vsel %vm655, %v4683, 0
        %v4804 = vsel %vm655, %v4684, 0
        %v4807 = vsel %vm655, %v4685, 0
        %v4810 = vsel %vm655, %v4686, 0
        %v4813 = vsel %vm655, %v4687, 0
        %v4816 = vsel %vm655, %v4688, 0
        %v4819 = vsel %vm655, %v4689, 0
        %v4822 = vsel %vm655, %v4690, 0
        %v4825 = vsel %vm655, %v4691, 0
        %v4828 = vsel %vm655, %v4692, 0
        %v4831 = vsel %vm655, %v4693, 0
        %v4834 = vsel %vm655, %v4694, 0
        %4836 = vmatprep.subr.bf16.mxu0 %v3887
        %4837 = vmatpush1.bf16.msra.mxu0 %v3883
        %4838 = vmatprep.subr.bf16.mxu0 %v3943
        %4839 = vmatpush1.bf16.msra.mxu0 %v3939
        %4840 = vmatprep.subr.bf16.mxu0 %v3999
        %4841 = vmatpush1.bf16.msra.mxu0 %v3995
        %4842 = vmatprep.subr.bf16.mxu0 %v4055
        %4843 = vmatpush1.bf16.msra.mxu0 %v4051
        %4844 = vmatprep.subr.bf16.mxu0 %v4111
        %4845 = vmatpush1.bf16.msra.mxu0 %v4107
        %4846 = vmatprep.subr.bf16.mxu0 %v4167
        %4847 = vmatpush1.bf16.msra.mxu0 %v4163
        %4848 = vmatprep.subr.bf16.mxu0 %v4223
        %4849 = vmatpush1.bf16.msra.mxu0 %v4219
        %4850 = vmatprep.subr.bf16.mxu0 %v4279
        %4851 = vmatpush1.bf16.msra.mxu0 %v4275
        %4852 = vmatprep.subr.bf16.mxu0 %v4626
        %4853 = vmatpush1.bf16.msra.mxu0 %v4625
        %4854 = vmatprep.subr.bf16.mxu0 %v4640
        %4855 = vmatpush1.bf16.msra.mxu0 %v4639
        %4856 = vmatprep.subr.bf16.mxu0 %v4654
        %4857 = vmatpush1.bf16.msra.mxu0 %v4653
        %4858 = vmatprep.subr.bf16.mxu0 %v4668
        %4859 = vmatpush1.bf16.msra.mxu0 %v4667
        %4860 = vmatprep.subr.bf16.mxu0 %v4798
        %4861 = vmatpush1.bf16.msra.mxu0 %v4795
        %4862 = vmatprep.subr.bf16.mxu0 0
        %4863 = vmatpush1.bf16.msra.mxu0 0
        %4864 = vmatprep.subr.bf16.mxu0 0
        %4865 = vmatpush1.bf16.msra.mxu0 0
        %4866 = vmatprep.subr.bf16.mxu0 0
        %4867 = vmatpush1.bf16.msra.mxu0 0
        %4868 = vmatprep.mubr.bf16.mxu0 %v4789
        %4869 = vmatmul.mubr.bf16.gmra.mrb[0].mxu0 %v4781
        %v4870 = vpop.f32.mrb[0].mxu0
        %v4871 = vadd.f32 %v4760, %v4870
        %v4872 = vpop.f32.mrb[0].mxu0
        %v4873 = vadd.f32 %v4760, %v4872
        %v4874 = vpop.f32.mrb[0].mxu0
        %v4875 = vadd.f32 %v4765, %v4874
        %v4876 = vpop.f32.mrb[0].mxu0
        %v4877 = vadd.f32 %v4765, %v4876
        %4878 = vmatprep.mubr.bf16.mxu0 %v4792
        %4879 = vmatmul.mubr.bf16.gmra.mrb[0].mxu0 %v4783
        %v4880 = vpop.f32.mrb[0].mxu0
        %v4881 = vadd.f32 %v4770, %v4880
        %v4882 = vpop.f32.mrb[0].mxu0
        %v4883 = vadd.f32 %v4770, %v4882
        %v4884 = vpop.f32.mrb[0].mxu0
        %v4885 = vpop.f32.mrb[0].mxu0
        %4886 = vdwg.mxu0
        %4887 = vmatprep.subr.bf16.mxu0 %v3895
        %4888 = vmatpush1.bf16.msra.mxu0 %v3891
        %4889 = vmatprep.subr.bf16.mxu0 %v3951
        %4890 = vmatpush1.bf16.msra.mxu0 %v3947
        %4891 = vmatprep.subr.bf16.mxu0 %v4007
        %4892 = vmatpush1.bf16.msra.mxu0 %v4003
        %4893 = vmatprep.subr.bf16.mxu0 %v4063
        %4894 = vmatpush1.bf16.msra.mxu0 %v4059
        %4895 = vmatprep.subr.bf16.mxu0 %v4119
        %4896 = vmatpush1.bf16.msra.mxu0 %v4115
        %4897 = vmatprep.subr.bf16.mxu0 %v4175
        %4898 = vmatpush1.bf16.msra.mxu0 %v4171
        %4899 = vmatprep.subr.bf16.mxu0 %v4231
        %4900 = vmatpush1.bf16.msra.mxu0 %v4227
        %4901 = vmatprep.subr.bf16.mxu0 %v4287
        %4902 = vmatpush1.bf16.msra.mxu0 %v4283
        %4903 = vmatprep.subr.bf16.mxu0 %v4628
        %4904 = vmatpush1.bf16.msra.mxu0 %v4627
        %4905 = vmatprep.subr.bf16.mxu0 %v4642
        %4906 = vmatpush1.bf16.msra.mxu0 %v4641
        %4907 = vmatprep.subr.bf16.mxu0 %v4656
        %4908 = vmatpush1.bf16.msra.mxu0 %v4655
        %4909 = vmatprep.subr.bf16.mxu0 %v4670
        %4910 = vmatpush1.bf16.msra.mxu0 %v4669
        %4911 = vmatprep.subr.bf16.mxu0 %v4804
        %4912 = vmatpush1.bf16.msra.mxu0 %v4801
        %4913 = vmatprep.subr.bf16.mxu0 0
        %4914 = vmatpush1.bf16.msra.mxu0 0
        %4915 = vmatprep.subr.bf16.mxu0 0
        %4916 = vmatpush1.bf16.msra.mxu0 0
        %4917 = vmatprep.subr.bf16.mxu0 0
        %4918 = vmatpush1.bf16.msra.mxu0 0
        %4919 = vmatprep.mubr.bf16.mxu0 %v4789
        %4920 = vmatmul.mubr.bf16.gmra.mrb[0].mxu0 %v4781
        %v4921 = vpop.f32.mrb[0].mxu0
        %v4922 = vadd.f32 %v4760, %v4921
        %v4923 = vpop.f32.mrb[0].mxu0
        %v4924 = vadd.f32 %v4760, %v4923
        %v4925 = vpop.f32.mrb[0].mxu0
        %v4926 = vadd.f32 %v4765, %v4925
        %v4927 = vpop.f32.mrb[0].mxu0
        %v4928 = vadd.f32 %v4765, %v4927
        %4929 = vmatprep.mubr.bf16.mxu0 %v4792
        %4930 = vmatmul.mubr.bf16.gmra.mrb[0].mxu0 %v4783
        %v4931 = vpop.f32.mrb[0].mxu0
        %v4932 = vadd.f32 %v4770, %v4931
        %v4933 = vpop.f32.mrb[0].mxu0
        %v4934 = vadd.f32 %v4770, %v4933
        %v4935 = vpop.f32.mrb[0].mxu0
        %v4936 = vpop.f32.mrb[0].mxu0
        %4937 = vdwg.mxu0
        %4938 = vmatprep.subr.bf16.mxu0 %v3903
        %4939 = vmatpush1.bf16.msra.mxu0 %v3899
        %4940 = vmatprep.subr.bf16.mxu0 %v3959
        %4941 = vmatpush1.bf16.msra.mxu0 %v3955
        %4942 = vmatprep.subr.bf16.mxu0 %v4015
        %4943 = vmatpush1.bf16.msra.mxu0 %v4011
        %4944 = vmatprep.subr.bf16.mxu0 %v4071
        %4945 = vmatpush1.bf16.msra.mxu0 %v4067
        %4946 = vmatprep.subr.bf16.mxu0 %v4127
        %4947 = vmatpush1.bf16.msra.mxu0 %v4123
        %4948 = vmatprep.subr.bf16.mxu0 %v4183
        %4949 = vmatpush1.bf16.msra.mxu0 %v4179
        %4950 = vmatprep.subr.bf16.mxu0 %v4239
        %4951 = vmatpush1.bf16.msra.mxu0 %v4235
        %4952 = vmatprep.subr.bf16.mxu0 %v4295
        %4953 = vmatpush1.bf16.msra.mxu0 %v4291
        %4954 = vmatprep.subr.bf16.mxu0 %v4630
        %4955 = vmatpush1.bf16.msra.mxu0 %v4629
        %4956 = vmatprep.subr.bf16.mxu0 %v4644
        %4957 = vmatpush1.bf16.msra.mxu0 %v4643
        %4958 = vmatprep.subr.bf16.mxu0 %v4658
        %4959 = vmatpush1.bf16.msra.mxu0 %v4657
        %4960 = vmatprep.subr.bf16.mxu0 %v4672
        %4961 = vmatpush1.bf16.msra.mxu0 %v4671
        %4962 = vmatprep.subr.bf16.mxu0 %v4810
        %4963 = vmatpush1.bf16.msra.mxu0 %v4807
        %4964 = vmatprep.subr.bf16.mxu0 0
        %4965 = vmatpush1.bf16.msra.mxu0 0
        %4966 = vmatprep.subr.bf16.mxu0 0
        %4967 = vmatpush1.bf16.msra.mxu0 0
        %4968 = vmatprep.subr.bf16.mxu0 0
        %4969 = vmatpush1.bf16.msra.mxu0 0
        %4970 = vmatprep.mubr.bf16.mxu0 %v4789
        %4971 = vmatmul.mubr.bf16.gmra.mrb[0].mxu0 %v4781
        %v4972 = vpop.f32.mrb[0].mxu0
        %v4973 = vadd.f32 %v4760, %v4972
        %v4974 = vpop.f32.mrb[0].mxu0
        %v4975 = vadd.f32 %v4760, %v4974
        %v4976 = vpop.f32.mrb[0].mxu0
        %v4977 = vadd.f32 %v4765, %v4976
        %v4978 = vpop.f32.mrb[0].mxu0
        %v4979 = vadd.f32 %v4765, %v4978
        %4980 = vmatprep.mubr.bf16.mxu0 %v4792
        %4981 = vmatmul.mubr.bf16.gmra.mrb[0].mxu0 %v4783
        %v4982 = vpop.f32.mrb[0].mxu0
        %v4983 = vadd.f32 %v4770, %v4982
        %v4984 = vpop.f32.mrb[0].mxu0
        %v4985 = vadd.f32 %v4770, %v4984
        %v4986 = vpop.f32.mrb[0].mxu0
        %v4987 = vpop.f32.mrb[0].mxu0
        %4988 = vdwg.mxu0
        %4989 = vmatprep.subr.bf16.mxu0 %v3911
        %4990 = vmatpush1.bf16.msra.mxu0 %v3907
        %4991 = vmatprep.subr.bf16.mxu0 %v3967
        %4992 = vmatpush1.bf16.msra.mxu0 %v3963
        %4993 = vmatprep.subr.bf16.mxu0 %v4023
        %4994 = vmatpush1.bf16.msra.mxu0 %v4019
        %4995 = vmatprep.subr.bf16.mxu0 %v4079
        %4996 = vmatpush1.bf16.msra.mxu0 %v4075
        %4997 = vmatprep.subr.bf16.mxu0 %v4135
        %4998 = vmatpush1.bf16.msra.mxu0 %v4131
        %4999 = vmatprep.subr.bf16.mxu0 %v4191
        %5000 = vmatpush1.bf16.msra.mxu0 %v4187
        %5001 = vmatprep.subr.bf16.mxu0 %v4247
        %5002 = vmatpush1.bf16.msra.mxu0 %v4243
        %5003 = vmatprep.subr.bf16.mxu0 %v4303
        %5004 = vmatpush1.bf16.msra.mxu0 %v4299
        %5005 = vmatprep.subr.bf16.mxu0 %v4632
        %5006 = vmatpush1.bf16.msra.mxu0 %v4631
        %5007 = vmatprep.subr.bf16.mxu0 %v4646
        %5008 = vmatpush1.bf16.msra.mxu0 %v4645
        %5009 = vmatprep.subr.bf16.mxu0 %v4660
        %5010 = vmatpush1.bf16.msra.mxu0 %v4659
        %5011 = vmatprep.subr.bf16.mxu0 %v4674
        %5012 = vmatpush1.bf16.msra.mxu0 %v4673
        %5013 = vmatprep.subr.bf16.mxu0 %v4816
        %5014 = vmatpush1.bf16.msra.mxu0 %v4813
        %5015 = vmatprep.subr.bf16.mxu0 0
        %5016 = vmatpush1.bf16.msra.mxu0 0
        %5017 = vmatprep.subr.bf16.mxu0 0
        %5018 = vmatpush1.bf16.msra.mxu0 0
        %5019 = vmatprep.subr.bf16.mxu0 0
        %5020 = vmatpush1.bf16.msra.mxu0 0
        %5021 = vmatprep.mubr.bf16.mxu0 %v4789
        %5022 = vmatmul.mubr.bf16.gmra.mrb[0].mxu0 %v4781
        %v5023 = vpop.f32.mrb[0].mxu0
        %v5024 = vadd.f32 %v4760, %v5023
        %v5025 = vpop.f32.mrb[0].mxu0
        %v5026 = vadd.f32 %v4760, %v5025
        %v5027 = vpop.f32.mrb[0].mxu0
        %v5028 = vadd.f32 %v4765, %v5027
        %v5029 = vpop.f32.mrb[0].mxu0
        %v5030 = vadd.f32 %v4765, %v5029
        %5031 = vmatprep.mubr.bf16.mxu0 %v4792
        %5032 = vmatmul.mubr.bf16.gmra.mrb[0].mxu0 %v4783
        %v5033 = vpop.f32.mrb[0].mxu0
        %v5034 = vadd.f32 %v4770, %v5033
        %v5035 = vpop.f32.mrb[0].mxu0
        %v5036 = vadd.f32 %v4770, %v5035
        %v5037 = vpop.f32.mrb[0].mxu0
        %v5038 = vpop.f32.mrb[0].mxu0
        %5039 = vdwg.mxu0
        %5040 = vmatprep.subr.bf16.mxu0 %v3919
        %5041 = vmatpush1.bf16.msra.mxu0 %v3915
        %5042 = vmatprep.subr.bf16.mxu0 %v3975
        %5043 = vmatpush1.bf16.msra.mxu0 %v3971
        %5044 = vmatprep.subr.bf16.mxu0 %v4031
        %5045 = vmatpush1.bf16.msra.mxu0 %v4027
        %5046 = vmatprep.subr.bf16.mxu0 %v4087
        %5047 = vmatpush1.bf16.msra.mxu0 %v4083
        %5048 = vmatprep.subr.bf16.mxu0 %v4143
        %5049 = vmatpush1.bf16.msra.mxu0 %v4139
        %5050 = vmatprep.subr.bf16.mxu0 %v4199
        %5051 = vmatpush1.bf16.msra.mxu0 %v4195
        %5052 = vmatprep.subr.bf16.mxu0 %v4255
        %5053 = vmatpush1.bf16.msra.mxu0 %v4251
        %5054 = vmatprep.subr.bf16.mxu0 %v4311
        %5055 = vmatpush1.bf16.msra.mxu0 %v4307
        %5056 = vmatprep.subr.bf16.mxu0 %v4634
        %5057 = vmatpush1.bf16.msra.mxu0 %v4633
        %5058 = vmatprep.subr.bf16.mxu0 %v4648
        %5059 = vmatpush1.bf16.msra.mxu0 %v4647
        %5060 = vmatprep.subr.bf16.mxu0 %v4662
        %5061 = vmatpush1.bf16.msra.mxu0 %v4661
        %5062 = vmatprep.subr.bf16.mxu0 %v4676
        %5063 = vmatpush1.bf16.msra.mxu0 %v4675
        %5064 = vmatprep.subr.bf16.mxu0 %v4822
        %5065 = vmatpush1.bf16.msra.mxu0 %v4819
        %5066 = vmatprep.subr.bf16.mxu0 0
        %5067 = vmatpush1.bf16.msra.mxu0 0
        %5068 = vmatprep.subr.bf16.mxu0 0
        %5069 = vmatpush1.bf16.msra.mxu0 0
        %5070 = vmatprep.subr.bf16.mxu0 0
        %5071 = vmatpush1.bf16.msra.mxu0 0
        %5072 = vmatprep.mubr.bf16.mxu0 %v4789
        %5073 = vmatmul.mubr.bf16.gmra.mrb[0].mxu0 %v4781
        %v5074 = vpop.f32.mrb[0].mxu0
        %v5075 = vadd.f32 %v4760, %v5074
        %v5076 = vpop.f32.mrb[0].mxu0
        %v5077 = vadd.f32 %v4760, %v5076
        %v5078 = vpop.f32.mrb[0].mxu0
        %v5079 = vadd.f32 %v4765, %v5078
        %v5080 = vpop.f32.mrb[0].mxu0
        %v5081 = vadd.f32 %v4765, %v5080
        %5082 = vmatprep.mubr.bf16.mxu0 %v4792
        %5083 = vmatmul.mubr.bf16.gmra.mrb[0].mxu0 %v4783
        %v5084 = vpop.f32.mrb[0].mxu0
        %v5085 = vadd.f32 %v4770, %v5084
        %v5086 = vpop.f32.mrb[0].mxu0
        %v5087 = vadd.f32 %v4770, %v5086
        %v5088 = vpop.f32.mrb[0].mxu0
        %v5089 = vpop.f32.mrb[0].mxu0
        %5090 = vdwg.mxu0
        %5091 = vmatprep.subr.bf16.mxu0 %v3927
        %5092 = vmatpush1.bf16.msra.mxu0 %v3923
        %5093 = vmatprep.subr.bf16.mxu0 %v3983
        %5094 = vmatpush1.bf16.msra.mxu0 %v3979
        %5095 = vmatprep.subr.bf16.mxu0 %v4039
        %5096 = vmatpush1.bf16.msra.mxu0 %v4035
        %5097 = vmatprep.subr.bf16.mxu0 %v4095
        %5098 = vmatpush1.bf16.msra.mxu0 %v4091
        %5099 = vmatprep.subr.bf16.mxu0 %v4151
        %5100 = vmatpush1.bf16.msra.mxu0 %v4147
        %5101 = vmatprep.subr.bf16.mxu0 %v4207
        %5102 = vmatpush1.bf16.msra.mxu0 %v4203
        %5103 = vmatprep.subr.bf16.mxu0 %v4263
        %5104 = vmatpush1.bf16.msra.mxu0 %v4259
        %5105 = vmatprep.subr.bf16.mxu0 %v4319
        %5106 = vmatpush1.bf16.msra.mxu0 %v4315
        %5107 = vmatprep.subr.bf16.mxu0 %v4636
        %5108 = vmatpush1.bf16.msra.mxu0 %v4635
        %5109 = vmatprep.subr.bf16.mxu0 %v4650
        %5110 = vmatpush1.bf16.msra.mxu0 %v4649
        %5111 = vmatprep.subr.bf16.mxu0 %v4664
        %5112 = vmatpush1.bf16.msra.mxu0 %v4663
        %5113 = vmatprep.subr.bf16.mxu0 %v4678
        %5114 = vmatpush1.bf16.msra.mxu0 %v4677
        %5115 = vmatprep.subr.bf16.mxu0 %v4828
        %5116 = vmatpush1.bf16.msra.mxu0 %v4825
        %5117 = vmatprep.subr.bf16.mxu0 0
        %5118 = vmatpush1.bf16.msra.mxu0 0
        %5119 = vmatprep.subr.bf16.mxu0 0
        %5120 = vmatpush1.bf16.msra.mxu0 0
        %5121 = vmatprep.subr.bf16.mxu0 0
        %5122 = vmatpush1.bf16.msra.mxu0 0
        %5123 = vmatprep.mubr.bf16.mxu0 %v4789
        %5124 = vmatmul.mubr.bf16.gmra.mrb[0].mxu0 %v4781
        %v5125 = vpop.f32.mrb[0].mxu0
        %v5126 = vadd.f32 %v4760, %v5125
        %v5127 = vpop.f32.mrb[0].mxu0
        %v5128 = vadd.f32 %v4760, %v5127
        %v5129 = vpop.f32.mrb[0].mxu0
        %v5130 = vadd.f32 %v4765, %v5129
        %v5131 = vpop.f32.mrb[0].mxu0
        %v5132 = vadd.f32 %v4765, %v5131
        %5133 = vmatprep.mubr.bf16.mxu0 %v4792
        %5134 = vmatmul.mubr.bf16.gmra.mrb[0].mxu0 %v4783
        %v5135 = vpop.f32.mrb[0].mxu0
        %v5136 = vadd.f32 %v4770, %v5135
        %v5137 = vpop.f32.mrb[0].mxu0
        %v5138 = vadd.f32 %v4770, %v5137
        %v5139 = vpop.f32.mrb[0].mxu0
        %v5140 = vpop.f32.mrb[0].mxu0
        %5141 = vdwg.mxu0
        %5142 = vmatprep.subr.bf16.mxu0 %v3935
        %5143 = vmatpush1.bf16.msra.mxu0 %v3931
        %5144 = vmatprep.subr.bf16.mxu0 %v3991
        %5145 = vmatpush1.bf16.msra.mxu0 %v3987
        %5146 = vmatprep.subr.bf16.mxu0 %v4047
        %5147 = vmatpush1.bf16.msra.mxu0 %v4043
        %5148 = vmatprep.subr.bf16.mxu0 %v4103
        %5149 = vmatpush1.bf16.msra.mxu0 %v4099
        %5150 = vmatprep.subr.bf16.mxu0 %v4159
        %5151 = vmatpush1.bf16.msra.mxu0 %v4155
        %5152 = vmatprep.subr.bf16.mxu0 %v4215
        %5153 = vmatpush1.bf16.msra.mxu0 %v4211
        %5154 = vmatprep.subr.bf16.mxu0 %v4271
        %5155 = vmatpush1.bf16.msra.mxu0 %v4267
        %5156 = vmatprep.subr.bf16.mxu0 %v4327
        %5157 = vmatpush1.bf16.msra.mxu0 %v4323
        %5158 = vmatprep.subr.bf16.mxu0 %v4638
        %5159 = vmatpush1.bf16.msra.mxu0 %v4637
        %5160 = vmatprep.subr.bf16.mxu0 %v4652
        %5161 = vmatpush1.bf16.msra.mxu0 %v4651
        %5162 = vmatprep.subr.bf16.mxu0 %v4666
        %5163 = vmatpush1.bf16.msra.mxu0 %v4665
        %5164 = vmatprep.subr.bf16.mxu0 %v4680
        %5165 = vmatpush1.bf16.msra.mxu0 %v4679
        %5166 = vmatprep.subr.bf16.mxu0 %v4834
        %5167 = vmatpush1.bf16.msra.mxu0 %v4831
        %5168 = vmatprep.subr.bf16.mxu0 0
        %5169 = vmatpush1.bf16.msra.mxu0 0
        %5170 = vmatprep.subr.bf16.mxu0 0
        %5171 = vmatpush1.bf16.msra.mxu0 0
        %5172 = vmatprep.subr.bf16.mxu0 0
        %5173 = vmatpush1.bf16.msra.mxu0 0
        %5174 = vmatprep.mubr.bf16.mxu0 %v4789
        %5175 = vmatmul.mubr.bf16.gmra.mrb[0].mxu0 %v4781
        %v5176 = vpop.f32.mrb[0].mxu0
        %v5177 = vadd.f32 %v4760, %v5176
        %v5178 = vpop.f32.mrb[0].mxu0
        %v5179 = vadd.f32 %v4760, %v5178
        %v5180 = vpop.f32.mrb[0].mxu0
        %v5181 = vadd.f32 %v4765, %v5180
        %v5182 = vpop.f32.mrb[0].mxu0
        %v5183 = vadd.f32 %v4765, %v5182
        %5184 = vmatprep.mubr.bf16.mxu0 %v4792
        %5185 = vmatmul.mubr.bf16.gmra.mrb[0].mxu0 %v4783
        %v5186 = vpop.f32.mrb[0].mxu0
        %v5187 = vadd.f32 %v4770, %v5186
        %v5188 = vpop.f32.mrb[0].mxu0
        %v5189 = vadd.f32 %v4770, %v5188
        %v5190 = vpop.f32.mrb[0].mxu0
        %v5191 = vpop.f32.mrb[0].mxu0
        %5192 = vdwg.mxu0
        %v5193 = vmax.f32 %v4871, 0.0
        %v5194 = vmax.f32 %v4873, 0.0
        %v5195 = vmax.f32 %v4922, 0.0
        %v5196 = vmax.f32 %v4924, 0.0
        %v5197 = vmax.f32 %v4973, 0.0
        %v5198 = vmax.f32 %v4975, 0.0
        %v5199 = vmax.f32 %v5024, 0.0
        %v5200 = vmax.f32 %v5026, 0.0
        %v5201 = vmax.f32 %v5075, 0.0
        %v5202 = vmax.f32 %v5077, 0.0
        %v5203 = vmax.f32 %v5126, 0.0
        %v5204 = vmax.f32 %v5128, 0.0
        %v5205 = vmax.f32 %v5177, 0.0
        %v5206 = vmax.f32 %v5179, 0.0
        %v5207 = vmax.f32 %v4875, 0.0
        %v5208 = vmax.f32 %v4877, 0.0
        %v5209 = vmax.f32 %v4926, 0.0
        %v5210 = vmax.f32 %v4928, 0.0
        %v5211 = vmax.f32 %v4977, 0.0
        %v5212 = vmax.f32 %v4979, 0.0
        %v5213 = vmax.f32 %v5028, 0.0
        %v5214 = vmax.f32 %v5030, 0.0
        %v5215 = vmax.f32 %v5079, 0.0
        %v5216 = vmax.f32 %v5081, 0.0
        %v5217 = vmax.f32 %v5130, 0.0
        %v5218 = vmax.f32 %v5132, 0.0
        %v5219 = vmax.f32 %v5181, 0.0
        %v5220 = vmax.f32 %v5183, 0.0
        %v5221 = vmax.f32 %v4881, 0.0
        %v5222 = vmax.f32 %v4883, 0.0
        %v5223 = vmax.f32 %v4932, 0.0
        %v5224 = vmax.f32 %v4934, 0.0
        %v5225 = vmax.f32 %v4983, 0.0
        %v5226 = vmax.f32 %v4985, 0.0
        %v5227 = vmax.f32 %v5034, 0.0
        %v5228 = vmax.f32 %v5036, 0.0
        %v5229 = vmax.f32 %v5085, 0.0
        %v5230 = vmax.f32 %v5087, 0.0
        %v5231 = vmax.f32 %v5136, 0.0
        %v5232 = vmax.f32 %v5138, 0.0
        %v5233 = vmax.f32 %v5187, 0.0
        %v5234 = vmax.f32 %v5189, 0.0
        %5277 = vrot.lane.b32.xlu0 %v5193, 127
        %v5278 = vpop.permute.xlu0 %5277
        %5279 = vrot.lane.b32.xlu0 %v5194, 127
        %v5280 = vpop.permute.xlu0 %5279
        %5281 = vrot.lane.b32.xlu0 %v5195, 127
        %v5282 = vpop.permute.xlu0 %5281
        %5283 = vrot.lane.b32.xlu0 %v5196, 127
        %v5284 = vpop.permute.xlu0 %5283
        %5285 = vrot.lane.b32.xlu0 %v5197, 127
        %v5286 = vpop.permute.xlu0 %5285
        %5287 = vrot.lane.b32.xlu0 %v5198, 127
        %v5288 = vpop.permute.xlu0 %5287
        %5289 = vrot.lane.b32.xlu0 %v5199, 127
        %v5290 = vpop.permute.xlu0 %5289
        %5291 = vrot.lane.b32.xlu0 %v5200, 127
        %v5292 = vpop.permute.xlu0 %5291
        %5293 = vrot.lane.b32.xlu0 %v5201, 127
        %v5294 = vpop.permute.xlu0 %5293
        %5295 = vrot.lane.b32.xlu0 %v5202, 127
        %v5296 = vpop.permute.xlu0 %5295
        %5297 = vrot.lane.b32.xlu0 %v5203, 127
        %v5298 = vpop.permute.xlu0 %5297
        %5299 = vrot.lane.b32.xlu0 %v5204, 127
        %v5300 = vpop.permute.xlu0 %5299
        %5301 = vrot.lane.b32.xlu0 %v5205, 127
        %v5302 = vpop.permute.xlu0 %5301
        %5303 = vrot.lane.b32.xlu0 %v5206, 127
        %v5304 = vpop.permute.xlu0 %5303
        %5305 = vrot.lane.b32.xlu0 %v5207, 127
        %v5306 = vpop.permute.xlu0 %5305
        %5307 = vrot.lane.b32.xlu0 %v5208, 127
        %v5308 = vpop.permute.xlu0 %5307
        %5309 = vrot.lane.b32.xlu0 %v5209, 127
        %v5310 = vpop.permute.xlu0 %5309
        %5311 = vrot.lane.b32.xlu0 %v5210, 127
        %v5312 = vpop.permute.xlu0 %5311
        %5313 = vrot.lane.b32.xlu0 %v5211, 127
        %v5314 = vpop.permute.xlu0 %5313
        %5315 = vrot.lane.b32.xlu0 %v5212, 127
        %v5316 = vpop.permute.xlu0 %5315
        %5317 = vrot.lane.b32.xlu0 %v5213, 127
        %v5318 = vpop.permute.xlu0 %5317
        %5319 = vrot.lane.b32.xlu0 %v5214, 127
        %v5320 = vpop.permute.xlu0 %5319
        %5321 = vrot.lane.b32.xlu0 %v5215, 127
        %v5322 = vpop.permute.xlu0 %5321
        %5323 = vrot.lane.b32.xlu0 %v5216, 127
        %v5324 = vpop.permute.xlu0 %5323
        %5325 = vrot.lane.b32.xlu0 %v5217, 127
        %v5326 = vpop.permute.xlu0 %5325
        %5327 = vrot.lane.b32.xlu0 %v5218, 127
        %v5328 = vpop.permute.xlu0 %5327
        %5329 = vrot.lane.b32.xlu0 %v5219, 127
        %v5330 = vpop.permute.xlu0 %5329
        %5331 = vrot.lane.b32.xlu0 %v5220, 127
        %v5332 = vpop.permute.xlu0 %5331
        %5333 = vrot.lane.b32.xlu0 %v5221, 127
        %v5334 = vpop.permute.xlu0 %5333
        %5335 = vrot.lane.b32.xlu0 %v5222, 127
        %v5336 = vpop.permute.xlu0 %5335
        %5337 = vrot.lane.b32.xlu0 %v5223, 127
        %v5338 = vpop.permute.xlu0 %5337
        %5339 = vrot.lane.b32.xlu0 %v5224, 127
        %v5340 = vpop.permute.xlu0 %5339
        %5341 = vrot.lane.b32.xlu0 %v5225, 127
        %v5342 = vpop.permute.xlu0 %5341
        %5343 = vrot.lane.b32.xlu0 %v5226, 127
        %v5344 = vpop.permute.xlu0 %5343
        %5345 = vrot.lane.b32.xlu0 %v5227, 127
        %v5346 = vpop.permute.xlu0 %5345
        %5347 = vrot.lane.b32.xlu0 %v5228, 127
        %v5348 = vpop.permute.xlu0 %5347
        %5349 = vrot.lane.b32.xlu0 %v5229, 127
        %v5350 = vpop.permute.xlu0 %5349
        %5351 = vrot.lane.b32.xlu0 %v5230, 127
        %v5352 = vpop.permute.xlu0 %5351
        %5353 = vrot.lane.b32.xlu0 %v5231, 127
        %v5354 = vpop.permute.xlu0 %5353
        %5355 = vrot.lane.b32.xlu0 %v5232, 127
        %v5356 = vpop.permute.xlu0 %5355
        %5357 = vrot.lane.b32.xlu0 %v5233, 127
        %v5358 = vpop.permute.xlu0 %5357
        %5359 = vrot.lane.b32.xlu0 %v5234, 127
        %v5360 = vpop.permute.xlu0 %5359
        %vm5361 = vcmask 1039360
        %v5362 = vsel %vm5361, %v5278, %v5280
        %v5363 = vsel %vm5361, %v5280, %v5282
        %v5364 = vsel %vm5361, %v5282, %v5284
        %v5365 = vsel %vm5361, %v5284, %v5286
        %v5366 = vsel %vm5361, %v5286, %v5288
        %v5367 = vsel %vm5361, %v5288, %v5290
        %v5368 = vsel %vm5361, %v5290, %v5292
        %v5369 = vsel %vm5361, %v5292, %v5294
        %v5370 = vsel %vm5361, %v5294, %v5296
        %v5371 = vsel %vm5361, %v5296, %v5298
        %v5372 = vsel %vm5361, %v5298, %v5300
        %v5373 = vsel %vm5361, %v5300, %v5302
        %v5374 = vsel %vm5361, %v5302, %v5304
        %v5375 = vsel %vm5361, %v5306, %v5308
        %v5376 = vsel %vm5361, %v5308, %v5310
        %v5377 = vsel %vm5361, %v5310, %v5312
        %v5378 = vsel %vm5361, %v5312, %v5314
        %v5379 = vsel %vm5361, %v5314, %v5316
        %v5380 = vsel %vm5361, %v5316, %v5318
        %v5381 = vsel %vm5361, %v5318, %v5320
        %v5382 = vsel %vm5361, %v5320, %v5322
        %v5383 = vsel %vm5361, %v5322, %v5324
        %v5384 = vsel %vm5361, %v5324, %v5326
        %v5385 = vsel %vm5361, %v5326, %v5328
        %v5386 = vsel %vm5361, %v5328, %v5330
        %v5387 = vsel %vm5361, %v5330, %v5332
        %v5388 = vsel %vm5361, %v5334, %v5336
        %v5389 = vsel %vm5361, %v5336, %v5338
        %v5390 = vsel %vm5361, %v5338, %v5340
        %v5391 = vsel %vm5361, %v5340, %v5342
        %v5392 = vsel %vm5361, %v5342, %v5344
        %v5393 = vsel %vm5361, %v5344, %v5346
        %v5394 = vsel %vm5361, %v5346, %v5348
        %v5395 = vsel %vm5361, %v5348, %v5350
        %v5396 = vsel %vm5361, %v5350, %v5352
        %v5397 = vsel %vm5361, %v5352, %v5354
        %v5398 = vsel %vm5361, %v5354, %v5356
        %v5399 = vsel %vm5361, %v5356, %v5358
        %v5400 = vsel %vm5361, %v5358, %v5360
        %v5446 = vsel %vm5361, %v5304, %v5278
        %v5447 = vsel %vm5361, %v5332, %v5306
        %v5448 = vsel %vm5361, %v5360, %v5334
        %v5449 = vmax.f32 %v5193, %v5362
        %v5450 = vmax.f32 %v5194, %v5363
        %v5451 = vmax.f32 %v5195, %v5364
        %v5452 = vmax.f32 %v5196, %v5365
        %v5453 = vmax.f32 %v5197, %v5366
        %v5454 = vmax.f32 %v5198, %v5367
        %v5455 = vmax.f32 %v5199, %v5368
        %v5456 = vmax.f32 %v5200, %v5369
        %v5457 = vmax.f32 %v5201, %v5370
        %v5458 = vmax.f32 %v5202, %v5371
        %v5459 = vmax.f32 %v5203, %v5372
        %v5460 = vmax.f32 %v5204, %v5373
        %v5461 = vmax.f32 %v5205, %v5374
        %v5462 = vmax.f32 %v5206, %v5446
        %v5463 = vmax.f32 %v5207, %v5375
        %v5464 = vmax.f32 %v5208, %v5376
        %v5465 = vmax.f32 %v5209, %v5377
        %v5466 = vmax.f32 %v5210, %v5378
        %v5467 = vmax.f32 %v5211, %v5379
        %v5468 = vmax.f32 %v5212, %v5380
        %v5469 = vmax.f32 %v5213, %v5381
        %v5470 = vmax.f32 %v5214, %v5382
        %v5471 = vmax.f32 %v5215, %v5383
        %v5472 = vmax.f32 %v5216, %v5384
        %v5473 = vmax.f32 %v5217, %v5385
        %v5474 = vmax.f32 %v5218, %v5386
        %v5475 = vmax.f32 %v5219, %v5387
        %v5476 = vmax.f32 %v5220, %v5447
        %v5477 = vmax.f32 %v5221, %v5388
        %v5478 = vmax.f32 %v5222, %v5389
        %v5479 = vmax.f32 %v5223, %v5390
        %v5480 = vmax.f32 %v5224, %v5391
        %v5481 = vmax.f32 %v5225, %v5392
        %v5482 = vmax.f32 %v5226, %v5393
        %v5483 = vmax.f32 %v5227, %v5394
        %v5484 = vmax.f32 %v5228, %v5395
        %v5485 = vmax.f32 %v5229, %v5396
        %v5486 = vmax.f32 %v5230, %v5397
        %v5487 = vmax.f32 %v5231, %v5398
        %v5488 = vmax.f32 %v5232, %v5399
        %v5489 = vmax.f32 %v5233, %v5400
        %v5490 = vmax.f32 %v5234, %v5448
        %5533 = vrot.lane.b32.xlu0 %v5449, 112
        %v5534 = vpop.permute.xlu0 %5533
        %5535 = vrot.lane.b32.xlu0 %v5450, 112
        %v5536 = vpop.permute.xlu0 %5535
        %5537 = vrot.lane.b32.xlu0 %v5451, 112
        %v5538 = vpop.permute.xlu0 %5537
        %5539 = vrot.lane.b32.xlu0 %v5452, 112
        %v5540 = vpop.permute.xlu0 %5539
        %5541 = vrot.lane.b32.xlu0 %v5453, 112
        %v5542 = vpop.permute.xlu0 %5541
        %5543 = vrot.lane.b32.xlu0 %v5454, 112
        %v5544 = vpop.permute.xlu0 %5543
        %5545 = vrot.lane.b32.xlu0 %v5455, 112
        %v5546 = vpop.permute.xlu0 %5545
        %5547 = vrot.lane.b32.xlu0 %v5456, 112
        %v5548 = vpop.permute.xlu0 %5547
        %5549 = vrot.lane.b32.xlu0 %v5457, 112
        %v5550 = vpop.permute.xlu0 %5549
        %5551 = vrot.lane.b32.xlu0 %v5458, 112
        %v5552 = vpop.permute.xlu0 %5551
        %5553 = vrot.lane.b32.xlu0 %v5459, 112
        %v5554 = vpop.permute.xlu0 %5553
        %5555 = vrot.lane.b32.xlu0 %v5460, 112
        %v5556 = vpop.permute.xlu0 %5555
        %5557 = vrot.lane.b32.xlu0 %v5461, 112
        %v5558 = vpop.permute.xlu0 %5557
        %5559 = vrot.lane.b32.xlu0 %v5462, 112
        %v5560 = vpop.permute.xlu0 %5559
        %5561 = vrot.lane.b32.xlu0 %v5463, 112
        %v5562 = vpop.permute.xlu0 %5561
        %5563 = vrot.lane.b32.xlu0 %v5464, 112
        %v5564 = vpop.permute.xlu0 %5563
        %5565 = vrot.lane.b32.xlu0 %v5465, 112
        %v5566 = vpop.permute.xlu0 %5565
        %5567 = vrot.lane.b32.xlu0 %v5466, 112
        %v5568 = vpop.permute.xlu0 %5567
        %5569 = vrot.lane.b32.xlu0 %v5467, 112
        %v5570 = vpop.permute.xlu0 %5569
        %5571 = vrot.lane.b32.xlu0 %v5468, 112
        %v5572 = vpop.permute.xlu0 %5571
        %5573 = vrot.lane.b32.xlu0 %v5469, 112
        %v5574 = vpop.permute.xlu0 %5573
        %5575 = vrot.lane.b32.xlu0 %v5470, 112
        %v5576 = vpop.permute.xlu0 %5575
        %5577 = vrot.lane.b32.xlu0 %v5471, 112
        %v5578 = vpop.permute.xlu0 %5577
        %5579 = vrot.lane.b32.xlu0 %v5472, 112
        %v5580 = vpop.permute.xlu0 %5579
        %5581 = vrot.lane.b32.xlu0 %v5473, 112
        %v5582 = vpop.permute.xlu0 %5581
        %5583 = vrot.lane.b32.xlu0 %v5474, 112
        %v5584 = vpop.permute.xlu0 %5583
        %5585 = vrot.lane.b32.xlu0 %v5475, 112
        %v5586 = vpop.permute.xlu0 %5585
        %5587 = vrot.lane.b32.xlu0 %v5476, 112
        %v5588 = vpop.permute.xlu0 %5587
        %5589 = vrot.lane.b32.xlu0 %v5477, 112
        %v5590 = vpop.permute.xlu0 %5589
        %5591 = vrot.lane.b32.xlu0 %v5478, 112
        %v5592 = vpop.permute.xlu0 %5591
        %5593 = vrot.lane.b32.xlu0 %v5479, 112
        %v5594 = vpop.permute.xlu0 %5593
        %5595 = vrot.lane.b32.xlu0 %v5480, 112
        %v5596 = vpop.permute.xlu0 %5595
        %5597 = vrot.lane.b32.xlu0 %v5481, 112
        %v5598 = vpop.permute.xlu0 %5597
        %5599 = vrot.lane.b32.xlu0 %v5482, 112
        %v5600 = vpop.permute.xlu0 %5599
        %5601 = vrot.lane.b32.xlu0 %v5483, 112
        %v5602 = vpop.permute.xlu0 %5601
        %5603 = vrot.lane.b32.xlu0 %v5484, 112
        %v5604 = vpop.permute.xlu0 %5603
        %5605 = vrot.lane.b32.xlu0 %v5485, 112
        %v5606 = vpop.permute.xlu0 %5605
        %5607 = vrot.lane.b32.xlu0 %v5486, 112
        %v5608 = vpop.permute.xlu0 %5607
        %5609 = vrot.lane.b32.xlu0 %v5487, 112
        %v5610 = vpop.permute.xlu0 %5609
        %5611 = vrot.lane.b32.xlu0 %v5488, 112
        %v5612 = vpop.permute.xlu0 %5611
        %5613 = vrot.lane.b32.xlu0 %v5489, 112
        %v5614 = vpop.permute.xlu0 %5613
        %5615 = vrot.lane.b32.xlu0 %v5490, 112
        %v5616 = vpop.permute.xlu0 %5615
        %vm5617 = vcmask 916480
        %v5618 = vsel %vm5617, %v5534, %v5536
        %v5619 = vsel %vm5617, %v5536, %v5538
        %v5620 = vsel %vm5617, %v5538, %v5540
        %v5621 = vsel %vm5617, %v5540, %v5542
        %v5622 = vsel %vm5617, %v5542, %v5544
        %v5623 = vsel %vm5617, %v5544, %v5546
        %v5624 = vsel %vm5617, %v5546, %v5548
        %v5625 = vsel %vm5617, %v5548, %v5550
        %v5626 = vsel %vm5617, %v5550, %v5552
        %v5627 = vsel %vm5617, %v5552, %v5554
        %v5628 = vsel %vm5617, %v5554, %v5556
        %v5629 = vsel %vm5617, %v5556, %v5558
        %v5630 = vsel %vm5617, %v5558, %v5560
        %v5631 = vsel %vm5617, %v5562, %v5564
        %v5632 = vsel %vm5617, %v5564, %v5566
        %v5633 = vsel %vm5617, %v5566, %v5568
        %v5634 = vsel %vm5617, %v5568, %v5570
        %v5635 = vsel %vm5617, %v5570, %v5572
        %v5636 = vsel %vm5617, %v5572, %v5574
        %v5637 = vsel %vm5617, %v5574, %v5576
        %v5638 = vsel %vm5617, %v5576, %v5578
        %v5639 = vsel %vm5617, %v5578, %v5580
        %v5640 = vsel %vm5617, %v5580, %v5582
        %v5641 = vsel %vm5617, %v5582, %v5584
        %v5642 = vsel %vm5617, %v5584, %v5586
        %v5643 = vsel %vm5617, %v5586, %v5588
        %v5644 = vsel %vm5617, %v5590, %v5592
        %v5645 = vsel %vm5617, %v5592, %v5594
        %v5646 = vsel %vm5617, %v5594, %v5596
        %v5647 = vsel %vm5617, %v5596, %v5598
        %v5648 = vsel %vm5617, %v5598, %v5600
        %v5649 = vsel %vm5617, %v5600, %v5602
        %v5650 = vsel %vm5617, %v5602, %v5604
        %v5651 = vsel %vm5617, %v5604, %v5606
        %v5652 = vsel %vm5617, %v5606, %v5608
        %v5653 = vsel %vm5617, %v5608, %v5610
        %v5654 = vsel %vm5617, %v5610, %v5612
        %v5655 = vsel %vm5617, %v5612, %v5614
        %v5656 = vsel %vm5617, %v5614, %v5616
        %v5702 = vsel %vm5617, %v5560, %v5534
        %v5703 = vsel %vm5617, %v5588, %v5562
        %v5704 = vsel %vm5617, %v5616, %v5590
        %v5705 = vmax.f32 %v5449, %v5618
        %v5706 = vmax.f32 %v5450, %v5619
        %v5707 = vmax.f32 %v5451, %v5620
        %v5708 = vmax.f32 %v5452, %v5621
        %v5709 = vmax.f32 %v5453, %v5622
        %v5710 = vmax.f32 %v5454, %v5623
        %v5711 = vmax.f32 %v5455, %v5624
        %v5712 = vmax.f32 %v5456, %v5625
        %v5713 = vmax.f32 %v5457, %v5626
        %v5714 = vmax.f32 %v5458, %v5627
        %v5715 = vmax.f32 %v5459, %v5628
        %v5716 = vmax.f32 %v5460, %v5629
        %v5717 = vmax.f32 %v5461, %v5630
        %v5718 = vmax.f32 %v5462, %v5702
        %v5719 = vmax.f32 %v5463, %v5631
        %v5720 = vmax.f32 %v5464, %v5632
        %v5721 = vmax.f32 %v5465, %v5633
        %v5722 = vmax.f32 %v5466, %v5634
        %v5723 = vmax.f32 %v5467, %v5635
        %v5724 = vmax.f32 %v5468, %v5636
        %v5725 = vmax.f32 %v5469, %v5637
        %v5726 = vmax.f32 %v5470, %v5638
        %v5727 = vmax.f32 %v5471, %v5639
        %v5728 = vmax.f32 %v5472, %v5640
        %v5729 = vmax.f32 %v5473, %v5641
        %v5730 = vmax.f32 %v5474, %v5642
        %v5731 = vmax.f32 %v5475, %v5643
        %v5732 = vmax.f32 %v5476, %v5703
        %v5733 = vmax.f32 %v5477, %v5644
        %v5734 = vmax.f32 %v5478, %v5645
        %v5735 = vmax.f32 %v5479, %v5646
        %v5736 = vmax.f32 %v5480, %v5647
        %v5737 = vmax.f32 %v5481, %v5648
        %v5738 = vmax.f32 %v5482, %v5649
        %v5739 = vmax.f32 %v5483, %v5650
        %v5740 = vmax.f32 %v5484, %v5651
        %v5741 = vmax.f32 %v5485, %v5652
        %v5742 = vmax.f32 %v5486, %v5653
        %v5743 = vmax.f32 %v5487, %v5654
        %v5744 = vmax.f32 %v5488, %v5655
        %v5745 = vmax.f32 %v5489, %v5656
        %v5746 = vmax.f32 %v5490, %v5704
        %v5747 = vpack.c.bf16 %v5719, %v5705
        %v5748 = vpack.c.bf16 %v5720, %v5706
        %v5749 = vpack.c.bf16 %v5721, %v5707
        %v5750 = vpack.c.bf16 %v5722, %v5708
        %v5751 = vpack.c.bf16 %v5723, %v5709
        %v5752 = vpack.c.bf16 %v5724, %v5710
        %v5753 = vpack.c.bf16 %v5725, %v5711
        %v5754 = vpack.c.bf16 %v5726, %v5712
        %v5755 = vpack.c.bf16 %v5727, %v5713
        %v5756 = vpack.c.bf16 %v5728, %v5714
        %v5757 = vpack.c.bf16 %v5729, %v5715
        %v5758 = vpack.c.bf16 %v5730, %v5716
        %v5759 = vpack.c.bf16 %v5731, %v5717
        %v5760 = vpack.c.bf16 %v5732, %v5718
        %v5761 = vpack.c.bf16 %v5733, %v5733
        %v5762 = vpack.c.bf16 %v5734, %v5734
        %v5763 = vpack.c.bf16 %v5735, %v5735
        %v5764 = vpack.c.bf16 %v5736, %v5736
        %v5765 = vpack.c.bf16 %v5737, %v5737
        %v5766 = vpack.c.bf16 %v5738, %v5738
        %v5767 = vpack.c.bf16 %v5739, %v5739
        %v5768 = vpack.c.bf16 %v5740, %v5740
        %v5769 = vpack.c.bf16 %v5741, %v5741
        %v5770 = vpack.c.bf16 %v5742, %v5742
        %v5771 = vpack.c.bf16 %v5743, %v5743
        %v5772 = vpack.c.bf16 %v5744, %v5744
        %v5773 = vpack.c.bf16 %v5745, %v5745
        %v5774 = vpack.c.bf16 %v5746, %v5746
        %v5775 = vld [vmem:[%s9] sm:$0xff]
        %v5776 = vld [vmem:[%s9 + $0x8] sm:$0xff]
        %v5777 = vld [vmem:[%s9 + $0x10] sm:$0xff]
        %v5778 = vld [vmem:[%s9 + $0x18] sm:$0xff]
        %v5779 = vld [vmem:[%s9 + $0x20] sm:$0xff]
        %v5780 = vld [vmem:[%s9 + $0x28] sm:$0xff]
        %v5781 = vld [vmem:[%s9 + $0x30] sm:$0xff]
        %v5782 = vld [vmem:[%s9 + $0x38] sm:$0xff]
        %v5783 = vld [vmem:[%s9 + $0x40] sm:$0xff]
        %v5784 = vld [vmem:[%s9 + $0x48] sm:$0xff]
        %v5785 = vld [vmem:[%s9 + $0x50] sm:$0xff]
        %v5786 = vld [vmem:[%s9 + $0x58] sm:$0xff]
        %v5787 = vld [vmem:[%s9 + $0x60] sm:$0xff]
        %v5788 = vld [vmem:[%s9 + $0x68] sm:$0xff]
        %v5789 = vld [vmem:[%s9 + $0x70] sm:$0xff]
        %v5790 = vld [vmem:[%s9 + $0x78] sm:$0xff]
        %v5791 = vld [vmem:[%s9 + $0x80] sm:$0xff]
        %v5792 = vld [vmem:[%s9 + $0x88] sm:$0xff]
        %v5793 = vld [vmem:[%s9 + $0x90] sm:$0xff]
        %v5794 = vld [vmem:[%s9 + $0x98] sm:$0xff]
        %v5795 = vld [vmem:[%s9 + $0xa0] sm:$0xff]
        %v5796 = vld [vmem:[%s9 + $0xa8] sm:$0xff]
        %v5797 = vld [vmem:[%s9 + $0xb0] sm:$0xff]
        %v5798 = vld [vmem:[%s9 + $0xb8] sm:$0xff]
        %v5799 = vld [vmem:[%s9 + $0xc0] sm:$0xff]
        %v5800 = vld [vmem:[%s9 + $0xc8] sm:$0xff]
        %v5801 = vld [vmem:[%s9 + $0xd0] sm:$0xff]
        %v5802 = vld [vmem:[%s9 + $0xd8] sm:$0xff]
        %v5803 = vld [vmem:[%s9 + $0xe0] sm:$0xff]
        %v5804 = vld [vmem:[%s9 + $0xe8] sm:$0xff]
        %v5805 = vld [vmem:[%s9 + $0xf0] sm:$0xff]
        %v5806 = vld [vmem:[%s9 + $0xf8] sm:$0xff]
        %v5807 = vld [vmem:[%s9 + $0x100] sm:$0xff]
        %v5808 = vld [vmem:[%s9 + $0x108] sm:$0xff]
        %v5809 = vld [vmem:[%s9 + $0x110] sm:$0xff]
        %v5810 = vld [vmem:[%s9 + $0x118] sm:$0xff]
        %v5811 = vld [vmem:[%s9 + $0x120] sm:$0xff]
        %v5812 = vld [vmem:[%s9 + $0x128] sm:$0xff]
        %v5813 = vld [vmem:[%s9 + $0x130] sm:$0xff]
        %v5814 = vld [vmem:[%s9 + $0x138] sm:$0xff]
        %v5815 = vld [vmem:[%s9 + $0x140] sm:$0xff]
        %v5816 = vld [vmem:[%s9 + $0x148] sm:$0xff]
        %v5817 = vld [vmem:[%s9 + $0x150] sm:$0xff]
        %v5818 = vld [vmem:[%s9 + $0x158] sm:$0xff]
        %v5819 = vld [vmem:[%s9 + $0x160] sm:$0xff]
        %v5820 = vld [vmem:[%s9 + $0x168] sm:$0xff]
        %v5821 = vld [vmem:[%s9 + $0x170] sm:$0xff]
        %v5822 = vld [vmem:[%s9 + $0x178] sm:$0xff]
        %v5823 = vld [vmem:[%s9 + $0x180] sm:$0xff]
        %v5824 = vld [vmem:[%s9 + $0x188] sm:$0xff]
        %v5825 = vld [vmem:[%s9 + $0x190] sm:$0xff]
        %v5826 = vld [vmem:[%s9 + $0x198] sm:$0xff]
        %v5827 = vld [vmem:[%s9 + $0x1a0] sm:$0xff]
        %v5828 = vld [vmem:[%s9 + $0x1a8] sm:$0xff]
        %v5829 = vld [vmem:[%s9 + $0x1b0] sm:$0xff]
        %v5830 = vld [vmem:[%s9 + $0x1b8] sm:$0xff]
        %v5831 = vld [vmem:[%s9 + $0x1c0] sm:$0xff]
        %v5832 = vld [vmem:[%s9 + $0x1c8] sm:$0xff]
        %v5833 = vld [vmem:[%s9 + $0x1d0] sm:$0xff]
        %v5834 = vld [vmem:[%s9 + $0x1d8] sm:$0xff]
        %v5835 = vld [vmem:[%s9 + $0x1e0] sm:$0xff]
        %v5836 = vld [vmem:[%s9 + $0x1e8] sm:$0xff]
        %v5837 = vld [vmem:[%s9 + $0x1f0] sm:$0xff]
        %v5838 = vld [vmem:[%s9 + $0x1f8] sm:$0xff]
        %v5839 = vld [vmem:[%s9 + $0x200] sm:$0xff]
        %v5840 = vld [vmem:[%s9 + $0x208] sm:$0xff]
        %v5841 = vld [vmem:[%s9 + $0x210] sm:$0xff]
        %v5842 = vld [vmem:[%s9 + $0x218] sm:$0xff]
        %v5843 = vld [vmem:[%s9 + $0x220] sm:$0xff]
        %v5844 = vld [vmem:[%s9 + $0x228] sm:$0xff]
        %v5845 = vld [vmem:[%s9 + $0x230] sm:$0xff]
        %v5846 = vld [vmem:[%s9 + $0x238] sm:$0xff]
        %v5847 = vld [vmem:[%s9 + $0x240] sm:$0xff]
        %v5848 = vld [vmem:[%s9 + $0x248] sm:$0xff]
        %v5849 = vld [vmem:[%s9 + $0x250] sm:$0xff]
        %v5850 = vld [vmem:[%s9 + $0x258] sm:$0xff]
        %v5851 = vld [vmem:[%s9 + $0x260] sm:$0xff]
        %v5852 = vld [vmem:[%s9 + $0x268] sm:$0xff]
        %v5853 = vld [vmem:[%s9 + $0x270] sm:$0xff]
        %v5854 = vld [vmem:[%s9 + $0x278] sm:$0xff]
        %v5855 = vld [vmem:[%s9 + $0x280] sm:$0xff]
        %v5856 = vld [vmem:[%s9 + $0x288] sm:$0xff]
        %v5857 = vld [vmem:[%s9 + $0x290] sm:$0xff]
        %v5858 = vld [vmem:[%s9 + $0x298] sm:$0xff]
        %v5859 = vld [vmem:[%s9 + $0x2a0] sm:$0xff]
        %v5860 = vld [vmem:[%s9 + $0x2a8] sm:$0xff]
        %v5861 = vld [vmem:[%s9 + $0x2b0] sm:$0xff]
        %v5862 = vld [vmem:[%s9 + $0x2b8] sm:$0xff]
        %v5863 = vld [vmem:[%s9 + $0x2c0] sm:$0xff]
        %v5864 = vld [vmem:[%s9 + $0x2c8] sm:$0xff]
        %v5865 = vld [vmem:[%s9 + $0x2d0] sm:$0xff]
        %v5866 = vld [vmem:[%s9 + $0x2d8] sm:$0xff]
        %v5867 = vld [vmem:[%s9 + $0x2e0] sm:$0xff]
        %v5868 = vld [vmem:[%s9 + $0x2e8] sm:$0xff]
        %v5869 = vld [vmem:[%s9 + $0x2f0] sm:$0xff]
        %v5870 = vld [vmem:[%s9 + $0x2f8] sm:$0xff]
        %v5871 = vld [vmem:[%s9 + $0x300] sm:$0xff]
        %v5872 = vld [vmem:[%s9 + $0x308] sm:$0xff]
        %v5873 = vld [vmem:[%s9 + $0x310] sm:$0xff]
        %v5874 = vld [vmem:[%s9 + $0x318] sm:$0xff]
        %v5875 = vld [vmem:[%s9 + $0x320] sm:$0xff]
        %v5876 = vld [vmem:[%s9 + $0x328] sm:$0xff]
        %v5877 = vld [vmem:[%s9 + $0x330] sm:$0xff]
        %v5878 = vld [vmem:[%s9 + $0x338] sm:$0xff]
        %v5879 = vld [vmem:[%s9 + $0x340] sm:$0xff]
        %v5880 = vld [vmem:[%s9 + $0x348] sm:$0xff]
        %v5881 = vld [vmem:[%s9 + $0x350] sm:$0xff]
        %v5882 = vld [vmem:[%s9 + $0x358] sm:$0xff]
        %v5883 = vld [vmem:[%s9 + $0x360] sm:$0xff]
        %v5884 = vld [vmem:[%s9 + $0x368] sm:$0xff]
        %v5885 = vld [vmem:[%s9 + $0x370] sm:$0xff]
        %v5886 = vld [vmem:[%s9 + $0x378] sm:$0xff]
        %v5887 = vld [vmem:[%s9 + $0x380] sm:$0xff]
        %v5888 = vld [vmem:[%s9 + $0x388] sm:$0xff]
        %v5889 = vld [vmem:[%s9 + $0x390] sm:$0xff]
        %v5890 = vld [vmem:[%s9 + $0x398] sm:$0xff]
        %v5891 = vld [vmem:[%s9 + $0x3a0] sm:$0xff]
        %v5892 = vld [vmem:[%s9 + $0x3a8] sm:$0xff]
        %v5893 = vld [vmem:[%s9 + $0x3b0] sm:$0xff]
        %v5894 = vld [vmem:[%s9 + $0x3b8] sm:$0xff]
        %v5895 = vld [vmem:[%s9 + $0x3c0] sm:$0xff]
        %v5896 = vld [vmem:[%s9 + $0x3c8] sm:$0xff]
        %v5897 = vld [vmem:[%s9 + $0x3d0] sm:$0xff]
        %v5898 = vld [vmem:[%s9 + $0x3d8] sm:$0xff]
        %v5899 = vld [vmem:[%s9 + $0x3e0] sm:$0xff]
        %v5900 = vld [vmem:[%s9 + $0x3e8] sm:$0xff]
        %v5901 = vld [vmem:[%s9 + $0x3f0] sm:$0xff]
        %v5902 = vld [vmem:[%s9 + $0x3f8] sm:$0xff]
        %v5903 = vld [vmem:[%s9 + $0x400] sm:$0xff]
        %v5904 = vld [vmem:[%s9 + $0x408] sm:$0xff]
        %v5905 = vld [vmem:[%s9 + $0x410] sm:$0xff]
        %v5906 = vld [vmem:[%s9 + $0x418] sm:$0xff]
        %v5907 = vld [vmem:[%s9 + $0x420] sm:$0xff]
        %v5908 = vld [vmem:[%s9 + $0x428] sm:$0xff]
        %v5909 = vld [vmem:[%s9 + $0x430] sm:$0xff]
        %v5910 = vld [vmem:[%s9 + $0x438] sm:$0xff]
        %v5911 = vld [vmem:[%s9 + $0x440] sm:$0xff]
        %v5912 = vld [vmem:[%s9 + $0x448] sm:$0xff]
        %v5913 = vld [vmem:[%s9 + $0x450] sm:$0xff]
        %v5914 = vld [vmem:[%s9 + $0x458] sm:$0xff]
        %v5915 = vld [vmem:[%s9 + $0x460] sm:$0xff]
        %v5916 = vld [vmem:[%s9 + $0x468] sm:$0xff]
        %v5917 = vld [vmem:[%s9 + $0x470] sm:$0xff]
        %v5918 = vld [vmem:[%s9 + $0x478] sm:$0xff]
        %v5919 = vld [vmem:[%s9 + $0x480] sm:$0xff]
        %v5920 = vld [vmem:[%s9 + $0x488] sm:$0xff]
        %v5921 = vld [vmem:[%s9 + $0x490] sm:$0xff]
        %v5922 = vld [vmem:[%s9 + $0x498] sm:$0xff]
        %v5923 = vld [vmem:[%s9 + $0x4a0] sm:$0xff]
        %v5924 = vld [vmem:[%s9 + $0x4a8] sm:$0xff]
        %v5925 = vld [vmem:[%s9 + $0x4b0] sm:$0xff]
        %v5926 = vld [vmem:[%s9 + $0x4b8] sm:$0xff]
        %v5927 = vld [vmem:[%s9 + $0x4c0] sm:$0xff]
        %v5928 = vld [vmem:[%s9 + $0x4c8] sm:$0xff]
        %v5929 = vld [vmem:[%s9 + $0x4d0] sm:$0xff]
        %v5930 = vld [vmem:[%s9 + $0x4d8] sm:$0xff]
        %v5931 = vld [vmem:[%s9 + $0x4e0] sm:$0xff]
        %v5932 = vld [vmem:[%s9 + $0x4e8] sm:$0xff]
        %v5933 = vld [vmem:[%s9 + $0x4f0] sm:$0xff]
        %v5934 = vld [vmem:[%s9 + $0x4f8] sm:$0xff]
        %v5935 = vld [vmem:[%s9 + $0x500] sm:$0xff]
        %v5936 = vld [vmem:[%s9 + $0x508] sm:$0xff]
        %v5937 = vld [vmem:[%s9 + $0x510] sm:$0xff]
        %v5938 = vld [vmem:[%s9 + $0x518] sm:$0xff]
        %v5939 = vld [vmem:[%s9 + $0x520] sm:$0xff]
        %v5940 = vld [vmem:[%s9 + $0x528] sm:$0xff]
        %v5941 = vld [vmem:[%s9 + $0x530] sm:$0xff]
        %v5942 = vld [vmem:[%s9 + $0x538] sm:$0xff]
        %v5943 = vld [vmem:[%s9 + $0x540] sm:$0xff]
        %v5944 = vld [vmem:[%s9 + $0x548] sm:$0xff]
        %v5945 = vld [vmem:[%s9 + $0x550] sm:$0xff]
        %v5946 = vld [vmem:[%s9 + $0x558] sm:$0xff]
        %v5947 = vld [vmem:[%s9 + $0x560] sm:$0xff]
        %v5948 = vld [vmem:[%s9 + $0x568] sm:$0xff]
        %v5949 = vld [vmem:[%s9 + $0x570] sm:$0xff]
        %v5950 = vld [vmem:[%s9 + $0x578] sm:$0xff]
        %v5951 = vld [vmem:[%s9 + $0x580] sm:$0xff]
        %v5952 = vld [vmem:[%s9 + $0x588] sm:$0xff]
        %v5953 = vld [vmem:[%s9 + $0x590] sm:$0xff]
        %v5954 = vld [vmem:[%s9 + $0x598] sm:$0xff]
        %v5955 = vld [vmem:[%s9 + $0x5a0] sm:$0xff]
        %v5956 = vld [vmem:[%s9 + $0x5a8] sm:$0xff]
        %v5957 = vld [vmem:[%s9 + $0x5b0] sm:$0xff]
        %v5958 = vld [vmem:[%s9 + $0x5b8] sm:$0xff]
        %v5959 = vld [vmem:[%s9 + $0x5c0] sm:$0xff]
        %v5960 = vld [vmem:[%s9 + $0x5c8] sm:$0xff]
        %v5961 = vld [vmem:[%s9 + $0x5d0] sm:$0xff]
        %v5962 = vld [vmem:[%s9 + $0x5d8] sm:$0xff]
        %v5963 = vld [vmem:[%s9 + $0x5e0] sm:$0xff]
        %v5964 = vld [vmem:[%s9 + $0x5e8] sm:$0xff]
        %v5965 = vld [vmem:[%s9 + $0x5f0] sm:$0xff]
        %v5966 = vld [vmem:[%s9 + $0x5f8] sm:$0xff]
        %v5967 = vld [vmem:[%s9 + $0x600] sm:$0xff]
        %v5968 = vld [vmem:[%s9 + $0x608] sm:$0xff]
        %v5969 = vld [vmem:[%s9 + $0x610] sm:$0xff]
        %v5970 = vld [vmem:[%s9 + $0x618] sm:$0xff]
        %v5971 = vld [vmem:[%s9 + $0x620] sm:$0xff]
        %v5972 = vld [vmem:[%s9 + $0x628] sm:$0xff]
        %v5973 = vld [vmem:[%s9 + $0x630] sm:$0xff]
        %v5974 = vld [vmem:[%s9 + $0x638] sm:$0xff]
        %v5975 = vld [vmem:[%s9 + $0x640] sm:$0xff]
        %v5976 = vld [vmem:[%s9 + $0x648] sm:$0xff]
        %v5977 = vld [vmem:[%s9 + $0x650] sm:$0xff]
        %v5978 = vld [vmem:[%s9 + $0x658] sm:$0xff]
        %v5979 = vld [vmem:[%s9 + $0x660] sm:$0xff]
        %v5980 = vld [vmem:[%s9 + $0x668] sm:$0xff]
        %v5981 = vld [vmem:[%s9 + $0x670] sm:$0xff]
        %v5982 = vld [vmem:[%s9 + $0x678] sm:$0xff]
        %v5983 = vld [vmem:[%s9 + $0x680] sm:$0xff]
        %v5984 = vld [vmem:[%s9 + $0x688] sm:$0xff]
        %v5985 = vld [vmem:[%s9 + $0x690] sm:$0xff]
        %v5986 = vld [vmem:[%s9 + $0x698] sm:$0xff]
        %v5987 = vld [vmem:[%s9 + $0x6a0] sm:$0xff]
        %v5988 = vld [vmem:[%s9 + $0x6a8] sm:$0xff]
        %v5989 = vld [vmem:[%s9 + $0x6b0] sm:$0xff]
        %v5990 = vld [vmem:[%s9 + $0x6b8] sm:$0xff]
        %v5991 = vld [vmem:[%s9 + $0x6c0] sm:$0xff]
        %v5992 = vld [vmem:[%s9 + $0x6c8] sm:$0xff]
        %v5993 = vld [vmem:[%s9 + $0x6d0] sm:$0xff]
        %v5994 = vld [vmem:[%s9 + $0x6d8] sm:$0xff]
        %v5995 = vld [vmem:[%s9 + $0x6e0] sm:$0xff]
        %v5996 = vld [vmem:[%s9 + $0x6e8] sm:$0xff]
        %v5997 = vld [vmem:[%s9 + $0x6f0] sm:$0xff]
        %v5998 = vld [vmem:[%s9 + $0x6f8] sm:$0xff]
        %v6223 = vunpack.c.l.b16 %v5775
        %v6224 = vunpack.c.h.b16 %v5775
        %v6225 = vunpack.c.l.b16 %v5776
        %v6226 = vunpack.c.h.b16 %v5776
        %v6227 = vunpack.c.l.b16 %v5777
        %v6228 = vunpack.c.h.b16 %v5777
        %v6229 = vunpack.c.l.b16 %v5778
        %v6230 = vunpack.c.h.b16 %v5778
        %v6231 = vunpack.c.l.b16 %v5779
        %v6232 = vunpack.c.h.b16 %v5779
        %v6233 = vunpack.c.l.b16 %v5780
        %v6234 = vunpack.c.h.b16 %v5780
        %v6235 = vunpack.c.l.b16 %v5781
        %v6236 = vunpack.c.h.b16 %v5781
        %v6237 = vunpack.c.l.b16 %v5782
        %v6238 = vunpack.c.h.b16 %v5782
        %v6239 = vunpack.c.l.b16 %v5783
        %v6240 = vunpack.c.h.b16 %v5783
        %v6241 = vunpack.c.l.b16 %v5784
        %v6242 = vunpack.c.h.b16 %v5784
        %v6243 = vunpack.c.l.b16 %v5785
        %v6244 = vunpack.c.h.b16 %v5785
        %v6245 = vunpack.c.l.b16 %v5786
        %v6246 = vunpack.c.h.b16 %v5786
        %v6247 = vunpack.c.l.b16 %v5787
        %v6248 = vunpack.c.h.b16 %v5787
        %v6249 = vunpack.c.l.b16 %v5788
        %v6250 = vunpack.c.h.b16 %v5788
        %v6251 = vunpack.c.l.b16 %v5789
        %v6252 = vunpack.c.h.b16 %v5789
        %v6253 = vunpack.c.l.b16 %v5790
        %v6254 = vunpack.c.h.b16 %v5790
        %v6255 = vunpack.c.l.b16 %v5791
        %v6256 = vunpack.c.h.b16 %v5791
        %v6257 = vunpack.c.l.b16 %v5792
        %v6258 = vunpack.c.h.b16 %v5792
        %v6259 = vunpack.c.l.b16 %v5793
        %v6260 = vunpack.c.h.b16 %v5793
        %v6261 = vunpack.c.l.b16 %v5794
        %v6262 = vunpack.c.h.b16 %v5794
        %v6263 = vunpack.c.l.b16 %v5795
        %v6264 = vunpack.c.h.b16 %v5795
        %v6265 = vunpack.c.l.b16 %v5796
        %v6266 = vunpack.c.h.b16 %v5796
        %v6267 = vunpack.c.l.b16 %v5797
        %v6268 = vunpack.c.h.b16 %v5797
        %v6269 = vunpack.c.l.b16 %v5798
        %v6270 = vunpack.c.h.b16 %v5798
        %v6271 = vunpack.c.l.b16 %v5799
        %v6272 = vunpack.c.h.b16 %v5799
        %v6273 = vunpack.c.l.b16 %v5800
        %v6274 = vunpack.c.h.b16 %v5800
        %v6275 = vunpack.c.l.b16 %v5801
        %v6276 = vunpack.c.h.b16 %v5801
        %v6277 = vunpack.c.l.b16 %v5802
        %v6278 = vunpack.c.h.b16 %v5802
        %v6279 = vunpack.c.l.b16 %v5803
        %v6280 = vunpack.c.h.b16 %v5803
        %v6281 = vunpack.c.l.b16 %v5804
        %v6282 = vunpack.c.h.b16 %v5804
        %v6283 = vunpack.c.l.b16 %v5805
        %v6284 = vunpack.c.h.b16 %v5805
        %v6285 = vunpack.c.l.b16 %v5806
        %v6286 = vunpack.c.h.b16 %v5806
        %v6287 = vunpack.c.l.b16 %v5807
        %v6288 = vunpack.c.h.b16 %v5807
        %v6289 = vunpack.c.l.b16 %v5808
        %v6290 = vunpack.c.h.b16 %v5808
        %v6291 = vunpack.c.l.b16 %v5809
        %v6292 = vunpack.c.h.b16 %v5809
        %v6293 = vunpack.c.l.b16 %v5810
        %v6294 = vunpack.c.h.b16 %v5810
        %v6295 = vunpack.c.l.b16 %v5811
        %v6296 = vunpack.c.h.b16 %v5811
        %v6297 = vunpack.c.l.b16 %v5812
        %v6298 = vunpack.c.h.b16 %v5812
        %v6299 = vunpack.c.l.b16 %v5813
        %v6300 = vunpack.c.h.b16 %v5813
        %v6301 = vunpack.c.l.b16 %v5814
        %v6302 = vunpack.c.h.b16 %v5814
        %v6303 = vunpack.c.l.b16 %v5815
        %v6304 = vunpack.c.h.b16 %v5815
        %v6305 = vunpack.c.l.b16 %v5816
        %v6306 = vunpack.c.h.b16 %v5816
        %v6307 = vunpack.c.l.b16 %v5817
        %v6308 = vunpack.c.h.b16 %v5817
        %v6309 = vunpack.c.l.b16 %v5818
        %v6310 = vunpack.c.h.b16 %v5818
        %v6311 = vunpack.c.l.b16 %v5819
        %v6312 = vunpack.c.h.b16 %v5819
        %v6313 = vunpack.c.l.b16 %v5820
        %v6314 = vunpack.c.h.b16 %v5820
        %v6315 = vunpack.c.l.b16 %v5821
        %v6316 = vunpack.c.h.b16 %v5821
        %v6317 = vunpack.c.l.b16 %v5822
        %v6318 = vunpack.c.h.b16 %v5822
        %v6319 = vunpack.c.l.b16 %v5823
        %v6320 = vunpack.c.h.b16 %v5823
        %v6321 = vunpack.c.l.b16 %v5824
        %v6322 = vunpack.c.h.b16 %v5824
        %v6323 = vunpack.c.l.b16 %v5825
        %v6324 = vunpack.c.h.b16 %v5825
        %v6325 = vunpack.c.l.b16 %v5826
        %v6326 = vunpack.c.h.b16 %v5826
        %v6327 = vunpack.c.l.b16 %v5827
        %v6328 = vunpack.c.h.b16 %v5827
        %v6329 = vunpack.c.l.b16 %v5828
        %v6330 = vunpack.c.h.b16 %v5828
        %v6331 = vunpack.c.l.b16 %v5829
        %v6332 = vunpack.c.h.b16 %v5829
        %v6333 = vunpack.c.l.b16 %v5830
        %v6334 = vunpack.c.h.b16 %v5830
        %v6335 = vunpack.c.l.b16 %v5831
        %v6336 = vunpack.c.h.b16 %v5831
        %v6337 = vunpack.c.l.b16 %v5832
        %v6338 = vunpack.c.h.b16 %v5832
        %v6339 = vunpack.c.l.b16 %v5833
        %v6340 = vunpack.c.h.b16 %v5833
        %v6341 = vunpack.c.l.b16 %v5834
        %v6342 = vunpack.c.h.b16 %v5834
        %v6343 = vunpack.c.l.b16 %v5835
        %v6344 = vunpack.c.h.b16 %v5835
        %v6345 = vunpack.c.l.b16 %v5836
        %v6346 = vunpack.c.h.b16 %v5836
        %v6347 = vunpack.c.l.b16 %v5837
        %v6348 = vunpack.c.h.b16 %v5837
        %v6349 = vunpack.c.l.b16 %v5838
        %v6350 = vunpack.c.h.b16 %v5838
        %v6351 = vunpack.c.l.b16 %v5839
        %v6352 = vunpack.c.h.b16 %v5839
        %v6353 = vunpack.c.l.b16 %v5840
        %v6354 = vunpack.c.h.b16 %v5840
        %v6355 = vunpack.c.l.b16 %v5841
        %v6356 = vunpack.c.h.b16 %v5841
        %v6357 = vunpack.c.l.b16 %v5842
        %v6358 = vunpack.c.h.b16 %v5842
        %v6359 = vunpack.c.l.b16 %v5843
        %v6360 = vunpack.c.h.b16 %v5843
        %v6361 = vunpack.c.l.b16 %v5844
        %v6362 = vunpack.c.h.b16 %v5844
        %v6363 = vunpack.c.l.b16 %v5845
        %v6364 = vunpack.c.h.b16 %v5845
        %v6365 = vunpack.c.l.b16 %v5846
        %v6366 = vunpack.c.h.b16 %v5846
        %v6367 = vunpack.c.l.b16 %v5847
        %v6368 = vunpack.c.h.b16 %v5847
        %v6369 = vunpack.c.l.b16 %v5848
        %v6370 = vunpack.c.h.b16 %v5848
        %v6371 = vunpack.c.l.b16 %v5849
        %v6372 = vunpack.c.h.b16 %v5849
        %v6373 = vunpack.c.l.b16 %v5850
        %v6374 = vunpack.c.h.b16 %v5850
        %v6375 = vunpack.c.l.b16 %v5851
        %v6376 = vunpack.c.h.b16 %v5851
        %v6377 = vunpack.c.l.b16 %v5852
        %v6378 = vunpack.c.h.b16 %v5852
        %v6379 = vunpack.c.l.b16 %v5853
        %v6380 = vunpack.c.h.b16 %v5853
        %v6381 = vunpack.c.l.b16 %v5854
        %v6382 = vunpack.c.h.b16 %v5854
        %v6383 = vunpack.c.l.b16 %v5855
        %v6384 = vunpack.c.h.b16 %v5855
        %v6385 = vunpack.c.l.b16 %v5856
        %v6386 = vunpack.c.h.b16 %v5856
        %v6387 = vunpack.c.l.b16 %v5857
        %v6388 = vunpack.c.h.b16 %v5857
        %v6389 = vunpack.c.l.b16 %v5858
        %v6390 = vunpack.c.h.b16 %v5858
        %v6391 = vunpack.c.l.b16 %v5859
        %v6392 = vunpack.c.h.b16 %v5859
        %v6393 = vunpack.c.l.b16 %v5860
        %v6394 = vunpack.c.h.b16 %v5860
        %v6395 = vunpack.c.l.b16 %v5861
        %v6396 = vunpack.c.h.b16 %v5861
        %v6397 = vunpack.c.l.b16 %v5862
        %v6398 = vunpack.c.h.b16 %v5862
        %v6399 = vunpack.c.l.b16 %v5863
        %v6400 = vunpack.c.h.b16 %v5863
        %v6401 = vunpack.c.l.b16 %v5864
        %v6402 = vunpack.c.h.b16 %v5864
        %v6403 = vunpack.c.l.b16 %v5865
        %v6404 = vunpack.c.h.b16 %v5865
        %v6405 = vunpack.c.l.b16 %v5866
        %v6406 = vunpack.c.h.b16 %v5866
        %v6407 = vunpack.c.l.b16 %v5867
        %v6408 = vunpack.c.h.b16 %v5867
        %v6409 = vunpack.c.l.b16 %v5868
        %v6410 = vunpack.c.h.b16 %v5868
        %v6411 = vunpack.c.l.b16 %v5869
        %v6412 = vunpack.c.h.b16 %v5869
        %v6413 = vunpack.c.l.b16 %v5870
        %v6414 = vunpack.c.h.b16 %v5870
        %v6415 = vunpack.c.l.b16 %v5871
        %v6416 = vunpack.c.h.b16 %v5871
        %v6417 = vunpack.c.l.b16 %v5872
        %v6418 = vunpack.c.h.b16 %v5872
        %v6419 = vunpack.c.l.b16 %v5873
        %v6420 = vunpack.c.h.b16 %v5873
        %v6421 = vunpack.c.l.b16 %v5874
        %v6422 = vunpack.c.h.b16 %v5874
        %v6423 = vunpack.c.l.b16 %v5875
        %v6424 = vunpack.c.h.b16 %v5875
        %v6425 = vunpack.c.l.b16 %v5876
        %v6426 = vunpack.c.h.b16 %v5876
        %v6427 = vunpack.c.l.b16 %v5877
        %v6428 = vunpack.c.h.b16 %v5877
        %v6429 = vunpack.c.l.b16 %v5878
        %v6430 = vunpack.c.h.b16 %v5878
        %v6431 = vunpack.c.l.b16 %v5879
        %v6432 = vunpack.c.h.b16 %v5879
        %v6433 = vunpack.c.l.b16 %v5880
        %v6434 = vunpack.c.h.b16 %v5880
        %v6435 = vunpack.c.l.b16 %v5881
        %v6436 = vunpack.c.h.b16 %v5881
        %v6437 = vunpack.c.l.b16 %v5882
        %v6438 = vunpack.c.h.b16 %v5882
        %v6439 = vunpack.c.l.b16 %v5883
        %v6440 = vunpack.c.h.b16 %v5883
        %v6441 = vunpack.c.l.b16 %v5884
        %v6442 = vunpack.c.h.b16 %v5884
        %v6443 = vunpack.c.l.b16 %v5885
        %v6444 = vunpack.c.h.b16 %v5885
        %v6445 = vunpack.c.l.b16 %v5886
        %v6446 = vunpack.c.h.b16 %v5886
        %v6447 = vunpack.c.l.b16 %v5887
        %v6448 = vunpack.c.h.b16 %v5887
        %v6449 = vunpack.c.l.b16 %v5888
        %v6450 = vunpack.c.h.b16 %v5888
        %v6451 = vunpack.c.l.b16 %v5889
        %v6452 = vunpack.c.h.b16 %v5889
        %v6453 = vunpack.c.l.b16 %v5890
        %v6454 = vunpack.c.h.b16 %v5890
        %v6455 = vunpack.c.l.b16 %v5891
        %v6456 = vunpack.c.h.b16 %v5891
        %v6457 = vunpack.c.l.b16 %v5892
        %v6458 = vunpack.c.h.b16 %v5892
        %v6459 = vunpack.c.l.b16 %v5893
        %v6460 = vunpack.c.h.b16 %v5893
        %v6461 = vunpack.c.l.b16 %v5894
        %v6462 = vunpack.c.h.b16 %v5894
        %v6463 = vunpack.c.l.b16 %v5895
        %v6464 = vunpack.c.h.b16 %v5895
        %v6465 = vunpack.c.l.b16 %v5896
        %v6466 = vunpack.c.h.b16 %v5896
        %v6467 = vunpack.c.l.b16 %v5897
        %v6468 = vunpack.c.h.b16 %v5897
        %v6469 = vunpack.c.l.b16 %v5898
        %v6470 = vunpack.c.h.b16 %v5898
        %v6471 = vunpack.c.l.b16 %v5899
        %v6472 = vunpack.c.h.b16 %v5899
        %v6473 = vunpack.c.l.b16 %v5900
        %v6474 = vunpack.c.h.b16 %v5900
        %v6475 = vunpack.c.l.b16 %v5901
        %v6476 = vunpack.c.h.b16 %v5901
        %v6477 = vunpack.c.l.b16 %v5902
        %v6478 = vunpack.c.h.b16 %v5902
        %v6479 = vunpack.c.l.b16 %v5903
        %v6480 = vunpack.c.h.b16 %v5903
        %v6481 = vunpack.c.l.b16 %v5904
        %v6482 = vunpack.c.h.b16 %v5904
        %v6483 = vunpack.c.l.b16 %v5905
        %v6484 = vunpack.c.h.b16 %v5905
        %v6485 = vunpack.c.l.b16 %v5906
        %v6486 = vunpack.c.h.b16 %v5906
        %v6487 = vunpack.c.l.b16 %v5907
        %v6488 = vunpack.c.h.b16 %v5907
        %v6489 = vunpack.c.l.b16 %v5908
        %v6490 = vunpack.c.h.b16 %v5908
        %v6491 = vunpack.c.l.b16 %v5909
        %v6492 = vunpack.c.h.b16 %v5909
        %v6493 = vunpack.c.l.b16 %v5910
        %v6494 = vunpack.c.h.b16 %v5910
        %v6495 = vunpack.c.l.b16 %v5911
        %v6496 = vunpack.c.h.b16 %v5911
        %v6497 = vunpack.c.l.b16 %v5912
        %v6498 = vunpack.c.h.b16 %v5912
        %v6499 = vunpack.c.l.b16 %v5913
        %v6500 = vunpack.c.h.b16 %v5913
        %v6501 = vunpack.c.l.b16 %v5914
        %v6502 = vunpack.c.h.b16 %v5914
        %v6503 = vunpack.c.l.b16 %v5915
        %v6504 = vunpack.c.h.b16 %v5915
        %v6505 = vunpack.c.l.b16 %v5916
        %v6506 = vunpack.c.h.b16 %v5916
        %v6507 = vunpack.c.l.b16 %v5917
        %v6508 = vunpack.c.h.b16 %v5917
        %v6509 = vunpack.c.l.b16 %v5918
        %v6510 = vunpack.c.h.b16 %v5918
        %v6511 = vunpack.c.l.b16 %v5919
        %v6512 = vunpack.c.h.b16 %v5919
        %v6513 = vunpack.c.l.b16 %v5920
        %v6514 = vunpack.c.h.b16 %v5920
        %v6515 = vunpack.c.l.b16 %v5921
        %v6516 = vunpack.c.h.b16 %v5921
        %v6517 = vunpack.c.l.b16 %v5922
        %v6518 = vunpack.c.h.b16 %v5922
        %v6519 = vunpack.c.l.b16 %v5923
        %v6520 = vunpack.c.h.b16 %v5923
        %v6521 = vunpack.c.l.b16 %v5924
        %v6522 = vunpack.c.h.b16 %v5924
        %v6523 = vunpack.c.l.b16 %v5925
        %v6524 = vunpack.c.h.b16 %v5925
        %v6525 = vunpack.c.l.b16 %v5926
        %v6526 = vunpack.c.h.b16 %v5926
        %v6527 = vunpack.c.l.b16 %v5927
        %v6528 = vunpack.c.h.b16 %v5927
        %v6529 = vunpack.c.l.b16 %v5928
        %v6530 = vunpack.c.h.b16 %v5928
        %v6531 = vunpack.c.l.b16 %v5929
        %v6532 = vunpack.c.h.b16 %v5929
        %v6533 = vunpack.c.l.b16 %v5930
        %v6534 = vunpack.c.h.b16 %v5930
        %v6535 = vunpack.c.l.b16 %v5931
        %v6536 = vunpack.c.h.b16 %v5931
        %v6537 = vunpack.c.l.b16 %v5932
        %v6538 = vunpack.c.h.b16 %v5932
        %v6539 = vunpack.c.l.b16 %v5933
        %v6540 = vunpack.c.h.b16 %v5933
        %v6541 = vunpack.c.l.b16 %v5934
        %v6542 = vunpack.c.h.b16 %v5934
        %v6543 = vunpack.c.l.b16 %v5935
        %v6544 = vunpack.c.h.b16 %v5935
        %v6545 = vunpack.c.l.b16 %v5936
        %v6546 = vunpack.c.h.b16 %v5936
        %v6547 = vunpack.c.l.b16 %v5937
        %v6548 = vunpack.c.h.b16 %v5937
        %v6549 = vunpack.c.l.b16 %v5938
        %v6550 = vunpack.c.h.b16 %v5938
        %v6551 = vunpack.c.l.b16 %v5939
        %v6552 = vunpack.c.h.b16 %v5939
        %v6553 = vunpack.c.l.b16 %v5940
        %v6554 = vunpack.c.h.b16 %v5940
        %v6555 = vunpack.c.l.b16 %v5941
        %v6556 = vunpack.c.h.b16 %v5941
        %v6557 = vunpack.c.l.b16 %v5942
        %v6558 = vunpack.c.h.b16 %v5942
        %v6559 = vunpack.c.l.b16 %v5943
        %v6560 = vunpack.c.h.b16 %v5943
        %v6561 = vunpack.c.l.b16 %v5944
        %v6562 = vunpack.c.h.b16 %v5944
        %v6563 = vunpack.c.l.b16 %v5945
        %v6564 = vunpack.c.h.b16 %v5945
        %v6565 = vunpack.c.l.b16 %v5946
        %v6566 = vunpack.c.h.b16 %v5946
        %v6567 = vunpack.c.l.b16 %v5947
        %v6568 = vunpack.c.h.b16 %v5947
        %v6569 = vunpack.c.l.b16 %v5948
        %v6570 = vunpack.c.h.b16 %v5948
        %v6571 = vunpack.c.l.b16 %v5949
        %v6572 = vunpack.c.h.b16 %v5949
        %v6573 = vunpack.c.l.b16 %v5950
        %v6574 = vunpack.c.h.b16 %v5950
        %v6575 = vunpack.c.l.b16 %v5951
        %v6576 = vunpack.c.h.b16 %v5951
        %v6577 = vunpack.c.l.b16 %v5952
        %v6578 = vunpack.c.h.b16 %v5952
        %v6579 = vunpack.c.l.b16 %v5953
        %v6580 = vunpack.c.h.b16 %v5953
        %v6581 = vunpack.c.l.b16 %v5954
        %v6582 = vunpack.c.h.b16 %v5954
        %v6583 = vunpack.c.l.b16 %v5955
        %v6584 = vunpack.c.h.b16 %v5955
        %v6585 = vunpack.c.l.b16 %v5956
        %v6586 = vunpack.c.h.b16 %v5956
        %v6587 = vunpack.c.l.b16 %v5957
        %v6588 = vunpack.c.h.b16 %v5957
        %v6589 = vunpack.c.l.b16 %v5958
        %v6590 = vunpack.c.h.b16 %v5958
        %v6591 = vunpack.c.l.b16 %v5959
        %v6592 = vunpack.c.h.b16 %v5959
        %v6593 = vunpack.c.l.b16 %v5960
        %v6594 = vunpack.c.h.b16 %v5960
        %v6595 = vunpack.c.l.b16 %v5961
        %v6596 = vunpack.c.h.b16 %v5961
        %v6597 = vunpack.c.l.b16 %v5962
        %v6598 = vunpack.c.h.b16 %v5962
        %v6599 = vunpack.c.l.b16 %v5963
        %v6600 = vunpack.c.h.b16 %v5963
        %v6601 = vunpack.c.l.b16 %v5964
        %v6602 = vunpack.c.h.b16 %v5964
        %v6603 = vunpack.c.l.b16 %v5965
        %v6604 = vunpack.c.h.b16 %v5965
        %v6605 = vunpack.c.l.b16 %v5966
        %v6606 = vunpack.c.h.b16 %v5966
        %v6607 = vunpack.c.l.b16 %v5967
        %v6608 = vunpack.c.h.b16 %v5967
        %v6609 = vunpack.c.l.b16 %v5968
        %v6610 = vunpack.c.h.b16 %v5968
        %v6611 = vunpack.c.l.b16 %v5969
        %v6612 = vunpack.c.h.b16 %v5969
        %v6613 = vunpack.c.l.b16 %v5970
        %v6614 = vunpack.c.h.b16 %v5970
        %v6615 = vunpack.c.l.b16 %v5971
        %v6616 = vunpack.c.h.b16 %v5971
        %v6617 = vunpack.c.l.b16 %v5972
        %v6618 = vunpack.c.h.b16 %v5972
        %v6619 = vunpack.c.l.b16 %v5973
        %v6620 = vunpack.c.h.b16 %v5973
        %v6621 = vunpack.c.l.b16 %v5974
        %v6622 = vunpack.c.h.b16 %v5974
        %v6623 = vunpack.c.l.b16 %v5975
        %v6624 = vunpack.c.h.b16 %v5975
        %v6625 = vunpack.c.l.b16 %v5976
        %v6626 = vunpack.c.h.b16 %v5976
        %v6627 = vunpack.c.l.b16 %v5977
        %v6628 = vunpack.c.h.b16 %v5977
        %v6629 = vunpack.c.l.b16 %v5978
        %v6630 = vunpack.c.h.b16 %v5978
        %v6631 = vunpack.c.l.b16 %v5979
        %v6632 = vunpack.c.h.b16 %v5979
        %v6633 = vunpack.c.l.b16 %v5980
        %v6634 = vunpack.c.h.b16 %v5980
        %v6635 = vunpack.c.l.b16 %v5981
        %v6636 = vunpack.c.h.b16 %v5981
        %v6637 = vunpack.c.l.b16 %v5982
        %v6638 = vunpack.c.h.b16 %v5982
        %v6639 = vunpack.c.l.b16 %v5983
        %v6640 = vunpack.c.h.b16 %v5983
        %v6641 = vunpack.c.l.b16 %v5984
        %v6642 = vunpack.c.h.b16 %v5984
        %v6643 = vunpack.c.l.b16 %v5985
        %v6644 = vunpack.c.h.b16 %v5985
        %v6645 = vunpack.c.l.b16 %v5986
        %v6646 = vunpack.c.h.b16 %v5986
        %v6647 = vunpack.c.l.b16 %v5987
        %v6648 = vunpack.c.h.b16 %v5987
        %v6649 = vunpack.c.l.b16 %v5988
        %v6650 = vunpack.c.h.b16 %v5988
        %v6651 = vunpack.c.l.b16 %v5989
        %v6652 = vunpack.c.h.b16 %v5989
        %v6653 = vunpack.c.l.b16 %v5990
        %v6654 = vunpack.c.h.b16 %v5990
        %v6655 = vunpack.c.l.b16 %v5991
        %v6656 = vunpack.c.h.b16 %v5991
        %v6657 = vunpack.c.l.b16 %v5992
        %v6658 = vunpack.c.h.b16 %v5992
        %v6659 = vunpack.c.l.b16 %v5993
        %v6660 = vunpack.c.h.b16 %v5993
        %v6661 = vunpack.c.l.b16 %v5994
        %v6662 = vunpack.c.h.b16 %v5994
        %v6663 = vunpack.c.l.b16 %v5995
        %v6664 = vunpack.c.h.b16 %v5995
        %v6665 = vunpack.c.l.b16 %v5996
        %v6666 = vunpack.c.h.b16 %v5996
        %v6667 = vunpack.c.l.b16 %v5997
        %v6668 = vunpack.c.h.b16 %v5997
        %v6669 = vunpack.c.l.b16 %v5998
        %v6670 = vunpack.c.h.b16 %v5998
        %v6671 = vpack.c.b16 %v6225, %v6223
        %v6672 = vpack.c.b16 %v6226, %v6224
        %v6673 = vpack.c.b16 %v6229, %v6227
        %v6674 = vpack.c.b16 %v6230, %v6228
        %v6675 = vpack.c.b16 %v6233, %v6231
        %v6676 = vpack.c.b16 %v6234, %v6232
        %v6677 = vpack.c.b16 %v6237, %v6235
        %v6678 = vpack.c.b16 %v6238, %v6236
        %v6679 = vpack.c.b16 %v6241, %v6239
        %v6680 = vpack.c.b16 %v6242, %v6240
        %v6681 = vpack.c.b16 %v6245, %v6243
        %v6682 = vpack.c.b16 %v6246, %v6244
        %v6683 = vpack.c.b16 %v6249, %v6247
        %v6684 = vpack.c.b16 %v6250, %v6248
        %v6685 = vpack.c.b16 %v6253, %v6251
        %v6686 = vpack.c.b16 %v6254, %v6252
        %v6687 = vpack.c.b16 %v6257, %v6255
        %v6688 = vpack.c.b16 %v6258, %v6256
        %v6689 = vpack.c.b16 %v6261, %v6259
        %v6690 = vpack.c.b16 %v6262, %v6260
        %v6691 = vpack.c.b16 %v6265, %v6263
        %v6692 = vpack.c.b16 %v6266, %v6264
        %v6693 = vpack.c.b16 %v6269, %v6267
        %v6694 = vpack.c.b16 %v6270, %v6268
        %v6695 = vpack.c.b16 %v6273, %v6271
        %v6696 = vpack.c.b16 %v6274, %v6272
        %v6697 = vpack.c.b16 %v6277, %v6275
        %v6698 = vpack.c.b16 %v6278, %v6276
        %v6699 = vpack.c.b16 %v6281, %v6279
        %v6700 = vpack.c.b16 %v6282, %v6280
        %v6701 = vpack.c.b16 %v6285, %v6283
        %v6702 = vpack.c.b16 %v6286, %v6284
        %v6703 = vpack.c.b16 %v6289, %v6287
        %v6704 = vpack.c.b16 %v6290, %v6288
        %v6705 = vpack.c.b16 %v6293, %v6291
        %v6706 = vpack.c.b16 %v6294, %v6292
        %v6707 = vpack.c.b16 %v6297, %v6295
        %v6708 = vpack.c.b16 %v6298, %v6296
        %v6709 = vpack.c.b16 %v6301, %v6299
        %v6710 = vpack.c.b16 %v6302, %v6300
        %v6711 = vpack.c.b16 %v6305, %v6303
        %v6712 = vpack.c.b16 %v6306, %v6304
        %v6713 = vpack.c.b16 %v6309, %v6307
        %v6714 = vpack.c.b16 %v6310, %v6308
        %v6715 = vpack.c.b16 %v6313, %v6311
        %v6716 = vpack.c.b16 %v6314, %v6312
        %v6717 = vpack.c.b16 %v6317, %v6315
        %v6718 = vpack.c.b16 %v6318, %v6316
        %v6719 = vpack.c.b16 %v6321, %v6319
        %v6720 = vpack.c.b16 %v6322, %v6320
        %v6721 = vpack.c.b16 %v6325, %v6323
        %v6722 = vpack.c.b16 %v6326, %v6324
        %v6723 = vpack.c.b16 %v6329, %v6327
        %v6724 = vpack.c.b16 %v6330, %v6328
        %v6725 = vpack.c.b16 %v6333, %v6331
        %v6726 = vpack.c.b16 %v6334, %v6332
        %v6727 = vpack.c.b16 %v6337, %v6335
        %v6728 = vpack.c.b16 %v6338, %v6336
        %v6729 = vpack.c.b16 %v6341, %v6339
        %v6730 = vpack.c.b16 %v6342, %v6340
        %v6731 = vpack.c.b16 %v6345, %v6343
        %v6732 = vpack.c.b16 %v6346, %v6344
        %v6733 = vpack.c.b16 %v6349, %v6347
        %v6734 = vpack.c.b16 %v6350, %v6348
        %v6735 = vpack.c.b16 %v6353, %v6351
        %v6736 = vpack.c.b16 %v6354, %v6352
        %v6737 = vpack.c.b16 %v6357, %v6355
        %v6738 = vpack.c.b16 %v6358, %v6356
        %v6739 = vpack.c.b16 %v6361, %v6359
        %v6740 = vpack.c.b16 %v6362, %v6360
        %v6741 = vpack.c.b16 %v6365, %v6363
        %v6742 = vpack.c.b16 %v6366, %v6364
        %v6743 = vpack.c.b16 %v6369, %v6367
        %v6744 = vpack.c.b16 %v6370, %v6368
        %v6745 = vpack.c.b16 %v6373, %v6371
        %v6746 = vpack.c.b16 %v6374, %v6372
        %v6747 = vpack.c.b16 %v6377, %v6375
        %v6748 = vpack.c.b16 %v6378, %v6376
        %v6749 = vpack.c.b16 %v6381, %v6379
        %v6750 = vpack.c.b16 %v6382, %v6380
        %v6751 = vpack.c.b16 %v6385, %v6383
        %v6752 = vpack.c.b16 %v6386, %v6384
        %v6753 = vpack.c.b16 %v6389, %v6387
        %v6754 = vpack.c.b16 %v6390, %v6388
        %v6755 = vpack.c.b16 %v6393, %v6391
        %v6756 = vpack.c.b16 %v6394, %v6392
        %v6757 = vpack.c.b16 %v6397, %v6395
        %v6758 = vpack.c.b16 %v6398, %v6396
        %v6759 = vpack.c.b16 %v6401, %v6399
        %v6760 = vpack.c.b16 %v6402, %v6400
        %v6761 = vpack.c.b16 %v6405, %v6403
        %v6762 = vpack.c.b16 %v6406, %v6404
        %v6763 = vpack.c.b16 %v6409, %v6407
        %v6764 = vpack.c.b16 %v6410, %v6408
        %v6765 = vpack.c.b16 %v6413, %v6411
        %v6766 = vpack.c.b16 %v6414, %v6412
        %v6767 = vpack.c.b16 %v6417, %v6415
        %v6768 = vpack.c.b16 %v6418, %v6416
        %v6769 = vpack.c.b16 %v6421, %v6419
        %v6770 = vpack.c.b16 %v6422, %v6420
        %v6771 = vpack.c.b16 %v6425, %v6423
        %v6772 = vpack.c.b16 %v6426, %v6424
        %v6773 = vpack.c.b16 %v6429, %v6427
        %v6774 = vpack.c.b16 %v6430, %v6428
        %v6775 = vpack.c.b16 %v6433, %v6431
        %v6776 = vpack.c.b16 %v6434, %v6432
        %v6777 = vpack.c.b16 %v6437, %v6435
        %v6778 = vpack.c.b16 %v6438, %v6436
        %v6779 = vpack.c.b16 %v6441, %v6439
        %v6780 = vpack.c.b16 %v6442, %v6440
        %v6781 = vpack.c.b16 %v6445, %v6443
        %v6782 = vpack.c.b16 %v6446, %v6444
        %v6783 = vpack.c.b16 %v6449, %v6447
        %v6784 = vpack.c.b16 %v6450, %v6448
        %v6785 = vpack.c.b16 %v6453, %v6451
        %v6786 = vpack.c.b16 %v6454, %v6452
        %v6787 = vpack.c.b16 %v6457, %v6455
        %v6788 = vpack.c.b16 %v6458, %v6456
        %v6789 = vpack.c.b16 %v6461, %v6459
        %v6790 = vpack.c.b16 %v6462, %v6460
        %v6791 = vpack.c.b16 %v6465, %v6463
        %v6792 = vpack.c.b16 %v6466, %v6464
        %v6793 = vpack.c.b16 %v6469, %v6467
        %v6794 = vpack.c.b16 %v6470, %v6468
        %v6795 = vpack.c.b16 %v6473, %v6471
        %v6796 = vpack.c.b16 %v6474, %v6472
        %v6797 = vpack.c.b16 %v6477, %v6475
        %v6798 = vpack.c.b16 %v6478, %v6476
        %v6799 = vpack.c.b16 %v6481, %v6479
        %v6800 = vpack.c.b16 %v6482, %v6480
        %v6801 = vpack.c.b16 %v6485, %v6483
        %v6802 = vpack.c.b16 %v6486, %v6484
        %v6803 = vpack.c.b16 %v6489, %v6487
        %v6804 = vpack.c.b16 %v6490, %v6488
        %v6805 = vpack.c.b16 %v6493, %v6491
        %v6806 = vpack.c.b16 %v6494, %v6492
        %v6807 = vpack.c.b16 %v6497, %v6495
        %v6808 = vpack.c.b16 %v6498, %v6496
        %v6809 = vpack.c.b16 %v6501, %v6499
        %v6810 = vpack.c.b16 %v6502, %v6500
        %v6811 = vpack.c.b16 %v6505, %v6503
        %v6812 = vpack.c.b16 %v6506, %v6504
        %v6813 = vpack.c.b16 %v6509, %v6507
        %v6814 = vpack.c.b16 %v6510, %v6508
        %v6815 = vpack.c.b16 %v6513, %v6511
        %v6816 = vpack.c.b16 %v6514, %v6512
        %v6817 = vpack.c.b16 %v6517, %v6515
        %v6818 = vpack.c.b16 %v6518, %v6516
        %v6819 = vpack.c.b16 %v6521, %v6519
        %v6820 = vpack.c.b16 %v6522, %v6520
        %v6821 = vpack.c.b16 %v6525, %v6523
        %v6822 = vpack.c.b16 %v6526, %v6524
        %v6823 = vpack.c.b16 %v6529, %v6527
        %v6824 = vpack.c.b16 %v6530, %v6528
        %v6825 = vpack.c.b16 %v6533, %v6531
        %v6826 = vpack.c.b16 %v6534, %v6532
        %v6827 = vpack.c.b16 %v6537, %v6535
        %v6828 = vpack.c.b16 %v6538, %v6536
        %v6829 = vpack.c.b16 %v6541, %v6539
        %v6830 = vpack.c.b16 %v6542, %v6540
        %v6831 = vpack.c.b16 %v6545, %v6543
        %v6832 = vpack.c.b16 %v6546, %v6544
        %v6833 = vpack.c.b16 %v6549, %v6547
        %v6834 = vpack.c.b16 %v6550, %v6548
        %v6835 = vpack.c.b16 %v6553, %v6551
        %v6836 = vpack.c.b16 %v6554, %v6552
        %v6837 = vpack.c.b16 %v6557, %v6555
        %v6838 = vpack.c.b16 %v6558, %v6556
        %v6839 = vpack.c.b16 %v6561, %v6559
        %v6840 = vpack.c.b16 %v6562, %v6560
        %v6841 = vpack.c.b16 %v6565, %v6563
        %v6842 = vpack.c.b16 %v6566, %v6564
        %v6843 = vpack.c.b16 %v6569, %v6567
        %v6844 = vpack.c.b16 %v6570, %v6568
        %v6845 = vpack.c.b16 %v6573, %v6571
        %v6846 = vpack.c.b16 %v6574, %v6572
        %v6847 = vpack.c.b16 %v6577, %v6575
        %v6848 = vpack.c.b16 %v6578, %v6576
        %v6849 = vpack.c.b16 %v6581, %v6579
        %v6850 = vpack.c.b16 %v6582, %v6580
        %v6851 = vpack.c.b16 %v6585, %v6583
        %v6852 = vpack.c.b16 %v6586, %v6584
        %v6853 = vpack.c.b16 %v6589, %v6587
        %v6854 = vpack.c.b16 %v6590, %v6588
        %v6855 = vpack.c.b16 %v6593, %v6591
        %v6856 = vpack.c.b16 %v6594, %v6592
        %v6857 = vpack.c.b16 %v6597, %v6595
        %v6858 = vpack.c.b16 %v6598, %v6596
        %v6859 = vpack.c.b16 %v6601, %v6599
        %v6860 = vpack.c.b16 %v6602, %v6600
        %v6861 = vpack.c.b16 %v6605, %v6603
        %v6862 = vpack.c.b16 %v6606, %v6604
        %v6863 = vpack.c.b16 %v6609, %v6607
        %v6864 = vpack.c.b16 %v6610, %v6608
        %v6865 = vpack.c.b16 %v6613, %v6611
        %v6866 = vpack.c.b16 %v6614, %v6612
        %v6867 = vpack.c.b16 %v6617, %v6615
        %v6868 = vpack.c.b16 %v6618, %v6616
        %v6869 = vpack.c.b16 %v6621, %v6619
        %v6870 = vpack.c.b16 %v6622, %v6620
        %v6871 = vpack.c.b16 %v6625, %v6623
        %v6872 = vpack.c.b16 %v6626, %v6624
        %v6873 = vpack.c.b16 %v6629, %v6627
        %v6874 = vpack.c.b16 %v6630, %v6628
        %v6875 = vpack.c.b16 %v6633, %v6631
        %v6876 = vpack.c.b16 %v6634, %v6632
        %v6877 = vpack.c.b16 %v6637, %v6635
        %v6878 = vpack.c.b16 %v6638, %v6636
        %v6879 = vpack.c.b16 %v6641, %v6639
        %v6880 = vpack.c.b16 %v6642, %v6640
        %v6881 = vpack.c.b16 %v6645, %v6643
        %v6882 = vpack.c.b16 %v6646, %v6644
        %v6883 = vpack.c.b16 %v6649, %v6647
        %v6884 = vpack.c.b16 %v6650, %v6648
        %v6885 = vpack.c.b16 %v6653, %v6651
        %v6886 = vpack.c.b16 %v6654, %v6652
        %v6887 = vpack.c.b16 %v6657, %v6655
        %v6888 = vpack.c.b16 %v6658, %v6656
        %v6889 = vpack.c.b16 %v6661, %v6659
        %v6890 = vpack.c.b16 %v6662, %v6660
        %v6891 = vpack.c.b16 %v6665, %v6663
        %v6892 = vpack.c.b16 %v6666, %v6664
        %v6893 = vpack.c.b16 %v6669, %v6667
        %v6894 = vpack.c.b16 %v6670, %v6668
        %7119 = vmatprep.subr.bf16.mxu0 %v6672
        %7120 = vmatpush1.bf16.msra.mxu0 %v6671
        %7121 = vmatprep.subr.bf16.mxu0 %v6674
        %7122 = vmatpush1.bf16.msra.mxu0 %v6673
        %7123 = vmatprep.subr.bf16.mxu0 %v6676
        %7124 = vmatpush1.bf16.msra.mxu0 %v6675
        %7125 = vmatprep.subr.bf16.mxu0 %v6678
        %7126 = vmatpush1.bf16.msra.mxu0 %v6677
        %7127 = vmatprep.subr.bf16.mxu0 %v6680
        %7128 = vmatpush1.bf16.msra.mxu0 %v6679
        %7129 = vmatprep.subr.bf16.mxu0 %v6682
        %7130 = vmatpush1.bf16.msra.mxu0 %v6681
        %7131 = vmatprep.subr.bf16.mxu0 %v6684
        %7132 = vmatpush1.bf16.msra.mxu0 %v6683
        %7133 = vmatprep.subr.bf16.mxu0 %v6686
        %7134 = vmatpush1.bf16.msra.mxu0 %v6685
        %7135 = vmatprep.subr.bf16.mxu0 %v6688
        %7136 = vmatpush1.bf16.msra.mxu0 %v6687
        %7137 = vmatprep.subr.bf16.mxu0 %v6690
        %7138 = vmatpush1.bf16.msra.mxu0 %v6689
        %7139 = vmatprep.subr.bf16.mxu0 %v6692
        %7140 = vmatpush1.bf16.msra.mxu0 %v6691
        %7141 = vmatprep.subr.bf16.mxu0 %v6694
        %7142 = vmatpush1.bf16.msra.mxu0 %v6693
        %7143 = vmatprep.subr.bf16.mxu0 %v6696
        %7144 = vmatpush1.bf16.msra.mxu0 %v6695
        %7145 = vmatprep.subr.bf16.mxu0 %v6698
        %7146 = vmatpush1.bf16.msra.mxu0 %v6697
        %7147 = vmatprep.subr.bf16.mxu0 %v6700
        %7148 = vmatpush1.bf16.msra.mxu0 %v6699
        %7149 = vmatprep.subr.bf16.mxu0 %v6702
        %7150 = vmatpush1.bf16.msra.mxu0 %v6701
        %7151 = vmatprep.mubr.bf16.mxu0 %v5748
        %7152 = vmatmul.mubr.bf16.gmra.mrb[0].mxu0 %v5747
        %v7153 = vpop.f32.mrb[0].mxu0
        %v7154 = vadd.f32 0.0, %v7153
        %v7155 = vpop.f32.mrb[0].mxu0
        %v7156 = vadd.f32 0.0, %v7155
        %v7157 = vpop.f32.mrb[0].mxu0
        %v7158 = vadd.f32 0.0, %v7157
        %v7159 = vpop.f32.mrb[0].mxu0
        %v7160 = vadd.f32 0.0, %v7159
        %7161 = vmatprep.mubr.bf16.mxu0 %v5762
        %7162 = vmatmul.mubr.bf16.gmra.mrb[0].mxu0 %v5761
        %v7163 = vpop.f32.mrb[0].mxu0
        %v7164 = vadd.f32 0.0, %v7163
        %v7165 = vpop.f32.mrb[0].mxu0
        %v7166 = vadd.f32 0.0, %v7165
        %v7167 = vpop.f32.mrb[0].mxu0
        %v7168 = vpop.f32.mrb[0].mxu0
        %7169 = vdwg.mxu0
        %7170 = vmatprep.subr.bf16.mxu0 %v6704
        %7171 = vmatpush1.bf16.msra.mxu0 %v6703
        %7172 = vmatprep.subr.bf16.mxu0 %v6706
        %7173 = vmatpush1.bf16.msra.mxu0 %v6705
        %7174 = vmatprep.subr.bf16.mxu0 %v6708
        %7175 = vmatpush1.bf16.msra.mxu0 %v6707
        %7176 = vmatprep.subr.bf16.mxu0 %v6710
        %7177 = vmatpush1.bf16.msra.mxu0 %v6709
        %7178 = vmatprep.subr.bf16.mxu0 %v6712
        %7179 = vmatpush1.bf16.msra.mxu0 %v6711
        %7180 = vmatprep.subr.bf16.mxu0 %v6714
        %7181 = vmatpush1.bf16.msra.mxu0 %v6713
        %7182 = vmatprep.subr.bf16.mxu0 %v6716
        %7183 = vmatpush1.bf16.msra.mxu0 %v6715
        %7184 = vmatprep.subr.bf16.mxu0 %v6718
        %7185 = vmatpush1.bf16.msra.mxu0 %v6717
        %7186 = vmatprep.subr.bf16.mxu0 %v6720
        %7187 = vmatpush1.bf16.msra.mxu0 %v6719
        %7188 = vmatprep.subr.bf16.mxu0 %v6722
        %7189 = vmatpush1.bf16.msra.mxu0 %v6721
        %7190 = vmatprep.subr.bf16.mxu0 %v6724
        %7191 = vmatpush1.bf16.msra.mxu0 %v6723
        %7192 = vmatprep.subr.bf16.mxu0 %v6726
        %7193 = vmatpush1.bf16.msra.mxu0 %v6725
        %7194 = vmatprep.subr.bf16.mxu0 %v6728
        %7195 = vmatpush1.bf16.msra.mxu0 %v6727
        %7196 = vmatprep.subr.bf16.mxu0 %v6730
        %7197 = vmatpush1.bf16.msra.mxu0 %v6729
        %7198 = vmatprep.subr.bf16.mxu0 %v6732
        %7199 = vmatpush1.bf16.msra.mxu0 %v6731
        %7200 = vmatprep.subr.bf16.mxu0 %v6734
        %7201 = vmatpush1.bf16.msra.mxu0 %v6733
        %7202 = vmatprep.mubr.bf16.mxu0 %v5750
        %7203 = vmatmul.mubr.bf16.gmra.mrb[0].mxu0 %v5749
        %v7204 = vpop.f32.mrb[0].mxu0
        %v7205 = vadd.f32 %v7154, %v7204
        %v7206 = vpop.f32.mrb[0].mxu0
        %v7207 = vadd.f32 %v7156, %v7206
        %v7208 = vpop.f32.mrb[0].mxu0
        %v7209 = vadd.f32 %v7158, %v7208
        %v7210 = vpop.f32.mrb[0].mxu0
        %v7211 = vadd.f32 %v7160, %v7210
        %7212 = vmatprep.mubr.bf16.mxu0 %v5764
        %7213 = vmatmul.mubr.bf16.gmra.mrb[0].mxu0 %v5763
        %v7214 = vpop.f32.mrb[0].mxu0
        %v7215 = vadd.f32 %v7164, %v7214
        %v7216 = vpop.f32.mrb[0].mxu0
        %v7217 = vadd.f32 %v7166, %v7216
        %v7218 = vpop.f32.mrb[0].mxu0
        %v7219 = vpop.f32.mrb[0].mxu0
        %7220 = vdwg.mxu0
        %7221 = vmatprep.subr.bf16.mxu0 %v6736
        %7222 = vmatpush1.bf16.msra.mxu0 %v6735
        %7223 = vmatprep.subr.bf16.mxu0 %v6738
        %7224 = vmatpush1.bf16.msra.mxu0 %v6737
        %7225 = vmatprep.subr.bf16.mxu0 %v6740
        %7226 = vmatpush1.bf16.msra.mxu0 %v6739
        %7227 = vmatprep.subr.bf16.mxu0 %v6742
        %7228 = vmatpush1.bf16.msra.mxu0 %v6741
        %7229 = vmatprep.subr.bf16.mxu0 %v6744
        %7230 = vmatpush1.bf16.msra.mxu0 %v6743
        %7231 = vmatprep.subr.bf16.mxu0 %v6746
        %7232 = vmatpush1.bf16.msra.mxu0 %v6745
        %7233 = vmatprep.subr.bf16.mxu0 %v6748
        %7234 = vmatpush1.bf16.msra.mxu0 %v6747
        %7235 = vmatprep.subr.bf16.mxu0 %v6750
        %7236 = vmatpush1.bf16.msra.mxu0 %v6749
        %7237 = vmatprep.subr.bf16.mxu0 %v6752
        %7238 = vmatpush1.bf16.msra.mxu0 %v6751
        %7239 = vmatprep.subr.bf16.mxu0 %v6754
        %7240 = vmatpush1.bf16.msra.mxu0 %v6753
        %7241 = vmatprep.subr.bf16.mxu0 %v6756
        %7242 = vmatpush1.bf16.msra.mxu0 %v6755
        %7243 = vmatprep.subr.bf16.mxu0 %v6758
        %7244 = vmatpush1.bf16.msra.mxu0 %v6757
        %7245 = vmatprep.subr.bf16.mxu0 %v6760
        %7246 = vmatpush1.bf16.msra.mxu0 %v6759
        %7247 = vmatprep.subr.bf16.mxu0 %v6762
        %7248 = vmatpush1.bf16.msra.mxu0 %v6761
        %7249 = vmatprep.subr.bf16.mxu0 %v6764
        %7250 = vmatpush1.bf16.msra.mxu0 %v6763
        %7251 = vmatprep.subr.bf16.mxu0 %v6766
        %7252 = vmatpush1.bf16.msra.mxu0 %v6765
        %7253 = vmatprep.mubr.bf16.mxu0 %v5752
        %7254 = vmatmul.mubr.bf16.gmra.mrb[0].mxu0 %v5751
        %v7255 = vpop.f32.mrb[0].mxu0
        %v7256 = vadd.f32 %v7205, %v7255
        %v7257 = vpop.f32.mrb[0].mxu0
        %v7258 = vadd.f32 %v7207, %v7257
        %v7259 = vpop.f32.mrb[0].mxu0
        %v7260 = vadd.f32 %v7209, %v7259
        %v7261 = vpop.f32.mrb[0].mxu0
        %v7262 = vadd.f32 %v7211, %v7261
        %7263 = vmatprep.mubr.bf16.mxu0 %v5766
        %7264 = vmatmul.mubr.bf16.gmra.mrb[0].mxu0 %v5765
        %v7265 = vpop.f32.mrb[0].mxu0
        %v7266 = vadd.f32 %v7215, %v7265
        %v7267 = vpop.f32.mrb[0].mxu0
        %v7268 = vadd.f32 %v7217, %v7267
        %v7269 = vpop.f32.mrb[0].mxu0
        %v7270 = vpop.f32.mrb[0].mxu0
        %7271 = vdwg.mxu0
        %7272 = vmatprep.subr.bf16.mxu0 %v6768
        %7273 = vmatpush1.bf16.msra.mxu0 %v6767
        %7274 = vmatprep.subr.bf16.mxu0 %v6770
        %7275 = vmatpush1.bf16.msra.mxu0 %v6769
        %7276 = vmatprep.subr.bf16.mxu0 %v6772
        %7277 = vmatpush1.bf16.msra.mxu0 %v6771
        %7278 = vmatprep.subr.bf16.mxu0 %v6774
        %7279 = vmatpush1.bf16.msra.mxu0 %v6773
        %7280 = vmatprep.subr.bf16.mxu0 %v6776
        %7281 = vmatpush1.bf16.msra.mxu0 %v6775
        %7282 = vmatprep.subr.bf16.mxu0 %v6778
        %7283 = vmatpush1.bf16.msra.mxu0 %v6777
        %7284 = vmatprep.subr.bf16.mxu0 %v6780
        %7285 = vmatpush1.bf16.msra.mxu0 %v6779
        %7286 = vmatprep.subr.bf16.mxu0 %v6782
        %7287 = vmatpush1.bf16.msra.mxu0 %v6781
        %7288 = vmatprep.subr.bf16.mxu0 %v6784
        %7289 = vmatpush1.bf16.msra.mxu0 %v6783
        %7290 = vmatprep.subr.bf16.mxu0 %v6786
        %7291 = vmatpush1.bf16.msra.mxu0 %v6785
        %7292 = vmatprep.subr.bf16.mxu0 %v6788
        %7293 = vmatpush1.bf16.msra.mxu0 %v6787
        %7294 = vmatprep.subr.bf16.mxu0 %v6790
        %7295 = vmatpush1.bf16.msra.mxu0 %v6789
        %7296 = vmatprep.subr.bf16.mxu0 %v6792
        %7297 = vmatpush1.bf16.msra.mxu0 %v6791
        %7298 = vmatprep.subr.bf16.mxu0 %v6794
        %7299 = vmatpush1.bf16.msra.mxu0 %v6793
        %7300 = vmatprep.subr.bf16.mxu0 %v6796
        %7301 = vmatpush1.bf16.msra.mxu0 %v6795
        %7302 = vmatprep.subr.bf16.mxu0 %v6798
        %7303 = vmatpush1.bf16.msra.mxu0 %v6797
        %7304 = vmatprep.mubr.bf16.mxu0 %v5754
        %7305 = vmatmul.mubr.bf16.gmra.mrb[0].mxu0 %v5753
        %v7306 = vpop.f32.mrb[0].mxu0
        %v7307 = vadd.f32 %v7256, %v7306
        %v7308 = vpop.f32.mrb[0].mxu0
        %v7309 = vadd.f32 %v7258, %v7308
        %v7310 = vpop.f32.mrb[0].mxu0
        %v7311 = vadd.f32 %v7260, %v7310
        %v7312 = vpop.f32.mrb[0].mxu0
        %v7313 = vadd.f32 %v7262, %v7312
        %7314 = vmatprep.mubr.bf16.mxu0 %v5768
        %7315 = vmatmul.mubr.bf16.gmra.mrb[0].mxu0 %v5767
        %v7316 = vpop.f32.mrb[0].mxu0
        %v7317 = vadd.f32 %v7266, %v7316
        %v7318 = vpop.f32.mrb[0].mxu0
        %v7319 = vadd.f32 %v7268, %v7318
        %v7320 = vpop.f32.mrb[0].mxu0
        %v7321 = vpop.f32.mrb[0].mxu0
        %7322 = vdwg.mxu0
        %7323 = vmatprep.subr.bf16.mxu0 %v6800
        %7324 = vmatpush1.bf16.msra.mxu0 %v6799
        %7325 = vmatprep.subr.bf16.mxu0 %v6802
        %7326 = vmatpush1.bf16.msra.mxu0 %v6801
        %7327 = vmatprep.subr.bf16.mxu0 %v6804
        %7328 = vmatpush1.bf16.msra.mxu0 %v6803
        %7329 = vmatprep.subr.bf16.mxu0 %v6806
        %7330 = vmatpush1.bf16.msra.mxu0 %v6805
        %7331 = vmatprep.subr.bf16.mxu0 %v6808
        %7332 = vmatpush1.bf16.msra.mxu0 %v6807
        %7333 = vmatprep.subr.bf16.mxu0 %v6810
        %7334 = vmatpush1.bf16.msra.mxu0 %v6809
        %7335 = vmatprep.subr.bf16.mxu0 %v6812
        %7336 = vmatpush1.bf16.msra.mxu0 %v6811
        %7337 = vmatprep.subr.bf16.mxu0 %v6814
        %7338 = vmatpush1.bf16.msra.mxu0 %v6813
        %7339 = vmatprep.subr.bf16.mxu0 %v6816
        %7340 = vmatpush1.bf16.msra.mxu0 %v6815
        %7341 = vmatprep.subr.bf16.mxu0 %v6818
        %7342 = vmatpush1.bf16.msra.mxu0 %v6817
        %7343 = vmatprep.subr.bf16.mxu0 %v6820
        %7344 = vmatpush1.bf16.msra.mxu0 %v6819
        %7345 = vmatprep.subr.bf16.mxu0 %v6822
        %7346 = vmatpush1.bf16.msra.mxu0 %v6821
        %7347 = vmatprep.subr.bf16.mxu0 %v6824
        %7348 = vmatpush1.bf16.msra.mxu0 %v6823
        %7349 = vmatprep.subr.bf16.mxu0 %v6826
        %7350 = vmatpush1.bf16.msra.mxu0 %v6825
        %7351 = vmatprep.subr.bf16.mxu0 %v6828
        %7352 = vmatpush1.bf16.msra.mxu0 %v6827
        %7353 = vmatprep.subr.bf16.mxu0 %v6830
        %7354 = vmatpush1.bf16.msra.mxu0 %v6829
        %7355 = vmatprep.mubr.bf16.mxu0 %v5756
        %7356 = vmatmul.mubr.bf16.gmra.mrb[0].mxu0 %v5755
        %v7357 = vpop.f32.mrb[0].mxu0
        %v7358 = vadd.f32 %v7307, %v7357
        %v7359 = vpop.f32.mrb[0].mxu0
        %v7360 = vadd.f32 %v7309, %v7359
        %v7361 = vpop.f32.mrb[0].mxu0
        %v7362 = vadd.f32 %v7311, %v7361
        %v7363 = vpop.f32.mrb[0].mxu0
        %v7364 = vadd.f32 %v7313, %v7363
        %7365 = vmatprep.mubr.bf16.mxu0 %v5770
        %7366 = vmatmul.mubr.bf16.gmra.mrb[0].mxu0 %v5769
        %v7367 = vpop.f32.mrb[0].mxu0
        %v7368 = vadd.f32 %v7317, %v7367
        %v7369 = vpop.f32.mrb[0].mxu0
        %v7370 = vadd.f32 %v7319, %v7369
        %v7371 = vpop.f32.mrb[0].mxu0
        %v7372 = vpop.f32.mrb[0].mxu0
        %7373 = vdwg.mxu0
        %7374 = vmatprep.subr.bf16.mxu0 %v6832
        %7375 = vmatpush1.bf16.msra.mxu0 %v6831
        %7376 = vmatprep.subr.bf16.mxu0 %v6834
        %7377 = vmatpush1.bf16.msra.mxu0 %v6833
        %7378 = vmatprep.subr.bf16.mxu0 %v6836
        %7379 = vmatpush1.bf16.msra.mxu0 %v6835
        %7380 = vmatprep.subr.bf16.mxu0 %v6838
        %7381 = vmatpush1.bf16.msra.mxu0 %v6837
        %7382 = vmatprep.subr.bf16.mxu0 %v6840
        %7383 = vmatpush1.bf16.msra.mxu0 %v6839
        %7384 = vmatprep.subr.bf16.mxu0 %v6842
        %7385 = vmatpush1.bf16.msra.mxu0 %v6841
        %7386 = vmatprep.subr.bf16.mxu0 %v6844
        %7387 = vmatpush1.bf16.msra.mxu0 %v6843
        %7388 = vmatprep.subr.bf16.mxu0 %v6846
        %7389 = vmatpush1.bf16.msra.mxu0 %v6845
        %7390 = vmatprep.subr.bf16.mxu0 %v6848
        %7391 = vmatpush1.bf16.msra.mxu0 %v6847
        %7392 = vmatprep.subr.bf16.mxu0 %v6850
        %7393 = vmatpush1.bf16.msra.mxu0 %v6849
        %7394 = vmatprep.subr.bf16.mxu0 %v6852
        %7395 = vmatpush1.bf16.msra.mxu0 %v6851
        %7396 = vmatprep.subr.bf16.mxu0 %v6854
        %7397 = vmatpush1.bf16.msra.mxu0 %v6853
        %7398 = vmatprep.subr.bf16.mxu0 %v6856
        %7399 = vmatpush1.bf16.msra.mxu0 %v6855
        %7400 = vmatprep.subr.bf16.mxu0 %v6858
        %7401 = vmatpush1.bf16.msra.mxu0 %v6857
        %7402 = vmatprep.subr.bf16.mxu0 %v6860
        %7403 = vmatpush1.bf16.msra.mxu0 %v6859
        %7404 = vmatprep.subr.bf16.mxu0 %v6862
        %7405 = vmatpush1.bf16.msra.mxu0 %v6861
        %7406 = vmatprep.mubr.bf16.mxu0 %v5758
        %7407 = vmatmul.mubr.bf16.gmra.mrb[0].mxu0 %v5757
        %v7408 = vpop.f32.mrb[0].mxu0
        %v7409 = vadd.f32 %v7358, %v7408
        %v7410 = vpop.f32.mrb[0].mxu0
        %v7411 = vadd.f32 %v7360, %v7410
        %v7412 = vpop.f32.mrb[0].mxu0
        %v7413 = vadd.f32 %v7362, %v7412
        %v7414 = vpop.f32.mrb[0].mxu0
        %v7415 = vadd.f32 %v7364, %v7414
        %7416 = vmatprep.mubr.bf16.mxu0 %v5772
        %7417 = vmatmul.mubr.bf16.gmra.mrb[0].mxu0 %v5771
        %v7418 = vpop.f32.mrb[0].mxu0
        %v7419 = vadd.f32 %v7368, %v7418
        %v7420 = vpop.f32.mrb[0].mxu0
        %v7421 = vadd.f32 %v7370, %v7420
        %v7422 = vpop.f32.mrb[0].mxu0
        %v7423 = vpop.f32.mrb[0].mxu0
        %7424 = vdwg.mxu0
        %7425 = vmatprep.subr.bf16.mxu0 %v6864
        %7426 = vmatpush1.bf16.msra.mxu0 %v6863
        %7427 = vmatprep.subr.bf16.mxu0 %v6866
        %7428 = vmatpush1.bf16.msra.mxu0 %v6865
        %7429 = vmatprep.subr.bf16.mxu0 %v6868
        %7430 = vmatpush1.bf16.msra.mxu0 %v6867
        %7431 = vmatprep.subr.bf16.mxu0 %v6870
        %7432 = vmatpush1.bf16.msra.mxu0 %v6869
        %7433 = vmatprep.subr.bf16.mxu0 %v6872
        %7434 = vmatpush1.bf16.msra.mxu0 %v6871
        %7435 = vmatprep.subr.bf16.mxu0 %v6874
        %7436 = vmatpush1.bf16.msra.mxu0 %v6873
        %7437 = vmatprep.subr.bf16.mxu0 %v6876
        %7438 = vmatpush1.bf16.msra.mxu0 %v6875
        %7439 = vmatprep.subr.bf16.mxu0 %v6878
        %7440 = vmatpush1.bf16.msra.mxu0 %v6877
        %7441 = vmatprep.subr.bf16.mxu0 %v6880
        %7442 = vmatpush1.bf16.msra.mxu0 %v6879
        %7443 = vmatprep.subr.bf16.mxu0 %v6882
        %7444 = vmatpush1.bf16.msra.mxu0 %v6881
        %7445 = vmatprep.subr.bf16.mxu0 %v6884
        %7446 = vmatpush1.bf16.msra.mxu0 %v6883
        %7447 = vmatprep.subr.bf16.mxu0 %v6886
        %7448 = vmatpush1.bf16.msra.mxu0 %v6885
        %7449 = vmatprep.subr.bf16.mxu0 %v6888
        %7450 = vmatpush1.bf16.msra.mxu0 %v6887
        %7451 = vmatprep.subr.bf16.mxu0 %v6890
        %7452 = vmatpush1.bf16.msra.mxu0 %v6889
        %7453 = vmatprep.subr.bf16.mxu0 %v6892
        %7454 = vmatpush1.bf16.msra.mxu0 %v6891
        %7455 = vmatprep.subr.bf16.mxu0 %v6894
        %7456 = vmatpush1.bf16.msra.mxu0 %v6893
        %7457 = vmatprep.mubr.bf16.mxu0 %v5760
        %7458 = vmatmul.mubr.bf16.gmra.mrb[0].mxu0 %v5759
        %v7459 = vpop.f32.mrb[0].mxu0
        %v7460 = vadd.f32 %v7409, %v7459
        %v7461 = vpop.f32.mrb[0].mxu0
        %v7462 = vadd.f32 %v7411, %v7461
        %v7463 = vpop.f32.mrb[0].mxu0
        %v7464 = vadd.f32 %v7413, %v7463
        %v7465 = vpop.f32.mrb[0].mxu0
        %v7466 = vadd.f32 %v7415, %v7465
        %7467 = vmatprep.mubr.bf16.mxu0 %v5774
        %7468 = vmatmul.mubr.bf16.gmra.mrb[0].mxu0 %v5773
        %v7469 = vpop.f32.mrb[0].mxu0
        %v7470 = vadd.f32 %v7419, %v7469
        %v7471 = vpop.f32.mrb[0].mxu0
        %v7472 = vadd.f32 %v7421, %v7471
        %v7473 = vpop.f32.mrb[0].mxu0
        %v7474 = vpop.f32.mrb[0].mxu0
        %7475 = vdwg.mxu0
        %v7479 = vrot.slane %v7460, 4
        %v7480 = vrot.slane %v7464, 4
        %v7481 = vsel %vm655, %v7479, %v7480
        %v7482 = vrot.slane %v7470, 4
        %v7483 = vsel %vm655, %v7480, %v7482
        %7484 = vrot.lane.b32.xlu0 %v7479, 120
        %v7485 = vpop.permute.xlu0 %7484
        %7486 = vrot.lane.b32.xlu0 %v7481, 120
        %v7487 = vpop.permute.xlu0 %7486
        %7488 = vrot.lane.b32.xlu0 %v7483, 120
        %v7489 = vpop.permute.xlu0 %7488
        %7493 = vrot.lane.b32.xlu0 %v7460, 112
        %v7494 = vpop.permute.xlu0 %7493
        %7495 = vrot.lane.b32.xlu0 %v7464, 112
        %v7496 = vpop.permute.xlu0 %7495
        %7497 = vrot.lane.b32.xlu0 %v7470, 112
        %v7498 = vpop.permute.xlu0 %7497
        %7502 = vrot.lane.b32.xlu0 %v7479, 104
        %v7503 = vpop.permute.xlu0 %7502
        %7504 = vrot.lane.b32.xlu0 %v7481, 104
        %v7505 = vpop.permute.xlu0 %7504
        %7506 = vrot.lane.b32.xlu0 %v7483, 104
        %v7507 = vpop.permute.xlu0 %7506
        %7511 = vrot.lane.b32.xlu0 %v7460, 96
        %v7512 = vpop.permute.xlu0 %7511
        %7513 = vrot.lane.b32.xlu0 %v7464, 96
        %v7514 = vpop.permute.xlu0 %7513
        %7515 = vrot.lane.b32.xlu0 %v7470, 96
        %v7516 = vpop.permute.xlu0 %7515
        %7520 = vrot.lane.b32.xlu0 %v7479, 88
        %v7521 = vpop.permute.xlu0 %7520
        %7522 = vrot.lane.b32.xlu0 %v7481, 88
        %v7523 = vpop.permute.xlu0 %7522
        %7524 = vrot.lane.b32.xlu0 %v7483, 88
        %v7525 = vpop.permute.xlu0 %7524
        %7529 = vrot.lane.b32.xlu0 %v7460, 80
        %v7530 = vpop.permute.xlu0 %7529
        %7531 = vrot.lane.b32.xlu0 %v7464, 80
        %v7532 = vpop.permute.xlu0 %7531
        %7533 = vrot.lane.b32.xlu0 %v7470, 80
        %v7534 = vpop.permute.xlu0 %7533
        %7538 = vrot.lane.b32.xlu0 %v7479, 72
        %v7539 = vpop.permute.xlu0 %7538
        %7540 = vrot.lane.b32.xlu0 %v7481, 72
        %v7541 = vpop.permute.xlu0 %7540
        %7542 = vrot.lane.b32.xlu0 %v7483, 72
        %v7543 = vpop.permute.xlu0 %7542
        %7547 = vrot.lane.b32.xlu0 %v7460, 64
        %v7548 = vpop.permute.xlu0 %7547
        %7549 = vrot.lane.b32.xlu0 %v7464, 64
        %v7550 = vpop.permute.xlu0 %7549
        %7551 = vrot.lane.b32.xlu0 %v7470, 64
        %v7552 = vpop.permute.xlu0 %7551
        %7556 = vrot.lane.b32.xlu0 %v7479, 56
        %v7557 = vpop.permute.xlu0 %7556
        %7558 = vrot.lane.b32.xlu0 %v7481, 56
        %v7559 = vpop.permute.xlu0 %7558
        %7560 = vrot.lane.b32.xlu0 %v7483, 56
        %v7561 = vpop.permute.xlu0 %7560
        %7565 = vrot.lane.b32.xlu0 %v7460, 48
        %v7566 = vpop.permute.xlu0 %7565
        %7567 = vrot.lane.b32.xlu0 %v7464, 48
        %v7568 = vpop.permute.xlu0 %7567
        %7569 = vrot.lane.b32.xlu0 %v7470, 48
        %v7570 = vpop.permute.xlu0 %7569
        %7574 = vrot.lane.b32.xlu0 %v7479, 40
        %v7575 = vpop.permute.xlu0 %7574
        %7576 = vrot.lane.b32.xlu0 %v7481, 40
        %v7577 = vpop.permute.xlu0 %7576
        %7578 = vrot.lane.b32.xlu0 %v7483, 40
        %v7579 = vpop.permute.xlu0 %7578
        %7583 = vrot.lane.b32.xlu0 %v7460, 32
        %v7584 = vpop.permute.xlu0 %7583
        %7585 = vrot.lane.b32.xlu0 %v7464, 32
        %v7586 = vpop.permute.xlu0 %7585
        %7587 = vrot.lane.b32.xlu0 %v7470, 32
        %v7588 = vpop.permute.xlu0 %7587
        %7592 = vrot.lane.b32.xlu0 %v7479, 24
        %v7593 = vpop.permute.xlu0 %7592
        %7594 = vrot.lane.b32.xlu0 %v7481, 24
        %v7595 = vpop.permute.xlu0 %7594
        %7596 = vrot.lane.b32.xlu0 %v7483, 24
        %v7597 = vpop.permute.xlu0 %7596
        %7601 = vrot.lane.b32.xlu0 %v7460, 16
        %v7602 = vpop.permute.xlu0 %7601
        %7603 = vrot.lane.b32.xlu0 %v7464, 16
        %v7604 = vpop.permute.xlu0 %7603
        %7605 = vrot.lane.b32.xlu0 %v7470, 16
        %v7606 = vpop.permute.xlu0 %7605
        %7610 = vrot.lane.b32.xlu0 %v7479, 8
        %v7611 = vpop.permute.xlu0 %7610
        %7612 = vrot.lane.b32.xlu0 %v7481, 8
        %v7613 = vpop.permute.xlu0 %7612
        %7614 = vrot.lane.b32.xlu0 %v7483, 8
        %v7615 = vpop.permute.xlu0 %7614
        %v7619 = vsel %vm655, %v7470, %v7485
        %v7620 = vsel %vm655, %v7498, %v7503
        %v7621 = vsel %vm655, %v7516, %v7521
        %v7622 = vsel %vm655, %v7534, %v7539
        %v7623 = vsel %vm655, %v7552, %v7557
        %v7624 = vsel %vm655, %v7570, %v7575
        %v7625 = vsel %vm655, %v7588, %v7593
        %v7626 = vsel %vm655, %v7606, %v7611
        %v7630 = vrot.slane %v7462, 4
        %v7631 = vrot.slane %v7466, 4
        %v7632 = vsel %vm655, %v7630, %v7631
        %v7633 = vrot.slane %v7472, 4
        %v7634 = vsel %vm655, %v7631, %v7633
        %7635 = vrot.lane.b32.xlu0 %v7630, 120
        %v7636 = vpop.permute.xlu0 %7635
        %7637 = vrot.lane.b32.xlu0 %v7632, 120
        %v7638 = vpop.permute.xlu0 %7637
        %7639 = vrot.lane.b32.xlu0 %v7634, 120
        %v7640 = vpop.permute.xlu0 %7639
        %7644 = vrot.lane.b32.xlu0 %v7462, 112
        %v7645 = vpop.permute.xlu0 %7644
        %7646 = vrot.lane.b32.xlu0 %v7466, 112
        %v7647 = vpop.permute.xlu0 %7646
        %7648 = vrot.lane.b32.xlu0 %v7472, 112
        %v7649 = vpop.permute.xlu0 %7648
        %7653 = vrot.lane.b32.xlu0 %v7630, 104
        %v7654 = vpop.permute.xlu0 %7653
        %7655 = vrot.lane.b32.xlu0 %v7632, 104
        %v7656 = vpop.permute.xlu0 %7655
        %7657 = vrot.lane.b32.xlu0 %v7634, 104
        %v7658 = vpop.permute.xlu0 %7657
        %7662 = vrot.lane.b32.xlu0 %v7462, 96
        %v7663 = vpop.permute.xlu0 %7662
        %7664 = vrot.lane.b32.xlu0 %v7466, 96
        %v7665 = vpop.permute.xlu0 %7664
        %7666 = vrot.lane.b32.xlu0 %v7472, 96
        %v7667 = vpop.permute.xlu0 %7666
        %7671 = vrot.lane.b32.xlu0 %v7630, 88
        %v7672 = vpop.permute.xlu0 %7671
        %7673 = vrot.lane.b32.xlu0 %v7632, 88
        %v7674 = vpop.permute.xlu0 %7673
        %7675 = vrot.lane.b32.xlu0 %v7634, 88
        %v7676 = vpop.permute.xlu0 %7675
        %7680 = vrot.lane.b32.xlu0 %v7462, 80
        %v7681 = vpop.permute.xlu0 %7680
        %7682 = vrot.lane.b32.xlu0 %v7466, 80
        %v7683 = vpop.permute.xlu0 %7682
        %7684 = vrot.lane.b32.xlu0 %v7472, 80
        %v7685 = vpop.permute.xlu0 %7684
        %7689 = vrot.lane.b32.xlu0 %v7630, 72
        %v7690 = vpop.permute.xlu0 %7689
        %7691 = vrot.lane.b32.xlu0 %v7632, 72
        %v7692 = vpop.permute.xlu0 %7691
        %7693 = vrot.lane.b32.xlu0 %v7634, 72
        %v7694 = vpop.permute.xlu0 %7693
        %7698 = vrot.lane.b32.xlu0 %v7462, 64
        %v7699 = vpop.permute.xlu0 %7698
        %7700 = vrot.lane.b32.xlu0 %v7466, 64
        %v7701 = vpop.permute.xlu0 %7700
        %7702 = vrot.lane.b32.xlu0 %v7472, 64
        %v7703 = vpop.permute.xlu0 %7702
        %v7706 = vsel %vm655, %v7472, %v7636
        %v7707 = vsel %vm655, %v7649, %v7654
        %v7708 = vsel %vm655, %v7667, %v7672
        %v7709 = vsel %vm655, %v7685, %v7690
        %v7710 = vld [vmem:[%s10] sm:$0xff]
        %v7711 = vld [vmem:[%s10 + $0x8] sm:$0xff]
        %v7712 = vld [vmem:[%s10 + $0x10] sm:$0xff]
        %v7713 = vld [vmem:[%s10 + $0x18] sm:$0xff]
        %v7714 = vld [vmem:[%s10 + $0x20] sm:$0x3]
        %v7715 = vld [vmem:[%s10 + $0x28] sm:$0x3]
        %v7716 = vld [vmem:[%s10 + $0x30] sm:$0x3]
        %v7717 = vld [vmem:[%s10 + $0x38] sm:$0x3]
        %v7718 = vld [vmem:[%s11] sm:$0xff]
        %v7719 = vld [vmem:[%s11 + $0x8] sm:$0x3]
        %7721 = vset.pattern.permute.xlu0 0
        %7722 = vperm.xlu0 %7721, %v7718
        %v7723 = vpop.permute.xlu0 %7722
        %7726 = vset.pattern.permute.xlu0 0
        %7727 = vperm.xlu0 %7726, %v7719
        %v7728 = vpop.permute.xlu0 %7727
        %vm7730 = vcmask 949248
        %v7732 = vsel %vm7730, %v7713, 0
        %v7735 = vsel %vm7730, %v7717, 0
        %v7737 = vsel %vm655, %v7703, 0
        %7739 = vmatprep.subr.mxu0 0.0
        %7740 = vmatpush1.msra.mxu0 %v7460
        %7741 = vmatprep.subr.mxu0 0.0
        %7742 = vmatpush1.msra.mxu0 %v7464
        %7743 = vmatprep.subr.mxu0 0.0
        %7744 = vmatpush1.msra.mxu0 %v7619
        %7745 = vmatprep.subr.mxu0 0.0
        %7746 = vmatpush1.msra.mxu0 %v7487
        %7747 = vmatprep.subr.mxu0 0.0
        %7748 = vmatpush1.msra.mxu0 %v7489
        %7749 = vmatprep.subr.mxu0 0.0
        %7750 = vmatpush1.msra.mxu0 %v7494
        %7751 = vmatprep.subr.mxu0 0.0
        %7752 = vmatpush1.msra.mxu0 %v7496
        %7753 = vmatprep.subr.mxu0 0.0
        %7754 = vmatpush1.msra.mxu0 %v7620
        %7755 = vmatprep.subr.mxu0 0.0
        %7756 = vmatpush1.msra.mxu0 %v7505
        %7757 = vmatprep.subr.mxu0 0.0
        %7758 = vmatpush1.msra.mxu0 %v7507
        %7759 = vmatprep.subr.mxu0 0.0
        %7760 = vmatpush1.msra.mxu0 %v7512
        %7761 = vmatprep.subr.mxu0 0.0
        %7762 = vmatpush1.msra.mxu0 %v7514
        %7763 = vmatprep.subr.mxu0 0.0
        %7764 = vmatpush1.msra.mxu0 %v7621
        %7765 = vmatprep.subr.mxu0 0.0
        %7766 = vmatpush1.msra.mxu0 %v7523
        %7767 = vmatprep.subr.mxu0 0.0
        %7768 = vmatpush1.msra.mxu0 %v7525
        %7769 = vmatprep.subr.mxu0 0.0
        %7770 = vmatpush1.msra.mxu0 %v7530
        %7771 = vmatprep.subr.mxu0 0.0
        %7772 = vmatpush1.msra.mxu0 %v7532
        %7773 = vmatprep.subr.mxu0 0.0
        %7774 = vmatpush1.msra.mxu0 %v7622
        %7775 = vmatprep.subr.mxu0 0.0
        %7776 = vmatpush1.msra.mxu0 %v7541
        %7777 = vmatprep.subr.mxu0 0.0
        %7778 = vmatpush1.msra.mxu0 %v7543
        %7779 = vmatprep.subr.mxu0 0.0
        %7780 = vmatpush1.msra.mxu0 %v7548
        %7781 = vmatprep.subr.mxu0 0.0
        %7782 = vmatpush1.msra.mxu0 %v7550
        %7783 = vmatprep.subr.mxu0 0.0
        %7784 = vmatpush1.msra.mxu0 %v7623
        %7785 = vmatprep.subr.mxu0 0.0
        %7786 = vmatpush1.msra.mxu0 %v7559
        %7787 = vmatprep.subr.mxu0 0.0
        %7788 = vmatpush1.msra.mxu0 %v7561
        %7789 = vmatprep.subr.mxu0 0.0
        %7790 = vmatpush1.msra.mxu0 %v7566
        %7791 = vmatprep.subr.mxu0 0.0
        %7792 = vmatpush1.msra.mxu0 %v7568
        %7793 = vmatprep.subr.mxu0 0.0
        %7794 = vmatpush1.msra.mxu0 %v7624
        %7795 = vmatprep.subr.mxu0 0.0
        %7796 = vmatpush1.msra.mxu0 %v7577
        %7797 = vmatprep.subr.mxu0 0.0
        %7798 = vmatpush1.msra.mxu0 %v7579
        %7799 = vmatprep.subr.mxu0 0.0
        %7800 = vmatpush1.msra.mxu0 %v7584
        %7801 = vmatprep.subr.mxu0 0.0
        %7802 = vmatpush1.msra.mxu0 %v7586
        %7803 = vmatprep.mubr.f32.mxu0 %v7711
        %7804 = vmatmul.mubr.f32.gmra.mrb[0].mxu0 %v7710
        %v7805 = vpop.f32.mrb[0].mxu0
        %v7806 = vadd.f32 %v7723, %v7805
        %v7807 = vpop.f32.mrb[0].mxu0
        %7808 = vmatprep.mubr.f32.mxu0 %v7715
        %7809 = vmatmul.mubr.f32.gmra.mrb[0].mxu0 %v7714
        %v7810 = vpop.f32.mrb[0].mxu0
        %v7811 = vadd.f32 %v7728, %v7810
        %v7812 = vpop.f32.mrb[0].mxu0
        %7813 = vdwg.mxu0
        %7814 = vmatprep.subr.mxu0 0.0
        %7815 = vmatpush1.msra.mxu0 %v7625
        %7816 = vmatprep.subr.mxu0 0.0
        %7817 = vmatpush1.msra.mxu0 %v7595
        %7818 = vmatprep.subr.mxu0 0.0
        %7819 = vmatpush1.msra.mxu0 %v7597
        %7820 = vmatprep.subr.mxu0 0.0
        %7821 = vmatpush1.msra.mxu0 %v7602
        %7822 = vmatprep.subr.mxu0 0.0
        %7823 = vmatpush1.msra.mxu0 %v7604
        %7824 = vmatprep.subr.mxu0 0.0
        %7825 = vmatpush1.msra.mxu0 %v7626
        %7826 = vmatprep.subr.mxu0 0.0
        %7827 = vmatpush1.msra.mxu0 %v7613
        %7828 = vmatprep.subr.mxu0 0.0
        %7829 = vmatpush1.msra.mxu0 %v7615
        %7830 = vmatprep.subr.mxu0 0.0
        %7831 = vmatpush1.msra.mxu0 %v7462
        %7832 = vmatprep.subr.mxu0 0.0
        %7833 = vmatpush1.msra.mxu0 %v7466
        %7834 = vmatprep.subr.mxu0 0.0
        %7835 = vmatpush1.msra.mxu0 %v7706
        %7836 = vmatprep.subr.mxu0 0.0
        %7837 = vmatpush1.msra.mxu0 %v7638
        %7838 = vmatprep.subr.mxu0 0.0
        %7839 = vmatpush1.msra.mxu0 %v7640
        %7840 = vmatprep.subr.mxu0 0.0
        %7841 = vmatpush1.msra.mxu0 %v7645
        %7842 = vmatprep.subr.mxu0 0.0
        %7843 = vmatpush1.msra.mxu0 %v7647
        %7844 = vmatprep.subr.mxu0 0.0
        %7845 = vmatpush1.msra.mxu0 %v7707
        %7846 = vmatprep.subr.mxu0 0.0
        %7847 = vmatpush1.msra.mxu0 %v7656
        %7848 = vmatprep.subr.mxu0 0.0
        %7849 = vmatpush1.msra.mxu0 %v7658
        %7850 = vmatprep.subr.mxu0 0.0
        %7851 = vmatpush1.msra.mxu0 %v7663
        %7852 = vmatprep.subr.mxu0 0.0
        %7853 = vmatpush1.msra.mxu0 %v7665
        %7854 = vmatprep.subr.mxu0 0.0
        %7855 = vmatpush1.msra.mxu0 %v7708
        %7856 = vmatprep.subr.mxu0 0.0
        %7857 = vmatpush1.msra.mxu0 %v7674
        %7858 = vmatprep.subr.mxu0 0.0
        %7859 = vmatpush1.msra.mxu0 %v7676
        %7860 = vmatprep.subr.mxu0 0.0
        %7861 = vmatpush1.msra.mxu0 %v7681
        %7862 = vmatprep.subr.mxu0 0.0
        %7863 = vmatpush1.msra.mxu0 %v7683
        %7864 = vmatprep.subr.mxu0 0.0
        %7865 = vmatpush1.msra.mxu0 %v7709
        %7866 = vmatprep.subr.mxu0 0.0
        %7867 = vmatpush1.msra.mxu0 %v7692
        %7868 = vmatprep.subr.mxu0 0.0
        %7869 = vmatpush1.msra.mxu0 %v7694
        %7870 = vmatprep.subr.mxu0 0.0
        %7871 = vmatpush1.msra.mxu0 %v7699
        %7872 = vmatprep.subr.mxu0 0.0
        %7873 = vmatpush1.msra.mxu0 %v7701
        %7874 = vmatprep.subr.mxu0 0.0
        %7875 = vmatpush1.msra.mxu0 %v7737
        %7876 = vmatprep.subr.mxu0 0.0
        %7877 = vmatpush1.msra.mxu0 0.0
        %7878 = vmatprep.mubr.f32.mxu0 %v7732
        %7879 = vmatmul.mubr.f32.gmra.mrb[0].mxu0 %v7712
        %v7880 = vpop.f32.mrb[0].mxu0
        %v7881 = vadd.f32 %v7806, %v7880
        %v7882 = vpop.f32.mrb[0].mxu0
        %7883 = vmatprep.mubr.f32.mxu0 %v7735
        %7884 = vmatmul.mubr.f32.gmra.mrb[0].mxu0 %v7716
        %v7885 = vpop.f32.mrb[0].mxu0
        %v7886 = vadd.f32 %v7811, %v7885
        %v7887 = vpop.f32.mrb[0].mxu0
        %7888 = vdwg.mxu0
        %7889 = vst.msk [vmem:[%s572] sm:$0xff] %vm1909, %v7881
        %vm7890 = vcmask 58368
        %7891 = vst.msk [vmem:[%s572 + $0x8] sm:$0x3] %vm7890, %v7886
        %p7892 = scmp.lt.s32.totalorder %s23, 1
        %s7893 = scalar_select %p7892, %s23, 1
        %s7894 = smul.addr %s7893, 2
        %s7895 = smul.addr %s7894, 8
        %s7896 = scalar_lea.vmem %s12, %s7895
        // Predicated region
        $region92: #{net1_forward.1} parent=86 // pred_check
          %p7897 = pneg %p298
        $region93: #{net1_forward.1} parent=86 // pred_check_branch
          %7899 = sbr.rel (%p7897) target = $region95
        $region94: #{net1_forward.1} parent=86 // pred_region
          _
        $region95: #{net1_forward.1} parent=86 // pred_fallthru
          _
      $region87: #{net1_forward.1} parent=5 // pred_fallthru
        _
      %p7900 = scmp.le.s32.totalorder 2, %s18
      // Predicated region
      $region96: #{net1_forward.1} parent=5 // pred_check
        %p7901 = pneg %p7900
      $region97: #{net1_forward.1} parent=5 // pred_check_branch
        %7903 = sbr.rel (%p7901) target = $region99
      $region98: #{net1_forward.1} parent=5 // pred_region
        %s7904 = ssub.s32 %s18, 2
        // Predicated region
        $region100: #{net1_forward.1} parent=98 // pred_check
          %p7905 = pneg %p304
        $region101: #{net1_forward.1} parent=98 // pred_check_branch
          %7907 = sbr.rel (%p7905) target = $region103
        $region102: #{net1_forward.1} parent=98 // pred_region
          %p7908 = scmp.lt.s32.totalorder %s24, 1
          %s7909 = scalar_select %p7908, %s24, 1
          %s7910 = smul.addr %s7909, 2
          %s7911 = smul.addr %s7910, 8
          %s7912 = scalar_lea.vmem %s12, %s7911
        $region103: #{net1_forward.1} parent=98 // pred_fallthru
          _
      $region99: #{net1_forward.1} parent=5 // pred_fallthru
        _
    $region6: #{net1_forward.1} parent=1 // loop_footer
      %s22 = sadd.s32 1, %s18
    $region7: #{net1_forward.1} parent=1 // loop_footer_branch
      %17 = sbr.rel target = $region3
    $region8: #{net1_forward.1} parent=1 // loop_exit
      _

</llo_original>
